<compile_context>
chip_gen: v7x
topology: tpu7x:2x2x1
jax: 0.10.0
libtpu: 0.0.40
codegen_flags: <defaults>
</compile_context>

<pallas_src>
import functools

import jax
import jax.numpy as jnp
import numpy as np
from jax.experimental import pallas as pl
from jax.experimental.pallas import tpu as pltpu

KSIZE = 7
PAD = 3
W_OFF = 8          # sublane-aligned column offset of the interior in the halo scratch
LANE = 128


def _round_up(n, m):
    return ((n + m - 1) // m) * m


def _gelu_exact(x):
    # nn.GELU() default = exact erf-based GELU (used by the pure-JAX reference only).
    return 0.5 * x * (1.0 + jax.lax.erf(x * jnp.float32(1.0 / np.sqrt(2.0))))


def block_kernel(x_ref, dw_w_ref, dw_b_ref, ln_w_ref, ln_b_ref,
                 w1_ref, b1_ref, gamma_ref, beta_ref, w2_ref, b2_ref,
                 y_ref, xpad_s, acc_s, *, c_true, c4_true, z_dtype):
    # x_ref / y_ref block: (1, H, W, Cp)   (channels-last, lane-padded)
    # xpad_s scratch:      (H+6, W+16, Cp) f32, interior at (row PAD, col W_OFF)
    # acc_s scratch:       (H, W, Cp)      f32 dwconv accumulator
    _, H, W, Cp = y_ref.shape
    Hp, WPs, _ = xpad_s.shape

    # ---- stage the input + 3-pixel halo in VMEM ----
    # Interior at column offset W_OFF (=8) -> dense, sublane-aligned store.  Only the
    # border strips are zeroed, and they are zeroed every grid step so the scratch is
    # valid on every core no matter how a "parallel" grid axis is split.
    xpad_s[0:PAD] = jnp.zeros((PAD, WPs, Cp), jnp.float32)
    xpad_s[PAD + H:Hp] = jnp.zeros((Hp - PAD - H, WPs, Cp), jnp.float32)
    xpad_s[PAD:PAD + H, 0:W_OFF] = jnp.zeros((H, W_OFF, Cp), jnp.float32)
    xpad_s[PAD:PAD + H, W_OFF + W:WPs] = jnp.zeros((H, WPs - W_OFF - W, Cp), jnp.float32)
    xpad_s[PAD:PAD + H, W_OFF:W_OFF + W] = x_ref[0]

    # ---- depthwise 7x7 conv ----
    # Accumulator initialized with the bias; the fori over kw keeps exactly one shifted
    # (Hp, W, Cp) copy of the padded input live at a time.
    acc_s[...] = jnp.broadcast_to(dw_b_ref[0], (H, W, Cp))

    def kw_body(kw, carry):
        xs = xpad_s[:, pl.ds(W_OFF - PAD + kw, W), :]       # (Hp, W, Cp)
        wk = dw_w_ref[kw]                                    # (KSIZE, Cp), kw-major layout
        t = xs[0:H] * wk[0]
        for kh in range(1, KSIZE):                           # cheap leading-axis slices
            t = t + xs[kh:kh + H] * wk[kh]
        acc_s[...] = acc_s[...] + t
        return carry

    jax.lax.fori_loop(0, KSIZE, kw_body, 0)
    acc = acc_s[...]                                         # (H, W, Cp) f32

    # ---- LayerNorm over the true channels (channels_last, eps=1e-6), f32, mask-free ----
    # Padded lanes of acc are exactly zero (zero-padded input / weights / bias), so the
    # sums only see the true channels; E[x^2]-E[x]^2 avoids the per-lane mask multiply.
    inv_c = jnp.float32(1.0 / c_true)
    mu = jnp.sum(acc, axis=-1, keepdims=True) * inv_c
    var = jnp.maximum(jnp.sum(acc * acc, axis=-1, keepdims=True) * inv_c - mu * mu, 0.0)
    hn = (acc - mu) * jax.lax.rsqrt(var + 1e-6) * ln_w_ref[0] + ln_b_ref[0]

    # ---- pwconv1 as one dense 2-D MXU matmul (bf16 operands, f32 accumulation) ----
    hn2d = hn.reshape(H * W, Cp).astype(jnp.bfloat16)
    z = (jnp.dot(hn2d, w1_ref[...], preferred_element_type=jnp.float32)
         + b1_ref[0]).astype(z_dtype)                        # (H*W, Dp)

    # ---- GELU: tanh approximation (routes to the EUP slot instead of a VPU erf poly) ----
    z = jax.nn.gelu(z, approximate=True)

    # ---- GRN: f32 sum-of-squares reduction, fused affine z*(gamma*nx + 1) + beta ----
    zf = z.astype(jnp.float32)
    gx = jnp.sqrt(jnp.sum(zf * zf, axis=0, keepdims=True))   # (1, Dp); padded lanes -> 0
    gmean = jnp.sum(gx, axis=-1, keepdims=True) * jnp.float32(1.0 / c4_true)
    nx = gx / (gmean + 1e-6)
    s = (gamma_ref[0] * nx + 1.0).astype(z_dtype)            # (1, Dp)
    z = z * s + beta_ref[0].astype(z_dtype)

    # ---- pwconv2 (bf16 operands, f32 accum) + residual (re-read the input block) ----
    out = jnp.dot(z.astype(jnp.bfloat16), w2_ref[...],
                  preferred_element_type=jnp.float32) + b2_ref[0]
    y_ref[0] = out.reshape(H, W, Cp) + x_ref[0]


def _pad_last(a, n):
    return jnp.pad(a, [(0, 0)] * (a.ndim - 1) + [(0, n - a.shape[-1])])


def _pad_params(p, C, C4, Cp, Dp):
    return {
        # dw weight stored kw-major (kw, kh, C) so the kernel's fori over kw indexes the
        # cheap leading dim dynamically.
        "dw_w": _pad_last(jnp.transpose(p["dw_w"], (1, 0, 2)), Cp),
        "dw_b": _pad_last(p["dw_b"], Cp),
        "ln_w": _pad_last(p["ln_w"], Cp),
        "ln_b": _pad_last(p["ln_b"], Cp),
        "w1": jnp.pad(p["w1"], ((0, Cp - C), (0, Dp - C4))).astype(jnp.bfloat16),
        "b1": _pad_last(p["b1"], Dp),
        "gamma": _pad_last(p["gamma"], Dp),
        "beta": _pad_last(p["beta"], Dp),
        "w2": jnp.pad(p["w2"], ((0, Dp - C4), (0, Cp - C))).astype(jnp.bfloat16),
        "b2": _pad_last(p["b2"], Cp),
    }


def _tpu_defaults():
    """Best-effort query: (physical VMEM bytes, has packed-bf16 VPU)."""
    vmem_cap = 128 * 2 ** 20
    bf16_vpu = True
    try:
        info = pltpu.get_tpu_info()
        vmem_cap = int(getattr(info, "vmem_capacity_bytes", vmem_cap))
        ver = str(getattr(info, "chip_version", "")).lower()
        if ("v5" in ver) or ("v4" in ver) or ("v3" in ver) or ("v2" in ver):
            bf16_vpu = False          # no packed-bf16 VPU on v5e and older
    except Exception:
        pass
    return vmem_cap, bf16_vpu


def _vmem_bytes_estimate(H, W, Cp, Dp, z_bytes):
    f32 = 4
    Hp, WPs = H + 2 * PAD, W + 2 * W_OFF
    n = 0
    n += 2 * 2 * H * W * Cp * f32            # x / y blocks, double-buffered
    n += Hp * WPs * Cp * f32                 # halo scratch
    n += H * W * Cp * f32                    # dwconv accumulator scratch
    n += (Hp + H) * W * Cp * f32             # live dwconv loop temporaries (slice + tap sum)
    n += 2 * H * W * Cp * f32                # LayerNorm temporaries
    n += H * W * Cp * 2                      # bf16 matmul operand
    n += 2 * H * W * Dp * z_bytes            # z through GELU / GRN
    n += H * W * Dp * f32                    # f32 temp for GRN sum-of-squares
    n += 2 * 2 * (Cp * Dp + Dp * Cp)         # bf16 w1 / w2 (worst case double-buffered)
    n += 2 * f32 * (KSIZE * KSIZE * Cp + 4 * Cp + 4 * Dp)   # small params
    return n


def convnext_block(x_nchw, params):
    """x_nchw: (B, C, H, W) float32.  Returns (B, C, H, W) float32."""
    B, C, H, W = x_nchw.shape
    C4 = 4 * C
    Cp = _round_up(C, LANE)
    Dp = _round_up(C4, LANE)
    Hp, WPs = H + 2 * PAD, W + 2 * W_OFF

    vmem_cap, bf16_vpu = _tpu_defaults()
    z_dtype = jnp.bfloat16 if bf16_vpu else jnp.float32

    # NCHW -> NHWC + lane (channel) padding only; the spatial halo for the 7x7 dwconv is
    # built inside VMEM (no padded HBM round trip).
    x_nhwc = jnp.transpose(x_nchw, (0, 2, 3, 1))
    x_p = _pad_last(x_nhwc, Cp)
    pp = _pad_params(params, C, C4, Cp, Dp)

    est = _vmem_bytes_estimate(H, W, Cp, Dp, jnp.dtype(z_dtype).itemsize)
    vmem_limit = int(min(min(56 * 2 ** 20, (3 * vmem_cap) // 4),
                         max(32 * 2 ** 20, 2 * est)))

    kernel = functools.partial(block_kernel, c_true=C, c4_true=C4, z_dtype=z_dtype)

    def call(single_buffer_params):
        def pspec(shape):
            idx = lambda b: (0,) * len(shape)
            if single_buffer_params:
                # grid-invariant parameters never re-fetch -> single buffer saves VMEM
                return pl.BlockSpec(shape, idx, pipeline_mode=pl.Buffered(1))
            return pl.BlockSpec(shape, idx)

        in_specs = [
            pl.BlockSpec((1, H, W, Cp), lambda b: (b, 0, 0, 0)),   # input block
            pspec((KSIZE, KSIZE, Cp)),                             # dw weight (kw-major)
            pspec((1, Cp)),                                        # dw bias
            pspec((1, Cp)),                                        # ln weight
            pspec((1, Cp)),                                        # ln bias
            pspec((Cp, Dp)),                                       # w1 (bf16)
            pspec((1, Dp)),                                        # b1
            pspec((1, Dp)),                                        # grn gamma
            pspec((1, Dp)),                                        # grn beta
            pspec((Dp, Cp)),                                       # w2 (bf16)
            pspec((1, Cp)),                                        # b2
        ]
        out_specs = pl.BlockSpec((1, H, W, Cp), lambda b: (b, 0, 0, 0))

        return pl.pallas_call(
            kernel,
            out_shape=jax.ShapeDtypeStruct((B, H, W, Cp), jnp.float32),
            grid=(B,),
            in_specs=in_specs,
            out_specs=out_specs,
            scratch_shapes=[pltpu.VMEM((Hp, WPs, Cp), jnp.float32),   # halo scratch
                            pltpu.VMEM((H, W, Cp), jnp.float32)],     # dwconv accumulator
            compiler_params=pltpu.CompilerParams(
                dimension_semantics=("parallel",),
                vmem_limit_bytes=vmem_limit),
        )(x_p,
          pp["dw_w"], pp["dw_b"], pp["ln_w"], pp["ln_b"],
          pp["w1"], pp["b1"], pp["gamma"], pp["beta"], pp["w2"], pp["b2"])

    # TODO(synk): for stage-1 ConvNeXt activations on v7x (H*W*4C f32 ~ 40-50 MB), add an
    # H-tile grid axis with a 3-row halo and a two-pass GRN (pass 1 accumulates per-channel
    # sum(z^2) across tiles in scratch; pass 2 applies nx + pwconv2 + residual).
    try:
        y_p = call(True)          # single-buffer the grid-invariant parameter blocks
    except Exception:             # pl.Buffered(1) unsupported -> default double buffering
        y_p = call(False)

    y_nhwc = y_p[..., :C]
    return jnp.transpose(y_nhwc, (0, 3, 1, 2))


def ref_block(x_nchw, params):
    """Pure-JAX f32 reference of the same forward pass (for verification)."""
    x = jnp.transpose(x_nchw, (0, 2, 3, 1))                     # NHWC
    C = x.shape[-1]
    dw = params["dw_w"].reshape(KSIZE, KSIZE, 1, C)             # HWIO, depthwise
    h = jax.lax.conv_general_dilated(
        x, dw, window_strides=(1, 1), padding=((PAD, PAD), (PAD, PAD)),
        dimension_numbers=("NHWC", "HWIO", "NHWC"),
        feature_group_count=C) + params["dw_b"][0]
    mu = jnp.mean(h, axis=-1, keepdims=True)
    var = jnp.mean((h - mu) ** 2, axis=-1, keepdims=True)
    h = (h - mu) / jnp.sqrt(var + 1e-6) * params["ln_w"][0] + params["ln_b"][0]
    z = h @ params["w1"] + params["b1"][0]
    z = _gelu_exact(z)
    gx = jnp.sqrt(jnp.sum(z * z, axis=(1, 2), keepdims=True))
    nx = gx / (jnp.mean(gx, axis=-1, keepdims=True) + 1e-6)
    z = params["gamma"][0] * (z * nx) + params["beta"][0] + z
    out = z @ params["w2"] + params["b2"][0]
    return x_nchw + jnp.transpose(out, (0, 3, 1, 2))


def make_params(key, dim):
    C, C4 = dim, 4 * dim
    ks = jax.random.split(key, 10)
    return {
        "dw_w": 0.1 * jax.random.normal(ks[0], (KSIZE, KSIZE, C), jnp.float32),
        "dw_b": 0.1 * jax.random.normal(ks[1], (1, C), jnp.float32),
        "ln_w": 1.0 + 0.05 * jax.random.normal(ks[2], (1, C), jnp.float32),
        "ln_b": 0.05 * jax.random.normal(ks[3], (1, C), jnp.float32),
        "w1": 0.1 * jax.random.normal(ks[4], (C, C4), jnp.float32),
        "b1": 0.1 * jax.random.normal(ks[5], (1, C4), jnp.float32),
        "gamma": 0.1 * jax.random.normal(ks[6], (1, C4), jnp.float32),
        "beta": 0.1 * jax.random.normal(ks[7], (1, C4), jnp.float32),
        "w2": 0.1 * jax.random.normal(ks[8], (C4, C), jnp.float32),
        "b2": 0.1 * jax.random.normal(ks[9], (1, C), jnp.float32),
    }


if __name__ == "__main__":
    key = jax.random.PRNGKey(0)
    kx, kp = jax.random.split(key)

    B, C, H, W = 2, 4, 16, 16
    x = jax.random.normal(kx, (B, C, H, W), jnp.float32)
    params = make_params(kp, C)

    y = jax.block_until_ready(convnext_block(x, params))
    y_ref = jax.block_until_ready(ref_block(x, params))

    # Kernel uses bf16 MXU operands (f32 accumulation), a bf16 elementwise z-path on
    # bf16-VPU chips, and tanh-approx GELU vs. the pure-f32 / exact-erf reference, so
    # allow bf16-level tolerance.
    np.testing.assert_allclose(np.asarray(y), np.asarray(y_ref),
                               rtol=1e-2, atol=1e-2)

    print("KERNEL_OK")
</pallas_src>

<mosaic_0001>
module attributes {stable_mosaic.version = 11 : i64} {
  func.func @block_kernel(%arg0: i32, %arg1: memref<1x16x16x128xf32, #tpu.memory_space<vmem>>, %arg2: memref<7x7x128xf32, #tpu.memory_space<vmem>>, %arg3: memref<1x128xf32, #tpu.memory_space<vmem>>, %arg4: memref<1x128xf32, #tpu.memory_space<vmem>>, %arg5: memref<1x128xf32, #tpu.memory_space<vmem>>, %arg6: memref<128x128xbf16, #tpu.memory_space<vmem>>, %arg7: memref<1x128xf32, #tpu.memory_space<vmem>>, %arg8: memref<1x128xf32, #tpu.memory_space<vmem>>, %arg9: memref<1x128xf32, #tpu.memory_space<vmem>>, %arg10: memref<128x128xbf16, #tpu.memory_space<vmem>>, %arg11: memref<1x128xf32, #tpu.memory_space<vmem>>, %arg12: memref<1x16x16x128xf32, #tpu.memory_space<vmem>>, %arg13: memref<22x32x128xf32, #tpu.memory_space<vmem>>, %arg14: memref<16x16x128xf32, #tpu.memory_space<vmem>>) attributes {dimension_semantics = [#tpu.dimension_semantics<parallel>], iteration_bounds = array<i64: 2>, scalar_prefetch = 0 : i64, scratch_operands = 2 : i64, tpu.core_type = #tpu.core_type<tc>, window_params = [{transform_indices = @transform_0, window_bounds = array<i64: 1, 16, 16, 128>}, {pipeline_mode = #tpu.pipeline_mode<synchronous>, transform_indices = @transform_1, window_bounds = array<i64: 7, 7, 128>}, {pipeline_mode = #tpu.pipeline_mode<synchronous>, transform_indices = @transform_2, window_bounds = array<i64: 1, 128>}, {pipeline_mode = #tpu.pipeline_mode<synchronous>, transform_indices = @transform_3, window_bounds = array<i64: 1, 128>}, {pipeline_mode = #tpu.pipeline_mode<synchronous>, transform_indices = @transform_4, window_bounds = array<i64: 1, 128>}, {pipeline_mode = #tpu.pipeline_mode<synchronous>, transform_indices = @transform_5, window_bounds = array<i64: 128, 128>}, {pipeline_mode = #tpu.pipeline_mode<synchronous>, transform_indices = @transform_6, window_bounds = array<i64: 1, 128>}, {pipeline_mode = #tpu.pipeline_mode<synchronous>, transform_indices = @transform_7, window_bounds = array<i64: 1, 128>}, {pipeline_mode = #tpu.pipeline_mode<synchronous>, transform_indices = @transform_8, window_bounds = array<i64: 1, 128>}, {pipeline_mode = #tpu.pipeline_mode<synchronous>, transform_indices = @transform_9, window_bounds = array<i64: 128, 128>}, {pipeline_mode = #tpu.pipeline_mode<synchronous>, transform_indices = @transform_10, window_bounds = array<i64: 1, 128>}, {transform_indices = @transform_11, window_bounds = array<i64: 1, 16, 16, 128>}]} {
    %cst = arith.constant 0.000000e+00 : f32
    %0 = vector.broadcast %cst : f32 to vector<3x32x128xf32>
    %c0 = arith.constant 0 : index
    %c0_0 = arith.constant 0 : index
    %c0_1 = arith.constant 0 : index
    %1 = vector.load %arg13[%c0, %c0_0, %c0_1] : memref<22x32x128xf32, #tpu.memory_space<vmem>>, vector<3x32x128xf32>
    tpu.vector_store %arg13[%c0, %c0_0, %c0_1], %0 {strides = array<i32>} : memref<22x32x128xf32, #tpu.memory_space<vmem>>, vector<3x32x128xf32>,
    %cst_2 = arith.constant 0.000000e+00 : f32
    %2 = vector.broadcast %cst_2 : f32 to vector<3x32x128xf32>
    %c19 = arith.constant 19 : index
    %c0_3 = arith.constant 0 : index
    %c0_4 = arith.constant 0 : index
    %3 = vector.load %arg13[%c19, %c0_3, %c0_4] : memref<22x32x128xf32, #tpu.memory_space<vmem>>, vector<3x32x128xf32>
    tpu.vector_store %arg13[%c19, %c0_3, %c0_4], %2 {strides = array<i32>} : memref<22x32x128xf32, #tpu.memory_space<vmem>>, vector<3x32x128xf32>,
    %cst_5 = arith.constant 0.000000e+00 : f32
    %4 = vector.broadcast %cst_5 : f32 to vector<16x8x128xf32>
    %c3 = arith.constant 3 : index
    %c0_6 = arith.constant 0 : index
    %c0_7 = arith.constant 0 : index
    %5 = vector.load %arg13[%c3, %c0_6, %c0_7] : memref<22x32x128xf32, #tpu.memory_space<vmem>>, vector<16x8x128xf32>
    tpu.vector_store %arg13[%c3, %c0_6, %c0_7], %4 {strides = array<i32>} : memref<22x32x128xf32, #tpu.memory_space<vmem>>, vector<16x8x128xf32>,
    %cst_8 = arith.constant 0.000000e+00 : f32
    %6 = vector.broadcast %cst_8 : f32 to vector<16x8x128xf32>
    %c3_9 = arith.constant 3 : index
    %c24 = arith.constant 24 : index
    %c0_10 = arith.constant 0 : index
    %7 = vector.load %arg13[%c3_9, %c24, %c0_10] : memref<22x32x128xf32, #tpu.memory_space<vmem>>, vector<16x8x128xf32>
    tpu.vector_store %arg13[%c3_9, %c24, %c0_10], %6 {strides = array<i32>} : memref<22x32x128xf32, #tpu.memory_space<vmem>>, vector<16x8x128xf32>,
    %c0_11 = arith.constant 0 : index
    %c0_12 = arith.constant 0 : index
    %c0_13 = arith.constant 0 : index
    %c0_14 = arith.constant 0 : index
    %8 = vector.load %arg1[%c0_11, %c0_12, %c0_13, %c0_14] : memref<1x16x16x128xf32, #tpu.memory_space<vmem>>, vector<1x16x16x128xf32>
    %9 = vector.shape_cast %8 : vector<1x16x16x128xf32> to vector<16x16x128xf32>
    %c3_15 = arith.constant 3 : index
    %c8 = arith.constant 8 : index
    %c0_16 = arith.constant 0 : index
    %10 = vector.load %arg13[%c3_15, %c8, %c0_16] : memref<22x32x128xf32, #tpu.memory_space<vmem>>, vector<16x16x128xf32>
    tpu.vector_store %arg13[%c3_15, %c8, %c0_16], %9 {strides = array<i32>} : memref<22x32x128xf32, #tpu.memory_space<vmem>>, vector<16x16x128xf32>,
    %c0_17 = arith.constant 0 : index
    %c0_18 = arith.constant 0 : index
    %11 = vector.load %arg3[%c0_17, %c0_18] : memref<1x128xf32, #tpu.memory_space<vmem>>, vector<1x128xf32>
    %12 = vector.shape_cast %11 : vector<1x128xf32> to vector<128xf32>
    %13 = vector.shape_cast %12 : vector<128xf32> to vector<1x1x128xf32>
    %14 = vector.broadcast %13 : vector<1x1x128xf32> to vector<16x16x128xf32>
    %c0_19 = arith.constant 0 : index
    %c0_20 = arith.constant 0 : index
    %c0_21 = arith.constant 0 : index
    %15 = vector.load %arg14[%c0_19, %c0_20, %c0_21] : memref<16x16x128xf32, #tpu.memory_space<vmem>>, vector<16x16x128xf32>
    tpu.vector_store %arg14[%c0_19, %c0_20, %c0_21], %14 {strides = array<i32>} : memref<16x16x128xf32, #tpu.memory_space<vmem>>, vector<16x16x128xf32>,
    %c0_i32 = arith.constant 0 : i32
    %c7_i32 = arith.constant 7 : i32
    %16 = arith.addi %c0_i32, %c7_i32 : i32
    %c1_i32 = arith.constant 1 : i32
    scf.for %arg15 = %c0_i32 to %16 step %c1_i32  : i32 {
      %c5_i32 = arith.constant 5 : i32
      %113 = arith.addi %c5_i32, %arg15 : i32
      %c0_67 = arith.constant 0 : index
      %114 = arith.index_cast %113 : i32 to index
      %c0_68 = arith.constant 0 : index
      %115 = vector.load %arg13[%c0_67, %114, %c0_68] : memref<22x32x128xf32, #tpu.memory_space<vmem>>, vector<22x16x128xf32>
      %116 = arith.index_cast %arg15 : i32 to index
      %c0_69 = arith.constant 0 : index
      %c0_70 = arith.constant 0 : index
      %117 = vector.load %arg2[%116, %c0_69, %c0_70] : memref<7x7x128xf32, #tpu.memory_space<vmem>>, vector<1x7x128xf32>
      %118 = vector.shape_cast %117 : vector<1x7x128xf32> to vector<7x128xf32>
      %119 = vector.extract_strided_slice %115 {offsets = [0, 0, 0], sizes = [16, 16, 128], strides = [1, 1, 1]} : vector<22x16x128xf32> to vector<16x16x128xf32>
      %120 = vector.extract_strided_slice %118 {offsets = [0, 0], sizes = [1, 128], strides = [1, 1]} : vector<7x128xf32> to vector<1x128xf32>
      %121 = vector.shape_cast %120 : vector<1x128xf32> to vector<128xf32>
      %122 = vector.shape_cast %121 : vector<128xf32> to vector<1x1x128xf32>
      %123 = vector.broadcast %122 : vector<1x1x128xf32> to vector<16x16x128xf32>
      %124 = arith.mulf %119, %123 : vector<16x16x128xf32>
      %125 = vector.extract_strided_slice %115 {offsets = [1, 0, 0], sizes = [16, 16, 128], strides = [1, 1, 1]} : vector<22x16x128xf32> to vector<16x16x128xf32>
      %126 = vector.extract_strided_slice %118 {offsets = [1, 0], sizes = [1, 128], strides = [1, 1]} : vector<7x128xf32> to vector<1x128xf32>
      %127 = vector.shape_cast %126 : vector<1x128xf32> to vector<128xf32>
      %128 = vector.shape_cast %127 : vector<128xf32> to vector<1x1x128xf32>
      %129 = vector.broadcast %128 : vector<1x1x128xf32> to vector<16x16x128xf32>
      %130 = arith.mulf %125, %129 : vector<16x16x128xf32>
      %131 = arith.addf %124, %130 : vector<16x16x128xf32>
      %132 = vector.extract_strided_slice %115 {offsets = [2, 0, 0], sizes = [16, 16, 128], strides = [1, 1, 1]} : vector<22x16x128xf32> to vector<16x16x128xf32>
      %133 = vector.extract_strided_slice %118 {offsets = [2, 0], sizes = [1, 128], strides = [1, 1]} : vector<7x128xf32> to vector<1x128xf32>
      %134 = vector.shape_cast %133 : vector<1x128xf32> to vector<128xf32>
      %135 = vector.shape_cast %134 : vector<128xf32> to vector<1x1x128xf32>
      %136 = vector.broadcast %135 : vector<1x1x128xf32> to vector<16x16x128xf32>
      %137 = arith.mulf %132, %136 : vector<16x16x128xf32>
      %138 = arith.addf %131, %137 : vector<16x16x128xf32>
      %139 = vector.extract_strided_slice %115 {offsets = [3, 0, 0], sizes = [16, 16, 128], strides = [1, 1, 1]} : vector<22x16x128xf32> to vector<16x16x128xf32>
      %140 = vector.extract_strided_slice %118 {offsets = [3, 0], sizes = [1, 128], strides = [1, 1]} : vector<7x128xf32> to vector<1x128xf32>
      %141 = vector.shape_cast %140 : vector<1x128xf32> to vector<128xf32>
      %142 = vector.shape_cast %141 : vector<128xf32> to vector<1x1x128xf32>
      %143 = vector.broadcast %142 : vector<1x1x128xf32> to vector<16x16x128xf32>
      %144 = arith.mulf %139, %143 : vector<16x16x128xf32>
      %145 = arith.addf %138, %144 : vector<16x16x128xf32>
      %146 = vector.extract_strided_slice %115 {offsets = [4, 0, 0], sizes = [16, 16, 128], strides = [1, 1, 1]} : vector<22x16x128xf32> to vector<16x16x128xf32>
      %147 = vector.extract_strided_slice %118 {offsets = [4, 0], sizes = [1, 128], strides = [1, 1]} : vector<7x128xf32> to vector<1x128xf32>
      %148 = vector.shape_cast %147 : vector<1x128xf32> to vector<128xf32>
      %149 = vector.shape_cast %148 : vector<128xf32> to vector<1x1x128xf32>
      %150 = vector.broadcast %149 : vector<1x1x128xf32> to vector<16x16x128xf32>
      %151 = arith.mulf %146, %150 : vector<16x16x128xf32>
      %152 = arith.addf %145, %151 : vector<16x16x128xf32>
      %153 = vector.extract_strided_slice %115 {offsets = [5, 0, 0], sizes = [16, 16, 128], strides = [1, 1, 1]} : vector<22x16x128xf32> to vector<16x16x128xf32>
      %154 = vector.extract_strided_slice %118 {offsets = [5, 0], sizes = [1, 128], strides = [1, 1]} : vector<7x128xf32> to vector<1x128xf32>
      %155 = vector.shape_cast %154 : vector<1x128xf32> to vector<128xf32>
      %156 = vector.shape_cast %155 : vector<128xf32> to vector<1x1x128xf32>
      %157 = vector.broadcast %156 : vector<1x1x128xf32> to vector<16x16x128xf32>
      %158 = arith.mulf %153, %157 : vector<16x16x128xf32>
      %159 = arith.addf %152, %158 : vector<16x16x128xf32>
      %160 = vector.extract_strided_slice %115 {offsets = [6, 0, 0], sizes = [16, 16, 128], strides = [1, 1, 1]} : vector<22x16x128xf32> to vector<16x16x128xf32>
      %161 = vector.extract_strided_slice %118 {offsets = [6, 0], sizes = [1, 128], strides = [1, 1]} : vector<7x128xf32> to vector<1x128xf32>
      %162 = vector.shape_cast %161 : vector<1x128xf32> to vector<128xf32>
      %163 = vector.shape_cast %162 : vector<128xf32> to vector<1x1x128xf32>
      %164 = vector.broadcast %163 : vector<1x1x128xf32> to vector<16x16x128xf32>
      %165 = arith.mulf %160, %164 : vector<16x16x128xf32>
      %166 = arith.addf %159, %165 : vector<16x16x128xf32>
      %c0_71 = arith.constant 0 : index
      %c0_72 = arith.constant 0 : index
      %c0_73 = arith.constant 0 : index
      %167 = vector.load %arg14[%c0_71, %c0_72, %c0_73] : memref<16x16x128xf32, #tpu.memory_space<vmem>>, vector<16x16x128xf32>
      %168 = arith.addf %167, %166 : vector<16x16x128xf32>
      %c0_74 = arith.constant 0 : index
      %c0_75 = arith.constant 0 : index
      %c0_76 = arith.constant 0 : index
      %169 = vector.load %arg14[%c0_74, %c0_75, %c0_76] : memref<16x16x128xf32, #tpu.memory_space<vmem>>, vector<16x16x128xf32>
      tpu.vector_store %arg14[%c0_74, %c0_75, %c0_76], %168 {strides = array<i32>} : memref<16x16x128xf32, #tpu.memory_space<vmem>>, vector<16x16x128xf32>,
    }
    %c7_i32_22 = arith.constant 7 : i32
    %c0_23 = arith.constant 0 : index
    %c0_24 = arith.constant 0 : index
    %c0_25 = arith.constant 0 : index
    %17 = vector.load %arg14[%c0_23, %c0_24, %c0_25] : memref<16x16x128xf32, #tpu.memory_space<vmem>>, vector<16x16x128xf32>
    %cst_26 = arith.constant dense<0.000000e+00> : vector<16x16xf32>
    %18 = vector.multi_reduction <add>, %17, %cst_26 [2] : vector<16x16x128xf32> to vector<16x16xf32>
    %19 = vector.shape_cast %18 : vector<16x16xf32> to vector<16x16x1xf32>
    %cst_27 = arith.constant 2.500000e-01 : f32
    %20 = vector.broadcast %cst_27 : f32 to vector<16x16x1xf32>
    %21 = arith.mulf %19, %20 : vector<16x16x1xf32>
    %22 = arith.mulf %17, %17 : vector<16x16x128xf32>
    %cst_28 = arith.constant dense<0.000000e+00> : vector<16x16xf32>
    %23 = vector.multi_reduction <add>, %22, %cst_28 [2] : vector<16x16x128xf32> to vector<16x16xf32>
    %24 = vector.shape_cast %23 : vector<16x16xf32> to vector<16x16x1xf32>
    %cst_29 = arith.constant 2.500000e-01 : f32
    %25 = vector.broadcast %cst_29 : f32 to vector<16x16x1xf32>
    %26 = arith.mulf %24, %25 : vector<16x16x1xf32>
    %27 = arith.mulf %21, %21 : vector<16x16x1xf32>
    %28 = arith.subf %26, %27 : vector<16x16x1xf32>
    %cst_30 = arith.constant 0.000000e+00 : f32
    %29 = vector.broadcast %cst_30 : f32 to vector<16x16x1xf32>
    %30 = arith.maximumf %28, %29 : vector<16x16x1xf32>
    %31 = vector.broadcast %21 : vector<16x16x1xf32> to vector<16x16x128xf32>
    %32 = arith.subf %17, %31 : vector<16x16x128xf32>
    %cst_31 = arith.constant 9.99999997E-7 : f32
    %33 = vector.broadcast %cst_31 : f32 to vector<16x16x1xf32>
    %34 = arith.addf %30, %33 : vector<16x16x1xf32>
    %35 = math.rsqrt %34 : vector<16x16x1xf32>
    %36 = vector.broadcast %35 : vector<16x16x1xf32> to vector<16x16x128xf32>
    %37 = arith.mulf %32, %36 : vector<16x16x128xf32>
    %c0_32 = arith.constant 0 : index
    %c0_33 = arith.constant 0 : index
    %38 = vector.load %arg4[%c0_32, %c0_33] : memref<1x128xf32, #tpu.memory_space<vmem>>, vector<1x128xf32>
    %39 = vector.shape_cast %38 : vector<1x128xf32> to vector<128xf32>
    %40 = vector.shape_cast %39 : vector<128xf32> to vector<1x1x128xf32>
    %41 = vector.broadcast %40 : vector<1x1x128xf32> to vector<16x16x128xf32>
    %42 = arith.mulf %37, %41 : vector<16x16x128xf32>
    %c0_34 = arith.constant 0 : index
    %c0_35 = arith.constant 0 : index
    %43 = vector.load %arg5[%c0_34, %c0_35] : memref<1x128xf32, #tpu.memory_space<vmem>>, vector<1x128xf32>
    %44 = vector.shape_cast %43 : vector<1x128xf32> to vector<128xf32>
    %45 = vector.shape_cast %44 : vector<128xf32> to vector<1x1x128xf32>
    %46 = vector.broadcast %45 : vector<1x1x128xf32> to vector<16x16x128xf32>
    %47 = arith.addf %42, %46 : vector<16x16x128xf32>
    %48 = vector.shape_cast %47 : vector<16x16x128xf32> to vector<256x128xf32>
    %49 = arith.truncf %48 : vector<256x128xf32> to vector<256x128xbf16>
    %c0_36 = arith.constant 0 : index
    %c0_37 = arith.constant 0 : index
    %50 = vector.load %arg6[%c0_36, %c0_37] : memref<128x128xbf16, #tpu.memory_space<vmem>>, vector<128x128xbf16>
    %cst_38 = arith.constant dense<0.000000e+00> : vector<256x128xf32>
    %51 = tpu.matmul %49, %50, %cst_38 {dimension_numbers = #tpu.dot_dimension_numbers<[1], [0], [0], [1], [0, 0, 1, 1], [], []>} : vector<256x128xbf16>, vector<128x128xbf16>, vector<256x128xf32> -> vector<256x128xf32>
    %c0_39 = arith.constant 0 : index
    %c0_40 = arith.constant 0 : index
    %52 = vector.load %arg7[%c0_39, %c0_40] : memref<1x128xf32, #tpu.memory_space<vmem>>, vector<1x128xf32>
    %53 = vector.shape_cast %52 : vector<1x128xf32> to vector<128xf32>
    %54 = vector.shape_cast %53 : vector<128xf32> to vector<1x128xf32>
    %55 = vector.broadcast %54 : vector<1x128xf32> to vector<256x128xf32>
    %56 = arith.addf %51, %55 : vector<256x128xf32>
    %57 = arith.truncf %56 : vector<256x128xf32> to vector<256x128xbf16>
    %58 = arith.mulf %57, %57 : vector<256x128xbf16>
    %59 = arith.mulf %57, %58 : vector<256x128xbf16>
    %cst_41 = arith.constant 4.467770e-02 : bf16
    %60 = vector.broadcast %cst_41 : bf16 to vector<256x128xbf16>
    %61 = arith.mulf %60, %59 : vector<256x128xbf16>
    %62 = arith.addf %57, %61 : vector<256x128xbf16>
    %cst_42 = arith.constant 7.968750e-01 : bf16
    %63 = vector.broadcast %cst_42 : bf16 to vector<256x128xbf16>
    %64 = arith.mulf %63, %62 : vector<256x128xbf16>
    %65 = math.tanh %64 : vector<256x128xbf16>
    %cst_43 = arith.constant 1.000000e+00 : bf16
    %66 = vector.broadcast %cst_43 : bf16 to vector<256x128xbf16>
    %67 = arith.addf %66, %65 : vector<256x128xbf16>
    %cst_44 = arith.constant 5.000000e-01 : bf16
    %68 = vector.broadcast %cst_44 : bf16 to vector<256x128xbf16>
    %69 = arith.mulf %68, %67 : vector<256x128xbf16>
    %70 = arith.mulf %57, %69 : vector<256x128xbf16>
    %71 = arith.extf %70 : vector<256x128xbf16> to vector<256x128xf32>
    %72 = arith.mulf %71, %71 : vector<256x128xf32>
    %cst_45 = arith.constant dense<0.000000e+00> : vector<128xf32>
    %73 = vector.multi_reduction <add>, %72, %cst_45 [0] : vector<256x128xf32> to vector<128xf32>
    %74 = vector.shape_cast %73 : vector<128xf32> to vector<1x128xf32>
    %75 = math.sqrt %74 : vector<1x128xf32>
    %cst_46 = arith.constant dense<0.000000e+00> : vector<1xf32>
    %76 = vector.multi_reduction <add>, %75, %cst_46 [1] : vector<1x128xf32> to vector<1xf32>
    %77 = vector.shape_cast %76 : vector<1xf32> to vector<1x1xf32>
    %cst_47 = arith.constant 6.250000e-02 : f32
    %78 = vector.broadcast %cst_47 : f32 to vector<1x1xf32>
    %79 = arith.mulf %77, %78 : vector<1x1xf32>
    %cst_48 = arith.constant 9.99999997E-7 : f32
    %80 = vector.broadcast %cst_48 : f32 to vector<1x1xf32>
    %81 = arith.addf %79, %80 : vector<1x1xf32>
    %82 = vector.broadcast %81 : vector<1x1xf32> to vector<1x128xf32>
    %83 = arith.divf %75, %82 : vector<1x128xf32>
    %c0_49 = arith.constant 0 : index
    %c0_50 = arith.constant 0 : index
    %84 = vector.load %arg8[%c0_49, %c0_50] : memref<1x128xf32, #tpu.memory_space<vmem>>, vector<1x128xf32>
    %85 = vector.shape_cast %84 : vector<1x128xf32> to vector<128xf32>
    %86 = vector.shape_cast %85 : vector<128xf32> to vector<1x128xf32>
    %87 = arith.mulf %86, %83 : vector<1x128xf32>
    %cst_51 = arith.constant 1.000000e+00 : f32
    %88 = vector.broadcast %cst_51 : f32 to vector<1x128xf32>
    %89 = arith.addf %87, %88 : vector<1x128xf32>
    %90 = arith.truncf %89 : vector<1x128xf32> to vector<1x128xbf16>
    %91 = vector.broadcast %90 : vector<1x128xbf16> to vector<256x128xbf16>
    %92 = arith.mulf %70, %91 : vector<256x128xbf16>
    %c0_52 = arith.constant 0 : index
    %c0_53 = arith.constant 0 : index
    %93 = vector.load %arg9[%c0_52, %c0_53] : memref<1x128xf32, #tpu.memory_space<vmem>>, vector<1x128xf32>
    %94 = vector.shape_cast %93 : vector<1x128xf32> to vector<128xf32>
    %95 = arith.truncf %94 : vector<128xf32> to vector<128xbf16>
    %96 = vector.shape_cast %95 : vector<128xbf16> to vector<1x128xbf16>
    %97 = vector.broadcast %96 : vector<1x128xbf16> to vector<256x128xbf16>
    %98 = arith.addf %92, %97 : vector<256x128xbf16>
    %c0_54 = arith.constant 0 : index
    %c0_55 = arith.constant 0 : index
    %99 = vector.load %arg10[%c0_54, %c0_55] : memref<128x128xbf16, #tpu.memory_space<vmem>>, vector<128x128xbf16>
    %cst_56 = arith.constant dense<0.000000e+00> : vector<256x128xf32>
    %100 = tpu.matmul %98, %99, %cst_56 {dimension_numbers = #tpu.dot_dimension_numbers<[1], [0], [0], [1], [0, 0, 1, 1], [], []>} : vector<256x128xbf16>, vector<128x128xbf16>, vector<256x128xf32> -> vector<256x128xf32>
    %c0_57 = arith.constant 0 : index
    %c0_58 = arith.constant 0 : index
    %101 = vector.load %arg11[%c0_57, %c0_58] : memref<1x128xf32, #tpu.memory_space<vmem>>, vector<1x128xf32>
    %102 = vector.shape_cast %101 : vector<1x128xf32> to vector<128xf32>
    %103 = vector.shape_cast %102 : vector<128xf32> to vector<1x128xf32>
    %104 = vector.broadcast %103 : vector<1x128xf32> to vector<256x128xf32>
    %105 = arith.addf %100, %104 : vector<256x128xf32>
    %106 = vector.shape_cast %105 : vector<256x128xf32> to vector<16x16x128xf32>
    %c0_59 = arith.constant 0 : index
    %c0_60 = arith.constant 0 : index
    %c0_61 = arith.constant 0 : index
    %c0_62 = arith.constant 0 : index
    %107 = vector.load %arg1[%c0_59, %c0_60, %c0_61, %c0_62] : memref<1x16x16x128xf32, #tpu.memory_space<vmem>>, vector<1x16x16x128xf32>
    %108 = vector.shape_cast %107 : vector<1x16x16x128xf32> to vector<16x16x128xf32>
    %109 = arith.addf %106, %108 : vector<16x16x128xf32>
    %c0_63 = arith.constant 0 : index
    %c0_64 = arith.constant 0 : index
    %c0_65 = arith.constant 0 : index
    %c0_66 = arith.constant 0 : index
    %110 = vector.load %arg12[%c0_63, %c0_64, %c0_65, %c0_66] : memref<1x16x16x128xf32, #tpu.memory_space<vmem>>, vector<1x16x16x128xf32>
    %111 = vector.shape_cast %110 : vector<1x16x16x128xf32> to vector<16x16x128xf32>
    %112 = vector.shape_cast %109 : vector<16x16x128xf32> to vector<1x16x16x128xf32>
    tpu.vector_store %arg12[%c0_63, %c0_64, %c0_65, %c0_66], %112 {strides = array<i32>} : memref<1x16x16x128xf32, #tpu.memory_space<vmem>>, vector<1x16x16x128xf32>,
    return
  }
  func.func @transform_0(%arg0: i32) -> (i32, i32, i32, i32) {
    %c0_i32 = arith.constant 0 : i32
    %c0_i32_0 = arith.constant 0 : i32
    %c0_i32_1 = arith.constant 0 : i32
    %c0_i32_2 = arith.constant 0 : i32
    return %arg0, %c0_i32, %c0_i32_0, %c0_i32_1 : i32, i32, i32, i32
  }
  func.func @transform_1(%arg0: i32) -> (i32, i32, i32) {
    %c0_i32 = arith.constant 0 : i32
    %c0_i32_0 = arith.constant 0 : i32
    %c0_i32_1 = arith.constant 0 : i32
    %c0_i32_2 = arith.constant 0 : i32
    return %c0_i32, %c0_i32_0, %c0_i32_1 : i32, i32, i32
  }
  func.func @transform_2(%arg0: i32) -> (i32, i32) {
    %c0_i32 = arith.constant 0 : i32
    %c0_i32_0 = arith.constant 0 : i32
    %c0_i32_1 = arith.constant 0 : i32
    return %c0_i32, %c0_i32_0 : i32, i32
  }
  func.func @transform_3(%arg0: i32) -> (i32, i32) {
    %c0_i32 = arith.constant 0 : i32
    %c0_i32_0 = arith.constant 0 : i32
    %c0_i32_1 = arith.constant 0 : i32
    return %c0_i32, %c0_i32_0 : i32, i32
  }
  func.func @transform_4(%arg0: i32) -> (i32, i32) {
    %c0_i32 = arith.constant 0 : i32
    %c0_i32_0 = arith.constant 0 : i32
    %c0_i32_1 = arith.constant 0 : i32
    return %c0_i32, %c0_i32_0 : i32, i32
  }
  func.func @transform_5(%arg0: i32) -> (i32, i32) {
    %c0_i32 = arith.constant 0 : i32
    %c0_i32_0 = arith.constant 0 : i32
    %c0_i32_1 = arith.constant 0 : i32
    return %c0_i32, %c0_i32_0 : i32, i32
  }
  func.func @transform_6(%arg0: i32) -> (i32, i32) {
    %c0_i32 = arith.constant 0 : i32
    %c0_i32_0 = arith.constant 0 : i32
    %c0_i32_1 = arith.constant 0 : i32
    return %c0_i32, %c0_i32_0 : i32, i32
  }
  func.func @transform_7(%arg0: i32) -> (i32, i32) {
    %c0_i32 = arith.constant 0 : i32
    %c0_i32_0 = arith.constant 0 : i32
    %c0_i32_1 = arith.constant 0 : i32
    return %c0_i32, %c0_i32_0 : i32, i32
  }
  func.func @transform_8(%arg0: i32) -> (i32, i32) {
    %c0_i32 = arith.constant 0 : i32
    %c0_i32_0 = arith.constant 0 : i32
    %c0_i32_1 = arith.constant 0 : i32
    return %c0_i32, %c0_i32_0 : i32, i32
  }
  func.func @transform_9(%arg0: i32) -> (i32, i32) {
    %c0_i32 = arith.constant 0 : i32
    %c0_i32_0 = arith.constant 0 : i32
    %c0_i32_1 = arith.constant 0 : i32
    return %c0_i32, %c0_i32_0 : i32, i32
  }
  func.func @transform_10(%arg0: i32) -> (i32, i32) {
    %c0_i32 = arith.constant 0 : i32
    %c0_i32_0 = arith.constant 0 : i32
    %c0_i32_1 = arith.constant 0 : i32
    return %c0_i32, %c0_i32_0 : i32, i32
  }
  func.func @transform_11(%arg0: i32) -> (i32, i32, i32, i32) {
    %c0_i32 = arith.constant 0 : i32
    %c0_i32_0 = arith.constant 0 : i32
    %c0_i32_1 = arith.constant 0 : i32
    %c0_i32_2 = arith.constant 0 : i32
    return %arg0, %c0_i32, %c0_i32_0, %c0_i32_1 : i32, i32, i32, i32
  }
}

module attributes {stable_mosaic.version = 11 : i64} {
  func.func @block_kernel(%arg0: i32, %arg1: memref<1x16x16x128xf32, #tpu.memory_space<vmem>>, %arg2: memref<7x7x128xf32, #tpu.memory_space<vmem>>, %arg3: memref<1x128xf32, #tpu.memory_space<vmem>>, %arg4: memref<1x128xf32, #tpu.memory_space<vmem>>, %arg5: memref<1x128xf32, #tpu.memory_space<vmem>>, %arg6: memref<128x128xbf16, #tpu.memory_space<vmem>>, %arg7: memref<1x128xf32, #tpu.memory_space<vmem>>, %arg8: memref<1x128xf32, #tpu.memory_space<vmem>>, %arg9: memref<1x128xf32, #tpu.memory_space<vmem>>, %arg10: memref<128x128xbf16, #tpu.memory_space<vmem>>, %arg11: memref<1x128xf32, #tpu.memory_space<vmem>>, %arg12: memref<1x16x16x128xf32, #tpu.memory_space<vmem>>, %arg13: memref<22x32x128xf32, #tpu.memory_space<vmem>>, %arg14: memref<16x16x128xf32, #tpu.memory_space<vmem>>) attributes {dimension_semantics = [#tpu.dimension_semantics<parallel>], iteration_bounds = array<i64: 2>, scalar_prefetch = 0 : i64, scratch_operands = 2 : i64, tpu.core_type = #tpu.core_type<tc>, window_params = [{transform_indices = @transform_0, window_bounds = array<i64: 1, 16, 16, 128>}, {pipeline_mode = #tpu.pipeline_mode<synchronous>, transform_indices = @transform_1, window_bounds = array<i64: 7, 7, 128>}, {pipeline_mode = #tpu.pipeline_mode<synchronous>, transform_indices = @transform_2, window_bounds = array<i64: 1, 128>}, {pipeline_mode = #tpu.pipeline_mode<synchronous>, transform_indices = @transform_3, window_bounds = array<i64: 1, 128>}, {pipeline_mode = #tpu.pipeline_mode<synchronous>, transform_indices = @transform_4, window_bounds = array<i64: 1, 128>}, {pipeline_mode = #tpu.pipeline_mode<synchronous>, transform_indices = @transform_5, window_bounds = array<i64: 128, 128>}, {pipeline_mode = #tpu.pipeline_mode<synchronous>, transform_indices = @transform_6, window_bounds = array<i64: 1, 128>}, {pipeline_mode = #tpu.pipeline_mode<synchronous>, transform_indices = @transform_7, window_bounds = array<i64: 1, 128>}, {pipeline_mode = #tpu.pipeline_mode<synchronous>, transform_indices = @transform_8, window_bounds = array<i64: 1, 128>}, {pipeline_mode = #tpu.pipeline_mode<synchronous>, transform_indices = @transform_9, window_bounds = array<i64: 128, 128>}, {pipeline_mode = #tpu.pipeline_mode<synchronous>, transform_indices = @transform_10, window_bounds = array<i64: 1, 128>}, {transform_indices = @transform_11, window_bounds = array<i64: 1, 16, 16, 128>}]} {
    %cst = arith.constant 0.000000e+00 : f32
    %0 = vector.broadcast %cst : f32 to vector<3x32x128xf32>
    %c0 = arith.constant 0 : index
    %c0_0 = arith.constant 0 : index
    %c0_1 = arith.constant 0 : index
    %1 = vector.load %arg13[%c0, %c0_0, %c0_1] : memref<22x32x128xf32, #tpu.memory_space<vmem>>, vector<3x32x128xf32>
    tpu.vector_store %arg13[%c0, %c0_0, %c0_1], %0 {strides = array<i32>} : memref<22x32x128xf32, #tpu.memory_space<vmem>>, vector<3x32x128xf32>,
    %cst_2 = arith.constant 0.000000e+00 : f32
    %2 = vector.broadcast %cst_2 : f32 to vector<3x32x128xf32>
    %c19 = arith.constant 19 : index
    %c0_3 = arith.constant 0 : index
    %c0_4 = arith.constant 0 : index
    %3 = vector.load %arg13[%c19, %c0_3, %c0_4] : memref<22x32x128xf32, #tpu.memory_space<vmem>>, vector<3x32x128xf32>
    tpu.vector_store %arg13[%c19, %c0_3, %c0_4], %2 {strides = array<i32>} : memref<22x32x128xf32, #tpu.memory_space<vmem>>, vector<3x32x128xf32>,
    %cst_5 = arith.constant 0.000000e+00 : f32
    %4 = vector.broadcast %cst_5 : f32 to vector<16x8x128xf32>
    %c3 = arith.constant 3 : index
    %c0_6 = arith.constant 0 : index
    %c0_7 = arith.constant 0 : index
    %5 = vector.load %arg13[%c3, %c0_6, %c0_7] : memref<22x32x128xf32, #tpu.memory_space<vmem>>, vector<16x8x128xf32>
    tpu.vector_store %arg13[%c3, %c0_6, %c0_7], %4 {strides = array<i32>} : memref<22x32x128xf32, #tpu.memory_space<vmem>>, vector<16x8x128xf32>,
    %cst_8 = arith.constant 0.000000e+00 : f32
    %6 = vector.broadcast %cst_8 : f32 to vector<16x8x128xf32>
    %c3_9 = arith.constant 3 : index
    %c24 = arith.constant 24 : index
    %c0_10 = arith.constant 0 : index
    %7 = vector.load %arg13[%c3_9, %c24, %c0_10] : memref<22x32x128xf32, #tpu.memory_space<vmem>>, vector<16x8x128xf32>
    tpu.vector_store %arg13[%c3_9, %c24, %c0_10], %6 {strides = array<i32>} : memref<22x32x128xf32, #tpu.memory_space<vmem>>, vector<16x8x128xf32>,
    %c0_11 = arith.constant 0 : index
    %c0_12 = arith.constant 0 : index
    %c0_13 = arith.constant 0 : index
    %c0_14 = arith.constant 0 : index
    %8 = vector.load %arg1[%c0_11, %c0_12, %c0_13, %c0_14] : memref<1x16x16x128xf32, #tpu.memory_space<vmem>>, vector<1x16x16x128xf32>
    %9 = vector.shape_cast %8 : vector<1x16x16x128xf32> to vector<16x16x128xf32>
    %c3_15 = arith.constant 3 : index
    %c8 = arith.constant 8 : index
    %c0_16 = arith.constant 0 : index
    %10 = vector.load %arg13[%c3_15, %c8, %c0_16] : memref<22x32x128xf32, #tpu.memory_space<vmem>>, vector<16x16x128xf32>
    tpu.vector_store %arg13[%c3_15, %c8, %c0_16], %9 {strides = array<i32>} : memref<22x32x128xf32, #tpu.memory_space<vmem>>, vector<16x16x128xf32>,
    %c0_17 = arith.constant 0 : index
    %c0_18 = arith.constant 0 : index
    %11 = vector.load %arg3[%c0_17, %c0_18] : memref<1x128xf32, #tpu.memory_space<vmem>>, vector<1x128xf32>
    %12 = vector.shape_cast %11 : vector<1x128xf32> to vector<128xf32>
    %13 = vector.shape_cast %12 : vector<128xf32> to vector<1x1x128xf32>
    %14 = vector.broadcast %13 : vector<1x1x128xf32> to vector<16x16x128xf32>
    %c0_19 = arith.constant 0 : index
    %c0_20 = arith.constant 0 : index
    %c0_21 = arith.constant 0 : index
    %15 = vector.load %arg14[%c0_19, %c0_20, %c0_21] : memref<16x16x128xf32, #tpu.memory_space<vmem>>, vector<16x16x128xf32>
    tpu.vector_store %arg14[%c0_19, %c0_20, %c0_21], %14 {strides = array<i32>} : memref<16x16x128xf32, #tpu.memory_space<vmem>>, vector<16x16x128xf32>,
    %c0_i32 = arith.constant 0 : i32
    %c7_i32 = arith.constant 7 : i32
    %16 = arith.addi %c0_i32, %c7_i32 : i32
    %c1_i32 = arith.constant 1 : i32
    scf.for %arg15 = %c0_i32 to %16 step %c1_i32  : i32 {
      %c5_i32 = arith.constant 5 : i32
      %113 = arith.addi %c5_i32, %arg15 : i32
      %c0_67 = arith.constant 0 : index
      %114 = arith.index_cast %113 : i32 to index
      %c0_68 = arith.constant 0 : index
      %115 = vector.load %arg13[%c0_67, %114, %c0_68] : memref<22x32x128xf32, #tpu.memory_space<vmem>>, vector<22x16x128xf32>
      %116 = arith.index_cast %arg15 : i32 to index
      %c0_69 = arith.constant 0 : index
      %c0_70 = arith.constant 0 : index
      %117 = vector.load %arg2[%116, %c0_69, %c0_70] : memref<7x7x128xf32, #tpu.memory_space<vmem>>, vector<1x7x128xf32>
      %118 = vector.shape_cast %117 : vector<1x7x128xf32> to vector<7x128xf32>
      %119 = vector.extract_strided_slice %115 {offsets = [0, 0, 0], sizes = [16, 16, 128], strides = [1, 1, 1]} : vector<22x16x128xf32> to vector<16x16x128xf32>
      %120 = vector.extract_strided_slice %118 {offsets = [0, 0], sizes = [1, 128], strides = [1, 1]} : vector<7x128xf32> to vector<1x128xf32>
      %121 = vector.shape_cast %120 : vector<1x128xf32> to vector<128xf32>
      %122 = vector.shape_cast %121 : vector<128xf32> to vector<1x1x128xf32>
      %123 = vector.broadcast %122 : vector<1x1x128xf32> to vector<16x16x128xf32>
      %124 = arith.mulf %119, %123 : vector<16x16x128xf32>
      %125 = vector.extract_strided_slice %115 {offsets = [1, 0, 0], sizes = [16, 16, 128], strides = [1, 1, 1]} : vector<22x16x128xf32> to vector<16x16x128xf32>
      %126 = vector.extract_strided_slice %118 {offsets = [1, 0], sizes = [1, 128], strides = [1, 1]} : vector<7x128xf32> to vector<1x128xf32>
      %127 = vector.shape_cast %126 : vector<1x128xf32> to vector<128xf32>
      %128 = vector.shape_cast %127 : vector<128xf32> to vector<1x1x128xf32>
      %129 = vector.broadcast %128 : vector<1x1x128xf32> to vector<16x16x128xf32>
      %130 = arith.mulf %125, %129 : vector<16x16x128xf32>
      %131 = arith.addf %124, %130 : vector<16x16x128xf32>
      %132 = vector.extract_strided_slice %115 {offsets = [2, 0, 0], sizes = [16, 16, 128], strides = [1, 1, 1]} : vector<22x16x128xf32> to vector<16x16x128xf32>
      %133 = vector.extract_strided_slice %118 {offsets = [2, 0], sizes = [1, 128], strides = [1, 1]} : vector<7x128xf32> to vector<1x128xf32>
      %134 = vector.shape_cast %133 : vector<1x128xf32> to vector<128xf32>
      %135 = vector.shape_cast %134 : vector<128xf32> to vector<1x1x128xf32>
      %136 = vector.broadcast %135 : vector<1x1x128xf32> to vector<16x16x128xf32>
      %137 = arith.mulf %132, %136 : vector<16x16x128xf32>
      %138 = arith.addf %131, %137 : vector<16x16x128xf32>
      %139 = vector.extract_strided_slice %115 {offsets = [3, 0, 0], sizes = [16, 16, 128], strides = [1, 1, 1]} : vector<22x16x128xf32> to vector<16x16x128xf32>
      %140 = vector.extract_strided_slice %118 {offsets = [3, 0], sizes = [1, 128], strides = [1, 1]} : vector<7x128xf32> to vector<1x128xf32>
      %141 = vector.shape_cast %140 : vector<1x128xf32> to vector<128xf32>
      %142 = vector.shape_cast %141 : vector<128xf32> to vector<1x1x128xf32>
      %143 = vector.broadcast %142 : vector<1x1x128xf32> to vector<16x16x128xf32>
      %144 = arith.mulf %139, %143 : vector<16x16x128xf32>
      %145 = arith.addf %138, %144 : vector<16x16x128xf32>
      %146 = vector.extract_strided_slice %115 {offsets = [4, 0, 0], sizes = [16, 16, 128], strides = [1, 1, 1]} : vector<22x16x128xf32> to vector<16x16x128xf32>
      %147 = vector.extract_strided_slice %118 {offsets = [4, 0], sizes = [1, 128], strides = [1, 1]} : vector<7x128xf32> to vector<1x128xf32>
      %148 = vector.shape_cast %147 : vector<1x128xf32> to vector<128xf32>
      %149 = vector.shape_cast %148 : vector<128xf32> to vector<1x1x128xf32>
      %150 = vector.broadcast %149 : vector<1x1x128xf32> to vector<16x16x128xf32>
      %151 = arith.mulf %146, %150 : vector<16x16x128xf32>
      %152 = arith.addf %145, %151 : vector<16x16x128xf32>
      %153 = vector.extract_strided_slice %115 {offsets = [5, 0, 0], sizes = [16, 16, 128], strides = [1, 1, 1]} : vector<22x16x128xf32> to vector<16x16x128xf32>
      %154 = vector.extract_strided_slice %118 {offsets = [5, 0], sizes = [1, 128], strides = [1, 1]} : vector<7x128xf32> to vector<1x128xf32>
      %155 = vector.shape_cast %154 : vector<1x128xf32> to vector<128xf32>
      %156 = vector.shape_cast %155 : vector<128xf32> to vector<1x1x128xf32>
      %157 = vector.broadcast %156 : vector<1x1x128xf32> to vector<16x16x128xf32>
      %158 = arith.mulf %153, %157 : vector<16x16x128xf32>
      %159 = arith.addf %152, %158 : vector<16x16x128xf32>
      %160 = vector.extract_strided_slice %115 {offsets = [6, 0, 0], sizes = [16, 16, 128], strides = [1, 1, 1]} : vector<22x16x128xf32> to vector<16x16x128xf32>
      %161 = vector.extract_strided_slice %118 {offsets = [6, 0], sizes = [1, 128], strides = [1, 1]} : vector<7x128xf32> to vector<1x128xf32>
      %162 = vector.shape_cast %161 : vector<1x128xf32> to vector<128xf32>
      %163 = vector.shape_cast %162 : vector<128xf32> to vector<1x1x128xf32>
      %164 = vector.broadcast %163 : vector<1x1x128xf32> to vector<16x16x128xf32>
      %165 = arith.mulf %160, %164 : vector<16x16x128xf32>
      %166 = arith.addf %159, %165 : vector<16x16x128xf32>
      %c0_71 = arith.constant 0 : index
      %c0_72 = arith.constant 0 : index
      %c0_73 = arith.constant 0 : index
      %167 = vector.load %arg14[%c0_71, %c0_72, %c0_73] : memref<16x16x128xf32, #tpu.memory_space<vmem>>, vector<16x16x128xf32>
      %168 = arith.addf %167, %166 : vector<16x16x128xf32>
      %c0_74 = arith.constant 0 : index
      %c0_75 = arith.constant 0 : index
      %c0_76 = arith.constant 0 : index
      %169 = vector.load %arg14[%c0_74, %c0_75, %c0_76] : memref<16x16x128xf32, #tpu.memory_space<vmem>>, vector<16x16x128xf32>
      tpu.vector_store %arg14[%c0_74, %c0_75, %c0_76], %168 {strides = array<i32>} : memref<16x16x128xf32, #tpu.memory_space<vmem>>, vector<16x16x128xf32>,
    }
    %c7_i32_22 = arith.constant 7 : i32
    %c0_23 = arith.constant 0 : index
    %c0_24 = arith.constant 0 : index
    %c0_25 = arith.constant 0 : index
    %17 = vector.load %arg14[%c0_23, %c0_24, %c0_25] : memref<16x16x128xf32, #tpu.memory_space<vmem>>, vector<16x16x128xf32>
    %cst_26 = arith.constant dense<0.000000e+00> : vector<16x16xf32>
    %18 = vector.multi_reduction <add>, %17, %cst_26 [2] : vector<16x16x128xf32> to vector<16x16xf32>
    %19 = vector.shape_cast %18 : vector<16x16xf32> to vector<16x16x1xf32>
    %cst_27 = arith.constant 2.500000e-01 : f32
    %20 = vector.broadcast %cst_27 : f32 to vector<16x16x1xf32>
    %21 = arith.mulf %19, %20 : vector<16x16x1xf32>
    %22 = arith.mulf %17, %17 : vector<16x16x128xf32>
    %cst_28 = arith.constant dense<0.000000e+00> : vector<16x16xf32>
    %23 = vector.multi_reduction <add>, %22, %cst_28 [2] : vector<16x16x128xf32> to vector<16x16xf32>
    %24 = vector.shape_cast %23 : vector<16x16xf32> to vector<16x16x1xf32>
    %cst_29 = arith.constant 2.500000e-01 : f32
    %25 = vector.broadcast %cst_29 : f32 to vector<16x16x1xf32>
    %26 = arith.mulf %24, %25 : vector<16x16x1xf32>
    %27 = arith.mulf %21, %21 : vector<16x16x1xf32>
    %28 = arith.subf %26, %27 : vector<16x16x1xf32>
    %cst_30 = arith.constant 0.000000e+00 : f32
    %29 = vector.broadcast %cst_30 : f32 to vector<16x16x1xf32>
    %30 = arith.maximumf %28, %29 : vector<16x16x1xf32>
    %31 = vector.broadcast %21 : vector<16x16x1xf32> to vector<16x16x128xf32>
    %32 = arith.subf %17, %31 : vector<16x16x128xf32>
    %cst_31 = arith.constant 9.99999997E-7 : f32
    %33 = vector.broadcast %cst_31 : f32 to vector<16x16x1xf32>
    %34 = arith.addf %30, %33 : vector<16x16x1xf32>
    %35 = math.rsqrt %34 : vector<16x16x1xf32>
    %36 = vector.broadcast %35 : vector<16x16x1xf32> to vector<16x16x128xf32>
    %37 = arith.mulf %32, %36 : vector<16x16x128xf32>
    %c0_32 = arith.constant 0 : index
    %c0_33 = arith.constant 0 : index
    %38 = vector.load %arg4[%c0_32, %c0_33] : memref<1x128xf32, #tpu.memory_space<vmem>>, vector<1x128xf32>
    %39 = vector.shape_cast %38 : vector<1x128xf32> to vector<128xf32>
    %40 = vector.shape_cast %39 : vector<128xf32> to vector<1x1x128xf32>
    %41 = vector.broadcast %40 : vector<1x1x128xf32> to vector<16x16x128xf32>
    %42 = arith.mulf %37, %41 : vector<16x16x128xf32>
    %c0_34 = arith.constant 0 : index
    %c0_35 = arith.constant 0 : index
    %43 = vector.load %arg5[%c0_34, %c0_35] : memref<1x128xf32, #tpu.memory_space<vmem>>, vector<1x128xf32>
    %44 = vector.shape_cast %43 : vector<1x128xf32> to vector<128xf32>
    %45 = vector.shape_cast %44 : vector<128xf32> to vector<1x1x128xf32>
    %46 = vector.broadcast %45 : vector<1x1x128xf32> to vector<16x16x128xf32>
    %47 = arith.addf %42, %46 : vector<16x16x128xf32>
    %48 = vector.shape_cast %47 : vector<16x16x128xf32> to vector<256x128xf32>
    %49 = arith.truncf %48 : vector<256x128xf32> to vector<256x128xbf16>
    %c0_36 = arith.constant 0 : index
    %c0_37 = arith.constant 0 : index
    %50 = vector.load %arg6[%c0_36, %c0_37] : memref<128x128xbf16, #tpu.memory_space<vmem>>, vector<128x128xbf16>
    %cst_38 = arith.constant dense<0.000000e+00> : vector<256x128xf32>
    %51 = tpu.matmul %49, %50, %cst_38 {dimension_numbers = #tpu.dot_dimension_numbers<[1], [0], [0], [1], [0, 0, 1, 1], [], []>} : vector<256x128xbf16>, vector<128x128xbf16>, vector<256x128xf32> -> vector<256x128xf32>
    %c0_39 = arith.constant 0 : index
    %c0_40 = arith.constant 0 : index
    %52 = vector.load %arg7[%c0_39, %c0_40] : memref<1x128xf32, #tpu.memory_space<vmem>>, vector<1x128xf32>
    %53 = vector.shape_cast %52 : vector<1x128xf32> to vector<128xf32>
    %54 = vector.shape_cast %53 : vector<128xf32> to vector<1x128xf32>
    %55 = vector.broadcast %54 : vector<1x128xf32> to vector<256x128xf32>
    %56 = arith.addf %51, %55 : vector<256x128xf32>
    %57 = arith.truncf %56 : vector<256x128xf32> to vector<256x128xbf16>
    %58 = arith.mulf %57, %57 : vector<256x128xbf16>
    %59 = arith.mulf %57, %58 : vector<256x128xbf16>
    %cst_41 = arith.constant 4.467770e-02 : bf16
    %60 = vector.broadcast %cst_41 : bf16 to vector<256x128xbf16>
    %61 = arith.mulf %60, %59 : vector<256x128xbf16>
    %62 = arith.addf %57, %61 : vector<256x128xbf16>
    %cst_42 = arith.constant 7.968750e-01 : bf16
    %63 = vector.broadcast %cst_42 : bf16 to vector<256x128xbf16>
    %64 = arith.mulf %63, %62 : vector<256x128xbf16>
    %65 = math.tanh %64 : vector<256x128xbf16>
    %cst_43 = arith.constant 1.000000e+00 : bf16
    %66 = vector.broadcast %cst_43 : bf16 to vector<256x128xbf16>
    %67 = arith.addf %66, %65 : vector<256x128xbf16>
    %cst_44 = arith.constant 5.000000e-01 : bf16
    %68 = vector.broadcast %cst_44 : bf16 to vector<256x128xbf16>
    %69 = arith.mulf %68, %67 : vector<256x128xbf16>
    %70 = arith.mulf %57, %69 : vector<256x128xbf16>
    %71 = arith.extf %70 : vector<256x128xbf16> to vector<256x128xf32>
    %72 = arith.mulf %71, %71 : vector<256x128xf32>
    %cst_45 = arith.constant dense<0.000000e+00> : vector<128xf32>
    %73 = vector.multi_reduction <add>, %72, %cst_45 [0] : vector<256x128xf32> to vector<128xf32>
    %74 = vector.shape_cast %73 : vector<128xf32> to vector<1x128xf32>
    %75 = math.sqrt %74 : vector<1x128xf32>
    %cst_46 = arith.constant dense<0.000000e+00> : vector<1xf32>
    %76 = vector.multi_reduction <add>, %75, %cst_46 [1] : vector<1x128xf32> to vector<1xf32>
    %77 = vector.shape_cast %76 : vector<1xf32> to vector<1x1xf32>
    %cst_47 = arith.constant 6.250000e-02 : f32
    %78 = vector.broadcast %cst_47 : f32 to vector<1x1xf32>
    %79 = arith.mulf %77, %78 : vector<1x1xf32>
    %cst_48 = arith.constant 9.99999997E-7 : f32
    %80 = vector.broadcast %cst_48 : f32 to vector<1x1xf32>
    %81 = arith.addf %79, %80 : vector<1x1xf32>
    %82 = vector.broadcast %81 : vector<1x1xf32> to vector<1x128xf32>
    %83 = arith.divf %75, %82 : vector<1x128xf32>
    %c0_49 = arith.constant 0 : index
    %c0_50 = arith.constant 0 : index
    %84 = vector.load %arg8[%c0_49, %c0_50] : memref<1x128xf32, #tpu.memory_space<vmem>>, vector<1x128xf32>
    %85 = vector.shape_cast %84 : vector<1x128xf32> to vector<128xf32>
    %86 = vector.shape_cast %85 : vector<128xf32> to vector<1x128xf32>
    %87 = arith.mulf %86, %83 : vector<1x128xf32>
    %cst_51 = arith.constant 1.000000e+00 : f32
    %88 = vector.broadcast %cst_51 : f32 to vector<1x128xf32>
    %89 = arith.addf %87, %88 : vector<1x128xf32>
    %90 = arith.truncf %89 : vector<1x128xf32> to vector<1x128xbf16>
    %91 = vector.broadcast %90 : vector<1x128xbf16> to vector<256x128xbf16>
    %92 = arith.mulf %70, %91 : vector<256x128xbf16>
    %c0_52 = arith.constant 0 : index
    %c0_53 = arith.constant 0 : index
    %93 = vector.load %arg9[%c0_52, %c0_53] : memref<1x128xf32, #tpu.memory_space<vmem>>, vector<1x128xf32>
    %94 = vector.shape_cast %93 : vector<1x128xf32> to vector<128xf32>
    %95 = arith.truncf %94 : vector<128xf32> to vector<128xbf16>
    %96 = vector.shape_cast %95 : vector<128xbf16> to vector<1x128xbf16>
    %97 = vector.broadcast %96 : vector<1x128xbf16> to vector<256x128xbf16>
    %98 = arith.addf %92, %97 : vector<256x128xbf16>
    %c0_54 = arith.constant 0 : index
    %c0_55 = arith.constant 0 : index
    %99 = vector.load %arg10[%c0_54, %c0_55] : memref<128x128xbf16, #tpu.memory_space<vmem>>, vector<128x128xbf16>
    %cst_56 = arith.constant dense<0.000000e+00> : vector<256x128xf32>
    %100 = tpu.matmul %98, %99, %cst_56 {dimension_numbers = #tpu.dot_dimension_numbers<[1], [0], [0], [1], [0, 0, 1, 1], [], []>} : vector<256x128xbf16>, vector<128x128xbf16>, vector<256x128xf32> -> vector<256x128xf32>
    %c0_57 = arith.constant 0 : index
    %c0_58 = arith.constant 0 : index
    %101 = vector.load %arg11[%c0_57, %c0_58] : memref<1x128xf32, #tpu.memory_space<vmem>>, vector<1x128xf32>
    %102 = vector.shape_cast %101 : vector<1x128xf32> to vector<128xf32>
    %103 = vector.shape_cast %102 : vector<128xf32> to vector<1x128xf32>
    %104 = vector.broadcast %103 : vector<1x128xf32> to vector<256x128xf32>
    %105 = arith.addf %100, %104 : vector<256x128xf32>
    %106 = vector.shape_cast %105 : vector<256x128xf32> to vector<16x16x128xf32>
    %c0_59 = arith.constant 0 : index
    %c0_60 = arith.constant 0 : index
    %c0_61 = arith.constant 0 : index
    %c0_62 = arith.constant 0 : index
    %107 = vector.load %arg1[%c0_59, %c0_60, %c0_61, %c0_62] : memref<1x16x16x128xf32, #tpu.memory_space<vmem>>, vector<1x16x16x128xf32>
    %108 = vector.shape_cast %107 : vector<1x16x16x128xf32> to vector<16x16x128xf32>
    %109 = arith.addf %106, %108 : vector<16x16x128xf32>
    %c0_63 = arith.constant 0 : index
    %c0_64 = arith.constant 0 : index
    %c0_65 = arith.constant 0 : index
    %c0_66 = arith.constant 0 : index
    %110 = vector.load %arg12[%c0_63, %c0_64, %c0_65, %c0_66] : memref<1x16x16x128xf32, #tpu.memory_space<vmem>>, vector<1x16x16x128xf32>
    %111 = vector.shape_cast %110 : vector<1x16x16x128xf32> to vector<16x16x128xf32>
    %112 = vector.shape_cast %109 : vector<16x16x128xf32> to vector<1x16x16x128xf32>
    tpu.vector_store %arg12[%c0_63, %c0_64, %c0_65, %c0_66], %112 {strides = array<i32>} : memref<1x16x16x128xf32, #tpu.memory_space<vmem>>, vector<1x16x16x128xf32>,
    return
  }
  func.func @transform_0(%arg0: i32) -> (i32, i32, i32, i32) {
    %c0_i32 = arith.constant 0 : i32
    %c0_i32_0 = arith.constant 0 : i32
    %c0_i32_1 = arith.constant 0 : i32
    %c0_i32_2 = arith.constant 0 : i32
    return %arg0, %c0_i32, %c0_i32_0, %c0_i32_1 : i32, i32, i32, i32
  }
  func.func @transform_1(%arg0: i32) -> (i32, i32, i32) {
    %c0_i32 = arith.constant 0 : i32
    %c0_i32_0 = arith.constant 0 : i32
    %c0_i32_1 = arith.constant 0 : i32
    %c0_i32_2 = arith.constant 0 : i32
    return %c0_i32, %c0_i32_0, %c0_i32_1 : i32, i32, i32
  }
  func.func @transform_2(%arg0: i32) -> (i32, i32) {
    %c0_i32 = arith.constant 0 : i32
    %c0_i32_0 = arith.constant 0 : i32
    %c0_i32_1 = arith.constant 0 : i32
    return %c0_i32, %c0_i32_0 : i32, i32
  }
  func.func @transform_3(%arg0: i32) -> (i32, i32) {
    %c0_i32 = arith.constant 0 : i32
    %c0_i32_0 = arith.constant 0 : i32
    %c0_i32_1 = arith.constant 0 : i32
    return %c0_i32, %c0_i32_0 : i32, i32
  }
  func.func @transform_4(%arg0: i32) -> (i32, i32) {
    %c0_i32 = arith.constant 0 : i32
    %c0_i32_0 = arith.constant 0 : i32
    %c0_i32_1 = arith.constant 0 : i32
    return %c0_i32, %c0_i32_0 : i32, i32
  }
  func.func @transform_5(%arg0: i32) -> (i32, i32) {
    %c0_i32 = arith.constant 0 : i32
    %c0_i32_0 = arith.constant 0 : i32
    %c0_i32_1 = arith.constant 0 : i32
    return %c0_i32, %c0_i32_0 : i32, i32
  }
  func.func @transform_6(%arg0: i32) -> (i32, i32) {
    %c0_i32 = arith.constant 0 : i32
    %c0_i32_0 = arith.constant 0 : i32
    %c0_i32_1 = arith.constant 0 : i32
    return %c0_i32, %c0_i32_0 : i32, i32
  }
  func.func @transform_7(%arg0: i32) -> (i32, i32) {
    %c0_i32 = arith.constant 0 : i32
    %c0_i32_0 = arith.constant 0 : i32
    %c0_i32_1 = arith.constant 0 : i32
    return %c0_i32, %c0_i32_0 : i32, i32
  }
  func.func @transform_8(%arg0: i32) -> (i32, i32) {
    %c0_i32 = arith.constant 0 : i32
    %c0_i32_0 = arith.constant 0 : i32
    %c0_i32_1 = arith.constant 0 : i32
    return %c0_i32, %c0_i32_0 : i32, i32
  }
  func.func @transform_9(%arg0: i32) -> (i32, i32) {
    %c0_i32 = arith.constant 0 : i32
    %c0_i32_0 = arith.constant 0 : i32
    %c0_i32_1 = arith.constant 0 : i32
    return %c0_i32, %c0_i32_0 : i32, i32
  }
  func.func @transform_10(%arg0: i32) -> (i32, i32) {
    %c0_i32 = arith.constant 0 : i32
    %c0_i32_0 = arith.constant 0 : i32
    %c0_i32_1 = arith.constant 0 : i32
    return %c0_i32, %c0_i32_0 : i32, i32
  }
  func.func @transform_11(%arg0: i32) -> (i32, i32, i32, i32) {
    %c0_i32 = arith.constant 0 : i32
    %c0_i32_0 = arith.constant 0 : i32
    %c0_i32_1 = arith.constant 0 : i32
    %c0_i32_2 = arith.constant 0 : i32
    return %arg0, %c0_i32, %c0_i32_0, %c0_i32_1 : i32, i32, i32, i32
  }
}

</mosaic_0001>

<llo_original>
// kernel: tpu_custom_call.1
$region0: #{tpu_custom_call.1}
  #allocation0 [shape = 'u32[]', space=smem, size = 0x4, offset = 0x4, fixed_abs, tag = 'smem constant byte address 0x4 - core index']
  #allocation1 [shape = 'u32[144,128]{1,0:T(1,128)}', space=vmem, size = 0x12000, scoped, tag = 'internal scratch']
  #allocation2 [shape = 'f32[22,32,128]{2,1,0:T(8,128)}', space=vmem, size = 0x58000, scoped, tag = 'scratch operand']
  #allocation3 [shape = 'f32[16,16,128]{2,1,0:T(8,128)}', space=vmem, size = 0x20000, scoped, tag = 'scratch operand']
  %s0 = inlined_call_operand.hbm [shape: f32[2,16,16,128], index: 0, kind: input, shape index: {}]
  %s1 = inlined_call_operand.hbm [shape: f32[7,7,128], index: 1, kind: input, shape index: {}]
  %s2 = inlined_call_operand.vmem [shape: f32[1,128], index: 2, kind: input, shape index: {}]
  %s3 = inlined_call_operand.vmem [shape: f32[1,128], index: 3, kind: input, shape index: {}]
  %s4 = inlined_call_operand.vmem [shape: f32[1,128], index: 4, kind: input, shape index: {}]
  %s5 = inlined_call_operand.hbm [shape: bf16[128,128], index: 5, kind: input, shape index: {}]
  %s6 = inlined_call_operand.vmem [shape: f32[1,128], index: 6, kind: input, shape index: {}]
  %s7 = inlined_call_operand.vmem [shape: f32[1,128], index: 7, kind: input, shape index: {}]
  %s8 = inlined_call_operand.vmem [shape: f32[1,128], index: 8, kind: input, shape index: {}]
  %s9 = inlined_call_operand.hbm [shape: bf16[128,128], index: 9, kind: input, shape index: {}]
  %s10 = inlined_call_operand.vmem [shape: f32[1,128], index: 10, kind: input, shape index: {}]
  %s11 = inlined_call_operand.hbm [shape: f32[2,16,16,128], index: 11, kind: output, shape index: {}]
  %s12 = sld [smem:[#allocation0]]
  $region100: #{tpu_custom_call.1} parent=0
    _
  %s14 = ssub.s32 1, %s12
  %s15 = scalar_select 0, %s14, %s12
  $region1: #{tpu_custom_call.1} parent=0
    #allocation4 [shape = 'u8[262144]{0}', space=vmem, size = 0x40000, scoped, tag = 'input window, operand 0']
    #allocation5 [shape = 's32[2]{0}', space=sflag, size = 0x8, scoped, tag = 'scoped memory for tpu_custom_call.1']
    #allocation6 [shape = 's32[2]{0}', space=sflag, size = 0x8, scoped, tag = 'scoped memory for tpu_custom_call.1']
    #allocation7 [shape = 'u8[28672]{0}', space=vmem, size = 0x7000, scoped, tag = 'input window, operand 1, single buffered']
    #allocation8 [shape = 's32[1]{0}', space=sflag, size = 0x4, scoped, tag = 'scoped memory for tpu_custom_call.1']
    #allocation9 [shape = 'u8[32768]{0}', space=vmem, size = 0x8000, scoped, tag = 'input window, operand 5, single buffered']
    #allocation10 [shape = 'u8[32768]{0}', space=vmem, size = 0x8000, scoped, tag = 'input window, operand 9, single buffered']
    #allocation11 [shape = 's32[1]{0}', space=sflag, size = 0x4, scoped, tag = 'scoped memory for tpu_custom_call.1']
    #allocation12 [shape = 'u8[262144]{0}', space=vmem, size = 0x40000, scoped, tag = 'output window, operand 0']
    %16 = vsyncpa [#allocation5], 0
    %s17 = scalar_lea.sflag [#allocation5], 1
    %18 = vsyncpa %s17, 0
    %19 = vsyncpa [#allocation8], 0
    %20 = vsyncpa [#allocation11], 0
    %21 = vsyncpa [#allocation6], 0
    %s22 = scalar_lea.sflag [#allocation6], 1
    %23 = vsyncpa %s22, 0
    loop: start=0, step=1, limit=4
    $region2: #{tpu_custom_call.1} parent=1 // loop_pre_header
      _
    $region3: #{tpu_custom_call.1} parent=1 // loop_header
      %s25 = sphi 0, %s29
      %p26 = scmp.ge.s32.totalorder %s25, 4
      %s35 = sphi 0, %s37
      %s38 = sphi 0, %s35
      %s39 = sphi 0, %s38
      %s55 = sphi 0, %s39
      %s59 = sphi 0, %s59
      %s61 = sphi 0, %s59
      %s62 = sphi 0, %s61
      %s76 = sphi 0, %s62
      %s80 = sphi 0, %s80
      %s82 = sphi 0, %s80
      %s83 = sphi 0, %s82
      %s97 = sphi 0, %s83
      %s101 = sphi 0, %s101
      %s103 = sphi 0, %s101
      %s104 = sphi 0, %s103
      %s118 = sphi 0, %s104
      %s122 = sphi 0, %s122
      %s124 = sphi 0, %s122
      %s125 = sphi 0, %s124
      %s139 = sphi 0, %s125
      %s143 = sphi 0, %s143
      %s145 = sphi 0, %s143
      %s146 = sphi 0, %s145
      %s160 = sphi 0, %s146
      %s164 = sphi 0, %s164
      %s166 = sphi 0, %s164
      %s167 = sphi 0, %s166
      %s181 = sphi 0, %s167
      %s185 = sphi 0, %s185
      %s187 = sphi 0, %s185
      %s188 = sphi 0, %s187
      %s202 = sphi 0, %s188
      %s206 = sphi 0, %s206
      %s208 = sphi 0, %s206
      %s209 = sphi 0, %s208
      %s223 = sphi 0, %s209
      %s227 = sphi 0, %s227
      %s229 = sphi 0, %s227
      %s230 = sphi 0, %s229
      %s244 = sphi 0, %s230
      %s248 = sphi 0, %s248
      %s250 = sphi 0, %s248
      %s251 = sphi 0, %s250
      %s265 = sphi 0, %s251
      %s271 = sphi 0, %s273
      %s274 = sphi 0, %s271
      %s275 = sphi 0, %s274
      %s291 = sphi 0, %s275
    $region4: #{tpu_custom_call.1} parent=1 // loop_header_branch
      %28 = sbr.rel (%p26) target = $region8
    $region5: #{tpu_custom_call.1} parent=1 // loop_body
      %s30 = ssub.s32 %s25, 1
      %s31 = ssub.s32 %s25, 2
      %s32 = sadd.s32 %s25, 1
      %s33 = ssub.s32 %s25, %s32
      %p34 = scmp.eq.s32.totalorder %s33, 0
      %s36 = sadd.s32 %s35, 1
      %s37 = scalar_select %p34, %s35, %s36
      %p40 = pneg %p34
      %p41 = scmp.eq.s32.totalorder %s25, 1
      %p42 = por %p40, %p41
      %p43 = scmp.ne.s32.totalorder %s35, %s38
      %p44 = scmp.eq.s32.totalorder %s25, 0
      %p45 = por %p43, %p44
      %p46 = scmp.ne.s32.totalorder %s35, %s38
      %p47 = scmp.eq.s32.totalorder %s30, 1
      %p48 = por %p46, %p47
      %p49 = scmp.ne.s32.totalorder %s38, %s39
      %p50 = scmp.eq.s32.totalorder %s30, 0
      %p51 = por %p49, %p50
      %p52 = scmp.ne.s32.totalorder %s38, %s39
      %p53 = scmp.eq.s32.totalorder %s31, 1
      %p54 = por %p52, %p53
      %p56 = scmp.ne.s32.totalorder %s39, %s55
      %p57 = scmp.eq.s32.totalorder %s31, 0
      %p58 = por %p56, %p57
      %s60 = sadd.s32 %s59, 1
      %p63 = scmp.eq.s32.totalorder %s25, 1
      %p64 = scmp.ne.s32.totalorder %s59, %s61
      %p65 = scmp.eq.s32.totalorder %s25, 0
      %p66 = por %p64, %p65
      %p67 = scmp.ne.s32.totalorder %s59, %s61
      %p68 = scmp.eq.s32.totalorder %s30, 1
      %p69 = por %p67, %p68
      %p70 = scmp.ne.s32.totalorder %s61, %s62
      %p71 = scmp.eq.s32.totalorder %s30, 0
      %p72 = por %p70, %p71
      %p73 = scmp.ne.s32.totalorder %s61, %s62
      %p74 = scmp.eq.s32.totalorder %s31, 1
      %p75 = por %p73, %p74
      %p77 = scmp.ne.s32.totalorder %s62, %s76
      %p78 = scmp.eq.s32.totalorder %s31, 0
      %p79 = por %p77, %p78
      %s81 = sadd.s32 %s80, 1
      %p84 = scmp.eq.s32.totalorder %s25, 1
      %p85 = scmp.ne.s32.totalorder %s80, %s82
      %p86 = scmp.eq.s32.totalorder %s25, 0
      %p87 = por %p85, %p86
      %p88 = scmp.ne.s32.totalorder %s80, %s82
      %p89 = scmp.eq.s32.totalorder %s30, 1
      %p90 = por %p88, %p89
      %p91 = scmp.ne.s32.totalorder %s82, %s83
      %p92 = scmp.eq.s32.totalorder %s30, 0
      %p93 = por %p91, %p92
      %p94 = scmp.ne.s32.totalorder %s82, %s83
      %p95 = scmp.eq.s32.totalorder %s31, 1
      %p96 = por %p94, %p95
      %p98 = scmp.ne.s32.totalorder %s83, %s97
      %p99 = scmp.eq.s32.totalorder %s31, 0
      %p100 = por %p98, %p99
      %s102 = sadd.s32 %s101, 1
      %p105 = scmp.eq.s32.totalorder %s25, 1
      %p106 = scmp.ne.s32.totalorder %s101, %s103
      %p107 = scmp.eq.s32.totalorder %s25, 0
      %p108 = por %p106, %p107
      %p109 = scmp.ne.s32.totalorder %s101, %s103
      %p110 = scmp.eq.s32.totalorder %s30, 1
      %p111 = por %p109, %p110
      %p112 = scmp.ne.s32.totalorder %s103, %s104
      %p113 = scmp.eq.s32.totalorder %s30, 0
      %p114 = por %p112, %p113
      %p115 = scmp.ne.s32.totalorder %s103, %s104
      %p116 = scmp.eq.s32.totalorder %s31, 1
      %p117 = por %p115, %p116
      %p119 = scmp.ne.s32.totalorder %s104, %s118
      %p120 = scmp.eq.s32.totalorder %s31, 0
      %p121 = por %p119, %p120
      %s123 = sadd.s32 %s122, 1
      %p126 = scmp.eq.s32.totalorder %s25, 1
      %p127 = scmp.ne.s32.totalorder %s122, %s124
      %p128 = scmp.eq.s32.totalorder %s25, 0
      %p129 = por %p127, %p128
      %p130 = scmp.ne.s32.totalorder %s122, %s124
      %p131 = scmp.eq.s32.totalorder %s30, 1
      %p132 = por %p130, %p131
      %p133 = scmp.ne.s32.totalorder %s124, %s125
      %p134 = scmp.eq.s32.totalorder %s30, 0
      %p135 = por %p133, %p134
      %p136 = scmp.ne.s32.totalorder %s124, %s125
      %p137 = scmp.eq.s32.totalorder %s31, 1
      %p138 = por %p136, %p137
      %p140 = scmp.ne.s32.totalorder %s125, %s139
      %p141 = scmp.eq.s32.totalorder %s31, 0
      %p142 = por %p140, %p141
      %s144 = sadd.s32 %s143, 1
      %p147 = scmp.eq.s32.totalorder %s25, 1
      %p148 = scmp.ne.s32.totalorder %s143, %s145
      %p149 = scmp.eq.s32.totalorder %s25, 0
      %p150 = por %p148, %p149
      %p151 = scmp.ne.s32.totalorder %s143, %s145
      %p152 = scmp.eq.s32.totalorder %s30, 1
      %p153 = por %p151, %p152
      %p154 = scmp.ne.s32.totalorder %s145, %s146
      %p155 = scmp.eq.s32.totalorder %s30, 0
      %p156 = por %p154, %p155
      %p157 = scmp.ne.s32.totalorder %s145, %s146
      %p158 = scmp.eq.s32.totalorder %s31, 1
      %p159 = por %p157, %p158
      %p161 = scmp.ne.s32.totalorder %s146, %s160
      %p162 = scmp.eq.s32.totalorder %s31, 0
      %p163 = por %p161, %p162
      %s165 = sadd.s32 %s164, 1
      %p168 = scmp.eq.s32.totalorder %s25, 1
      %p169 = scmp.ne.s32.totalorder %s164, %s166
      %p170 = scmp.eq.s32.totalorder %s25, 0
      %p171 = por %p169, %p170
      %p172 = scmp.ne.s32.totalorder %s164, %s166
      %p173 = scmp.eq.s32.totalorder %s30, 1
      %p174 = por %p172, %p173
      %p175 = scmp.ne.s32.totalorder %s166, %s167
      %p176 = scmp.eq.s32.totalorder %s30, 0
      %p177 = por %p175, %p176
      %p178 = scmp.ne.s32.totalorder %s166, %s167
      %p179 = scmp.eq.s32.totalorder %s31, 1
      %p180 = por %p178, %p179
      %p182 = scmp.ne.s32.totalorder %s167, %s181
      %p183 = scmp.eq.s32.totalorder %s31, 0
      %p184 = por %p182, %p183
      %s186 = sadd.s32 %s185, 1
      %p189 = scmp.eq.s32.totalorder %s25, 1
      %p190 = scmp.ne.s32.totalorder %s185, %s187
      %p191 = scmp.eq.s32.totalorder %s25, 0
      %p192 = por %p190, %p191
      %p193 = scmp.ne.s32.totalorder %s185, %s187
      %p194 = scmp.eq.s32.totalorder %s30, 1
      %p195 = por %p193, %p194
      %p196 = scmp.ne.s32.totalorder %s187, %s188
      %p197 = scmp.eq.s32.totalorder %s30, 0
      %p198 = por %p196, %p197
      %p199 = scmp.ne.s32.totalorder %s187, %s188
      %p200 = scmp.eq.s32.totalorder %s31, 1
      %p201 = por %p199, %p200
      %p203 = scmp.ne.s32.totalorder %s188, %s202
      %p204 = scmp.eq.s32.totalorder %s31, 0
      %p205 = por %p203, %p204
      %s207 = sadd.s32 %s206, 1
      %p210 = scmp.eq.s32.totalorder %s25, 1
      %p211 = scmp.ne.s32.totalorder %s206, %s208
      %p212 = scmp.eq.s32.totalorder %s25, 0
      %p213 = por %p211, %p212
      %p214 = scmp.ne.s32.totalorder %s206, %s208
      %p215 = scmp.eq.s32.totalorder %s30, 1
      %p216 = por %p214, %p215
      %p217 = scmp.ne.s32.totalorder %s208, %s209
      %p218 = scmp.eq.s32.totalorder %s30, 0
      %p219 = por %p217, %p218
      %p220 = scmp.ne.s32.totalorder %s208, %s209
      %p221 = scmp.eq.s32.totalorder %s31, 1
      %p222 = por %p220, %p221
      %p224 = scmp.ne.s32.totalorder %s209, %s223
      %p225 = scmp.eq.s32.totalorder %s31, 0
      %p226 = por %p224, %p225
      %s228 = sadd.s32 %s227, 1
      %p231 = scmp.eq.s32.totalorder %s25, 1
      %p232 = scmp.ne.s32.totalorder %s227, %s229
      %p233 = scmp.eq.s32.totalorder %s25, 0
      %p234 = por %p232, %p233
      %p235 = scmp.ne.s32.totalorder %s227, %s229
      %p236 = scmp.eq.s32.totalorder %s30, 1
      %p237 = por %p235, %p236
      %p238 = scmp.ne.s32.totalorder %s229, %s230
      %p239 = scmp.eq.s32.totalorder %s30, 0
      %p240 = por %p238, %p239
      %p241 = scmp.ne.s32.totalorder %s229, %s230
      %p242 = scmp.eq.s32.totalorder %s31, 1
      %p243 = por %p241, %p242
      %p245 = scmp.ne.s32.totalorder %s230, %s244
      %p246 = scmp.eq.s32.totalorder %s31, 0
      %p247 = por %p245, %p246
      %s249 = sadd.s32 %s248, 1
      %p252 = scmp.eq.s32.totalorder %s25, 1
      %p253 = scmp.ne.s32.totalorder %s248, %s250
      %p254 = scmp.eq.s32.totalorder %s25, 0
      %p255 = por %p253, %p254
      %p256 = scmp.ne.s32.totalorder %s248, %s250
      %p257 = scmp.eq.s32.totalorder %s30, 1
      %p258 = por %p256, %p257
      %p259 = scmp.ne.s32.totalorder %s250, %s251
      %p260 = scmp.eq.s32.totalorder %s30, 0
      %p261 = por %p259, %p260
      %p262 = scmp.ne.s32.totalorder %s250, %s251
      %p263 = scmp.eq.s32.totalorder %s31, 1
      %p264 = por %p262, %p263
      %p266 = scmp.ne.s32.totalorder %s251, %s265
      %p267 = scmp.eq.s32.totalorder %s31, 0
      %p268 = por %p266, %p267
      %s269 = ssub.s32 %s25, %s32
      %p270 = scmp.eq.s32.totalorder %s269, 0
      %s272 = sadd.s32 %s271, 1
      %s273 = scalar_select %p270, %s271, %s272
      %p276 = pneg %p270
      %p277 = scmp.eq.s32.totalorder %s25, 1
      %p278 = por %p276, %p277
      %p279 = scmp.ne.s32.totalorder %s271, %s274
      %p280 = scmp.eq.s32.totalorder %s25, 0
      %p281 = por %p279, %p280
      %p282 = scmp.ne.s32.totalorder %s271, %s274
      %p283 = scmp.eq.s32.totalorder %s30, 1
      %p284 = por %p282, %p283
      %p285 = scmp.ne.s32.totalorder %s274, %s275
      %p286 = scmp.eq.s32.totalorder %s30, 0
      %p287 = por %p285, %p286
      %p288 = scmp.ne.s32.totalorder %s274, %s275
      %p289 = scmp.eq.s32.totalorder %s31, 1
      %p290 = por %p288, %p289
      %p292 = scmp.ne.s32.totalorder %s275, %s291
      %p293 = scmp.eq.s32.totalorder %s31, 0
      %p294 = por %p292, %p293
      %p295 = scmp.le.s32.totalorder 1, %s25
      %p296 = scmp.lt.s32.totalorder %s25, 3
      %p297 = pnand %p295, %p296
      %p298 = pneg %p297
      // Predicated region
      $region9: #{tpu_custom_call.1} parent=5 // pred_check
        _
      $region10: #{tpu_custom_call.1} parent=5 // pred_check_branch
        %300 = sbr.rel (%p297) target = $region12
      $region11: #{tpu_custom_call.1} parent=5 // pred_region
        %s301 = ssub.s32 %s25, 1
        // Predicated region
        $region13: #{tpu_custom_call.1} parent=11 // pred_check
          %p302 = pneg %p72
        $region14: #{tpu_custom_call.1} parent=11 // pred_check_branch
          %304 = sbr.rel (%p302) target = $region16
        $region15: #{tpu_custom_call.1} parent=11 // pred_region
          %s306 = ssub.s32 896, 896
          %307 = vsyncadd [#allocation8], %s306
          %s308 = sshll.u32 [#allocation7], 4
          %s309 = int_to_ptr.vmem [resolvable:$true] %s308
          %314 = dma.hbm_to_vmem [thread:$0]  %s1, 896, %s309, [#allocation8], 128, 128, 8
        $region16: #{tpu_custom_call.1} parent=11 // pred_fallthru
          _
        // Predicated region
        $region17: #{tpu_custom_call.1} parent=11 // pred_check
          %p315 = pneg %p93
        $region18: #{tpu_custom_call.1} parent=11 // pred_check_branch
          %317 = sbr.rel (%p315) target = $region20
        $region19: #{tpu_custom_call.1} parent=11 // pred_region
          _
        $region20: #{tpu_custom_call.1} parent=11 // pred_fallthru
          _
        // Predicated region
        $region21: #{tpu_custom_call.1} parent=11 // pred_check
          %p318 = pneg %p114
        $region22: #{tpu_custom_call.1} parent=11 // pred_check_branch
          %320 = sbr.rel (%p318) target = $region24
        $region23: #{tpu_custom_call.1} parent=11 // pred_region
          _
        $region24: #{tpu_custom_call.1} parent=11 // pred_fallthru
          _
        // Predicated region
        $region25: #{tpu_custom_call.1} parent=11 // pred_check
          %p321 = pneg %p135
        $region26: #{tpu_custom_call.1} parent=11 // pred_check_branch
          %323 = sbr.rel (%p321) target = $region28
        $region27: #{tpu_custom_call.1} parent=11 // pred_region
          _
        $region28: #{tpu_custom_call.1} parent=11 // pred_fallthru
          _
        // Predicated region
        $region29: #{tpu_custom_call.1} parent=11 // pred_check
          %p324 = pneg %p156
        $region30: #{tpu_custom_call.1} parent=11 // pred_check_branch
          %326 = sbr.rel (%p324) target = $region32
        $region31: #{tpu_custom_call.1} parent=11 // pred_region
          %s328 = ssub.s32 1024, 1024
          %329 = vsyncadd [#allocation8], %s328
          %s330 = sshll.u32 [#allocation9], 4
          %s331 = int_to_ptr.vmem [resolvable:$true] %s330
          %336 = dma.hbm_to_vmem [thread:$0]  %s5, 1024, %s331, [#allocation8], 64, 64, 4
        $region32: #{tpu_custom_call.1} parent=11 // pred_fallthru
          _
        // Predicated region
        $region33: #{tpu_custom_call.1} parent=11 // pred_check
          %p337 = pneg %p177
        $region34: #{tpu_custom_call.1} parent=11 // pred_check_branch
          %339 = sbr.rel (%p337) target = $region36
        $region35: #{tpu_custom_call.1} parent=11 // pred_region
          _
        $region36: #{tpu_custom_call.1} parent=11 // pred_fallthru
          _
        // Predicated region
        $region37: #{tpu_custom_call.1} parent=11 // pred_check
          %p340 = pneg %p198
        $region38: #{tpu_custom_call.1} parent=11 // pred_check_branch
          %342 = sbr.rel (%p340) target = $region40
        $region39: #{tpu_custom_call.1} parent=11 // pred_region
          _
        $region40: #{tpu_custom_call.1} parent=11 // pred_fallthru
          _
        // Predicated region
        $region41: #{tpu_custom_call.1} parent=11 // pred_check
          %p343 = pneg %p219
        $region42: #{tpu_custom_call.1} parent=11 // pred_check_branch
          %345 = sbr.rel (%p343) target = $region44
        $region43: #{tpu_custom_call.1} parent=11 // pred_region
          _
        $region44: #{tpu_custom_call.1} parent=11 // pred_fallthru
          _
        // Predicated region
        $region45: #{tpu_custom_call.1} parent=11 // pred_check
          %p346 = pneg %p240
        $region46: #{tpu_custom_call.1} parent=11 // pred_check_branch
          %348 = sbr.rel (%p346) target = $region48
        $region47: #{tpu_custom_call.1} parent=11 // pred_region
          %s350 = ssub.s32 1024, 1024
          %351 = vsyncadd [#allocation11], %s350
          %s352 = sshll.u32 [#allocation10], 4
          %s353 = int_to_ptr.vmem [resolvable:$true] %s352
          %358 = dma.hbm_to_vmem [thread:$0]  %s9, 1024, %s353, [#allocation11], 64, 64, 4
        $region48: #{tpu_custom_call.1} parent=11 // pred_fallthru
          _
        // Predicated region
        $region49: #{tpu_custom_call.1} parent=11 // pred_check
          %p359 = pneg %p261
        $region50: #{tpu_custom_call.1} parent=11 // pred_check_branch
          %361 = sbr.rel (%p359) target = $region52
        $region51: #{tpu_custom_call.1} parent=11 // pred_region
          _
        $region52: #{tpu_custom_call.1} parent=11 // pred_fallthru
          _
      $region12: #{tpu_custom_call.1} parent=5 // pred_fallthru
        _
      %p362 = scmp.lt.s32.totalorder %s25, 2
      // Predicated region
      $region53: #{tpu_custom_call.1} parent=5 // pred_check
        %p363 = pneg %p362
      $region54: #{tpu_custom_call.1} parent=5 // pred_check_branch
        %365 = sbr.rel (%p363) target = $region56
      $region55: #{tpu_custom_call.1} parent=5 // pred_region
        // Predicated region
        $region57: #{tpu_custom_call.1} parent=55 // pred_check
          %p366 = pneg %p45
        $region58: #{tpu_custom_call.1} parent=55 // pred_check_branch
          %368 = sbr.rel (%p366) target = $region60
        $region59: #{tpu_custom_call.1} parent=55 // pred_region
          %s369 = sand.u32 %s35, 1
          %s370 = scalar_lea.sflag [#allocation5], %s369
          %s371 = sand.u32 %s35, 1
          %s372 = smul.addr %s371, 256
          %s373 = scalar_lea.vmem [#allocation4], %s372
          %s375 = ssub.s32 4096, 4096
          %376 = vsyncadd %s370, %s375
          %s377 = smul.addr %s25, 32
          %s378 = smul.addr %s377, 128
          %s379 = scalar_lea.hbm %s0, %s378
          %s380 = sshll.u32 %s373, 4
          %s381 = int_to_ptr.vmem [resolvable:$true] %s380
          %386 = dma.hbm_to_vmem [thread:$0]  %s379, 4096, %s381, %s370, 128, 128, 8
        $region60: #{tpu_custom_call.1} parent=55 // pred_fallthru
          _
      $region56: #{tpu_custom_call.1} parent=5 // pred_fallthru
        _
      %p387 = scmp.le.s32.totalorder 1, %s25
      %p388 = scmp.lt.s32.totalorder %s25, 3
      %p389 = pnand %p387, %p388
      %p390 = pneg %p389
      // Predicated region
      $region61: #{tpu_custom_call.1} parent=5 // pred_check
        _
      $region62: #{tpu_custom_call.1} parent=5 // pred_check_branch
        %392 = sbr.rel (%p389) target = $region64
      $region63: #{tpu_custom_call.1} parent=5 // pred_region
        %s393 = ssub.s32 %s25, 1
        %s394 = sand.u32 %s38, 1
        %s395 = scalar_lea.sflag [#allocation5], %s394
        %s396 = sand.u32 %s38, 1
        %s397 = smul.addr %s396, 256
        %s398 = scalar_lea.vmem [#allocation4], %s397
        // Predicated region
        $region65: #{tpu_custom_call.1} parent=63 // pred_check
          %p399 = pneg %p51
        $region66: #{tpu_custom_call.1} parent=63 // pred_check_branch
          %401 = sbr.rel (%p399) target = $region68
        $region67: #{tpu_custom_call.1} parent=63 // pred_region
          %402 = dma.done %s395, 4096
        $region68: #{tpu_custom_call.1} parent=63 // pred_fallthru
          _
        // Predicated region
        $region69: #{tpu_custom_call.1} parent=63 // pred_check
          %p403 = pneg %p72
        $region70: #{tpu_custom_call.1} parent=63 // pred_check_branch
          %405 = sbr.rel (%p403) target = $region72
        $region71: #{tpu_custom_call.1} parent=63 // pred_region
          %406 = dma.done [#allocation8], 896
        $region72: #{tpu_custom_call.1} parent=63 // pred_fallthru
          _
        // Predicated region
        $region73: #{tpu_custom_call.1} parent=63 // pred_check
          %p407 = pneg %p156
        $region74: #{tpu_custom_call.1} parent=63 // pred_check_branch
          %409 = sbr.rel (%p407) target = $region76
        $region75: #{tpu_custom_call.1} parent=63 // pred_region
          %410 = dma.done [#allocation8], 1024
        $region76: #{tpu_custom_call.1} parent=63 // pred_fallthru
          _
        // Predicated region
        $region77: #{tpu_custom_call.1} parent=63 // pred_check
          %p411 = pneg %p240
        $region78: #{tpu_custom_call.1} parent=63 // pred_check_branch
          %413 = sbr.rel (%p411) target = $region80
        $region79: #{tpu_custom_call.1} parent=63 // pred_region
          %414 = dma.done [#allocation11], 1024
        $region80: #{tpu_custom_call.1} parent=63 // pred_fallthru
          _
        %s415 = sand.u32 %s38, 1
        %s416 = scalar_lea.sflag [#allocation5], %s415
        %s417 = sand.u32 %s38, 1
        %s418 = smul.addr %s417, 256
        %s419 = scalar_lea.vmem [#allocation4], %s418
        %p420 = pneg %p51
        %p421 = pneg %p48
        %p422 = pneg %p72
        %p423 = pneg %p69
        %p424 = pneg %p93
        %p425 = pneg %p90
        %p426 = pneg %p114
        %p427 = pneg %p111
        %p428 = pneg %p135
        %p429 = pneg %p132
        %p430 = pneg %p156
        %p431 = pneg %p153
        %p432 = pneg %p177
        %p433 = pneg %p174
        %p434 = pneg %p198
        %p435 = pneg %p195
        %p436 = pneg %p219
        %p437 = pneg %p216
        %p438 = pneg %p240
        %p439 = pneg %p237
        %p440 = pneg %p261
        %p441 = pneg %p258
        %p442 = pneg %p287
        %p443 = pneg %p284
        %s444 = sand.u32 %s274, 1
        %s445 = scalar_lea.sflag [#allocation6], %s444
        %s446 = sand.u32 %s274, 1
        %s447 = smul.addr %s446, 256
        %s448 = scalar_lea.vmem [#allocation12], %s447
        %454 = vst [vmem:[#allocation2] sm:$0xff] 0.0
        %455 = vst [vmem:[#allocation2 + $0x8] sm:$0xff] 0.0
        %456 = vst [vmem:[#allocation2 + $0x10] sm:$0xff] 0.0
        %457 = vst [vmem:[#allocation2 + $0x18] sm:$0xff] 0.0
        %458 = vst [vmem:[#allocation2 + $0x20] sm:$0xff] 0.0
        %459 = vst [vmem:[#allocation2 + $0x28] sm:$0xff] 0.0
        %460 = vst [vmem:[#allocation2 + $0x30] sm:$0xff] 0.0
        %461 = vst [vmem:[#allocation2 + $0x38] sm:$0xff] 0.0
        %462 = vst [vmem:[#allocation2 + $0x40] sm:$0xff] 0.0
        %463 = vst [vmem:[#allocation2 + $0x48] sm:$0xff] 0.0
        %464 = vst [vmem:[#allocation2 + $0x50] sm:$0xff] 0.0
        %465 = vst [vmem:[#allocation2 + $0x58] sm:$0xff] 0.0
        %s466 = scalar_lea.vmem [#allocation2], 608
        %467 = vst [vmem:[%s466] sm:$0xff] 0.0
        %468 = vst [vmem:[%s466 + $0x8] sm:$0xff] 0.0
        %469 = vst [vmem:[%s466 + $0x10] sm:$0xff] 0.0
        %470 = vst [vmem:[%s466 + $0x18] sm:$0xff] 0.0
        %471 = vst [vmem:[%s466 + $0x20] sm:$0xff] 0.0
        %472 = vst [vmem:[%s466 + $0x28] sm:$0xff] 0.0
        %473 = vst [vmem:[%s466 + $0x30] sm:$0xff] 0.0
        %474 = vst [vmem:[%s466 + $0x38] sm:$0xff] 0.0
        %475 = vst [vmem:[%s466 + $0x40] sm:$0xff] 0.0
        %476 = vst [vmem:[%s466 + $0x48] sm:$0xff] 0.0
        %477 = vst [vmem:[%s466 + $0x50] sm:$0xff] 0.0
        %478 = vst [vmem:[%s466 + $0x58] sm:$0xff] 0.0
        %s479 = scalar_lea.vmem [#allocation2], 96
        %480 = vst [vmem:[%s479] sm:$0xff] 0.0
        %481 = vst [vmem:[%s479 + $0x20] sm:$0xff] 0.0
        %482 = vst [vmem:[%s479 + $0x40] sm:$0xff] 0.0
        %483 = vst [vmem:[%s479 + $0x60] sm:$0xff] 0.0
        %484 = vst [vmem:[%s479 + $0x80] sm:$0xff] 0.0
        %485 = vst [vmem:[%s479 + $0xa0] sm:$0xff] 0.0
        %486 = vst [vmem:[%s479 + $0xc0] sm:$0xff] 0.0
        %487 = vst [vmem:[%s479 + $0xe0] sm:$0xff] 0.0
        %488 = vst [vmem:[%s479 + $0x100] sm:$0xff] 0.0
        %489 = vst [vmem:[%s479 + $0x120] sm:$0xff] 0.0
        %490 = vst [vmem:[%s479 + $0x140] sm:$0xff] 0.0
        %491 = vst [vmem:[%s479 + $0x160] sm:$0xff] 0.0
        %492 = vst [vmem:[%s479 + $0x180] sm:$0xff] 0.0
        %493 = vst [vmem:[%s479 + $0x1a0] sm:$0xff] 0.0
        %494 = vst [vmem:[%s479 + $0x1c0] sm:$0xff] 0.0
        %495 = vst [vmem:[%s479 + $0x1e0] sm:$0xff] 0.0
        %496 = vst [vmem:[%s479 + $0x18] sm:$0xff] 0.0
        %497 = vst [vmem:[%s479 + $0x38] sm:$0xff] 0.0
        %498 = vst [vmem:[%s479 + $0x58] sm:$0xff] 0.0
        %499 = vst [vmem:[%s479 + $0x78] sm:$0xff] 0.0
        %500 = vst [vmem:[%s479 + $0x98] sm:$0xff] 0.0
        %501 = vst [vmem:[%s479 + $0xb8] sm:$0xff] 0.0
        %502 = vst [vmem:[%s479 + $0xd8] sm:$0xff] 0.0
        %503 = vst [vmem:[%s479 + $0xf8] sm:$0xff] 0.0
        %504 = vst [vmem:[%s479 + $0x118] sm:$0xff] 0.0
        %505 = vst [vmem:[%s479 + $0x138] sm:$0xff] 0.0
        %506 = vst [vmem:[%s479 + $0x158] sm:$0xff] 0.0
        %507 = vst [vmem:[%s479 + $0x178] sm:$0xff] 0.0
        %508 = vst [vmem:[%s479 + $0x198] sm:$0xff] 0.0
        %509 = vst [vmem:[%s479 + $0x1b8] sm:$0xff] 0.0
        %510 = vst [vmem:[%s479 + $0x1d8] sm:$0xff] 0.0
        %511 = vst [vmem:[%s479 + $0x1f8] sm:$0xff] 0.0
        %v512 = vld [vmem:[%s398] sm:$0xff]
        %v513 = vld [vmem:[%s398 + $0x8] sm:$0xff]
        %v514 = vld [vmem:[%s398 + $0x10] sm:$0xff]
        %v515 = vld [vmem:[%s398 + $0x18] sm:$0xff]
        %v516 = vld [vmem:[%s398 + $0x20] sm:$0xff]
        %v517 = vld [vmem:[%s398 + $0x28] sm:$0xff]
        %v518 = vld [vmem:[%s398 + $0x30] sm:$0xff]
        %v519 = vld [vmem:[%s398 + $0x38] sm:$0xff]
        %v520 = vld [vmem:[%s398 + $0x40] sm:$0xff]
        %v521 = vld [vmem:[%s398 + $0x48] sm:$0xff]
        %v522 = vld [vmem:[%s398 + $0x50] sm:$0xff]
        %v523 = vld [vmem:[%s398 + $0x58] sm:$0xff]
        %v524 = vld [vmem:[%s398 + $0x60] sm:$0xff]
        %v525 = vld [vmem:[%s398 + $0x68] sm:$0xff]
        %v526 = vld [vmem:[%s398 + $0x70] sm:$0xff]
        %v527 = vld [vmem:[%s398 + $0x78] sm:$0xff]
        %v528 = vld [vmem:[%s398 + $0x80] sm:$0xff]
        %v529 = vld [vmem:[%s398 + $0x88] sm:$0xff]
        %v530 = vld [vmem:[%s398 + $0x90] sm:$0xff]
        %v531 = vld [vmem:[%s398 + $0x98] sm:$0xff]
        %v532 = vld [vmem:[%s398 + $0xa0] sm:$0xff]
        %v533 = vld [vmem:[%s398 + $0xa8] sm:$0xff]
        %v534 = vld [vmem:[%s398 + $0xb0] sm:$0xff]
        %v535 = vld [vmem:[%s398 + $0xb8] sm:$0xff]
        %v536 = vld [vmem:[%s398 + $0xc0] sm:$0xff]
        %v537 = vld [vmem:[%s398 + $0xc8] sm:$0xff]
        %v538 = vld [vmem:[%s398 + $0xd0] sm:$0xff]
        %v539 = vld [vmem:[%s398 + $0xd8] sm:$0xff]
        %v540 = vld [vmem:[%s398 + $0xe0] sm:$0xff]
        %v541 = vld [vmem:[%s398 + $0xe8] sm:$0xff]
        %v542 = vld [vmem:[%s398 + $0xf0] sm:$0xff]
        %v543 = vld [vmem:[%s398 + $0xf8] sm:$0xff]
        %544 = vst [vmem:[%s479 + $0x8] sm:$0xff] %v512
        %545 = vst [vmem:[%s479 + $0x10] sm:$0xff] %v513
        %546 = vst [vmem:[%s479 + $0x28] sm:$0xff] %v514
        %547 = vst [vmem:[%s479 + $0x30] sm:$0xff] %v515
        %548 = vst [vmem:[%s479 + $0x48] sm:$0xff] %v516
        %549 = vst [vmem:[%s479 + $0x50] sm:$0xff] %v517
        %550 = vst [vmem:[%s479 + $0x68] sm:$0xff] %v518
        %551 = vst [vmem:[%s479 + $0x70] sm:$0xff] %v519
        %552 = vst [vmem:[%s479 + $0x88] sm:$0xff] %v520
        %553 = vst [vmem:[%s479 + $0x90] sm:$0xff] %v521
        %554 = vst [vmem:[%s479 + $0xa8] sm:$0xff] %v522
        %555 = vst [vmem:[%s479 + $0xb0] sm:$0xff] %v523
        %556 = vst [vmem:[%s479 + $0xc8] sm:$0xff] %v524
        %557 = vst [vmem:[%s479 + $0xd0] sm:$0xff] %v525
        %558 = vst [vmem:[%s479 + $0xe8] sm:$0xff] %v526
        %559 = vst [vmem:[%s479 + $0xf0] sm:$0xff] %v527
        %560 = vst [vmem:[%s479 + $0x108] sm:$0xff] %v528
        %561 = vst [vmem:[%s479 + $0x110] sm:$0xff] %v529
        %562 = vst [vmem:[%s479 + $0x128] sm:$0xff] %v530
        %563 = vst [vmem:[%s479 + $0x130] sm:$0xff] %v531
        %564 = vst [vmem:[%s479 + $0x148] sm:$0xff] %v532
        %565 = vst [vmem:[%s479 + $0x150] sm:$0xff] %v533
        %566 = vst [vmem:[%s479 + $0x168] sm:$0xff] %v534
        %567 = vst [vmem:[%s479 + $0x170] sm:$0xff] %v535
        %568 = vst [vmem:[%s479 + $0x188] sm:$0xff] %v536
        %569 = vst [vmem:[%s479 + $0x190] sm:$0xff] %v537
        %570 = vst [vmem:[%s479 + $0x1a8] sm:$0xff] %v538
        %571 = vst [vmem:[%s479 + $0x1b0] sm:$0xff] %v539
        %572 = vst [vmem:[%s479 + $0x1c8] sm:$0xff] %v540
        %573 = vst [vmem:[%s479 + $0x1d0] sm:$0xff] %v541
        %574 = vst [vmem:[%s479 + $0x1e8] sm:$0xff] %v542
        %575 = vst [vmem:[%s479 + $0x1f0] sm:$0xff] %v543
        %v576 = vld [vmem:[%s2] sm:$0x1]
        %v578 = vlaneseq
        %v579 = vshrl.u32 %v578, 7
        %v580 = vsub.s32 0, %v579
        %v581 = vrot.slane %v576, %v580
        %583 = vst [vmem:[#allocation3] sm:$0xff] %v581
        %584 = vst [vmem:[#allocation3 + $0x8] sm:$0xff] %v581
        %585 = vst [vmem:[#allocation3 + $0x10] sm:$0xff] %v581
        %586 = vst [vmem:[#allocation3 + $0x18] sm:$0xff] %v581
        %587 = vst [vmem:[#allocation3 + $0x20] sm:$0xff] %v581
        %588 = vst [vmem:[#allocation3 + $0x28] sm:$0xff] %v581
        %589 = vst [vmem:[#allocation3 + $0x30] sm:$0xff] %v581
        %590 = vst [vmem:[#allocation3 + $0x38] sm:$0xff] %v581
        %591 = vst [vmem:[#allocation3 + $0x40] sm:$0xff] %v581
        %592 = vst [vmem:[#allocation3 + $0x48] sm:$0xff] %v581
        %593 = vst [vmem:[#allocation3 + $0x50] sm:$0xff] %v581
        %594 = vst [vmem:[#allocation3 + $0x58] sm:$0xff] %v581
        %595 = vst [vmem:[#allocation3 + $0x60] sm:$0xff] %v581
        %596 = vst [vmem:[#allocation3 + $0x68] sm:$0xff] %v581
        %597 = vst [vmem:[#allocation3 + $0x70] sm:$0xff] %v581
        %598 = vst [vmem:[#allocation3 + $0x78] sm:$0xff] %v581
        %599 = vst [vmem:[#allocation3 + $0x80] sm:$0xff] %v581
        %600 = vst [vmem:[#allocation3 + $0x88] sm:$0xff] %v581
        %601 = vst [vmem:[#allocation3 + $0x90] sm:$0xff] %v581
        %602 = vst [vmem:[#allocation3 + $0x98] sm:$0xff] %v581
        %603 = vst [vmem:[#allocation3 + $0xa0] sm:$0xff] %v581
        %604 = vst [vmem:[#allocation3 + $0xa8] sm:$0xff] %v581
        %605 = vst [vmem:[#allocation3 + $0xb0] sm:$0xff] %v581
        %606 = vst [vmem:[#allocation3 + $0xb8] sm:$0xff] %v581
        %607 = vst [vmem:[#allocation3 + $0xc0] sm:$0xff] %v581
        %608 = vst [vmem:[#allocation3 + $0xc8] sm:$0xff] %v581
        %609 = vst [vmem:[#allocation3 + $0xd0] sm:$0xff] %v581
        %610 = vst [vmem:[#allocation3 + $0xd8] sm:$0xff] %v581
        %611 = vst [vmem:[#allocation3 + $0xe0] sm:$0xff] %v581
        %612 = vst [vmem:[#allocation3 + $0xe8] sm:$0xff] %v581
        %613 = vst [vmem:[#allocation3 + $0xf0] sm:$0xff] %v581
        %614 = vst [vmem:[#allocation3 + $0xf8] sm:$0xff] %v581
        loop: start=0, step=1, limit=7
        $region81: #{tpu_custom_call.1} parent=63 // loop_pre_header
          _
        $region82: #{tpu_custom_call.1} parent=63 // loop_header
          %s616 = sphi 0, %s620
          %p617 = scmp.ge.s32.totalorder %s616, 7
        $region83: #{tpu_custom_call.1} parent=63 // loop_header_branch
          %619 = sbr.rel (%p617) target = $region87
        $region84: #{tpu_custom_call.1} parent=63 // loop_body
          %s621 = sadd.s32 %s616, 5
          %s622 = scalar_lea.vmem [#allocation2], %s621
          %v623 = vld [vmem:[%s622] sm:$0xff]
          %v624 = vld [vmem:[%s622 + $0x8] sm:$0xff]
          %v625 = vld [vmem:[%s622 + $0x20] sm:$0xff]
          %v626 = vld [vmem:[%s622 + $0x28] sm:$0xff]
          %v627 = vld [vmem:[%s622 + $0x40] sm:$0xff]
          %v628 = vld [vmem:[%s622 + $0x48] sm:$0xff]
          %v629 = vld [vmem:[%s622 + $0x60] sm:$0xff]
          %v630 = vld [vmem:[%s622 + $0x68] sm:$0xff]
          %v631 = vld [vmem:[%s622 + $0x80] sm:$0xff]
          %v632 = vld [vmem:[%s622 + $0x88] sm:$0xff]
          %v633 = vld [vmem:[%s622 + $0xa0] sm:$0xff]
          %v634 = vld [vmem:[%s622 + $0xa8] sm:$0xff]
          %v635 = vld [vmem:[%s622 + $0xc0] sm:$0xff]
          %v636 = vld [vmem:[%s622 + $0xc8] sm:$0xff]
          %v637 = vld [vmem:[%s622 + $0xe0] sm:$0xff]
          %v638 = vld [vmem:[%s622 + $0xe8] sm:$0xff]
          %v639 = vld [vmem:[%s622 + $0x100] sm:$0xff]
          %v640 = vld [vmem:[%s622 + $0x108] sm:$0xff]
          %v641 = vld [vmem:[%s622 + $0x120] sm:$0xff]
          %v642 = vld [vmem:[%s622 + $0x128] sm:$0xff]
          %v643 = vld [vmem:[%s622 + $0x140] sm:$0xff]
          %v644 = vld [vmem:[%s622 + $0x148] sm:$0xff]
          %v645 = vld [vmem:[%s622 + $0x160] sm:$0xff]
          %v646 = vld [vmem:[%s622 + $0x168] sm:$0xff]
          %v647 = vld [vmem:[%s622 + $0x180] sm:$0xff]
          %v648 = vld [vmem:[%s622 + $0x188] sm:$0xff]
          %v649 = vld [vmem:[%s622 + $0x1a0] sm:$0xff]
          %v650 = vld [vmem:[%s622 + $0x1a8] sm:$0xff]
          %v651 = vld [vmem:[%s622 + $0x1c0] sm:$0xff]
          %v652 = vld [vmem:[%s622 + $0x1c8] sm:$0xff]
          %v653 = vld [vmem:[%s622 + $0x1e0] sm:$0xff]
          %v654 = vld [vmem:[%s622 + $0x1e8] sm:$0xff]
          %v655 = vld [vmem:[%s622 + $0x200] sm:$0xff]
          %v656 = vld [vmem:[%s622 + $0x208] sm:$0xff]
          %v657 = vld [vmem:[%s622 + $0x220] sm:$0xff]
          %v658 = vld [vmem:[%s622 + $0x228] sm:$0xff]
          %v659 = vld [vmem:[%s622 + $0x240] sm:$0xff]
          %v660 = vld [vmem:[%s622 + $0x248] sm:$0xff]
          %v661 = vld [vmem:[%s622 + $0x260] sm:$0xff]
          %v662 = vld [vmem:[%s622 + $0x268] sm:$0xff]
          %v663 = vld [vmem:[%s622 + $0x280] sm:$0xff]
          %v664 = vld [vmem:[%s622 + $0x288] sm:$0xff]
          %v665 = vld [vmem:[%s622 + $0x2a0] sm:$0xff]
          %v666 = vld [vmem:[%s622 + $0x2a8] sm:$0xff]
          %s667 = smul.u32 %s616, 8
          %s668 = scalar_lea.vmem [#allocation7], %s667
          %v669 = vld [vmem:[%s668] sm:$0x7f]
          %v670 = vlaneseq
          %v671 = vshrl.u32 %v670, 7
          %v672 = vsub.s32 0, %v671
          %v673 = vrot.slane %v669, %v672
          %v674 = vmul.f32 %v623, %v673
          %v675 = vmul.f32 %v624, %v673
          %v676 = vmul.f32 %v625, %v673
          %v677 = vmul.f32 %v626, %v673
          %v678 = vmul.f32 %v627, %v673
          %v679 = vmul.f32 %v628, %v673
          %v680 = vmul.f32 %v629, %v673
          %v681 = vmul.f32 %v630, %v673
          %v682 = vmul.f32 %v631, %v673
          %v683 = vmul.f32 %v632, %v673
          %v684 = vmul.f32 %v633, %v673
          %v685 = vmul.f32 %v634, %v673
          %v686 = vmul.f32 %v635, %v673
          %v687 = vmul.f32 %v636, %v673
          %v688 = vmul.f32 %v637, %v673
          %v689 = vmul.f32 %v638, %v673
          %v690 = vmul.f32 %v639, %v673
          %v691 = vmul.f32 %v640, %v673
          %v692 = vmul.f32 %v641, %v673
          %v693 = vmul.f32 %v642, %v673
          %v694 = vmul.f32 %v643, %v673
          %v695 = vmul.f32 %v644, %v673
          %v696 = vmul.f32 %v645, %v673
          %v697 = vmul.f32 %v646, %v673
          %v698 = vmul.f32 %v647, %v673
          %v699 = vmul.f32 %v648, %v673
          %v700 = vmul.f32 %v649, %v673
          %v701 = vmul.f32 %v650, %v673
          %v702 = vmul.f32 %v651, %v673
          %v703 = vmul.f32 %v652, %v673
          %v704 = vmul.f32 %v653, %v673
          %v705 = vmul.f32 %v654, %v673
          %v706 = vlaneseq
          %v707 = vshrl.u32 %v706, 7
          %v708 = vsub.s32 1, %v707
          %v709 = vrot.slane %v669, %v708
          %v710 = vmul.f32 %v625, %v709
          %v711 = vmul.f32 %v626, %v709
          %v712 = vmul.f32 %v627, %v709
          %v713 = vmul.f32 %v628, %v709
          %v714 = vmul.f32 %v629, %v709
          %v715 = vmul.f32 %v630, %v709
          %v716 = vmul.f32 %v631, %v709
          %v717 = vmul.f32 %v632, %v709
          %v718 = vmul.f32 %v633, %v709
          %v719 = vmul.f32 %v634, %v709
          %v720 = vmul.f32 %v635, %v709
          %v721 = vmul.f32 %v636, %v709
          %v722 = vmul.f32 %v637, %v709
          %v723 = vmul.f32 %v638, %v709
          %v724 = vmul.f32 %v639, %v709
          %v725 = vmul.f32 %v640, %v709
          %v726 = vmul.f32 %v641, %v709
          %v727 = vmul.f32 %v642, %v709
          %v728 = vmul.f32 %v643, %v709
          %v729 = vmul.f32 %v644, %v709
          %v730 = vmul.f32 %v645, %v709
          %v731 = vmul.f32 %v646, %v709
          %v732 = vmul.f32 %v647, %v709
          %v733 = vmul.f32 %v648, %v709
          %v734 = vmul.f32 %v649, %v709
          %v735 = vmul.f32 %v650, %v709
          %v736 = vmul.f32 %v651, %v709
          %v737 = vmul.f32 %v652, %v709
          %v738 = vmul.f32 %v653, %v709
          %v739 = vmul.f32 %v654, %v709
          %v740 = vmul.f32 %v655, %v709
          %v741 = vmul.f32 %v656, %v709
          %v742 = vadd.f32 %v674, %v710
          %v743 = vadd.f32 %v675, %v711
          %v744 = vadd.f32 %v676, %v712
          %v745 = vadd.f32 %v677, %v713
          %v746 = vadd.f32 %v678, %v714
          %v747 = vadd.f32 %v679, %v715
          %v748 = vadd.f32 %v680, %v716
          %v749 = vadd.f32 %v681, %v717
          %v750 = vadd.f32 %v682, %v718
          %v751 = vadd.f32 %v683, %v719
          %v752 = vadd.f32 %v684, %v720
          %v753 = vadd.f32 %v685, %v721
          %v754 = vadd.f32 %v686, %v722
          %v755 = vadd.f32 %v687, %v723
          %v756 = vadd.f32 %v688, %v724
          %v757 = vadd.f32 %v689, %v725
          %v758 = vadd.f32 %v690, %v726
          %v759 = vadd.f32 %v691, %v727
          %v760 = vadd.f32 %v692, %v728
          %v761 = vadd.f32 %v693, %v729
          %v762 = vadd.f32 %v694, %v730
          %v763 = vadd.f32 %v695, %v731
          %v764 = vadd.f32 %v696, %v732
          %v765 = vadd.f32 %v697, %v733
          %v766 = vadd.f32 %v698, %v734
          %v767 = vadd.f32 %v699, %v735
          %v768 = vadd.f32 %v700, %v736
          %v769 = vadd.f32 %v701, %v737
          %v770 = vadd.f32 %v702, %v738
          %v771 = vadd.f32 %v703, %v739
          %v772 = vadd.f32 %v704, %v740
          %v773 = vadd.f32 %v705, %v741
          %v774 = vlaneseq
          %v775 = vshrl.u32 %v774, 7
          %v776 = vsub.s32 2, %v775
          %v777 = vrot.slane %v669, %v776
          %v778 = vmul.f32 %v627, %v777
          %v779 = vmul.f32 %v628, %v777
          %v780 = vmul.f32 %v629, %v777
          %v781 = vmul.f32 %v630, %v777
          %v782 = vmul.f32 %v631, %v777
          %v783 = vmul.f32 %v632, %v777
          %v784 = vmul.f32 %v633, %v777
          %v785 = vmul.f32 %v634, %v777
          %v786 = vmul.f32 %v635, %v777
          %v787 = vmul.f32 %v636, %v777
          %v788 = vmul.f32 %v637, %v777
          %v789 = vmul.f32 %v638, %v777
          %v790 = vmul.f32 %v639, %v777
          %v791 = vmul.f32 %v640, %v777
          %v792 = vmul.f32 %v641, %v777
          %v793 = vmul.f32 %v642, %v777
          %v794 = vmul.f32 %v643, %v777
          %v795 = vmul.f32 %v644, %v777
          %v796 = vmul.f32 %v645, %v777
          %v797 = vmul.f32 %v646, %v777
          %v798 = vmul.f32 %v647, %v777
          %v799 = vmul.f32 %v648, %v777
          %v800 = vmul.f32 %v649, %v777
          %v801 = vmul.f32 %v650, %v777
          %v802 = vmul.f32 %v651, %v777
          %v803 = vmul.f32 %v652, %v777
          %v804 = vmul.f32 %v653, %v777
          %v805 = vmul.f32 %v654, %v777
          %v806 = vmul.f32 %v655, %v777
          %v807 = vmul.f32 %v656, %v777
          %v808 = vmul.f32 %v657, %v777
          %v809 = vmul.f32 %v658, %v777
          %v810 = vadd.f32 %v742, %v778
          %v811 = vadd.f32 %v743, %v779
          %v812 = vadd.f32 %v744, %v780
          %v813 = vadd.f32 %v745, %v781
          %v814 = vadd.f32 %v746, %v782
          %v815 = vadd.f32 %v747, %v783
          %v816 = vadd.f32 %v748, %v784
          %v817 = vadd.f32 %v749, %v785
          %v818 = vadd.f32 %v750, %v786
          %v819 = vadd.f32 %v751, %v787
          %v820 = vadd.f32 %v752, %v788
          %v821 = vadd.f32 %v753, %v789
          %v822 = vadd.f32 %v754, %v790
          %v823 = vadd.f32 %v755, %v791
          %v824 = vadd.f32 %v756, %v792
          %v825 = vadd.f32 %v757, %v793
          %v826 = vadd.f32 %v758, %v794
          %v827 = vadd.f32 %v759, %v795
          %v828 = vadd.f32 %v760, %v796
          %v829 = vadd.f32 %v761, %v797
          %v830 = vadd.f32 %v762, %v798
          %v831 = vadd.f32 %v763, %v799
          %v832 = vadd.f32 %v764, %v800
          %v833 = vadd.f32 %v765, %v801
          %v834 = vadd.f32 %v766, %v802
          %v835 = vadd.f32 %v767, %v803
          %v836 = vadd.f32 %v768, %v804
          %v837 = vadd.f32 %v769, %v805
          %v838 = vadd.f32 %v770, %v806
          %v839 = vadd.f32 %v771, %v807
          %v840 = vadd.f32 %v772, %v808
          %v841 = vadd.f32 %v773, %v809
          %v842 = vlaneseq
          %v843 = vshrl.u32 %v842, 7
          %v844 = vsub.s32 3, %v843
          %v845 = vrot.slane %v669, %v844
          %v846 = vmul.f32 %v629, %v845
          %v847 = vmul.f32 %v630, %v845
          %v848 = vmul.f32 %v631, %v845
          %v849 = vmul.f32 %v632, %v845
          %v850 = vmul.f32 %v633, %v845
          %v851 = vmul.f32 %v634, %v845
          %v852 = vmul.f32 %v635, %v845
          %v853 = vmul.f32 %v636, %v845
          %v854 = vmul.f32 %v637, %v845
          %v855 = vmul.f32 %v638, %v845
          %v856 = vmul.f32 %v639, %v845
          %v857 = vmul.f32 %v640, %v845
          %v858 = vmul.f32 %v641, %v845
          %v859 = vmul.f32 %v642, %v845
          %v860 = vmul.f32 %v643, %v845
          %v861 = vmul.f32 %v644, %v845
          %v862 = vmul.f32 %v645, %v845
          %v863 = vmul.f32 %v646, %v845
          %v864 = vmul.f32 %v647, %v845
          %v865 = vmul.f32 %v648, %v845
          %v866 = vmul.f32 %v649, %v845
          %v867 = vmul.f32 %v650, %v845
          %v868 = vmul.f32 %v651, %v845
          %v869 = vmul.f32 %v652, %v845
          %v870 = vmul.f32 %v653, %v845
          %v871 = vmul.f32 %v654, %v845
          %v872 = vmul.f32 %v655, %v845
          %v873 = vmul.f32 %v656, %v845
          %v874 = vmul.f32 %v657, %v845
          %v875 = vmul.f32 %v658, %v845
          %v876 = vmul.f32 %v659, %v845
          %v877 = vmul.f32 %v660, %v845
          %v878 = vadd.f32 %v810, %v846
          %v879 = vadd.f32 %v811, %v847
          %v880 = vadd.f32 %v812, %v848
          %v881 = vadd.f32 %v813, %v849
          %v882 = vadd.f32 %v814, %v850
          %v883 = vadd.f32 %v815, %v851
          %v884 = vadd.f32 %v816, %v852
          %v885 = vadd.f32 %v817, %v853
          %v886 = vadd.f32 %v818, %v854
          %v887 = vadd.f32 %v819, %v855
          %v888 = vadd.f32 %v820, %v856
          %v889 = vadd.f32 %v821, %v857
          %v890 = vadd.f32 %v822, %v858
          %v891 = vadd.f32 %v823, %v859
          %v892 = vadd.f32 %v824, %v860
          %v893 = vadd.f32 %v825, %v861
          %v894 = vadd.f32 %v826, %v862
          %v895 = vadd.f32 %v827, %v863
          %v896 = vadd.f32 %v828, %v864
          %v897 = vadd.f32 %v829, %v865
          %v898 = vadd.f32 %v830, %v866
          %v899 = vadd.f32 %v831, %v867
          %v900 = vadd.f32 %v832, %v868
          %v901 = vadd.f32 %v833, %v869
          %v902 = vadd.f32 %v834, %v870
          %v903 = vadd.f32 %v835, %v871
          %v904 = vadd.f32 %v836, %v872
          %v905 = vadd.f32 %v837, %v873
          %v906 = vadd.f32 %v838, %v874
          %v907 = vadd.f32 %v839, %v875
          %v908 = vadd.f32 %v840, %v876
          %v909 = vadd.f32 %v841, %v877
          %v910 = vlaneseq
          %v911 = vshrl.u32 %v910, 7
          %v912 = vsub.s32 4, %v911
          %v913 = vrot.slane %v669, %v912
          %v914 = vmul.f32 %v631, %v913
          %v915 = vmul.f32 %v632, %v913
          %v916 = vmul.f32 %v633, %v913
          %v917 = vmul.f32 %v634, %v913
          %v918 = vmul.f32 %v635, %v913
          %v919 = vmul.f32 %v636, %v913
          %v920 = vmul.f32 %v637, %v913
          %v921 = vmul.f32 %v638, %v913
          %v922 = vmul.f32 %v639, %v913
          %v923 = vmul.f32 %v640, %v913
          %v924 = vmul.f32 %v641, %v913
          %v925 = vmul.f32 %v642, %v913
          %v926 = vmul.f32 %v643, %v913
          %v927 = vmul.f32 %v644, %v913
          %v928 = vmul.f32 %v645, %v913
          %v929 = vmul.f32 %v646, %v913
          %v930 = vmul.f32 %v647, %v913
          %v931 = vmul.f32 %v648, %v913
          %v932 = vmul.f32 %v649, %v913
          %v933 = vmul.f32 %v650, %v913
          %v934 = vmul.f32 %v651, %v913
          %v935 = vmul.f32 %v652, %v913
          %v936 = vmul.f32 %v653, %v913
          %v937 = vmul.f32 %v654, %v913
          %v938 = vmul.f32 %v655, %v913
          %v939 = vmul.f32 %v656, %v913
          %v940 = vmul.f32 %v657, %v913
          %v941 = vmul.f32 %v658, %v913
          %v942 = vmul.f32 %v659, %v913
          %v943 = vmul.f32 %v660, %v913
          %v944 = vmul.f32 %v661, %v913
          %v945 = vmul.f32 %v662, %v913
          %v946 = vadd.f32 %v878, %v914
          %v947 = vadd.f32 %v879, %v915
          %v948 = vadd.f32 %v880, %v916
          %v949 = vadd.f32 %v881, %v917
          %v950 = vadd.f32 %v882, %v918
          %v951 = vadd.f32 %v883, %v919
          %v952 = vadd.f32 %v884, %v920
          %v953 = vadd.f32 %v885, %v921
          %v954 = vadd.f32 %v886, %v922
          %v955 = vadd.f32 %v887, %v923
          %v956 = vadd.f32 %v888, %v924
          %v957 = vadd.f32 %v889, %v925
          %v958 = vadd.f32 %v890, %v926
          %v959 = vadd.f32 %v891, %v927
          %v960 = vadd.f32 %v892, %v928
          %v961 = vadd.f32 %v893, %v929
          %v962 = vadd.f32 %v894, %v930
          %v963 = vadd.f32 %v895, %v931
          %v964 = vadd.f32 %v896, %v932
          %v965 = vadd.f32 %v897, %v933
          %v966 = vadd.f32 %v898, %v934
          %v967 = vadd.f32 %v899, %v935
          %v968 = vadd.f32 %v900, %v936
          %v969 = vadd.f32 %v901, %v937
          %v970 = vadd.f32 %v902, %v938
          %v971 = vadd.f32 %v903, %v939
          %v972 = vadd.f32 %v904, %v940
          %v973 = vadd.f32 %v905, %v941
          %v974 = vadd.f32 %v906, %v942
          %v975 = vadd.f32 %v907, %v943
          %v976 = vadd.f32 %v908, %v944
          %v977 = vadd.f32 %v909, %v945
          %v978 = vlaneseq
          %v979 = vshrl.u32 %v978, 7
          %v980 = vsub.s32 5, %v979
          %v981 = vrot.slane %v669, %v980
          %v982 = vmul.f32 %v633, %v981
          %v983 = vmul.f32 %v634, %v981
          %v984 = vmul.f32 %v635, %v981
          %v985 = vmul.f32 %v636, %v981
          %v986 = vmul.f32 %v637, %v981
          %v987 = vmul.f32 %v638, %v981
          %v988 = vmul.f32 %v639, %v981
          %v989 = vmul.f32 %v640, %v981
          %v990 = vmul.f32 %v641, %v981
          %v991 = vmul.f32 %v642, %v981
          %v992 = vmul.f32 %v643, %v981
          %v993 = vmul.f32 %v644, %v981
          %v994 = vmul.f32 %v645, %v981
          %v995 = vmul.f32 %v646, %v981
          %v996 = vmul.f32 %v647, %v981
          %v997 = vmul.f32 %v648, %v981
          %v998 = vmul.f32 %v649, %v981
          %v999 = vmul.f32 %v650, %v981
          %v1000 = vmul.f32 %v651, %v981
          %v1001 = vmul.f32 %v652, %v981
          %v1002 = vmul.f32 %v653, %v981
          %v1003 = vmul.f32 %v654, %v981
          %v1004 = vmul.f32 %v655, %v981
          %v1005 = vmul.f32 %v656, %v981
          %v1006 = vmul.f32 %v657, %v981
          %v1007 = vmul.f32 %v658, %v981
          %v1008 = vmul.f32 %v659, %v981
          %v1009 = vmul.f32 %v660, %v981
          %v1010 = vmul.f32 %v661, %v981
          %v1011 = vmul.f32 %v662, %v981
          %v1012 = vmul.f32 %v663, %v981
          %v1013 = vmul.f32 %v664, %v981
          %v1014 = vadd.f32 %v946, %v982
          %v1015 = vadd.f32 %v947, %v983
          %v1016 = vadd.f32 %v948, %v984
          %v1017 = vadd.f32 %v949, %v985
          %v1018 = vadd.f32 %v950, %v986
          %v1019 = vadd.f32 %v951, %v987
          %v1020 = vadd.f32 %v952, %v988
          %v1021 = vadd.f32 %v953, %v989
          %v1022 = vadd.f32 %v954, %v990
          %v1023 = vadd.f32 %v955, %v991
          %v1024 = vadd.f32 %v956, %v992
          %v1025 = vadd.f32 %v957, %v993
          %v1026 = vadd.f32 %v958, %v994
          %v1027 = vadd.f32 %v959, %v995
          %v1028 = vadd.f32 %v960, %v996
          %v1029 = vadd.f32 %v961, %v997
          %v1030 = vadd.f32 %v962, %v998
          %v1031 = vadd.f32 %v963, %v999
          %v1032 = vadd.f32 %v964, %v1000
          %v1033 = vadd.f32 %v965, %v1001
          %v1034 = vadd.f32 %v966, %v1002
          %v1035 = vadd.f32 %v967, %v1003
          %v1036 = vadd.f32 %v968, %v1004
          %v1037 = vadd.f32 %v969, %v1005
          %v1038 = vadd.f32 %v970, %v1006
          %v1039 = vadd.f32 %v971, %v1007
          %v1040 = vadd.f32 %v972, %v1008
          %v1041 = vadd.f32 %v973, %v1009
          %v1042 = vadd.f32 %v974, %v1010
          %v1043 = vadd.f32 %v975, %v1011
          %v1044 = vadd.f32 %v976, %v1012
          %v1045 = vadd.f32 %v977, %v1013
          %v1046 = vlaneseq
          %v1047 = vshrl.u32 %v1046, 7
          %v1048 = vsub.s32 6, %v1047
          %v1049 = vrot.slane %v669, %v1048
          %v1050 = vmul.f32 %v635, %v1049
          %v1051 = vmul.f32 %v636, %v1049
          %v1052 = vmul.f32 %v637, %v1049
          %v1053 = vmul.f32 %v638, %v1049
          %v1054 = vmul.f32 %v639, %v1049
          %v1055 = vmul.f32 %v640, %v1049
          %v1056 = vmul.f32 %v641, %v1049
          %v1057 = vmul.f32 %v642, %v1049
          %v1058 = vmul.f32 %v643, %v1049
          %v1059 = vmul.f32 %v644, %v1049
          %v1060 = vmul.f32 %v645, %v1049
          %v1061 = vmul.f32 %v646, %v1049
          %v1062 = vmul.f32 %v647, %v1049
          %v1063 = vmul.f32 %v648, %v1049
          %v1064 = vmul.f32 %v649, %v1049
          %v1065 = vmul.f32 %v650, %v1049
          %v1066 = vmul.f32 %v651, %v1049
          %v1067 = vmul.f32 %v652, %v1049
          %v1068 = vmul.f32 %v653, %v1049
          %v1069 = vmul.f32 %v654, %v1049
          %v1070 = vmul.f32 %v655, %v1049
          %v1071 = vmul.f32 %v656, %v1049
          %v1072 = vmul.f32 %v657, %v1049
          %v1073 = vmul.f32 %v658, %v1049
          %v1074 = vmul.f32 %v659, %v1049
          %v1075 = vmul.f32 %v660, %v1049
          %v1076 = vmul.f32 %v661, %v1049
          %v1077 = vmul.f32 %v662, %v1049
          %v1078 = vmul.f32 %v663, %v1049
          %v1079 = vmul.f32 %v664, %v1049
          %v1080 = vmul.f32 %v665, %v1049
          %v1081 = vmul.f32 %v666, %v1049
          %v1082 = vadd.f32 %v1014, %v1050
          %v1083 = vadd.f32 %v1015, %v1051
          %v1084 = vadd.f32 %v1016, %v1052
          %v1085 = vadd.f32 %v1017, %v1053
          %v1086 = vadd.f32 %v1018, %v1054
          %v1087 = vadd.f32 %v1019, %v1055
          %v1088 = vadd.f32 %v1020, %v1056
          %v1089 = vadd.f32 %v1021, %v1057
          %v1090 = vadd.f32 %v1022, %v1058
          %v1091 = vadd.f32 %v1023, %v1059
          %v1092 = vadd.f32 %v1024, %v1060
          %v1093 = vadd.f32 %v1025, %v1061
          %v1094 = vadd.f32 %v1026, %v1062
          %v1095 = vadd.f32 %v1027, %v1063
          %v1096 = vadd.f32 %v1028, %v1064
          %v1097 = vadd.f32 %v1029, %v1065
          %v1098 = vadd.f32 %v1030, %v1066
          %v1099 = vadd.f32 %v1031, %v1067
          %v1100 = vadd.f32 %v1032, %v1068
          %v1101 = vadd.f32 %v1033, %v1069
          %v1102 = vadd.f32 %v1034, %v1070
          %v1103 = vadd.f32 %v1035, %v1071
          %v1104 = vadd.f32 %v1036, %v1072
          %v1105 = vadd.f32 %v1037, %v1073
          %v1106 = vadd.f32 %v1038, %v1074
          %v1107 = vadd.f32 %v1039, %v1075
          %v1108 = vadd.f32 %v1040, %v1076
          %v1109 = vadd.f32 %v1041, %v1077
          %v1110 = vadd.f32 %v1042, %v1078
          %v1111 = vadd.f32 %v1043, %v1079
          %v1112 = vadd.f32 %v1044, %v1080
          %v1113 = vadd.f32 %v1045, %v1081
          %v1114 = vld [vmem:[#allocation3] sm:$0xff]
          %v1115 = vld [vmem:[#allocation3 + $0x8] sm:$0xff]
          %v1116 = vld [vmem:[#allocation3 + $0x10] sm:$0xff]
          %v1117 = vld [vmem:[#allocation3 + $0x18] sm:$0xff]
          %v1118 = vld [vmem:[#allocation3 + $0x20] sm:$0xff]
          %v1119 = vld [vmem:[#allocation3 + $0x28] sm:$0xff]
          %v1120 = vld [vmem:[#allocation3 + $0x30] sm:$0xff]
          %v1121 = vld [vmem:[#allocation3 + $0x38] sm:$0xff]
          %v1122 = vld [vmem:[#allocation3 + $0x40] sm:$0xff]
          %v1123 = vld [vmem:[#allocation3 + $0x48] sm:$0xff]
          %v1124 = vld [vmem:[#allocation3 + $0x50] sm:$0xff]
          %v1125 = vld [vmem:[#allocation3 + $0x58] sm:$0xff]
          %v1126 = vld [vmem:[#allocation3 + $0x60] sm:$0xff]
          %v1127 = vld [vmem:[#allocation3 + $0x68] sm:$0xff]
          %v1128 = vld [vmem:[#allocation3 + $0x70] sm:$0xff]
          %v1129 = vld [vmem:[#allocation3 + $0x78] sm:$0xff]
          %v1130 = vld [vmem:[#allocation3 + $0x80] sm:$0xff]
          %v1131 = vld [vmem:[#allocation3 + $0x88] sm:$0xff]
          %v1132 = vld [vmem:[#allocation3 + $0x90] sm:$0xff]
          %v1133 = vld [vmem:[#allocation3 + $0x98] sm:$0xff]
          %v1134 = vld [vmem:[#allocation3 + $0xa0] sm:$0xff]
          %v1135 = vld [vmem:[#allocation3 + $0xa8] sm:$0xff]
          %v1136 = vld [vmem:[#allocation3 + $0xb0] sm:$0xff]
          %v1137 = vld [vmem:[#allocation3 + $0xb8] sm:$0xff]
          %v1138 = vld [vmem:[#allocation3 + $0xc0] sm:$0xff]
          %v1139 = vld [vmem:[#allocation3 + $0xc8] sm:$0xff]
          %v1140 = vld [vmem:[#allocation3 + $0xd0] sm:$0xff]
          %v1141 = vld [vmem:[#allocation3 + $0xd8] sm:$0xff]
          %v1142 = vld [vmem:[#allocation3 + $0xe0] sm:$0xff]
          %v1143 = vld [vmem:[#allocation3 + $0xe8] sm:$0xff]
          %v1144 = vld [vmem:[#allocation3 + $0xf0] sm:$0xff]
          %v1145 = vld [vmem:[#allocation3 + $0xf8] sm:$0xff]
          %v1146 = vadd.f32 %v1114, %v1082
          %v1147 = vadd.f32 %v1115, %v1083
          %v1148 = vadd.f32 %v1116, %v1084
          %v1149 = vadd.f32 %v1117, %v1085
          %v1150 = vadd.f32 %v1118, %v1086
          %v1151 = vadd.f32 %v1119, %v1087
          %v1152 = vadd.f32 %v1120, %v1088
          %v1153 = vadd.f32 %v1121, %v1089
          %v1154 = vadd.f32 %v1122, %v1090
          %v1155 = vadd.f32 %v1123, %v1091
          %v1156 = vadd.f32 %v1124, %v1092
          %v1157 = vadd.f32 %v1125, %v1093
          %v1158 = vadd.f32 %v1126, %v1094
          %v1159 = vadd.f32 %v1127, %v1095
          %v1160 = vadd.f32 %v1128, %v1096
          %v1161 = vadd.f32 %v1129, %v1097
          %v1162 = vadd.f32 %v1130, %v1098
          %v1163 = vadd.f32 %v1131, %v1099
          %v1164 = vadd.f32 %v1132, %v1100
          %v1165 = vadd.f32 %v1133, %v1101
          %v1166 = vadd.f32 %v1134, %v1102
          %v1167 = vadd.f32 %v1135, %v1103
          %v1168 = vadd.f32 %v1136, %v1104
          %v1169 = vadd.f32 %v1137, %v1105
          %v1170 = vadd.f32 %v1138, %v1106
          %v1171 = vadd.f32 %v1139, %v1107
          %v1172 = vadd.f32 %v1140, %v1108
          %v1173 = vadd.f32 %v1141, %v1109
          %v1174 = vadd.f32 %v1142, %v1110
          %v1175 = vadd.f32 %v1143, %v1111
          %v1176 = vadd.f32 %v1144, %v1112
          %v1177 = vadd.f32 %v1145, %v1113
          %1178 = vst [vmem:[#allocation3] sm:$0xff] %v1146
          %1179 = vst [vmem:[#allocation3 + $0x8] sm:$0xff] %v1147
          %1180 = vst [vmem:[#allocation3 + $0x10] sm:$0xff] %v1148
          %1181 = vst [vmem:[#allocation3 + $0x18] sm:$0xff] %v1149
          %1182 = vst [vmem:[#allocation3 + $0x20] sm:$0xff] %v1150
          %1183 = vst [vmem:[#allocation3 + $0x28] sm:$0xff] %v1151
          %1184 = vst [vmem:[#allocation3 + $0x30] sm:$0xff] %v1152
          %1185 = vst [vmem:[#allocation3 + $0x38] sm:$0xff] %v1153
          %1186 = vst [vmem:[#allocation3 + $0x40] sm:$0xff] %v1154
          %1187 = vst [vmem:[#allocation3 + $0x48] sm:$0xff] %v1155
          %1188 = vst [vmem:[#allocation3 + $0x50] sm:$0xff] %v1156
          %1189 = vst [vmem:[#allocation3 + $0x58] sm:$0xff] %v1157
          %1190 = vst [vmem:[#allocation3 + $0x60] sm:$0xff] %v1158
          %1191 = vst [vmem:[#allocation3 + $0x68] sm:$0xff] %v1159
          %1192 = vst [vmem:[#allocation3 + $0x70] sm:$0xff] %v1160
          %1193 = vst [vmem:[#allocation3 + $0x78] sm:$0xff] %v1161
          %1194 = vst [vmem:[#allocation3 + $0x80] sm:$0xff] %v1162
          %1195 = vst [vmem:[#allocation3 + $0x88] sm:$0xff] %v1163
          %1196 = vst [vmem:[#allocation3 + $0x90] sm:$0xff] %v1164
          %1197 = vst [vmem:[#allocation3 + $0x98] sm:$0xff] %v1165
          %1198 = vst [vmem:[#allocation3 + $0xa0] sm:$0xff] %v1166
          %1199 = vst [vmem:[#allocation3 + $0xa8] sm:$0xff] %v1167
          %1200 = vst [vmem:[#allocation3 + $0xb0] sm:$0xff] %v1168
          %1201 = vst [vmem:[#allocation3 + $0xb8] sm:$0xff] %v1169
          %1202 = vst [vmem:[#allocation3 + $0xc0] sm:$0xff] %v1170
          %1203 = vst [vmem:[#allocation3 + $0xc8] sm:$0xff] %v1171
          %1204 = vst [vmem:[#allocation3 + $0xd0] sm:$0xff] %v1172
          %1205 = vst [vmem:[#allocation3 + $0xd8] sm:$0xff] %v1173
          %1206 = vst [vmem:[#allocation3 + $0xe0] sm:$0xff] %v1174
          %1207 = vst [vmem:[#allocation3 + $0xe8] sm:$0xff] %v1175
          %1208 = vst [vmem:[#allocation3 + $0xf0] sm:$0xff] %v1176
          %1209 = vst [vmem:[#allocation3 + $0xf8] sm:$0xff] %v1177
        $region85: #{tpu_custom_call.1} parent=63 // loop_footer
          %s620 = sadd.s32 1, %s616
        $region86: #{tpu_custom_call.1} parent=63 // loop_footer_branch
          %615 = sbr.rel target = $region82
        $region87: #{tpu_custom_call.1} parent=63 // loop_exit
          _
        %v1210 = vld [vmem:[#allocation3] sm:$0xff]
        %v1211 = vld [vmem:[#allocation3 + $0x8] sm:$0xff]
        %v1212 = vld [vmem:[#allocation3 + $0x10] sm:$0xff]
        %v1213 = vld [vmem:[#allocation3 + $0x18] sm:$0xff]
        %v1214 = vld [vmem:[#allocation3 + $0x20] sm:$0xff]
        %v1215 = vld [vmem:[#allocation3 + $0x28] sm:$0xff]
        %v1216 = vld [vmem:[#allocation3 + $0x30] sm:$0xff]
        %v1217 = vld [vmem:[#allocation3 + $0x38] sm:$0xff]
        %v1218 = vld [vmem:[#allocation3 + $0x40] sm:$0xff]
        %v1219 = vld [vmem:[#allocation3 + $0x48] sm:$0xff]
        %v1220 = vld [vmem:[#allocation3 + $0x50] sm:$0xff]
        %v1221 = vld [vmem:[#allocation3 + $0x58] sm:$0xff]
        %v1222 = vld [vmem:[#allocation3 + $0x60] sm:$0xff]
        %v1223 = vld [vmem:[#allocation3 + $0x68] sm:$0xff]
        %v1224 = vld [vmem:[#allocation3 + $0x70] sm:$0xff]
        %v1225 = vld [vmem:[#allocation3 + $0x78] sm:$0xff]
        %v1226 = vld [vmem:[#allocation3 + $0x80] sm:$0xff]
        %v1227 = vld [vmem:[#allocation3 + $0x88] sm:$0xff]
        %v1228 = vld [vmem:[#allocation3 + $0x90] sm:$0xff]
        %v1229 = vld [vmem:[#allocation3 + $0x98] sm:$0xff]
        %v1230 = vld [vmem:[#allocation3 + $0xa0] sm:$0xff]
        %v1231 = vld [vmem:[#allocation3 + $0xa8] sm:$0xff]
        %v1232 = vld [vmem:[#allocation3 + $0xb0] sm:$0xff]
        %v1233 = vld [vmem:[#allocation3 + $0xb8] sm:$0xff]
        %v1234 = vld [vmem:[#allocation3 + $0xc0] sm:$0xff]
        %v1235 = vld [vmem:[#allocation3 + $0xc8] sm:$0xff]
        %v1236 = vld [vmem:[#allocation3 + $0xd0] sm:$0xff]
        %v1237 = vld [vmem:[#allocation3 + $0xd8] sm:$0xff]
        %v1238 = vld [vmem:[#allocation3 + $0xe0] sm:$0xff]
        %v1239 = vld [vmem:[#allocation3 + $0xe8] sm:$0xff]
        %v1240 = vld [vmem:[#allocation3 + $0xf0] sm:$0xff]
        %v1241 = vld [vmem:[#allocation3 + $0xf8] sm:$0xff]
        %1242 = vadd.xlane.f32.xlu0 %v1210
        %v1243 = vpop.xlane.xlu0 %1242
        %1244 = vadd.xlane.f32.xlu0 %v1211
        %v1245 = vpop.xlane.xlu0 %1244
        %1246 = vadd.xlane.f32.xlu0 %v1212
        %v1247 = vpop.xlane.xlu0 %1246
        %1248 = vadd.xlane.f32.xlu0 %v1213
        %v1249 = vpop.xlane.xlu0 %1248
        %1250 = vadd.xlane.f32.xlu0 %v1214
        %v1251 = vpop.xlane.xlu0 %1250
        %1252 = vadd.xlane.f32.xlu0 %v1215
        %v1253 = vpop.xlane.xlu0 %1252
        %1254 = vadd.xlane.f32.xlu0 %v1216
        %v1255 = vpop.xlane.xlu0 %1254
        %1256 = vadd.xlane.f32.xlu0 %v1217
        %v1257 = vpop.xlane.xlu0 %1256
        %1258 = vadd.xlane.f32.xlu0 %v1218
        %v1259 = vpop.xlane.xlu0 %1258
        %1260 = vadd.xlane.f32.xlu0 %v1219
        %v1261 = vpop.xlane.xlu0 %1260
        %1262 = vadd.xlane.f32.xlu0 %v1220
        %v1263 = vpop.xlane.xlu0 %1262
        %1264 = vadd.xlane.f32.xlu0 %v1221
        %v1265 = vpop.xlane.xlu0 %1264
        %1266 = vadd.xlane.f32.xlu0 %v1222
        %v1267 = vpop.xlane.xlu0 %1266
        %1268 = vadd.xlane.f32.xlu0 %v1223
        %v1269 = vpop.xlane.xlu0 %1268
        %1270 = vadd.xlane.f32.xlu0 %v1224
        %v1271 = vpop.xlane.xlu0 %1270
        %1272 = vadd.xlane.f32.xlu0 %v1225
        %v1273 = vpop.xlane.xlu0 %1272
        %1274 = vadd.xlane.f32.xlu0 %v1226
        %v1275 = vpop.xlane.xlu0 %1274
        %1276 = vadd.xlane.f32.xlu0 %v1227
        %v1277 = vpop.xlane.xlu0 %1276
        %1278 = vadd.xlane.f32.xlu0 %v1228
        %v1279 = vpop.xlane.xlu0 %1278
        %1280 = vadd.xlane.f32.xlu0 %v1229
        %v1281 = vpop.xlane.xlu0 %1280
        %1282 = vadd.xlane.f32.xlu0 %v1230
        %v1283 = vpop.xlane.xlu0 %1282
        %1284 = vadd.xlane.f32.xlu0 %v1231
        %v1285 = vpop.xlane.xlu0 %1284
        %1286 = vadd.xlane.f32.xlu0 %v1232
        %v1287 = vpop.xlane.xlu0 %1286
        %1288 = vadd.xlane.f32.xlu0 %v1233
        %v1289 = vpop.xlane.xlu0 %1288
        %1290 = vadd.xlane.f32.xlu0 %v1234
        %v1291 = vpop.xlane.xlu0 %1290
        %1292 = vadd.xlane.f32.xlu0 %v1235
        %v1293 = vpop.xlane.xlu0 %1292
        %1294 = vadd.xlane.f32.xlu0 %v1236
        %v1295 = vpop.xlane.xlu0 %1294
        %1296 = vadd.xlane.f32.xlu0 %v1237
        %v1297 = vpop.xlane.xlu0 %1296
        %1298 = vadd.xlane.f32.xlu0 %v1238
        %v1299 = vpop.xlane.xlu0 %1298
        %1300 = vadd.xlane.f32.xlu0 %v1239
        %v1301 = vpop.xlane.xlu0 %1300
        %1302 = vadd.xlane.f32.xlu0 %v1240
        %v1303 = vpop.xlane.xlu0 %1302
        %1304 = vadd.xlane.f32.xlu0 %v1241
        %v1305 = vpop.xlane.xlu0 %1304
        %v1306 = vmul.f32 %v1243, 0.25
        %v1307 = vmul.f32 %v1245, 0.25
        %v1308 = vmul.f32 %v1247, 0.25
        %v1309 = vmul.f32 %v1249, 0.25
        %v1310 = vmul.f32 %v1251, 0.25
        %v1311 = vmul.f32 %v1253, 0.25
        %v1312 = vmul.f32 %v1255, 0.25
        %v1313 = vmul.f32 %v1257, 0.25
        %v1314 = vmul.f32 %v1259, 0.25
        %v1315 = vmul.f32 %v1261, 0.25
        %v1316 = vmul.f32 %v1263, 0.25
        %v1317 = vmul.f32 %v1265, 0.25
        %v1318 = vmul.f32 %v1267, 0.25
        %v1319 = vmul.f32 %v1269, 0.25
        %v1320 = vmul.f32 %v1271, 0.25
        %v1321 = vmul.f32 %v1273, 0.25
        %v1322 = vmul.f32 %v1275, 0.25
        %v1323 = vmul.f32 %v1277, 0.25
        %v1324 = vmul.f32 %v1279, 0.25
        %v1325 = vmul.f32 %v1281, 0.25
        %v1326 = vmul.f32 %v1283, 0.25
        %v1327 = vmul.f32 %v1285, 0.25
        %v1328 = vmul.f32 %v1287, 0.25
        %v1329 = vmul.f32 %v1289, 0.25
        %v1330 = vmul.f32 %v1291, 0.25
        %v1331 = vmul.f32 %v1293, 0.25
        %v1332 = vmul.f32 %v1295, 0.25
        %v1333 = vmul.f32 %v1297, 0.25
        %v1334 = vmul.f32 %v1299, 0.25
        %v1335 = vmul.f32 %v1301, 0.25
        %v1336 = vmul.f32 %v1303, 0.25
        %v1337 = vmul.f32 %v1305, 0.25
        %v1338 = vmul.f32 %v1210, %v1210
        %v1339 = vmul.f32 %v1211, %v1211
        %v1340 = vmul.f32 %v1212, %v1212
        %v1341 = vmul.f32 %v1213, %v1213
        %v1342 = vmul.f32 %v1214, %v1214
        %v1343 = vmul.f32 %v1215, %v1215
        %v1344 = vmul.f32 %v1216, %v1216
        %v1345 = vmul.f32 %v1217, %v1217
        %v1346 = vmul.f32 %v1218, %v1218
        %v1347 = vmul.f32 %v1219, %v1219
        %v1348 = vmul.f32 %v1220, %v1220
        %v1349 = vmul.f32 %v1221, %v1221
        %v1350 = vmul.f32 %v1222, %v1222
        %v1351 = vmul.f32 %v1223, %v1223
        %v1352 = vmul.f32 %v1224, %v1224
        %v1353 = vmul.f32 %v1225, %v1225
        %v1354 = vmul.f32 %v1226, %v1226
        %v1355 = vmul.f32 %v1227, %v1227
        %v1356 = vmul.f32 %v1228, %v1228
        %v1357 = vmul.f32 %v1229, %v1229
        %v1358 = vmul.f32 %v1230, %v1230
        %v1359 = vmul.f32 %v1231, %v1231
        %v1360 = vmul.f32 %v1232, %v1232
        %v1361 = vmul.f32 %v1233, %v1233
        %v1362 = vmul.f32 %v1234, %v1234
        %v1363 = vmul.f32 %v1235, %v1235
        %v1364 = vmul.f32 %v1236, %v1236
        %v1365 = vmul.f32 %v1237, %v1237
        %v1366 = vmul.f32 %v1238, %v1238
        %v1367 = vmul.f32 %v1239, %v1239
        %v1368 = vmul.f32 %v1240, %v1240
        %v1369 = vmul.f32 %v1241, %v1241
        %1370 = vadd.xlane.f32.xlu0 %v1338
        %v1371 = vpop.xlane.xlu0 %1370
        %1372 = vadd.xlane.f32.xlu0 %v1339
        %v1373 = vpop.xlane.xlu0 %1372
        %1374 = vadd.xlane.f32.xlu0 %v1340
        %v1375 = vpop.xlane.xlu0 %1374
        %1376 = vadd.xlane.f32.xlu0 %v1341
        %v1377 = vpop.xlane.xlu0 %1376
        %1378 = vadd.xlane.f32.xlu0 %v1342
        %v1379 = vpop.xlane.xlu0 %1378
        %1380 = vadd.xlane.f32.xlu0 %v1343
        %v1381 = vpop.xlane.xlu0 %1380
        %1382 = vadd.xlane.f32.xlu0 %v1344
        %v1383 = vpop.xlane.xlu0 %1382
        %1384 = vadd.xlane.f32.xlu0 %v1345
        %v1385 = vpop.xlane.xlu0 %1384
        %1386 = vadd.xlane.f32.xlu0 %v1346
        %v1387 = vpop.xlane.xlu0 %1386
        %1388 = vadd.xlane.f32.xlu0 %v1347
        %v1389 = vpop.xlane.xlu0 %1388
        %1390 = vadd.xlane.f32.xlu0 %v1348
        %v1391 = vpop.xlane.xlu0 %1390
        %1392 = vadd.xlane.f32.xlu0 %v1349
        %v1393 = vpop.xlane.xlu0 %1392
        %1394 = vadd.xlane.f32.xlu0 %v1350
        %v1395 = vpop.xlane.xlu0 %1394
        %1396 = vadd.xlane.f32.xlu0 %v1351
        %v1397 = vpop.xlane.xlu0 %1396
        %1398 = vadd.xlane.f32.xlu0 %v1352
        %v1399 = vpop.xlane.xlu0 %1398
        %1400 = vadd.xlane.f32.xlu0 %v1353
        %v1401 = vpop.xlane.xlu0 %1400
        %1402 = vadd.xlane.f32.xlu0 %v1354
        %v1403 = vpop.xlane.xlu0 %1402
        %1404 = vadd.xlane.f32.xlu0 %v1355
        %v1405 = vpop.xlane.xlu0 %1404
        %1406 = vadd.xlane.f32.xlu0 %v1356
        %v1407 = vpop.xlane.xlu0 %1406
        %1408 = vadd.xlane.f32.xlu0 %v1357
        %v1409 = vpop.xlane.xlu0 %1408
        %1410 = vadd.xlane.f32.xlu0 %v1358
        %v1411 = vpop.xlane.xlu0 %1410
        %1412 = vadd.xlane.f32.xlu0 %v1359
        %v1413 = vpop.xlane.xlu0 %1412
        %1414 = vadd.xlane.f32.xlu0 %v1360
        %v1415 = vpop.xlane.xlu0 %1414
        %1416 = vadd.xlane.f32.xlu0 %v1361
        %v1417 = vpop.xlane.xlu0 %1416
        %1418 = vadd.xlane.f32.xlu0 %v1362
        %v1419 = vpop.xlane.xlu0 %1418
        %1420 = vadd.xlane.f32.xlu0 %v1363
        %v1421 = vpop.xlane.xlu0 %1420
        %1422 = vadd.xlane.f32.xlu0 %v1364
        %v1423 = vpop.xlane.xlu0 %1422
        %1424 = vadd.xlane.f32.xlu0 %v1365
        %v1425 = vpop.xlane.xlu0 %1424
        %1426 = vadd.xlane.f32.xlu0 %v1366
        %v1427 = vpop.xlane.xlu0 %1426
        %1428 = vadd.xlane.f32.xlu0 %v1367
        %v1429 = vpop.xlane.xlu0 %1428
        %1430 = vadd.xlane.f32.xlu0 %v1368
        %v1431 = vpop.xlane.xlu0 %1430
        %1432 = vadd.xlane.f32.xlu0 %v1369
        %v1433 = vpop.xlane.xlu0 %1432
        %v1434 = vmul.f32 %v1371, 0.25
        %v1435 = vmul.f32 %v1373, 0.25
        %v1436 = vmul.f32 %v1375, 0.25
        %v1437 = vmul.f32 %v1377, 0.25
        %v1438 = vmul.f32 %v1379, 0.25
        %v1439 = vmul.f32 %v1381, 0.25
        %v1440 = vmul.f32 %v1383, 0.25
        %v1441 = vmul.f32 %v1385, 0.25
        %v1442 = vmul.f32 %v1387, 0.25
        %v1443 = vmul.f32 %v1389, 0.25
        %v1444 = vmul.f32 %v1391, 0.25
        %v1445 = vmul.f32 %v1393, 0.25
        %v1446 = vmul.f32 %v1395, 0.25
        %v1447 = vmul.f32 %v1397, 0.25
        %v1448 = vmul.f32 %v1399, 0.25
        %v1449 = vmul.f32 %v1401, 0.25
        %v1450 = vmul.f32 %v1403, 0.25
        %v1451 = vmul.f32 %v1405, 0.25
        %v1452 = vmul.f32 %v1407, 0.25
        %v1453 = vmul.f32 %v1409, 0.25
        %v1454 = vmul.f32 %v1411, 0.25
        %v1455 = vmul.f32 %v1413, 0.25
        %v1456 = vmul.f32 %v1415, 0.25
        %v1457 = vmul.f32 %v1417, 0.25
        %v1458 = vmul.f32 %v1419, 0.25
        %v1459 = vmul.f32 %v1421, 0.25
        %v1460 = vmul.f32 %v1423, 0.25
        %v1461 = vmul.f32 %v1425, 0.25
        %v1462 = vmul.f32 %v1427, 0.25
        %v1463 = vmul.f32 %v1429, 0.25
        %v1464 = vmul.f32 %v1431, 0.25
        %v1465 = vmul.f32 %v1433, 0.25
        %v1466 = vmul.f32 %v1306, %v1306
        %v1467 = vmul.f32 %v1307, %v1307
        %v1468 = vmul.f32 %v1308, %v1308
        %v1469 = vmul.f32 %v1309, %v1309
        %v1470 = vmul.f32 %v1310, %v1310
        %v1471 = vmul.f32 %v1311, %v1311
        %v1472 = vmul.f32 %v1312, %v1312
        %v1473 = vmul.f32 %v1313, %v1313
        %v1474 = vmul.f32 %v1314, %v1314
        %v1475 = vmul.f32 %v1315, %v1315
        %v1476 = vmul.f32 %v1316, %v1316
        %v1477 = vmul.f32 %v1317, %v1317
        %v1478 = vmul.f32 %v1318, %v1318
        %v1479 = vmul.f32 %v1319, %v1319
        %v1480 = vmul.f32 %v1320, %v1320
        %v1481 = vmul.f32 %v1321, %v1321
        %v1482 = vmul.f32 %v1322, %v1322
        %v1483 = vmul.f32 %v1323, %v1323
        %v1484 = vmul.f32 %v1324, %v1324
        %v1485 = vmul.f32 %v1325, %v1325
        %v1486 = vmul.f32 %v1326, %v1326
        %v1487 = vmul.f32 %v1327, %v1327
        %v1488 = vmul.f32 %v1328, %v1328
        %v1489 = vmul.f32 %v1329, %v1329
        %v1490 = vmul.f32 %v1330, %v1330
        %v1491 = vmul.f32 %v1331, %v1331
        %v1492 = vmul.f32 %v1332, %v1332
        %v1493 = vmul.f32 %v1333, %v1333
        %v1494 = vmul.f32 %v1334, %v1334
        %v1495 = vmul.f32 %v1335, %v1335
        %v1496 = vmul.f32 %v1336, %v1336
        %v1497 = vmul.f32 %v1337, %v1337
        %v1498 = vsub.f32 %v1434, %v1466
        %v1499 = vsub.f32 %v1435, %v1467
        %v1500 = vsub.f32 %v1436, %v1468
        %v1501 = vsub.f32 %v1437, %v1469
        %v1502 = vsub.f32 %v1438, %v1470
        %v1503 = vsub.f32 %v1439, %v1471
        %v1504 = vsub.f32 %v1440, %v1472
        %v1505 = vsub.f32 %v1441, %v1473
        %v1506 = vsub.f32 %v1442, %v1474
        %v1507 = vsub.f32 %v1443, %v1475
        %v1508 = vsub.f32 %v1444, %v1476
        %v1509 = vsub.f32 %v1445, %v1477
        %v1510 = vsub.f32 %v1446, %v1478
        %v1511 = vsub.f32 %v1447, %v1479
        %v1512 = vsub.f32 %v1448, %v1480
        %v1513 = vsub.f32 %v1449, %v1481
        %v1514 = vsub.f32 %v1450, %v1482
        %v1515 = vsub.f32 %v1451, %v1483
        %v1516 = vsub.f32 %v1452, %v1484
        %v1517 = vsub.f32 %v1453, %v1485
        %v1518 = vsub.f32 %v1454, %v1486
        %v1519 = vsub.f32 %v1455, %v1487
        %v1520 = vsub.f32 %v1456, %v1488
        %v1521 = vsub.f32 %v1457, %v1489
        %v1522 = vsub.f32 %v1458, %v1490
        %v1523 = vsub.f32 %v1459, %v1491
        %v1524 = vsub.f32 %v1460, %v1492
        %v1525 = vsub.f32 %v1461, %v1493
        %v1526 = vsub.f32 %v1462, %v1494
        %v1527 = vsub.f32 %v1463, %v1495
        %v1528 = vsub.f32 %v1464, %v1496
        %v1529 = vsub.f32 %v1465, %v1497
        %v1530 = vmax.f32 %v1498, 0.0
        %v1531 = vmax.f32 %v1499, 0.0
        %v1532 = vmax.f32 %v1500, 0.0
        %v1533 = vmax.f32 %v1501, 0.0
        %v1534 = vmax.f32 %v1502, 0.0
        %v1535 = vmax.f32 %v1503, 0.0
        %v1536 = vmax.f32 %v1504, 0.0
        %v1537 = vmax.f32 %v1505, 0.0
        %v1538 = vmax.f32 %v1506, 0.0
        %v1539 = vmax.f32 %v1507, 0.0
        %v1540 = vmax.f32 %v1508, 0.0
        %v1541 = vmax.f32 %v1509, 0.0
        %v1542 = vmax.f32 %v1510, 0.0
        %v1543 = vmax.f32 %v1511, 0.0
        %v1544 = vmax.f32 %v1512, 0.0
        %v1545 = vmax.f32 %v1513, 0.0
        %v1546 = vmax.f32 %v1514, 0.0
        %v1547 = vmax.f32 %v1515, 0.0
        %v1548 = vmax.f32 %v1516, 0.0
        %v1549 = vmax.f32 %v1517, 0.0
        %v1550 = vmax.f32 %v1518, 0.0
        %v1551 = vmax.f32 %v1519, 0.0
        %v1552 = vmax.f32 %v1520, 0.0
        %v1553 = vmax.f32 %v1521, 0.0
        %v1554 = vmax.f32 %v1522, 0.0
        %v1555 = vmax.f32 %v1523, 0.0
        %v1556 = vmax.f32 %v1524, 0.0
        %v1557 = vmax.f32 %v1525, 0.0
        %v1558 = vmax.f32 %v1526, 0.0
        %v1559 = vmax.f32 %v1527, 0.0
        %v1560 = vmax.f32 %v1528, 0.0
        %v1561 = vmax.f32 %v1529, 0.0
        %v1562 = vsub.f32 %v1210, %v1306
        %v1563 = vsub.f32 %v1211, %v1307
        %v1564 = vsub.f32 %v1212, %v1308
        %v1565 = vsub.f32 %v1213, %v1309
        %v1566 = vsub.f32 %v1214, %v1310
        %v1567 = vsub.f32 %v1215, %v1311
        %v1568 = vsub.f32 %v1216, %v1312
        %v1569 = vsub.f32 %v1217, %v1313
        %v1570 = vsub.f32 %v1218, %v1314
        %v1571 = vsub.f32 %v1219, %v1315
        %v1572 = vsub.f32 %v1220, %v1316
        %v1573 = vsub.f32 %v1221, %v1317
        %v1574 = vsub.f32 %v1222, %v1318
        %v1575 = vsub.f32 %v1223, %v1319
        %v1576 = vsub.f32 %v1224, %v1320
        %v1577 = vsub.f32 %v1225, %v1321
        %v1578 = vsub.f32 %v1226, %v1322
        %v1579 = vsub.f32 %v1227, %v1323
        %v1580 = vsub.f32 %v1228, %v1324
        %v1581 = vsub.f32 %v1229, %v1325
        %v1582 = vsub.f32 %v1230, %v1326
        %v1583 = vsub.f32 %v1231, %v1327
        %v1584 = vsub.f32 %v1232, %v1328
        %v1585 = vsub.f32 %v1233, %v1329
        %v1586 = vsub.f32 %v1234, %v1330
        %v1587 = vsub.f32 %v1235, %v1331
        %v1588 = vsub.f32 %v1236, %v1332
        %v1589 = vsub.f32 %v1237, %v1333
        %v1590 = vsub.f32 %v1238, %v1334
        %v1591 = vsub.f32 %v1239, %v1335
        %v1592 = vsub.f32 %v1240, %v1336
        %v1593 = vsub.f32 %v1241, %v1337
        %v1594 = vadd.f32 %v1530, 1e-06
        %v1595 = vadd.f32 %v1531, 1e-06
        %v1596 = vadd.f32 %v1532, 1e-06
        %v1597 = vadd.f32 %v1533, 1e-06
        %v1598 = vadd.f32 %v1534, 1e-06
        %v1599 = vadd.f32 %v1535, 1e-06
        %v1600 = vadd.f32 %v1536, 1e-06
        %v1601 = vadd.f32 %v1537, 1e-06
        %v1602 = vadd.f32 %v1538, 1e-06
        %v1603 = vadd.f32 %v1539, 1e-06
        %v1604 = vadd.f32 %v1540, 1e-06
        %v1605 = vadd.f32 %v1541, 1e-06
        %v1606 = vadd.f32 %v1542, 1e-06
        %v1607 = vadd.f32 %v1543, 1e-06
        %v1608 = vadd.f32 %v1544, 1e-06
        %v1609 = vadd.f32 %v1545, 1e-06
        %v1610 = vadd.f32 %v1546, 1e-06
        %v1611 = vadd.f32 %v1547, 1e-06
        %v1612 = vadd.f32 %v1548, 1e-06
        %v1613 = vadd.f32 %v1549, 1e-06
        %v1614 = vadd.f32 %v1550, 1e-06
        %v1615 = vadd.f32 %v1551, 1e-06
        %v1616 = vadd.f32 %v1552, 1e-06
        %v1617 = vadd.f32 %v1553, 1e-06
        %v1618 = vadd.f32 %v1554, 1e-06
        %v1619 = vadd.f32 %v1555, 1e-06
        %v1620 = vadd.f32 %v1556, 1e-06
        %v1621 = vadd.f32 %v1557, 1e-06
        %v1622 = vadd.f32 %v1558, 1e-06
        %v1623 = vadd.f32 %v1559, 1e-06
        %v1624 = vadd.f32 %v1560, 1e-06
        %v1625 = vadd.f32 %v1561, 1e-06
        %v1626 = vrsqrt.pop %v1594
        %v1627 = vrsqrt.pop %v1595
        %v1628 = vrsqrt.pop %v1596
        %v1629 = vrsqrt.pop %v1597
        %v1630 = vrsqrt.pop %v1598
        %v1631 = vrsqrt.pop %v1599
        %v1632 = vrsqrt.pop %v1600
        %v1633 = vrsqrt.pop %v1601
        %v1634 = vrsqrt.pop %v1602
        %v1635 = vrsqrt.pop %v1603
        %v1636 = vrsqrt.pop %v1604
        %v1637 = vrsqrt.pop %v1605
        %v1638 = vrsqrt.pop %v1606
        %v1639 = vrsqrt.pop %v1607
        %v1640 = vrsqrt.pop %v1608
        %v1641 = vrsqrt.pop %v1609
        %v1642 = vrsqrt.pop %v1610
        %v1643 = vrsqrt.pop %v1611
        %v1644 = vrsqrt.pop %v1612
        %v1645 = vrsqrt.pop %v1613
        %v1646 = vrsqrt.pop %v1614
        %v1647 = vrsqrt.pop %v1615
        %v1648 = vrsqrt.pop %v1616
        %v1649 = vrsqrt.pop %v1617
        %v1650 = vrsqrt.pop %v1618
        %v1651 = vrsqrt.pop %v1619
        %v1652 = vrsqrt.pop %v1620
        %v1653 = vrsqrt.pop %v1621
        %v1654 = vrsqrt.pop %v1622
        %v1655 = vrsqrt.pop %v1623
        %v1656 = vrsqrt.pop %v1624
        %v1657 = vrsqrt.pop %v1625
        %v1658 = vmul.f32 %v1562, %v1626
        %v1659 = vmul.f32 %v1563, %v1627
        %v1660 = vmul.f32 %v1564, %v1628
        %v1661 = vmul.f32 %v1565, %v1629
        %v1662 = vmul.f32 %v1566, %v1630
        %v1663 = vmul.f32 %v1567, %v1631
        %v1664 = vmul.f32 %v1568, %v1632
        %v1665 = vmul.f32 %v1569, %v1633
        %v1666 = vmul.f32 %v1570, %v1634
        %v1667 = vmul.f32 %v1571, %v1635
        %v1668 = vmul.f32 %v1572, %v1636
        %v1669 = vmul.f32 %v1573, %v1637
        %v1670 = vmul.f32 %v1574, %v1638
        %v1671 = vmul.f32 %v1575, %v1639
        %v1672 = vmul.f32 %v1576, %v1640
        %v1673 = vmul.f32 %v1577, %v1641
        %v1674 = vmul.f32 %v1578, %v1642
        %v1675 = vmul.f32 %v1579, %v1643
        %v1676 = vmul.f32 %v1580, %v1644
        %v1677 = vmul.f32 %v1581, %v1645
        %v1678 = vmul.f32 %v1582, %v1646
        %v1679 = vmul.f32 %v1583, %v1647
        %v1680 = vmul.f32 %v1584, %v1648
        %v1681 = vmul.f32 %v1585, %v1649
        %v1682 = vmul.f32 %v1586, %v1650
        %v1683 = vmul.f32 %v1587, %v1651
        %v1684 = vmul.f32 %v1588, %v1652
        %v1685 = vmul.f32 %v1589, %v1653
        %v1686 = vmul.f32 %v1590, %v1654
        %v1687 = vmul.f32 %v1591, %v1655
        %v1688 = vmul.f32 %v1592, %v1656
        %v1689 = vmul.f32 %v1593, %v1657
        %v1690 = vld [vmem:[%s3] sm:$0x1]
        %v1692 = vlaneseq
        %v1693 = vshrl.u32 %v1692, 7
        %v1694 = vsub.s32 0, %v1693
        %v1695 = vrot.slane %v1690, %v1694
        %v1697 = vmul.f32 %v1658, %v1695
        %v1698 = vmul.f32 %v1659, %v1695
        %v1699 = vmul.f32 %v1660, %v1695
        %v1700 = vmul.f32 %v1661, %v1695
        %v1701 = vmul.f32 %v1662, %v1695
        %v1702 = vmul.f32 %v1663, %v1695
        %v1703 = vmul.f32 %v1664, %v1695
        %v1704 = vmul.f32 %v1665, %v1695
        %v1705 = vmul.f32 %v1666, %v1695
        %v1706 = vmul.f32 %v1667, %v1695
        %v1707 = vmul.f32 %v1668, %v1695
        %v1708 = vmul.f32 %v1669, %v1695
        %v1709 = vmul.f32 %v1670, %v1695
        %v1710 = vmul.f32 %v1671, %v1695
        %v1711 = vmul.f32 %v1672, %v1695
        %v1712 = vmul.f32 %v1673, %v1695
        %v1713 = vmul.f32 %v1674, %v1695
        %v1714 = vmul.f32 %v1675, %v1695
        %v1715 = vmul.f32 %v1676, %v1695
        %v1716 = vmul.f32 %v1677, %v1695
        %v1717 = vmul.f32 %v1678, %v1695
        %v1718 = vmul.f32 %v1679, %v1695
        %v1719 = vmul.f32 %v1680, %v1695
        %v1720 = vmul.f32 %v1681, %v1695
        %v1721 = vmul.f32 %v1682, %v1695
        %v1722 = vmul.f32 %v1683, %v1695
        %v1723 = vmul.f32 %v1684, %v1695
        %v1724 = vmul.f32 %v1685, %v1695
        %v1725 = vmul.f32 %v1686, %v1695
        %v1726 = vmul.f32 %v1687, %v1695
        %v1727 = vmul.f32 %v1688, %v1695
        %v1728 = vmul.f32 %v1689, %v1695
        %v1729 = vld [vmem:[%s4] sm:$0x1]
        %v1731 = vlaneseq
        %v1732 = vshrl.u32 %v1731, 7
        %v1733 = vsub.s32 0, %v1732
        %v1734 = vrot.slane %v1729, %v1733
        %v1736 = vadd.f32 %v1697, %v1734
        %v1737 = vadd.f32 %v1698, %v1734
        %v1738 = vadd.f32 %v1699, %v1734
        %v1739 = vadd.f32 %v1700, %v1734
        %v1740 = vadd.f32 %v1701, %v1734
        %v1741 = vadd.f32 %v1702, %v1734
        %v1742 = vadd.f32 %v1703, %v1734
        %v1743 = vadd.f32 %v1704, %v1734
        %v1744 = vadd.f32 %v1705, %v1734
        %v1745 = vadd.f32 %v1706, %v1734
        %v1746 = vadd.f32 %v1707, %v1734
        %v1747 = vadd.f32 %v1708, %v1734
        %v1748 = vadd.f32 %v1709, %v1734
        %v1749 = vadd.f32 %v1710, %v1734
        %v1750 = vadd.f32 %v1711, %v1734
        %v1751 = vadd.f32 %v1712, %v1734
        %v1752 = vadd.f32 %v1713, %v1734
        %v1753 = vadd.f32 %v1714, %v1734
        %v1754 = vadd.f32 %v1715, %v1734
        %v1755 = vadd.f32 %v1716, %v1734
        %v1756 = vadd.f32 %v1717, %v1734
        %v1757 = vadd.f32 %v1718, %v1734
        %v1758 = vadd.f32 %v1719, %v1734
        %v1759 = vadd.f32 %v1720, %v1734
        %v1760 = vadd.f32 %v1721, %v1734
        %v1761 = vadd.f32 %v1722, %v1734
        %v1762 = vadd.f32 %v1723, %v1734
        %v1763 = vadd.f32 %v1724, %v1734
        %v1764 = vadd.f32 %v1725, %v1734
        %v1765 = vadd.f32 %v1726, %v1734
        %v1766 = vadd.f32 %v1727, %v1734
        %v1767 = vadd.f32 %v1728, %v1734
        %v1768 = vpack.c.bf16 %v1737, %v1736
        %v1769 = vpack.c.bf16 %v1739, %v1738
        %v1770 = vpack.c.bf16 %v1741, %v1740
        %v1771 = vpack.c.bf16 %v1743, %v1742
        %v1772 = vpack.c.bf16 %v1745, %v1744
        %v1773 = vpack.c.bf16 %v1747, %v1746
        %v1774 = vpack.c.bf16 %v1749, %v1748
        %v1775 = vpack.c.bf16 %v1751, %v1750
        %v1776 = vpack.c.bf16 %v1753, %v1752
        %v1777 = vpack.c.bf16 %v1755, %v1754
        %v1778 = vpack.c.bf16 %v1757, %v1756
        %v1779 = vpack.c.bf16 %v1759, %v1758
        %v1780 = vpack.c.bf16 %v1761, %v1760
        %v1781 = vpack.c.bf16 %v1763, %v1762
        %v1782 = vpack.c.bf16 %v1765, %v1764
        %v1783 = vpack.c.bf16 %v1767, %v1766
        %v1784 = vld [vmem:[#allocation9] sm:$0xf]
        %v1785 = vld [vmem:[#allocation9 + $0x4] sm:$0xf]
        %v1786 = vld [vmem:[#allocation9 + $0x8] sm:$0xf]
        %v1787 = vld [vmem:[#allocation9 + $0xc] sm:$0xf]
        %v1788 = vld [vmem:[#allocation9 + $0x10] sm:$0xf]
        %v1789 = vld [vmem:[#allocation9 + $0x14] sm:$0xf]
        %v1790 = vld [vmem:[#allocation9 + $0x18] sm:$0xf]
        %v1791 = vld [vmem:[#allocation9 + $0x1c] sm:$0xf]
        %v1792 = vld [vmem:[#allocation9 + $0x20] sm:$0xf]
        %v1793 = vld [vmem:[#allocation9 + $0x24] sm:$0xf]
        %v1794 = vld [vmem:[#allocation9 + $0x28] sm:$0xf]
        %v1795 = vld [vmem:[#allocation9 + $0x2c] sm:$0xf]
        %v1796 = vld [vmem:[#allocation9 + $0x30] sm:$0xf]
        %v1797 = vld [vmem:[#allocation9 + $0x34] sm:$0xf]
        %v1798 = vld [vmem:[#allocation9 + $0x38] sm:$0xf]
        %v1799 = vld [vmem:[#allocation9 + $0x3c] sm:$0xf]
        %v1800 = vld [vmem:[%s6] sm:$0x1]
        %v1802 = vlaneseq
        %v1803 = vshrl.u32 %v1802, 7
        %v1804 = vsub.s32 0, %v1803
        %v1805 = vrot.slane %v1800, %v1804
        %v1823 = vunpack.c.l.b16 %v1784
        %v1824 = vunpack.c.l.b16 %v1785
        %v1825 = vunpack.c.l.b16 %v1786
        %v1826 = vunpack.c.l.b16 %v1787
        %v1827 = vunpack.c.l.b16 %v1788
        %v1828 = vunpack.c.l.b16 %v1789
        %v1829 = vunpack.c.l.b16 %v1790
        %v1830 = vunpack.c.l.b16 %v1791
        %v1831 = vunpack.c.l.b16 %v1792
        %v1832 = vunpack.c.l.b16 %v1793
        %v1833 = vunpack.c.l.b16 %v1794
        %v1834 = vunpack.c.l.b16 %v1795
        %v1835 = vunpack.c.l.b16 %v1796
        %v1836 = vunpack.c.l.b16 %v1797
        %v1837 = vunpack.c.l.b16 %v1798
        %v1838 = vunpack.c.l.b16 %v1799
        %v1839 = vpack.c.b16 %v1824, %v1823
        %v1840 = vpack.c.b16 %v1826, %v1825
        %v1841 = vpack.c.b16 %v1828, %v1827
        %v1842 = vpack.c.b16 %v1830, %v1829
        %v1843 = vpack.c.b16 %v1832, %v1831
        %v1844 = vpack.c.b16 %v1834, %v1833
        %v1845 = vpack.c.b16 %v1836, %v1835
        %v1846 = vpack.c.b16 %v1838, %v1837
        %1855 = vmatprep.subr.bf16.mxu0 0
        %1856 = vmatpush1.bf16.msra.mxu0 %v1839
        %1857 = vmatprep.subr.bf16.mxu0 0
        %1858 = vmatpush1.bf16.msra.mxu0 %v1840
        %1859 = vmatprep.subr.bf16.mxu0 0
        %1860 = vmatpush1.bf16.msra.mxu0 %v1841
        %1861 = vmatprep.subr.bf16.mxu0 0
        %1862 = vmatpush1.bf16.msra.mxu0 %v1842
        %1863 = vmatprep.subr.bf16.mxu0 0
        %1864 = vmatpush1.bf16.msra.mxu0 %v1843
        %1865 = vmatprep.subr.bf16.mxu0 0
        %1866 = vmatpush1.bf16.msra.mxu0 %v1844
        %1867 = vmatprep.subr.bf16.mxu0 0
        %1868 = vmatpush1.bf16.msra.mxu0 %v1845
        %1869 = vmatprep.subr.bf16.mxu0 0
        %1870 = vmatpush1.bf16.msra.mxu0 %v1846
        %1871 = vmatprep.subr.bf16.mxu0 0
        %1872 = vmatpush1.bf16.msra.mxu0 0
        %1873 = vmatprep.subr.bf16.mxu0 0
        %1874 = vmatpush1.bf16.msra.mxu0 0
        %1875 = vmatprep.subr.bf16.mxu0 0
        %1876 = vmatpush1.bf16.msra.mxu0 0
        %1877 = vmatprep.subr.bf16.mxu0 0
        %1878 = vmatpush1.bf16.msra.mxu0 0
        %1879 = vmatprep.subr.bf16.mxu0 0
        %1880 = vmatpush1.bf16.msra.mxu0 0
        %1881 = vmatprep.subr.bf16.mxu0 0
        %1882 = vmatpush1.bf16.msra.mxu0 0
        %1883 = vmatprep.subr.bf16.mxu0 0
        %1884 = vmatpush1.bf16.msra.mxu0 0
        %1885 = vmatprep.subr.bf16.mxu0 0
        %1886 = vmatpush1.bf16.msra.mxu0 0
        %1887 = vmatprep.mubr.bf16.mxu0 0
        %1888 = vmatmul.mubr.bf16.gmra.mrb[0].mxu0 %v1768
        %v1889 = vpop.f32.mrb[0].mxu0
        %v1890 = vadd.f32 %v1805, %v1889
        %v1891 = vpop.f32.mrb[0].mxu0
        %v1892 = vpop.f32.mrb[0].mxu0
        %v1893 = vadd.f32 %v1805, %v1892
        %v1894 = vpop.f32.mrb[0].mxu0
        %1895 = vmatprep.mubr.bf16.mxu0 0
        %1896 = vmatmul.mubr.bf16.gmra.mrb[0].mxu0 %v1769
        %v1897 = vpop.f32.mrb[0].mxu0
        %v1898 = vadd.f32 %v1805, %v1897
        %v1899 = vpop.f32.mrb[0].mxu0
        %v1900 = vpop.f32.mrb[0].mxu0
        %v1901 = vadd.f32 %v1805, %v1900
        %v1902 = vpop.f32.mrb[0].mxu0
        %1903 = vmatprep.mubr.bf16.mxu0 0
        %1904 = vmatmul.mubr.bf16.gmra.mrb[0].mxu0 %v1770
        %v1905 = vpop.f32.mrb[0].mxu0
        %v1906 = vadd.f32 %v1805, %v1905
        %v1907 = vpop.f32.mrb[0].mxu0
        %v1908 = vpop.f32.mrb[0].mxu0
        %v1909 = vadd.f32 %v1805, %v1908
        %v1910 = vpop.f32.mrb[0].mxu0
        %1911 = vmatprep.mubr.bf16.mxu0 0
        %1912 = vmatmul.mubr.bf16.gmra.mrb[0].mxu0 %v1771
        %v1913 = vpop.f32.mrb[0].mxu0
        %v1914 = vadd.f32 %v1805, %v1913
        %v1915 = vpop.f32.mrb[0].mxu0
        %v1916 = vpop.f32.mrb[0].mxu0
        %v1917 = vadd.f32 %v1805, %v1916
        %v1918 = vpop.f32.mrb[0].mxu0
        %1919 = vmatprep.mubr.bf16.mxu0 0
        %1920 = vmatmul.mubr.bf16.gmra.mrb[0].mxu0 %v1772
        %v1921 = vpop.f32.mrb[0].mxu0
        %v1922 = vadd.f32 %v1805, %v1921
        %v1923 = vpop.f32.mrb[0].mxu0
        %v1924 = vpop.f32.mrb[0].mxu0
        %v1925 = vadd.f32 %v1805, %v1924
        %v1926 = vpop.f32.mrb[0].mxu0
        %1927 = vmatprep.mubr.bf16.mxu0 0
        %1928 = vmatmul.mubr.bf16.gmra.mrb[0].mxu0 %v1773
        %v1929 = vpop.f32.mrb[0].mxu0
        %v1930 = vadd.f32 %v1805, %v1929
        %v1931 = vpop.f32.mrb[0].mxu0
        %v1932 = vpop.f32.mrb[0].mxu0
        %v1933 = vadd.f32 %v1805, %v1932
        %v1934 = vpop.f32.mrb[0].mxu0
        %1935 = vmatprep.mubr.bf16.mxu0 0
        %1936 = vmatmul.mubr.bf16.gmra.mrb[0].mxu0 %v1774
        %v1937 = vpop.f32.mrb[0].mxu0
        %v1938 = vadd.f32 %v1805, %v1937
        %v1939 = vpop.f32.mrb[0].mxu0
        %v1940 = vpop.f32.mrb[0].mxu0
        %v1941 = vadd.f32 %v1805, %v1940
        %v1942 = vpop.f32.mrb[0].mxu0
        %1943 = vmatprep.mubr.bf16.mxu0 0
        %1944 = vmatmul.mubr.bf16.gmra.mrb[0].mxu0 %v1775
        %v1945 = vpop.f32.mrb[0].mxu0
        %v1946 = vadd.f32 %v1805, %v1945
        %v1947 = vpop.f32.mrb[0].mxu0
        %v1948 = vpop.f32.mrb[0].mxu0
        %v1949 = vadd.f32 %v1805, %v1948
        %v1950 = vpop.f32.mrb[0].mxu0
        %1951 = vmatprep.mubr.bf16.mxu0 0
        %1952 = vmatmul.mubr.bf16.gmra.mrb[0].mxu0 %v1776
        %v1953 = vpop.f32.mrb[0].mxu0
        %v1954 = vadd.f32 %v1805, %v1953
        %v1955 = vpop.f32.mrb[0].mxu0
        %v1956 = vpop.f32.mrb[0].mxu0
        %v1957 = vadd.f32 %v1805, %v1956
        %v1958 = vpop.f32.mrb[0].mxu0
        %1959 = vmatprep.mubr.bf16.mxu0 0
        %1960 = vmatmul.mubr.bf16.gmra.mrb[0].mxu0 %v1777
        %v1961 = vpop.f32.mrb[0].mxu0
        %v1962 = vadd.f32 %v1805, %v1961
        %v1963 = vpop.f32.mrb[0].mxu0
        %v1964 = vpop.f32.mrb[0].mxu0
        %v1965 = vadd.f32 %v1805, %v1964
        %v1966 = vpop.f32.mrb[0].mxu0
        %1967 = vmatprep.mubr.bf16.mxu0 0
        %1968 = vmatmul.mubr.bf16.gmra.mrb[0].mxu0 %v1778
        %v1969 = vpop.f32.mrb[0].mxu0
        %v1970 = vadd.f32 %v1805, %v1969
        %v1971 = vpop.f32.mrb[0].mxu0
        %v1972 = vpop.f32.mrb[0].mxu0
        %v1973 = vadd.f32 %v1805, %v1972
        %v1974 = vpop.f32.mrb[0].mxu0
        %1975 = vmatprep.mubr.bf16.mxu0 0
        %1976 = vmatmul.mubr.bf16.gmra.mrb[0].mxu0 %v1779
        %v1977 = vpop.f32.mrb[0].mxu0
        %v1978 = vadd.f32 %v1805, %v1977
        %v1979 = vpop.f32.mrb[0].mxu0
        %v1980 = vpop.f32.mrb[0].mxu0
        %v1981 = vadd.f32 %v1805, %v1980
        %v1982 = vpop.f32.mrb[0].mxu0
        %1983 = vmatprep.mubr.bf16.mxu0 0
        %1984 = vmatmul.mubr.bf16.gmra.mrb[0].mxu0 %v1780
        %v1985 = vpop.f32.mrb[0].mxu0
        %v1986 = vadd.f32 %v1805, %v1985
        %v1987 = vpop.f32.mrb[0].mxu0
        %v1988 = vpop.f32.mrb[0].mxu0
        %v1989 = vadd.f32 %v1805, %v1988
        %v1990 = vpop.f32.mrb[0].mxu0
        %1991 = vmatprep.mubr.bf16.mxu0 0
        %1992 = vmatmul.mubr.bf16.gmra.mrb[0].mxu0 %v1781
        %v1993 = vpop.f32.mrb[0].mxu0
        %v1994 = vadd.f32 %v1805, %v1993
        %v1995 = vpop.f32.mrb[0].mxu0
        %v1996 = vpop.f32.mrb[0].mxu0
        %v1997 = vadd.f32 %v1805, %v1996
        %v1998 = vpop.f32.mrb[0].mxu0
        %1999 = vmatprep.mubr.bf16.mxu0 0
        %2000 = vmatmul.mubr.bf16.gmra.mrb[0].mxu0 %v1782
        %v2001 = vpop.f32.mrb[0].mxu0
        %v2002 = vadd.f32 %v1805, %v2001
        %v2003 = vpop.f32.mrb[0].mxu0
        %v2004 = vpop.f32.mrb[0].mxu0
        %v2005 = vadd.f32 %v1805, %v2004
        %v2006 = vpop.f32.mrb[0].mxu0
        %2007 = vmatprep.mubr.bf16.mxu0 0
        %2008 = vmatmul.mubr.bf16.gmra.mrb[0].mxu0 %v1783
        %v2009 = vpop.f32.mrb[0].mxu0
        %v2010 = vadd.f32 %v1805, %v2009
        %v2011 = vpop.f32.mrb[0].mxu0
        %v2012 = vpop.f32.mrb[0].mxu0
        %v2013 = vadd.f32 %v1805, %v2012
        %v2014 = vpop.f32.mrb[0].mxu0
        %2015 = vdwg.mxu0
        %v2016 = vpack.c.bf16 %v1893, %v1890
        %v2017 = vpack.c.bf16 %v1901, %v1898
        %v2018 = vpack.c.bf16 %v1909, %v1906
        %v2019 = vpack.c.bf16 %v1917, %v1914
        %v2020 = vpack.c.bf16 %v1925, %v1922
        %v2021 = vpack.c.bf16 %v1933, %v1930
        %v2022 = vpack.c.bf16 %v1941, %v1938
        %v2023 = vpack.c.bf16 %v1949, %v1946
        %v2024 = vpack.c.bf16 %v1957, %v1954
        %v2025 = vpack.c.bf16 %v1965, %v1962
        %v2026 = vpack.c.bf16 %v1973, %v1970
        %v2027 = vpack.c.bf16 %v1981, %v1978
        %v2028 = vpack.c.bf16 %v1989, %v1986
        %v2029 = vpack.c.bf16 %v1997, %v1994
        %v2030 = vpack.c.bf16 %v2005, %v2002
        %v2031 = vpack.c.bf16 %v2013, %v2010
        %v2032 = vmul.bf16 %v2016, %v2016
        %v2033 = vmul.bf16 %v2017, %v2017
        %v2034 = vmul.bf16 %v2018, %v2018
        %v2035 = vmul.bf16 %v2019, %v2019
        %v2036 = vmul.bf16 %v2020, %v2020
        %v2037 = vmul.bf16 %v2021, %v2021
        %v2038 = vmul.bf16 %v2022, %v2022
        %v2039 = vmul.bf16 %v2023, %v2023
        %v2040 = vmul.bf16 %v2024, %v2024
        %v2041 = vmul.bf16 %v2025, %v2025
        %v2042 = vmul.bf16 %v2026, %v2026
        %v2043 = vmul.bf16 %v2027, %v2027
        %v2044 = vmul.bf16 %v2028, %v2028
        %v2045 = vmul.bf16 %v2029, %v2029
        %v2046 = vmul.bf16 %v2030, %v2030
        %v2047 = vmul.bf16 %v2031, %v2031
        %v2048 = vmul.bf16 %v2016, %v2032
        %v2049 = vmul.bf16 %v2017, %v2033
        %v2050 = vmul.bf16 %v2018, %v2034
        %v2051 = vmul.bf16 %v2019, %v2035
        %v2052 = vmul.bf16 %v2020, %v2036
        %v2053 = vmul.bf16 %v2021, %v2037
        %v2054 = vmul.bf16 %v2022, %v2038
        %v2055 = vmul.bf16 %v2023, %v2039
        %v2056 = vmul.bf16 %v2024, %v2040
        %v2057 = vmul.bf16 %v2025, %v2041
        %v2058 = vmul.bf16 %v2026, %v2042
        %v2059 = vmul.bf16 %v2027, %v2043
        %v2060 = vmul.bf16 %v2028, %v2044
        %v2061 = vmul.bf16 %v2029, %v2045
        %v2062 = vmul.bf16 %v2030, %v2046
        %v2063 = vmul.bf16 %v2031, %v2047
        %v2064 = vmul.bf16 %v2048, 1027030327
        %v2065 = vmul.bf16 %v2049, 1027030327
        %v2066 = vmul.bf16 %v2050, 1027030327
        %v2067 = vmul.bf16 %v2051, 1027030327
        %v2068 = vmul.bf16 %v2052, 1027030327
        %v2069 = vmul.bf16 %v2053, 1027030327
        %v2070 = vmul.bf16 %v2054, 1027030327
        %v2071 = vmul.bf16 %v2055, 1027030327
        %v2072 = vmul.bf16 %v2056, 1027030327
        %v2073 = vmul.bf16 %v2057, 1027030327
        %v2074 = vmul.bf16 %v2058, 1027030327
        %v2075 = vmul.bf16 %v2059, 1027030327
        %v2076 = vmul.bf16 %v2060, 1027030327
        %v2077 = vmul.bf16 %v2061, 1027030327
        %v2078 = vmul.bf16 %v2062, 1027030327
        %v2079 = vmul.bf16 %v2063, 1027030327
        %v2080 = vadd.bf16 %v2016, %v2064
        %v2081 = vadd.bf16 %v2017, %v2065
        %v2082 = vadd.bf16 %v2018, %v2066
        %v2083 = vadd.bf16 %v2019, %v2067
        %v2084 = vadd.bf16 %v2020, %v2068
        %v2085 = vadd.bf16 %v2021, %v2069
        %v2086 = vadd.bf16 %v2022, %v2070
        %v2087 = vadd.bf16 %v2023, %v2071
        %v2088 = vadd.bf16 %v2024, %v2072
        %v2089 = vadd.bf16 %v2025, %v2073
        %v2090 = vadd.bf16 %v2026, %v2074
        %v2091 = vadd.bf16 %v2027, %v2075
        %v2092 = vadd.bf16 %v2028, %v2076
        %v2093 = vadd.bf16 %v2029, %v2077
        %v2094 = vadd.bf16 %v2030, %v2078
        %v2095 = vadd.bf16 %v2031, %v2079
        %v2096 = vmul.bf16 %v2080, 1061961548
        %v2097 = vmul.bf16 %v2081, 1061961548
        %v2098 = vmul.bf16 %v2082, 1061961548
        %v2099 = vmul.bf16 %v2083, 1061961548
        %v2100 = vmul.bf16 %v2084, 1061961548
        %v2101 = vmul.bf16 %v2085, 1061961548
        %v2102 = vmul.bf16 %v2086, 1061961548
        %v2103 = vmul.bf16 %v2087, 1061961548
        %v2104 = vmul.bf16 %v2088, 1061961548
        %v2105 = vmul.bf16 %v2089, 1061961548
        %v2106 = vmul.bf16 %v2090, 1061961548
        %v2107 = vmul.bf16 %v2091, 1061961548
        %v2108 = vmul.bf16 %v2092, 1061961548
        %v2109 = vmul.bf16 %v2093, 1061961548
        %v2110 = vmul.bf16 %v2094, 1061961548
        %v2111 = vmul.bf16 %v2095, 1061961548
        %v2112 = vtanh.bf16.pop %v2096
        %v2113 = vtanh.bf16.pop %v2097
        %v2114 = vtanh.bf16.pop %v2098
        %v2115 = vtanh.bf16.pop %v2099
        %v2116 = vtanh.bf16.pop %v2100
        %v2117 = vtanh.bf16.pop %v2101
        %v2118 = vtanh.bf16.pop %v2102
        %v2119 = vtanh.bf16.pop %v2103
        %v2120 = vtanh.bf16.pop %v2104
        %v2121 = vtanh.bf16.pop %v2105
        %v2122 = vtanh.bf16.pop %v2106
        %v2123 = vtanh.bf16.pop %v2107
        %v2124 = vtanh.bf16.pop %v2108
        %v2125 = vtanh.bf16.pop %v2109
        %v2126 = vtanh.bf16.pop %v2110
        %v2127 = vtanh.bf16.pop %v2111
        %v2128 = vadd.bf16 %v2112, 1065369472
        %v2129 = vadd.bf16 %v2113, 1065369472
        %v2130 = vadd.bf16 %v2114, 1065369472
        %v2131 = vadd.bf16 %v2115, 1065369472
        %v2132 = vadd.bf16 %v2116, 1065369472
        %v2133 = vadd.bf16 %v2117, 1065369472
        %v2134 = vadd.bf16 %v2118, 1065369472
        %v2135 = vadd.bf16 %v2119, 1065369472
        %v2136 = vadd.bf16 %v2120, 1065369472
        %v2137 = vadd.bf16 %v2121, 1065369472
        %v2138 = vadd.bf16 %v2122, 1065369472
        %v2139 = vadd.bf16 %v2123, 1065369472
        %v2140 = vadd.bf16 %v2124, 1065369472
        %v2141 = vadd.bf16 %v2125, 1065369472
        %v2142 = vadd.bf16 %v2126, 1065369472
        %v2143 = vadd.bf16 %v2127, 1065369472
        %v2144 = vmul.bf16 %v2128, 1056980736
        %v2145 = vmul.bf16 %v2129, 1056980736
        %v2146 = vmul.bf16 %v2130, 1056980736
        %v2147 = vmul.bf16 %v2131, 1056980736
        %v2148 = vmul.bf16 %v2132, 1056980736
        %v2149 = vmul.bf16 %v2133, 1056980736
        %v2150 = vmul.bf16 %v2134, 1056980736
        %v2151 = vmul.bf16 %v2135, 1056980736
        %v2152 = vmul.bf16 %v2136, 1056980736
        %v2153 = vmul.bf16 %v2137, 1056980736
        %v2154 = vmul.bf16 %v2138, 1056980736
        %v2155 = vmul.bf16 %v2139, 1056980736
        %v2156 = vmul.bf16 %v2140, 1056980736
        %v2157 = vmul.bf16 %v2141, 1056980736
        %v2158 = vmul.bf16 %v2142, 1056980736
        %v2159 = vmul.bf16 %v2143, 1056980736
        %v2160 = vmul.bf16 %v2016, %v2144
        %v2161 = vmul.bf16 %v2017, %v2145
        %v2162 = vmul.bf16 %v2018, %v2146
        %v2163 = vmul.bf16 %v2019, %v2147
        %v2164 = vmul.bf16 %v2020, %v2148
        %v2165 = vmul.bf16 %v2021, %v2149
        %v2166 = vmul.bf16 %v2022, %v2150
        %v2167 = vmul.bf16 %v2023, %v2151
        %v2168 = vmul.bf16 %v2024, %v2152
        %v2169 = vmul.bf16 %v2025, %v2153
        %v2170 = vmul.bf16 %v2026, %v2154
        %v2171 = vmul.bf16 %v2027, %v2155
        %v2172 = vmul.bf16 %v2028, %v2156
        %v2173 = vmul.bf16 %v2029, %v2157
        %v2174 = vmul.bf16 %v2030, %v2158
        %v2175 = vmul.bf16 %v2031, %v2159
        %v2176 = vunpack.c.l.bf16 %v2160
        %v2177 = vunpack.c.h.bf16 %v2160
        %v2178 = vunpack.c.l.bf16 %v2161
        %v2179 = vunpack.c.h.bf16 %v2161
        %v2180 = vunpack.c.l.bf16 %v2162
        %v2181 = vunpack.c.h.bf16 %v2162
        %v2182 = vunpack.c.l.bf16 %v2163
        %v2183 = vunpack.c.h.bf16 %v2163
        %v2184 = vunpack.c.l.bf16 %v2164
        %v2185 = vunpack.c.h.bf16 %v2164
        %v2186 = vunpack.c.l.bf16 %v2165
        %v2187 = vunpack.c.h.bf16 %v2165
        %v2188 = vunpack.c.l.bf16 %v2166
        %v2189 = vunpack.c.h.bf16 %v2166
        %v2190 = vunpack.c.l.bf16 %v2167
        %v2191 = vunpack.c.h.bf16 %v2167
        %v2192 = vunpack.c.l.bf16 %v2168
        %v2193 = vunpack.c.h.bf16 %v2168
        %v2194 = vunpack.c.l.bf16 %v2169
        %v2195 = vunpack.c.h.bf16 %v2169
        %v2196 = vunpack.c.l.bf16 %v2170
        %v2197 = vunpack.c.h.bf16 %v2170
        %v2198 = vunpack.c.l.bf16 %v2171
        %v2199 = vunpack.c.h.bf16 %v2171
        %v2200 = vunpack.c.l.bf16 %v2172
        %v2201 = vunpack.c.h.bf16 %v2172
        %v2202 = vunpack.c.l.bf16 %v2173
        %v2203 = vunpack.c.h.bf16 %v2173
        %v2204 = vunpack.c.l.bf16 %v2174
        %v2205 = vunpack.c.h.bf16 %v2174
        %v2206 = vunpack.c.l.bf16 %v2175
        %v2207 = vunpack.c.h.bf16 %v2175
        %v2208 = vmul.f32 %v2176, %v2176
        %v2209 = vmul.f32 %v2177, %v2177
        %v2210 = vmul.f32 %v2178, %v2178
        %v2211 = vmul.f32 %v2179, %v2179
        %v2212 = vmul.f32 %v2180, %v2180
        %v2213 = vmul.f32 %v2181, %v2181
        %v2214 = vmul.f32 %v2182, %v2182
        %v2215 = vmul.f32 %v2183, %v2183
        %v2216 = vmul.f32 %v2184, %v2184
        %v2217 = vmul.f32 %v2185, %v2185
        %v2218 = vmul.f32 %v2186, %v2186
        %v2219 = vmul.f32 %v2187, %v2187
        %v2220 = vmul.f32 %v2188, %v2188
        %v2221 = vmul.f32 %v2189, %v2189
        %v2222 = vmul.f32 %v2190, %v2190
        %v2223 = vmul.f32 %v2191, %v2191
        %v2224 = vmul.f32 %v2192, %v2192
        %v2225 = vmul.f32 %v2193, %v2193
        %v2226 = vmul.f32 %v2194, %v2194
        %v2227 = vmul.f32 %v2195, %v2195
        %v2228 = vmul.f32 %v2196, %v2196
        %v2229 = vmul.f32 %v2197, %v2197
        %v2230 = vmul.f32 %v2198, %v2198
        %v2231 = vmul.f32 %v2199, %v2199
        %v2232 = vmul.f32 %v2200, %v2200
        %v2233 = vmul.f32 %v2201, %v2201
        %v2234 = vmul.f32 %v2202, %v2202
        %v2235 = vmul.f32 %v2203, %v2203
        %v2236 = vmul.f32 %v2204, %v2204
        %v2237 = vmul.f32 %v2205, %v2205
        %v2238 = vmul.f32 %v2206, %v2206
        %v2239 = vmul.f32 %v2207, %v2207
        %v2240 = vadd.f32 %v2208, %v2209
        %v2241 = vadd.f32 %v2240, %v2210
        %v2242 = vadd.f32 %v2241, %v2211
        %v2243 = vadd.f32 %v2242, %v2212
        %v2244 = vadd.f32 %v2243, %v2213
        %v2245 = vadd.f32 %v2244, %v2214
        %v2246 = vadd.f32 %v2245, %v2215
        %v2247 = vadd.f32 %v2246, %v2216
        %v2248 = vadd.f32 %v2247, %v2217
        %v2249 = vadd.f32 %v2248, %v2218
        %v2250 = vadd.f32 %v2249, %v2219
        %v2251 = vadd.f32 %v2250, %v2220
        %v2252 = vadd.f32 %v2251, %v2221
        %v2253 = vadd.f32 %v2252, %v2222
        %v2254 = vadd.f32 %v2253, %v2223
        %v2255 = vadd.f32 %v2254, %v2224
        %v2256 = vadd.f32 %v2255, %v2225
        %v2257 = vadd.f32 %v2256, %v2226
        %v2258 = vadd.f32 %v2257, %v2227
        %v2259 = vadd.f32 %v2258, %v2228
        %v2260 = vadd.f32 %v2259, %v2229
        %v2261 = vadd.f32 %v2260, %v2230
        %v2262 = vadd.f32 %v2261, %v2231
        %v2263 = vadd.f32 %v2262, %v2232
        %v2264 = vadd.f32 %v2263, %v2233
        %v2265 = vadd.f32 %v2264, %v2234
        %v2266 = vadd.f32 %v2265, %v2235
        %v2267 = vadd.f32 %v2266, %v2236
        %v2268 = vadd.f32 %v2267, %v2237
        %v2269 = vadd.f32 %v2268, %v2238
        %v2270 = vadd.f32 %v2269, %v2239
        %v2271 = vrot.slane %v2270, 4
        %v2272 = vadd.f32 %v2270, %v2271
        %v2273 = vrot.slane %v2272, 2
        %v2274 = vadd.f32 %v2272, %v2273
        %v2275 = vrot.slane %v2274, 1
        %v2276 = vadd.f32 %v2274, %v2275
        %v2277 = vrsqrt.pop %v2276
        %v2278 = vmul.f32 %v2276, %v2277
        %vm2279 = vcmp.eq.f32.partialorder %v2276, inf
        %v2280 = vsel %vm2279, %v2276, %v2278
        %vm2281 = vcmp.eq.f32.partialorder %v2276, 0.0
        %v2282 = vand.u32 %v2276, 2147483648
        %v2283 = vsel %vm2281, %v2282, %v2280
        %2284 = vadd.xlane.f32.xlu0 %v2283
        %v2285 = vpop.xlane.xlu0 %2284
        %v2286 = vmul.f32 %v2285, 0.0625
        %v2287 = vadd.f32 %v2286, 1e-06
        %v2288 = vrcp.pop %v2287
        %v2289 = vmul.f32 %v2283, %v2288
        %v2290 = vld [vmem:[%s7] sm:$0x1]
        %v2291 = vmul.f32 %v2290, %v2289
        %v2292 = vadd.f32 %v2291, 1.0
        %v2293 = vpack.c.bf16 %v2292, %v2292
        %v2295 = vpack.i.b16 %v2293, %v2293
        %v2297 = vlaneseq
        %v2298 = vshrl.u32 %v2297, 7
        %v2299 = vsub.s32 0, %v2298
        %v2300 = vrot.slane %v2295, %v2299
        %v2301 = vmul.bf16 %v2160, %v2300
        %v2302 = vmul.bf16 %v2161, %v2300
        %v2303 = vmul.bf16 %v2162, %v2300
        %v2304 = vmul.bf16 %v2163, %v2300
        %v2305 = vmul.bf16 %v2164, %v2300
        %v2306 = vmul.bf16 %v2165, %v2300
        %v2307 = vmul.bf16 %v2166, %v2300
        %v2308 = vmul.bf16 %v2167, %v2300
        %v2309 = vmul.bf16 %v2168, %v2300
        %v2310 = vmul.bf16 %v2169, %v2300
        %v2311 = vmul.bf16 %v2170, %v2300
        %v2312 = vmul.bf16 %v2171, %v2300
        %v2313 = vmul.bf16 %v2172, %v2300
        %v2314 = vmul.bf16 %v2173, %v2300
        %v2315 = vmul.bf16 %v2174, %v2300
        %v2316 = vmul.bf16 %v2175, %v2300
        %v2317 = vld [vmem:[%s8] sm:$0x1]
        %v2318 = vpack.c.bf16 %v2317, %v2317
        %v2320 = vpack.i.b16 %v2318, %v2318
        %v2322 = vlaneseq
        %v2323 = vshrl.u32 %v2322, 7
        %v2324 = vsub.s32 0, %v2323
        %v2325 = vrot.slane %v2320, %v2324
        %v2326 = vadd.bf16 %v2301, %v2325
        %v2327 = vadd.bf16 %v2302, %v2325
        %v2328 = vadd.bf16 %v2303, %v2325
        %v2329 = vadd.bf16 %v2304, %v2325
        %v2330 = vadd.bf16 %v2305, %v2325
        %v2331 = vadd.bf16 %v2306, %v2325
        %v2332 = vadd.bf16 %v2307, %v2325
        %v2333 = vadd.bf16 %v2308, %v2325
        %v2334 = vadd.bf16 %v2309, %v2325
        %v2335 = vadd.bf16 %v2310, %v2325
        %v2336 = vadd.bf16 %v2311, %v2325
        %v2337 = vadd.bf16 %v2312, %v2325
        %v2338 = vadd.bf16 %v2313, %v2325
        %v2339 = vadd.bf16 %v2314, %v2325
        %v2340 = vadd.bf16 %v2315, %v2325
        %v2341 = vadd.bf16 %v2316, %v2325
        %v2342 = vld [vmem:[#allocation10] sm:$0xf]
        %v2343 = vld [vmem:[#allocation10 + $0x4] sm:$0xf]
        %v2344 = vld [vmem:[#allocation10 + $0x8] sm:$0xf]
        %v2345 = vld [vmem:[#allocation10 + $0xc] sm:$0xf]
        %v2346 = vld [vmem:[#allocation10 + $0x10] sm:$0xf]
        %v2347 = vld [vmem:[#allocation10 + $0x14] sm:$0xf]
        %v2348 = vld [vmem:[#allocation10 + $0x18] sm:$0xf]
        %v2349 = vld [vmem:[#allocation10 + $0x1c] sm:$0xf]
        %v2350 = vld [vmem:[#allocation10 + $0x20] sm:$0xf]
        %v2351 = vld [vmem:[#allocation10 + $0x24] sm:$0xf]
        %v2352 = vld [vmem:[#allocation10 + $0x28] sm:$0xf]
        %v2353 = vld [vmem:[#allocation10 + $0x2c] sm:$0xf]
        %v2354 = vld [vmem:[#allocation10 + $0x30] sm:$0xf]
        %v2355 = vld [vmem:[#allocation10 + $0x34] sm:$0xf]
        %v2356 = vld [vmem:[#allocation10 + $0x38] sm:$0xf]
        %v2357 = vld [vmem:[#allocation10 + $0x3c] sm:$0xf]
        %v2358 = vld [vmem:[%s10] sm:$0x1]
        %v2360 = vlaneseq
        %v2361 = vshrl.u32 %v2360, 7
        %v2362 = vsub.s32 0, %v2361
        %v2363 = vrot.slane %v2358, %v2362
        %v2381 = vunpack.c.l.b16 %v2342
        %v2382 = vunpack.c.l.b16 %v2343
        %v2383 = vunpack.c.l.b16 %v2344
        %v2384 = vunpack.c.l.b16 %v2345
        %v2385 = vunpack.c.l.b16 %v2346
        %v2386 = vunpack.c.l.b16 %v2347
        %v2387 = vunpack.c.l.b16 %v2348
        %v2388 = vunpack.c.l.b16 %v2349
        %v2389 = vunpack.c.l.b16 %v2350
        %v2390 = vunpack.c.l.b16 %v2351
        %v2391 = vunpack.c.l.b16 %v2352
        %v2392 = vunpack.c.l.b16 %v2353
        %v2393 = vunpack.c.l.b16 %v2354
        %v2394 = vunpack.c.l.b16 %v2355
        %v2395 = vunpack.c.l.b16 %v2356
        %v2396 = vunpack.c.l.b16 %v2357
        %v2397 = vpack.c.b16 %v2382, %v2381
        %v2398 = vpack.c.b16 %v2384, %v2383
        %v2399 = vpack.c.b16 %v2386, %v2385
        %v2400 = vpack.c.b16 %v2388, %v2387
        %v2401 = vpack.c.b16 %v2390, %v2389
        %v2402 = vpack.c.b16 %v2392, %v2391
        %v2403 = vpack.c.b16 %v2394, %v2393
        %v2404 = vpack.c.b16 %v2396, %v2395
        %2413 = vmatprep.subr.bf16.mxu0 0
        %2414 = vmatpush1.bf16.msra.mxu0 %v2397
        %2415 = vmatprep.subr.bf16.mxu0 0
        %2416 = vmatpush1.bf16.msra.mxu0 %v2398
        %2417 = vmatprep.subr.bf16.mxu0 0
        %2418 = vmatpush1.bf16.msra.mxu0 %v2399
        %2419 = vmatprep.subr.bf16.mxu0 0
        %2420 = vmatpush1.bf16.msra.mxu0 %v2400
        %2421 = vmatprep.subr.bf16.mxu0 0
        %2422 = vmatpush1.bf16.msra.mxu0 %v2401
        %2423 = vmatprep.subr.bf16.mxu0 0
        %2424 = vmatpush1.bf16.msra.mxu0 %v2402
        %2425 = vmatprep.subr.bf16.mxu0 0
        %2426 = vmatpush1.bf16.msra.mxu0 %v2403
        %2427 = vmatprep.subr.bf16.mxu0 0
        %2428 = vmatpush1.bf16.msra.mxu0 %v2404
        %2429 = vmatprep.subr.bf16.mxu0 0
        %2430 = vmatpush1.bf16.msra.mxu0 0
        %2431 = vmatprep.subr.bf16.mxu0 0
        %2432 = vmatpush1.bf16.msra.mxu0 0
        %2433 = vmatprep.subr.bf16.mxu0 0
        %2434 = vmatpush1.bf16.msra.mxu0 0
        %2435 = vmatprep.subr.bf16.mxu0 0
        %2436 = vmatpush1.bf16.msra.mxu0 0
        %2437 = vmatprep.subr.bf16.mxu0 0
        %2438 = vmatpush1.bf16.msra.mxu0 0
        %2439 = vmatprep.subr.bf16.mxu0 0
        %2440 = vmatpush1.bf16.msra.mxu0 0
        %2441 = vmatprep.subr.bf16.mxu0 0
        %2442 = vmatpush1.bf16.msra.mxu0 0
        %2443 = vmatprep.subr.bf16.mxu0 0
        %2444 = vmatpush1.bf16.msra.mxu0 0
        %2445 = vmatprep.mubr.bf16.mxu0 0
        %2446 = vmatmul.mubr.bf16.gmra.mrb[0].mxu0 %v2326
        %v2447 = vpop.f32.mrb[0].mxu0
        %v2448 = vadd.f32 %v2363, %v2447
        %v2449 = vpop.f32.mrb[0].mxu0
        %v2450 = vpop.f32.mrb[0].mxu0
        %v2451 = vadd.f32 %v2363, %v2450
        %v2452 = vpop.f32.mrb[0].mxu0
        %2453 = vmatprep.mubr.bf16.mxu0 0
        %2454 = vmatmul.mubr.bf16.gmra.mrb[0].mxu0 %v2327
        %v2455 = vpop.f32.mrb[0].mxu0
        %v2456 = vadd.f32 %v2363, %v2455
        %v2457 = vpop.f32.mrb[0].mxu0
        %v2458 = vpop.f32.mrb[0].mxu0
        %v2459 = vadd.f32 %v2363, %v2458
        %v2460 = vpop.f32.mrb[0].mxu0
        %2461 = vmatprep.mubr.bf16.mxu0 0
        %2462 = vmatmul.mubr.bf16.gmra.mrb[0].mxu0 %v2328
        %v2463 = vpop.f32.mrb[0].mxu0
        %v2464 = vadd.f32 %v2363, %v2463
        %v2465 = vpop.f32.mrb[0].mxu0
        %v2466 = vpop.f32.mrb[0].mxu0
        %v2467 = vadd.f32 %v2363, %v2466
        %v2468 = vpop.f32.mrb[0].mxu0
        %2469 = vmatprep.mubr.bf16.mxu0 0
        %2470 = vmatmul.mubr.bf16.gmra.mrb[0].mxu0 %v2329
        %v2471 = vpop.f32.mrb[0].mxu0
        %v2472 = vadd.f32 %v2363, %v2471
        %v2473 = vpop.f32.mrb[0].mxu0
        %v2474 = vpop.f32.mrb[0].mxu0
        %v2475 = vadd.f32 %v2363, %v2474
        %v2476 = vpop.f32.mrb[0].mxu0
        %2477 = vmatprep.mubr.bf16.mxu0 0
        %2478 = vmatmul.mubr.bf16.gmra.mrb[0].mxu0 %v2330
        %v2479 = vpop.f32.mrb[0].mxu0
        %v2480 = vadd.f32 %v2363, %v2479
        %v2481 = vpop.f32.mrb[0].mxu0
        %v2482 = vpop.f32.mrb[0].mxu0
        %v2483 = vadd.f32 %v2363, %v2482
        %v2484 = vpop.f32.mrb[0].mxu0
        %2485 = vmatprep.mubr.bf16.mxu0 0
        %2486 = vmatmul.mubr.bf16.gmra.mrb[0].mxu0 %v2331
        %v2487 = vpop.f32.mrb[0].mxu0
        %v2488 = vadd.f32 %v2363, %v2487
        %v2489 = vpop.f32.mrb[0].mxu0
        %v2490 = vpop.f32.mrb[0].mxu0
        %v2491 = vadd.f32 %v2363, %v2490
        %v2492 = vpop.f32.mrb[0].mxu0
        %2493 = vmatprep.mubr.bf16.mxu0 0
        %2494 = vmatmul.mubr.bf16.gmra.mrb[0].mxu0 %v2332
        %v2495 = vpop.f32.mrb[0].mxu0
        %v2496 = vadd.f32 %v2363, %v2495
        %v2497 = vpop.f32.mrb[0].mxu0
        %v2498 = vpop.f32.mrb[0].mxu0
        %v2499 = vadd.f32 %v2363, %v2498
        %v2500 = vpop.f32.mrb[0].mxu0
        %2501 = vmatprep.mubr.bf16.mxu0 0
        %2502 = vmatmul.mubr.bf16.gmra.mrb[0].mxu0 %v2333
        %v2503 = vpop.f32.mrb[0].mxu0
        %v2504 = vadd.f32 %v2363, %v2503
        %v2505 = vpop.f32.mrb[0].mxu0
        %v2506 = vpop.f32.mrb[0].mxu0
        %v2507 = vadd.f32 %v2363, %v2506
        %v2508 = vpop.f32.mrb[0].mxu0
        %2509 = vmatprep.mubr.bf16.mxu0 0
        %2510 = vmatmul.mubr.bf16.gmra.mrb[0].mxu0 %v2334
        %v2511 = vpop.f32.mrb[0].mxu0
        %v2512 = vadd.f32 %v2363, %v2511
        %v2513 = vpop.f32.mrb[0].mxu0
        %v2514 = vpop.f32.mrb[0].mxu0
        %v2515 = vadd.f32 %v2363, %v2514
        %v2516 = vpop.f32.mrb[0].mxu0
        %2517 = vmatprep.mubr.bf16.mxu0 0
        %2518 = vmatmul.mubr.bf16.gmra.mrb[0].mxu0 %v2335
        %v2519 = vpop.f32.mrb[0].mxu0
        %v2520 = vadd.f32 %v2363, %v2519
        %v2521 = vpop.f32.mrb[0].mxu0
        %v2522 = vpop.f32.mrb[0].mxu0
        %v2523 = vadd.f32 %v2363, %v2522
        %v2524 = vpop.f32.mrb[0].mxu0
        %2525 = vmatprep.mubr.bf16.mxu0 0
        %2526 = vmatmul.mubr.bf16.gmra.mrb[0].mxu0 %v2336
        %v2527 = vpop.f32.mrb[0].mxu0
        %v2528 = vadd.f32 %v2363, %v2527
        %v2529 = vpop.f32.mrb[0].mxu0
        %v2530 = vpop.f32.mrb[0].mxu0
        %v2531 = vadd.f32 %v2363, %v2530
        %v2532 = vpop.f32.mrb[0].mxu0
        %2533 = vmatprep.mubr.bf16.mxu0 0
        %2534 = vmatmul.mubr.bf16.gmra.mrb[0].mxu0 %v2337
        %v2535 = vpop.f32.mrb[0].mxu0
        %v2536 = vadd.f32 %v2363, %v2535
        %v2537 = vpop.f32.mrb[0].mxu0
        %v2538 = vpop.f32.mrb[0].mxu0
        %v2539 = vadd.f32 %v2363, %v2538
        %v2540 = vpop.f32.mrb[0].mxu0
        %2541 = vmatprep.mubr.bf16.mxu0 0
        %2542 = vmatmul.mubr.bf16.gmra.mrb[0].mxu0 %v2338
        %v2543 = vpop.f32.mrb[0].mxu0
        %v2544 = vadd.f32 %v2363, %v2543
        %v2545 = vpop.f32.mrb[0].mxu0
        %v2546 = vpop.f32.mrb[0].mxu0
        %v2547 = vadd.f32 %v2363, %v2546
        %v2548 = vpop.f32.mrb[0].mxu0
        %2549 = vmatprep.mubr.bf16.mxu0 0
        %2550 = vmatmul.mubr.bf16.gmra.mrb[0].mxu0 %v2339
        %v2551 = vpop.f32.mrb[0].mxu0
        %v2552 = vadd.f32 %v2363, %v2551
        %v2553 = vpop.f32.mrb[0].mxu0
        %v2554 = vpop.f32.mrb[0].mxu0
        %v2555 = vadd.f32 %v2363, %v2554
        %v2556 = vpop.f32.mrb[0].mxu0
        %2557 = vmatprep.mubr.bf16.mxu0 0
        %2558 = vmatmul.mubr.bf16.gmra.mrb[0].mxu0 %v2340
        %v2559 = vpop.f32.mrb[0].mxu0
        %v2560 = vadd.f32 %v2363, %v2559
        %v2561 = vpop.f32.mrb[0].mxu0
        %v2562 = vpop.f32.mrb[0].mxu0
        %v2563 = vadd.f32 %v2363, %v2562
        %v2564 = vpop.f32.mrb[0].mxu0
        %2565 = vmatprep.mubr.bf16.mxu0 0
        %2566 = vmatmul.mubr.bf16.gmra.mrb[0].mxu0 %v2341
        %v2567 = vpop.f32.mrb[0].mxu0
        %v2568 = vadd.f32 %v2363, %v2567
        %v2569 = vpop.f32.mrb[0].mxu0
        %v2570 = vpop.f32.mrb[0].mxu0
        %v2571 = vadd.f32 %v2363, %v2570
        %v2572 = vpop.f32.mrb[0].mxu0
        %2573 = vdwg.mxu0
        %v2574 = vld [vmem:[%s398] sm:$0xff]
        %v2575 = vld [vmem:[%s398 + $0x8] sm:$0xff]
        %v2576 = vld [vmem:[%s398 + $0x10] sm:$0xff]
        %v2577 = vld [vmem:[%s398 + $0x18] sm:$0xff]
        %v2578 = vld [vmem:[%s398 + $0x20] sm:$0xff]
        %v2579 = vld [vmem:[%s398 + $0x28] sm:$0xff]
        %v2580 = vld [vmem:[%s398 + $0x30] sm:$0xff]
        %v2581 = vld [vmem:[%s398 + $0x38] sm:$0xff]
        %v2582 = vld [vmem:[%s398 + $0x40] sm:$0xff]
        %v2583 = vld [vmem:[%s398 + $0x48] sm:$0xff]
        %v2584 = vld [vmem:[%s398 + $0x50] sm:$0xff]
        %v2585 = vld [vmem:[%s398 + $0x58] sm:$0xff]
        %v2586 = vld [vmem:[%s398 + $0x60] sm:$0xff]
        %v2587 = vld [vmem:[%s398 + $0x68] sm:$0xff]
        %v2588 = vld [vmem:[%s398 + $0x70] sm:$0xff]
        %v2589 = vld [vmem:[%s398 + $0x78] sm:$0xff]
        %v2590 = vld [vmem:[%s398 + $0x80] sm:$0xff]
        %v2591 = vld [vmem:[%s398 + $0x88] sm:$0xff]
        %v2592 = vld [vmem:[%s398 + $0x90] sm:$0xff]
        %v2593 = vld [vmem:[%s398 + $0x98] sm:$0xff]
        %v2594 = vld [vmem:[%s398 + $0xa0] sm:$0xff]
        %v2595 = vld [vmem:[%s398 + $0xa8] sm:$0xff]
        %v2596 = vld [vmem:[%s398 + $0xb0] sm:$0xff]
        %v2597 = vld [vmem:[%s398 + $0xb8] sm:$0xff]
        %v2598 = vld [vmem:[%s398 + $0xc0] sm:$0xff]
        %v2599 = vld [vmem:[%s398 + $0xc8] sm:$0xff]
        %v2600 = vld [vmem:[%s398 + $0xd0] sm:$0xff]
        %v2601 = vld [vmem:[%s398 + $0xd8] sm:$0xff]
        %v2602 = vld [vmem:[%s398 + $0xe0] sm:$0xff]
        %v2603 = vld [vmem:[%s398 + $0xe8] sm:$0xff]
        %v2604 = vld [vmem:[%s398 + $0xf0] sm:$0xff]
        %v2605 = vld [vmem:[%s398 + $0xf8] sm:$0xff]
        %v2606 = vadd.f32 %v2448, %v2574
        %v2607 = vadd.f32 %v2451, %v2575
        %v2608 = vadd.f32 %v2456, %v2576
        %v2609 = vadd.f32 %v2459, %v2577
        %v2610 = vadd.f32 %v2464, %v2578
        %v2611 = vadd.f32 %v2467, %v2579
        %v2612 = vadd.f32 %v2472, %v2580
        %v2613 = vadd.f32 %v2475, %v2581
        %v2614 = vadd.f32 %v2480, %v2582
        %v2615 = vadd.f32 %v2483, %v2583
        %v2616 = vadd.f32 %v2488, %v2584
        %v2617 = vadd.f32 %v2491, %v2585
        %v2618 = vadd.f32 %v2496, %v2586
        %v2619 = vadd.f32 %v2499, %v2587
        %v2620 = vadd.f32 %v2504, %v2588
        %v2621 = vadd.f32 %v2507, %v2589
        %v2622 = vadd.f32 %v2512, %v2590
        %v2623 = vadd.f32 %v2515, %v2591
        %v2624 = vadd.f32 %v2520, %v2592
        %v2625 = vadd.f32 %v2523, %v2593
        %v2626 = vadd.f32 %v2528, %v2594
        %v2627 = vadd.f32 %v2531, %v2595
        %v2628 = vadd.f32 %v2536, %v2596
        %v2629 = vadd.f32 %v2539, %v2597
        %v2630 = vadd.f32 %v2544, %v2598
        %v2631 = vadd.f32 %v2547, %v2599
        %v2632 = vadd.f32 %v2552, %v2600
        %v2633 = vadd.f32 %v2555, %v2601
        %v2634 = vadd.f32 %v2560, %v2602
        %v2635 = vadd.f32 %v2563, %v2603
        %v2636 = vadd.f32 %v2568, %v2604
        %v2637 = vadd.f32 %v2571, %v2605
        %2638 = vst [vmem:[%s448] sm:$0xff] %v2606
        %2639 = vst [vmem:[%s448 + $0x8] sm:$0xff] %v2607
        %2640 = vst [vmem:[%s448 + $0x10] sm:$0xff] %v2608
        %2641 = vst [vmem:[%s448 + $0x18] sm:$0xff] %v2609
        %2642 = vst [vmem:[%s448 + $0x20] sm:$0xff] %v2610
        %2643 = vst [vmem:[%s448 + $0x28] sm:$0xff] %v2611
        %2644 = vst [vmem:[%s448 + $0x30] sm:$0xff] %v2612
        %2645 = vst [vmem:[%s448 + $0x38] sm:$0xff] %v2613
        %2646 = vst [vmem:[%s448 + $0x40] sm:$0xff] %v2614
        %2647 = vst [vmem:[%s448 + $0x48] sm:$0xff] %v2615
        %2648 = vst [vmem:[%s448 + $0x50] sm:$0xff] %v2616
        %2649 = vst [vmem:[%s448 + $0x58] sm:$0xff] %v2617
        %2650 = vst [vmem:[%s448 + $0x60] sm:$0xff] %v2618
        %2651 = vst [vmem:[%s448 + $0x68] sm:$0xff] %v2619
        %2652 = vst [vmem:[%s448 + $0x70] sm:$0xff] %v2620
        %2653 = vst [vmem:[%s448 + $0x78] sm:$0xff] %v2621
        %2654 = vst [vmem:[%s448 + $0x80] sm:$0xff] %v2622
        %2655 = vst [vmem:[%s448 + $0x88] sm:$0xff] %v2623
        %2656 = vst [vmem:[%s448 + $0x90] sm:$0xff] %v2624
        %2657 = vst [vmem:[%s448 + $0x98] sm:$0xff] %v2625
        %2658 = vst [vmem:[%s448 + $0xa0] sm:$0xff] %v2626
        %2659 = vst [vmem:[%s448 + $0xa8] sm:$0xff] %v2627
        %2660 = vst [vmem:[%s448 + $0xb0] sm:$0xff] %v2628
        %2661 = vst [vmem:[%s448 + $0xb8] sm:$0xff] %v2629
        %2662 = vst [vmem:[%s448 + $0xc0] sm:$0xff] %v2630
        %2663 = vst [vmem:[%s448 + $0xc8] sm:$0xff] %v2631
        %2664 = vst [vmem:[%s448 + $0xd0] sm:$0xff] %v2632
        %2665 = vst [vmem:[%s448 + $0xd8] sm:$0xff] %v2633
        %2666 = vst [vmem:[%s448 + $0xe0] sm:$0xff] %v2634
        %2667 = vst [vmem:[%s448 + $0xe8] sm:$0xff] %v2635
        %2668 = vst [vmem:[%s448 + $0xf0] sm:$0xff] %v2636
        %2669 = vst [vmem:[%s448 + $0xf8] sm:$0xff] %v2637
        %s2670 = sand.u32 %s274, 1
        %s2671 = scalar_lea.sflag [#allocation6], %s2670
        %s2672 = sand.u32 %s274, 1
        %s2673 = smul.addr %s2672, 256
        %s2674 = scalar_lea.vmem [#allocation12], %s2673
        // Predicated region
        $region88: #{tpu_custom_call.1} parent=63 // pred_check
          %p2675 = pneg %p284
        $region89: #{tpu_custom_call.1} parent=63 // pred_check_branch
          %2677 = sbr.rel (%p2675) target = $region91
        $region90: #{tpu_custom_call.1} parent=63 // pred_region
          %s2679 = ssub.s32 4096, 4096
          %2680 = vsyncadd %s2671, %s2679
          %s2681 = smul.addr %s30, 32
          %s2682 = smul.addr %s2681, 128
          %s2683 = scalar_lea.hbm %s11, %s2682
          %s2684 = sshll.u32 %s2674, 4
          %s2685 = int_to_ptr.vmem [resolvable:$true] %s2684
          %2690 = dma.vmem_to_hbm [thread:$0]  %s2685, 4096, %s2683, %s2671, 128, 128, 8
        $region91: #{tpu_custom_call.1} parent=63 // pred_fallthru
          _
      $region64: #{tpu_custom_call.1} parent=5 // pred_fallthru
        _
      %p2691 = scmp.le.s32.totalorder 2, %s25
      // Predicated region
      $region92: #{tpu_custom_call.1} parent=5 // pred_check
        %p2692 = pneg %p2691
      $region93: #{tpu_custom_call.1} parent=5 // pred_check_branch
        %2694 = sbr.rel (%p2692) target = $region95
      $region94: #{tpu_custom_call.1} parent=5 // pred_region
        %s2695 = ssub.s32 %s25, 2
        // Predicated region
        $region96: #{tpu_custom_call.1} parent=94 // pred_check
          %p2696 = pneg %p290
        $region97: #{tpu_custom_call.1} parent=94 // pred_check_branch
          %2698 = sbr.rel (%p2696) target = $region99
        $region98: #{tpu_custom_call.1} parent=94 // pred_region
          %s2699 = sand.u32 %s275, 1
          %s2700 = scalar_lea.sflag [#allocation6], %s2699
          %s2701 = sand.u32 %s275, 1
          %s2702 = smul.addr %s2701, 256
          %s2703 = scalar_lea.vmem [#allocation12], %s2702
          %2704 = dma.done %s2700, 4096
        $region99: #{tpu_custom_call.1} parent=94 // pred_fallthru
          _
      $region95: #{tpu_custom_call.1} parent=5 // pred_fallthru
        _
    $region6: #{tpu_custom_call.1} parent=1 // loop_footer
      %s29 = sadd.s32 1, %s25
    $region7: #{tpu_custom_call.1} parent=1 // loop_footer_branch
      %24 = sbr.rel target = $region3
    $region8: #{tpu_custom_call.1} parent=1 // loop_exit
      _
    %2705 = vsyncpa [#allocation5], 1
    %s2706 = scalar_lea.sflag [#allocation5], 1
    %2707 = vsyncpa %s2706, 1
    %2708 = vsyncpa [#allocation8], 1
    %2709 = vsyncpa [#allocation11], 1
    %2710 = vsyncpa [#allocation6], 1
    %s2711 = scalar_lea.sflag [#allocation6], 1
    %2712 = vsyncpa %s2711, 1

// kernel: tpu_custom_call.1
$region0: #{tpu_custom_call.1}
  #allocation0 [shape = 'u32[]', space=smem, size = 0x4, offset = 0x4, fixed_abs, tag = 'smem constant byte address 0x4 - core index']
  #allocation1 [shape = 'u32[144,128]{1,0:T(1,128)}', space=vmem, size = 0x12000, scoped, tag = 'internal scratch']
  #allocation2 [shape = 'f32[22,32,128]{2,1,0:T(8,128)}', space=vmem, size = 0x58000, scoped, tag = 'scratch operand']
  #allocation3 [shape = 'f32[16,16,128]{2,1,0:T(8,128)}', space=vmem, size = 0x20000, scoped, tag = 'scratch operand']
  %s0 = inlined_call_operand.hbm [shape: f32[2,16,16,128], index: 0, kind: input, shape index: {}]
  %s1 = inlined_call_operand.hbm [shape: f32[7,7,128], index: 1, kind: input, shape index: {}]
  %s2 = inlined_call_operand.vmem [shape: f32[1,128], index: 2, kind: input, shape index: {}]
  %s3 = inlined_call_operand.vmem [shape: f32[1,128], index: 3, kind: input, shape index: {}]
  %s4 = inlined_call_operand.vmem [shape: f32[1,128], index: 4, kind: input, shape index: {}]
  %s5 = inlined_call_operand.hbm [shape: bf16[128,128], index: 5, kind: input, shape index: {}]
  %s6 = inlined_call_operand.vmem [shape: f32[1,128], index: 6, kind: input, shape index: {}]
  %s7 = inlined_call_operand.vmem [shape: f32[1,128], index: 7, kind: input, shape index: {}]
  %s8 = inlined_call_operand.vmem [shape: f32[1,128], index: 8, kind: input, shape index: {}]
  %s9 = inlined_call_operand.hbm [shape: bf16[128,128], index: 9, kind: input, shape index: {}]
  %s10 = inlined_call_operand.vmem [shape: f32[1,128], index: 10, kind: input, shape index: {}]
  %s11 = inlined_call_operand.hbm [shape: f32[2,16,16,128], index: 11, kind: output, shape index: {}]
  %s12 = sld [smem:[#allocation0]]
  $region100: #{tpu_custom_call.1} parent=0
    _
  %s14 = ssub.s32 1, %s12
  %s15 = scalar_select 0, %s14, %s12
  $region1: #{tpu_custom_call.1} parent=0
    #allocation4 [shape = 'u8[262144]{0}', space=vmem, size = 0x40000, scoped, tag = 'input window, operand 0']
    #allocation5 [shape = 's32[2]{0}', space=sflag, size = 0x8, scoped, tag = 'scoped memory for tpu_custom_call.1']
    #allocation6 [shape = 's32[2]{0}', space=sflag, size = 0x8, scoped, tag = 'scoped memory for tpu_custom_call.1']
    #allocation7 [shape = 'u8[28672]{0}', space=vmem, size = 0x7000, scoped, tag = 'input window, operand 1, single buffered']
    #allocation8 [shape = 's32[1]{0}', space=sflag, size = 0x4, scoped, tag = 'scoped memory for tpu_custom_call.1']
    #allocation9 [shape = 'u8[32768]{0}', space=vmem, size = 0x8000, scoped, tag = 'input window, operand 5, single buffered']
    #allocation10 [shape = 'u8[32768]{0}', space=vmem, size = 0x8000, scoped, tag = 'input window, operand 9, single buffered']
    #allocation11 [shape = 's32[1]{0}', space=sflag, size = 0x4, scoped, tag = 'scoped memory for tpu_custom_call.1']
    #allocation12 [shape = 'u8[262144]{0}', space=vmem, size = 0x40000, scoped, tag = 'output window, operand 0']
    %16 = vsyncpa [#allocation5], 0
    %s17 = scalar_lea.sflag [#allocation5], 1
    %18 = vsyncpa %s17, 0
    %19 = vsyncpa [#allocation8], 0
    %20 = vsyncpa [#allocation11], 0
    %21 = vsyncpa [#allocation6], 0
    %s22 = scalar_lea.sflag [#allocation6], 1
    %23 = vsyncpa %s22, 0
    loop: start=0, step=1, limit=4
    $region2: #{tpu_custom_call.1} parent=1 // loop_pre_header
      _
    $region3: #{tpu_custom_call.1} parent=1 // loop_header
      %s25 = sphi 0, %s29
      %p26 = scmp.ge.s32.totalorder %s25, 4
      %s35 = sphi 0, %s37
      %s38 = sphi 0, %s35
      %s39 = sphi 0, %s38
      %s55 = sphi 0, %s39
      %s59 = sphi 0, %s59
      %s61 = sphi 0, %s59
      %s62 = sphi 0, %s61
      %s76 = sphi 0, %s62
      %s80 = sphi 0, %s80
      %s82 = sphi 0, %s80
      %s83 = sphi 0, %s82
      %s97 = sphi 0, %s83
      %s101 = sphi 0, %s101
      %s103 = sphi 0, %s101
      %s104 = sphi 0, %s103
      %s118 = sphi 0, %s104
      %s122 = sphi 0, %s122
      %s124 = sphi 0, %s122
      %s125 = sphi 0, %s124
      %s139 = sphi 0, %s125
      %s143 = sphi 0, %s143
      %s145 = sphi 0, %s143
      %s146 = sphi 0, %s145
      %s160 = sphi 0, %s146
      %s164 = sphi 0, %s164
      %s166 = sphi 0, %s164
      %s167 = sphi 0, %s166
      %s181 = sphi 0, %s167
      %s185 = sphi 0, %s185
      %s187 = sphi 0, %s185
      %s188 = sphi 0, %s187
      %s202 = sphi 0, %s188
      %s206 = sphi 0, %s206
      %s208 = sphi 0, %s206
      %s209 = sphi 0, %s208
      %s223 = sphi 0, %s209
      %s227 = sphi 0, %s227
      %s229 = sphi 0, %s227
      %s230 = sphi 0, %s229
      %s244 = sphi 0, %s230
      %s248 = sphi 0, %s248
      %s250 = sphi 0, %s248
      %s251 = sphi 0, %s250
      %s265 = sphi 0, %s251
      %s271 = sphi 0, %s273
      %s274 = sphi 0, %s271
      %s275 = sphi 0, %s274
      %s291 = sphi 0, %s275
    $region4: #{tpu_custom_call.1} parent=1 // loop_header_branch
      %28 = sbr.rel (%p26) target = $region8
    $region5: #{tpu_custom_call.1} parent=1 // loop_body
      %s30 = ssub.s32 %s25, 1
      %s31 = ssub.s32 %s25, 2
      %s32 = sadd.s32 %s25, 1
      %s33 = ssub.s32 %s25, %s32
      %p34 = scmp.eq.s32.totalorder %s33, 0
      %s36 = sadd.s32 %s35, 1
      %s37 = scalar_select %p34, %s35, %s36
      %p40 = pneg %p34
      %p41 = scmp.eq.s32.totalorder %s25, 1
      %p42 = por %p40, %p41
      %p43 = scmp.ne.s32.totalorder %s35, %s38
      %p44 = scmp.eq.s32.totalorder %s25, 0
      %p45 = por %p43, %p44
      %p46 = scmp.ne.s32.totalorder %s35, %s38
      %p47 = scmp.eq.s32.totalorder %s30, 1
      %p48 = por %p46, %p47
      %p49 = scmp.ne.s32.totalorder %s38, %s39
      %p50 = scmp.eq.s32.totalorder %s30, 0
      %p51 = por %p49, %p50
      %p52 = scmp.ne.s32.totalorder %s38, %s39
      %p53 = scmp.eq.s32.totalorder %s31, 1
      %p54 = por %p52, %p53
      %p56 = scmp.ne.s32.totalorder %s39, %s55
      %p57 = scmp.eq.s32.totalorder %s31, 0
      %p58 = por %p56, %p57
      %s60 = sadd.s32 %s59, 1
      %p63 = scmp.eq.s32.totalorder %s25, 1
      %p64 = scmp.ne.s32.totalorder %s59, %s61
      %p65 = scmp.eq.s32.totalorder %s25, 0
      %p66 = por %p64, %p65
      %p67 = scmp.ne.s32.totalorder %s59, %s61
      %p68 = scmp.eq.s32.totalorder %s30, 1
      %p69 = por %p67, %p68
      %p70 = scmp.ne.s32.totalorder %s61, %s62
      %p71 = scmp.eq.s32.totalorder %s30, 0
      %p72 = por %p70, %p71
      %p73 = scmp.ne.s32.totalorder %s61, %s62
      %p74 = scmp.eq.s32.totalorder %s31, 1
      %p75 = por %p73, %p74
      %p77 = scmp.ne.s32.totalorder %s62, %s76
      %p78 = scmp.eq.s32.totalorder %s31, 0
      %p79 = por %p77, %p78
      %s81 = sadd.s32 %s80, 1
      %p84 = scmp.eq.s32.totalorder %s25, 1
      %p85 = scmp.ne.s32.totalorder %s80, %s82
      %p86 = scmp.eq.s32.totalorder %s25, 0
      %p87 = por %p85, %p86
      %p88 = scmp.ne.s32.totalorder %s80, %s82
      %p89 = scmp.eq.s32.totalorder %s30, 1
      %p90 = por %p88, %p89
      %p91 = scmp.ne.s32.totalorder %s82, %s83
      %p92 = scmp.eq.s32.totalorder %s30, 0
      %p93 = por %p91, %p92
      %p94 = scmp.ne.s32.totalorder %s82, %s83
      %p95 = scmp.eq.s32.totalorder %s31, 1
      %p96 = por %p94, %p95
      %p98 = scmp.ne.s32.totalorder %s83, %s97
      %p99 = scmp.eq.s32.totalorder %s31, 0
      %p100 = por %p98, %p99
      %s102 = sadd.s32 %s101, 1
      %p105 = scmp.eq.s32.totalorder %s25, 1
      %p106 = scmp.ne.s32.totalorder %s101, %s103
      %p107 = scmp.eq.s32.totalorder %s25, 0
      %p108 = por %p106, %p107
      %p109 = scmp.ne.s32.totalorder %s101, %s103
      %p110 = scmp.eq.s32.totalorder %s30, 1
      %p111 = por %p109, %p110
      %p112 = scmp.ne.s32.totalorder %s103, %s104
      %p113 = scmp.eq.s32.totalorder %s30, 0
      %p114 = por %p112, %p113
      %p115 = scmp.ne.s32.totalorder %s103, %s104
      %p116 = scmp.eq.s32.totalorder %s31, 1
      %p117 = por %p115, %p116
      %p119 = scmp.ne.s32.totalorder %s104, %s118
      %p120 = scmp.eq.s32.totalorder %s31, 0
      %p121 = por %p119, %p120
      %s123 = sadd.s32 %s122, 1
      %p126 = scmp.eq.s32.totalorder %s25, 1
      %p127 = scmp.ne.s32.totalorder %s122, %s124
      %p128 = scmp.eq.s32.totalorder %s25, 0
      %p129 = por %p127, %p128
      %p130 = scmp.ne.s32.totalorder %s122, %s124
      %p131 = scmp.eq.s32.totalorder %s30, 1
      %p132 = por %p130, %p131
      %p133 = scmp.ne.s32.totalorder %s124, %s125
      %p134 = scmp.eq.s32.totalorder %s30, 0
      %p135 = por %p133, %p134
      %p136 = scmp.ne.s32.totalorder %s124, %s125
      %p137 = scmp.eq.s32.totalorder %s31, 1
      %p138 = por %p136, %p137
      %p140 = scmp.ne.s32.totalorder %s125, %s139
      %p141 = scmp.eq.s32.totalorder %s31, 0
      %p142 = por %p140, %p141
      %s144 = sadd.s32 %s143, 1
      %p147 = scmp.eq.s32.totalorder %s25, 1
      %p148 = scmp.ne.s32.totalorder %s143, %s145
      %p149 = scmp.eq.s32.totalorder %s25, 0
      %p150 = por %p148, %p149
      %p151 = scmp.ne.s32.totalorder %s143, %s145
      %p152 = scmp.eq.s32.totalorder %s30, 1
      %p153 = por %p151, %p152
      %p154 = scmp.ne.s32.totalorder %s145, %s146
      %p155 = scmp.eq.s32.totalorder %s30, 0
      %p156 = por %p154, %p155
      %p157 = scmp.ne.s32.totalorder %s145, %s146
      %p158 = scmp.eq.s32.totalorder %s31, 1
      %p159 = por %p157, %p158
      %p161 = scmp.ne.s32.totalorder %s146, %s160
      %p162 = scmp.eq.s32.totalorder %s31, 0
      %p163 = por %p161, %p162
      %s165 = sadd.s32 %s164, 1
      %p168 = scmp.eq.s32.totalorder %s25, 1
      %p169 = scmp.ne.s32.totalorder %s164, %s166
      %p170 = scmp.eq.s32.totalorder %s25, 0
      %p171 = por %p169, %p170
      %p172 = scmp.ne.s32.totalorder %s164, %s166
      %p173 = scmp.eq.s32.totalorder %s30, 1
      %p174 = por %p172, %p173
      %p175 = scmp.ne.s32.totalorder %s166, %s167
      %p176 = scmp.eq.s32.totalorder %s30, 0
      %p177 = por %p175, %p176
      %p178 = scmp.ne.s32.totalorder %s166, %s167
      %p179 = scmp.eq.s32.totalorder %s31, 1
      %p180 = por %p178, %p179
      %p182 = scmp.ne.s32.totalorder %s167, %s181
      %p183 = scmp.eq.s32.totalorder %s31, 0
      %p184 = por %p182, %p183
      %s186 = sadd.s32 %s185, 1
      %p189 = scmp.eq.s32.totalorder %s25, 1
      %p190 = scmp.ne.s32.totalorder %s185, %s187
      %p191 = scmp.eq.s32.totalorder %s25, 0
      %p192 = por %p190, %p191
      %p193 = scmp.ne.s32.totalorder %s185, %s187
      %p194 = scmp.eq.s32.totalorder %s30, 1
      %p195 = por %p193, %p194
      %p196 = scmp.ne.s32.totalorder %s187, %s188
      %p197 = scmp.eq.s32.totalorder %s30, 0
      %p198 = por %p196, %p197
      %p199 = scmp.ne.s32.totalorder %s187, %s188
      %p200 = scmp.eq.s32.totalorder %s31, 1
      %p201 = por %p199, %p200
      %p203 = scmp.ne.s32.totalorder %s188, %s202
      %p204 = scmp.eq.s32.totalorder %s31, 0
      %p205 = por %p203, %p204
      %s207 = sadd.s32 %s206, 1
      %p210 = scmp.eq.s32.totalorder %s25, 1
      %p211 = scmp.ne.s32.totalorder %s206, %s208
      %p212 = scmp.eq.s32.totalorder %s25, 0
      %p213 = por %p211, %p212
      %p214 = scmp.ne.s32.totalorder %s206, %s208
      %p215 = scmp.eq.s32.totalorder %s30, 1
      %p216 = por %p214, %p215
      %p217 = scmp.ne.s32.totalorder %s208, %s209
      %p218 = scmp.eq.s32.totalorder %s30, 0
      %p219 = por %p217, %p218
      %p220 = scmp.ne.s32.totalorder %s208, %s209
      %p221 = scmp.eq.s32.totalorder %s31, 1
      %p222 = por %p220, %p221
      %p224 = scmp.ne.s32.totalorder %s209, %s223
      %p225 = scmp.eq.s32.totalorder %s31, 0
      %p226 = por %p224, %p225
      %s228 = sadd.s32 %s227, 1
      %p231 = scmp.eq.s32.totalorder %s25, 1
      %p232 = scmp.ne.s32.totalorder %s227, %s229
      %p233 = scmp.eq.s32.totalorder %s25, 0
      %p234 = por %p232, %p233
      %p235 = scmp.ne.s32.totalorder %s227, %s229
      %p236 = scmp.eq.s32.totalorder %s30, 1
      %p237 = por %p235, %p236
      %p238 = scmp.ne.s32.totalorder %s229, %s230
      %p239 = scmp.eq.s32.totalorder %s30, 0
      %p240 = por %p238, %p239
      %p241 = scmp.ne.s32.totalorder %s229, %s230
      %p242 = scmp.eq.s32.totalorder %s31, 1
      %p243 = por %p241, %p242
      %p245 = scmp.ne.s32.totalorder %s230, %s244
      %p246 = scmp.eq.s32.totalorder %s31, 0
      %p247 = por %p245, %p246
      %s249 = sadd.s32 %s248, 1
      %p252 = scmp.eq.s32.totalorder %s25, 1
      %p253 = scmp.ne.s32.totalorder %s248, %s250
      %p254 = scmp.eq.s32.totalorder %s25, 0
      %p255 = por %p253, %p254
      %p256 = scmp.ne.s32.totalorder %s248, %s250
      %p257 = scmp.eq.s32.totalorder %s30, 1
      %p258 = por %p256, %p257
      %p259 = scmp.ne.s32.totalorder %s250, %s251
      %p260 = scmp.eq.s32.totalorder %s30, 0
      %p261 = por %p259, %p260
      %p262 = scmp.ne.s32.totalorder %s250, %s251
      %p263 = scmp.eq.s32.totalorder %s31, 1
      %p264 = por %p262, %p263
      %p266 = scmp.ne.s32.totalorder %s251, %s265
      %p267 = scmp.eq.s32.totalorder %s31, 0
      %p268 = por %p266, %p267
      %s269 = ssub.s32 %s25, %s32
      %p270 = scmp.eq.s32.totalorder %s269, 0
      %s272 = sadd.s32 %s271, 1
      %s273 = scalar_select %p270, %s271, %s272
      %p276 = pneg %p270
      %p277 = scmp.eq.s32.totalorder %s25, 1
      %p278 = por %p276, %p277
      %p279 = scmp.ne.s32.totalorder %s271, %s274
      %p280 = scmp.eq.s32.totalorder %s25, 0
      %p281 = por %p279, %p280
      %p282 = scmp.ne.s32.totalorder %s271, %s274
      %p283 = scmp.eq.s32.totalorder %s30, 1
      %p284 = por %p282, %p283
      %p285 = scmp.ne.s32.totalorder %s274, %s275
      %p286 = scmp.eq.s32.totalorder %s30, 0
      %p287 = por %p285, %p286
      %p288 = scmp.ne.s32.totalorder %s274, %s275
      %p289 = scmp.eq.s32.totalorder %s31, 1
      %p290 = por %p288, %p289
      %p292 = scmp.ne.s32.totalorder %s275, %s291
      %p293 = scmp.eq.s32.totalorder %s31, 0
      %p294 = por %p292, %p293
      %p295 = scmp.le.s32.totalorder 1, %s25
      %p296 = scmp.lt.s32.totalorder %s25, 3
      %p297 = pnand %p295, %p296
      %p298 = pneg %p297
      // Predicated region
      $region9: #{tpu_custom_call.1} parent=5 // pred_check
        _
      $region10: #{tpu_custom_call.1} parent=5 // pred_check_branch
        %300 = sbr.rel (%p297) target = $region12
      $region11: #{tpu_custom_call.1} parent=5 // pred_region
        %s301 = ssub.s32 %s25, 1
        // Predicated region
        $region13: #{tpu_custom_call.1} parent=11 // pred_check
          %p302 = pneg %p72
        $region14: #{tpu_custom_call.1} parent=11 // pred_check_branch
          %304 = sbr.rel (%p302) target = $region16
        $region15: #{tpu_custom_call.1} parent=11 // pred_region
          %s306 = ssub.s32 896, 896
          %307 = vsyncadd [#allocation8], %s306
          %s308 = sshll.u32 [#allocation7], 4
          %s309 = int_to_ptr.vmem [resolvable:$true] %s308
          %314 = dma.hbm_to_vmem [thread:$0]  %s1, 896, %s309, [#allocation8], 128, 128, 8
        $region16: #{tpu_custom_call.1} parent=11 // pred_fallthru
          _
        // Predicated region
        $region17: #{tpu_custom_call.1} parent=11 // pred_check
          %p315 = pneg %p93
        $region18: #{tpu_custom_call.1} parent=11 // pred_check_branch
          %317 = sbr.rel (%p315) target = $region20
        $region19: #{tpu_custom_call.1} parent=11 // pred_region
          _
        $region20: #{tpu_custom_call.1} parent=11 // pred_fallthru
          _
        // Predicated region
        $region21: #{tpu_custom_call.1} parent=11 // pred_check
          %p318 = pneg %p114
        $region22: #{tpu_custom_call.1} parent=11 // pred_check_branch
          %320 = sbr.rel (%p318) target = $region24
        $region23: #{tpu_custom_call.1} parent=11 // pred_region
          _
        $region24: #{tpu_custom_call.1} parent=11 // pred_fallthru
          _
        // Predicated region
        $region25: #{tpu_custom_call.1} parent=11 // pred_check
          %p321 = pneg %p135
        $region26: #{tpu_custom_call.1} parent=11 // pred_check_branch
          %323 = sbr.rel (%p321) target = $region28
        $region27: #{tpu_custom_call.1} parent=11 // pred_region
          _
        $region28: #{tpu_custom_call.1} parent=11 // pred_fallthru
          _
        // Predicated region
        $region29: #{tpu_custom_call.1} parent=11 // pred_check
          %p324 = pneg %p156
        $region30: #{tpu_custom_call.1} parent=11 // pred_check_branch
          %326 = sbr.rel (%p324) target = $region32
        $region31: #{tpu_custom_call.1} parent=11 // pred_region
          %s328 = ssub.s32 1024, 1024
          %329 = vsyncadd [#allocation8], %s328
          %s330 = sshll.u32 [#allocation9], 4
          %s331 = int_to_ptr.vmem [resolvable:$true] %s330
          %336 = dma.hbm_to_vmem [thread:$0]  %s5, 1024, %s331, [#allocation8], 64, 64, 4
        $region32: #{tpu_custom_call.1} parent=11 // pred_fallthru
          _
        // Predicated region
        $region33: #{tpu_custom_call.1} parent=11 // pred_check
          %p337 = pneg %p177
        $region34: #{tpu_custom_call.1} parent=11 // pred_check_branch
          %339 = sbr.rel (%p337) target = $region36
        $region35: #{tpu_custom_call.1} parent=11 // pred_region
          _
        $region36: #{tpu_custom_call.1} parent=11 // pred_fallthru
          _
        // Predicated region
        $region37: #{tpu_custom_call.1} parent=11 // pred_check
          %p340 = pneg %p198
        $region38: #{tpu_custom_call.1} parent=11 // pred_check_branch
          %342 = sbr.rel (%p340) target = $region40
        $region39: #{tpu_custom_call.1} parent=11 // pred_region
          _
        $region40: #{tpu_custom_call.1} parent=11 // pred_fallthru
          _
        // Predicated region
        $region41: #{tpu_custom_call.1} parent=11 // pred_check
          %p343 = pneg %p219
        $region42: #{tpu_custom_call.1} parent=11 // pred_check_branch
          %345 = sbr.rel (%p343) target = $region44
        $region43: #{tpu_custom_call.1} parent=11 // pred_region
          _
        $region44: #{tpu_custom_call.1} parent=11 // pred_fallthru
          _
        // Predicated region
        $region45: #{tpu_custom_call.1} parent=11 // pred_check
          %p346 = pneg %p240
        $region46: #{tpu_custom_call.1} parent=11 // pred_check_branch
          %348 = sbr.rel (%p346) target = $region48
        $region47: #{tpu_custom_call.1} parent=11 // pred_region
          %s350 = ssub.s32 1024, 1024
          %351 = vsyncadd [#allocation11], %s350
          %s352 = sshll.u32 [#allocation10], 4
          %s353 = int_to_ptr.vmem [resolvable:$true] %s352
          %358 = dma.hbm_to_vmem [thread:$0]  %s9, 1024, %s353, [#allocation11], 64, 64, 4
        $region48: #{tpu_custom_call.1} parent=11 // pred_fallthru
          _
        // Predicated region
        $region49: #{tpu_custom_call.1} parent=11 // pred_check
          %p359 = pneg %p261
        $region50: #{tpu_custom_call.1} parent=11 // pred_check_branch
          %361 = sbr.rel (%p359) target = $region52
        $region51: #{tpu_custom_call.1} parent=11 // pred_region
          _
        $region52: #{tpu_custom_call.1} parent=11 // pred_fallthru
          _
      $region12: #{tpu_custom_call.1} parent=5 // pred_fallthru
        _
      %p362 = scmp.lt.s32.totalorder %s25, 2
      // Predicated region
      $region53: #{tpu_custom_call.1} parent=5 // pred_check
        %p363 = pneg %p362
      $region54: #{tpu_custom_call.1} parent=5 // pred_check_branch
        %365 = sbr.rel (%p363) target = $region56
      $region55: #{tpu_custom_call.1} parent=5 // pred_region
        // Predicated region
        $region57: #{tpu_custom_call.1} parent=55 // pred_check
          %p366 = pneg %p45
        $region58: #{tpu_custom_call.1} parent=55 // pred_check_branch
          %368 = sbr.rel (%p366) target = $region60
        $region59: #{tpu_custom_call.1} parent=55 // pred_region
          %s369 = sand.u32 %s35, 1
          %s370 = scalar_lea.sflag [#allocation5], %s369
          %s371 = sand.u32 %s35, 1
          %s372 = smul.addr %s371, 256
          %s373 = scalar_lea.vmem [#allocation4], %s372
          %s375 = ssub.s32 4096, 4096
          %376 = vsyncadd %s370, %s375
          %s377 = smul.addr %s25, 32
          %s378 = smul.addr %s377, 128
          %s379 = scalar_lea.hbm %s0, %s378
          %s380 = sshll.u32 %s373, 4
          %s381 = int_to_ptr.vmem [resolvable:$true] %s380
          %386 = dma.hbm_to_vmem [thread:$0]  %s379, 4096, %s381, %s370, 128, 128, 8
        $region60: #{tpu_custom_call.1} parent=55 // pred_fallthru
          _
      $region56: #{tpu_custom_call.1} parent=5 // pred_fallthru
        _
      %p387 = scmp.le.s32.totalorder 1, %s25
      %p388 = scmp.lt.s32.totalorder %s25, 3
      %p389 = pnand %p387, %p388
      %p390 = pneg %p389
      // Predicated region
      $region61: #{tpu_custom_call.1} parent=5 // pred_check
        _
      $region62: #{tpu_custom_call.1} parent=5 // pred_check_branch
        %392 = sbr.rel (%p389) target = $region64
      $region63: #{tpu_custom_call.1} parent=5 // pred_region
        %s393 = ssub.s32 %s25, 1
        %s394 = sand.u32 %s38, 1
        %s395 = scalar_lea.sflag [#allocation5], %s394
        %s396 = sand.u32 %s38, 1
        %s397 = smul.addr %s396, 256
        %s398 = scalar_lea.vmem [#allocation4], %s397
        // Predicated region
        $region65: #{tpu_custom_call.1} parent=63 // pred_check
          %p399 = pneg %p51
        $region66: #{tpu_custom_call.1} parent=63 // pred_check_branch
          %401 = sbr.rel (%p399) target = $region68
        $region67: #{tpu_custom_call.1} parent=63 // pred_region
          %402 = dma.done %s395, 4096
        $region68: #{tpu_custom_call.1} parent=63 // pred_fallthru
          _
        // Predicated region
        $region69: #{tpu_custom_call.1} parent=63 // pred_check
          %p403 = pneg %p72
        $region70: #{tpu_custom_call.1} parent=63 // pred_check_branch
          %405 = sbr.rel (%p403) target = $region72
        $region71: #{tpu_custom_call.1} parent=63 // pred_region
          %406 = dma.done [#allocation8], 896
        $region72: #{tpu_custom_call.1} parent=63 // pred_fallthru
          _
        // Predicated region
        $region73: #{tpu_custom_call.1} parent=63 // pred_check
          %p407 = pneg %p156
        $region74: #{tpu_custom_call.1} parent=63 // pred_check_branch
          %409 = sbr.rel (%p407) target = $region76
        $region75: #{tpu_custom_call.1} parent=63 // pred_region
          %410 = dma.done [#allocation8], 1024
        $region76: #{tpu_custom_call.1} parent=63 // pred_fallthru
          _
        // Predicated region
        $region77: #{tpu_custom_call.1} parent=63 // pred_check
          %p411 = pneg %p240
        $region78: #{tpu_custom_call.1} parent=63 // pred_check_branch
          %413 = sbr.rel (%p411) target = $region80
        $region79: #{tpu_custom_call.1} parent=63 // pred_region
          %414 = dma.done [#allocation11], 1024
        $region80: #{tpu_custom_call.1} parent=63 // pred_fallthru
          _
        %s415 = sand.u32 %s38, 1
        %s416 = scalar_lea.sflag [#allocation5], %s415
        %s417 = sand.u32 %s38, 1
        %s418 = smul.addr %s417, 256
        %s419 = scalar_lea.vmem [#allocation4], %s418
        %p420 = pneg %p51
        %p421 = pneg %p48
        %p422 = pneg %p72
        %p423 = pneg %p69
        %p424 = pneg %p93
        %p425 = pneg %p90
        %p426 = pneg %p114
        %p427 = pneg %p111
        %p428 = pneg %p135
        %p429 = pneg %p132
        %p430 = pneg %p156
        %p431 = pneg %p153
        %p432 = pneg %p177
        %p433 = pneg %p174
        %p434 = pneg %p198
        %p435 = pneg %p195
        %p436 = pneg %p219
        %p437 = pneg %p216
        %p438 = pneg %p240
        %p439 = pneg %p237
        %p440 = pneg %p261
        %p441 = pneg %p258
        %p442 = pneg %p287
        %p443 = pneg %p284
        %s444 = sand.u32 %s274, 1
        %s445 = scalar_lea.sflag [#allocation6], %s444
        %s446 = sand.u32 %s274, 1
        %s447 = smul.addr %s446, 256
        %s448 = scalar_lea.vmem [#allocation12], %s447
        %454 = vst [vmem:[#allocation2] sm:$0xff] 0.0
        %455 = vst [vmem:[#allocation2 + $0x8] sm:$0xff] 0.0
        %456 = vst [vmem:[#allocation2 + $0x10] sm:$0xff] 0.0
        %457 = vst [vmem:[#allocation2 + $0x18] sm:$0xff] 0.0
        %458 = vst [vmem:[#allocation2 + $0x20] sm:$0xff] 0.0
        %459 = vst [vmem:[#allocation2 + $0x28] sm:$0xff] 0.0
        %460 = vst [vmem:[#allocation2 + $0x30] sm:$0xff] 0.0
        %461 = vst [vmem:[#allocation2 + $0x38] sm:$0xff] 0.0
        %462 = vst [vmem:[#allocation2 + $0x40] sm:$0xff] 0.0
        %463 = vst [vmem:[#allocation2 + $0x48] sm:$0xff] 0.0
        %464 = vst [vmem:[#allocation2 + $0x50] sm:$0xff] 0.0
        %465 = vst [vmem:[#allocation2 + $0x58] sm:$0xff] 0.0
        %s466 = scalar_lea.vmem [#allocation2], 608
        %467 = vst [vmem:[%s466] sm:$0xff] 0.0
        %468 = vst [vmem:[%s466 + $0x8] sm:$0xff] 0.0
        %469 = vst [vmem:[%s466 + $0x10] sm:$0xff] 0.0
        %470 = vst [vmem:[%s466 + $0x18] sm:$0xff] 0.0
        %471 = vst [vmem:[%s466 + $0x20] sm:$0xff] 0.0
        %472 = vst [vmem:[%s466 + $0x28] sm:$0xff] 0.0
        %473 = vst [vmem:[%s466 + $0x30] sm:$0xff] 0.0
        %474 = vst [vmem:[%s466 + $0x38] sm:$0xff] 0.0
        %475 = vst [vmem:[%s466 + $0x40] sm:$0xff] 0.0
        %476 = vst [vmem:[%s466 + $0x48] sm:$0xff] 0.0
        %477 = vst [vmem:[%s466 + $0x50] sm:$0xff] 0.0
        %478 = vst [vmem:[%s466 + $0x58] sm:$0xff] 0.0
        %s479 = scalar_lea.vmem [#allocation2], 96
        %480 = vst [vmem:[%s479] sm:$0xff] 0.0
        %481 = vst [vmem:[%s479 + $0x20] sm:$0xff] 0.0
        %482 = vst [vmem:[%s479 + $0x40] sm:$0xff] 0.0
        %483 = vst [vmem:[%s479 + $0x60] sm:$0xff] 0.0
        %484 = vst [vmem:[%s479 + $0x80] sm:$0xff] 0.0
        %485 = vst [vmem:[%s479 + $0xa0] sm:$0xff] 0.0
        %486 = vst [vmem:[%s479 + $0xc0] sm:$0xff] 0.0
        %487 = vst [vmem:[%s479 + $0xe0] sm:$0xff] 0.0
        %488 = vst [vmem:[%s479 + $0x100] sm:$0xff] 0.0
        %489 = vst [vmem:[%s479 + $0x120] sm:$0xff] 0.0
        %490 = vst [vmem:[%s479 + $0x140] sm:$0xff] 0.0
        %491 = vst [vmem:[%s479 + $0x160] sm:$0xff] 0.0
        %492 = vst [vmem:[%s479 + $0x180] sm:$0xff] 0.0
        %493 = vst [vmem:[%s479 + $0x1a0] sm:$0xff] 0.0
        %494 = vst [vmem:[%s479 + $0x1c0] sm:$0xff] 0.0
        %495 = vst [vmem:[%s479 + $0x1e0] sm:$0xff] 0.0
        %496 = vst [vmem:[%s479 + $0x18] sm:$0xff] 0.0
        %497 = vst [vmem:[%s479 + $0x38] sm:$0xff] 0.0
        %498 = vst [vmem:[%s479 + $0x58] sm:$0xff] 0.0
        %499 = vst [vmem:[%s479 + $0x78] sm:$0xff] 0.0
        %500 = vst [vmem:[%s479 + $0x98] sm:$0xff] 0.0
        %501 = vst [vmem:[%s479 + $0xb8] sm:$0xff] 0.0
        %502 = vst [vmem:[%s479 + $0xd8] sm:$0xff] 0.0
        %503 = vst [vmem:[%s479 + $0xf8] sm:$0xff] 0.0
        %504 = vst [vmem:[%s479 + $0x118] sm:$0xff] 0.0
        %505 = vst [vmem:[%s479 + $0x138] sm:$0xff] 0.0
        %506 = vst [vmem:[%s479 + $0x158] sm:$0xff] 0.0
        %507 = vst [vmem:[%s479 + $0x178] sm:$0xff] 0.0
        %508 = vst [vmem:[%s479 + $0x198] sm:$0xff] 0.0
        %509 = vst [vmem:[%s479 + $0x1b8] sm:$0xff] 0.0
        %510 = vst [vmem:[%s479 + $0x1d8] sm:$0xff] 0.0
        %511 = vst [vmem:[%s479 + $0x1f8] sm:$0xff] 0.0
        %v512 = vld [vmem:[%s398] sm:$0xff]
        %v513 = vld [vmem:[%s398 + $0x8] sm:$0xff]
        %v514 = vld [vmem:[%s398 + $0x10] sm:$0xff]
        %v515 = vld [vmem:[%s398 + $0x18] sm:$0xff]
        %v516 = vld [vmem:[%s398 + $0x20] sm:$0xff]
        %v517 = vld [vmem:[%s398 + $0x28] sm:$0xff]
        %v518 = vld [vmem:[%s398 + $0x30] sm:$0xff]
        %v519 = vld [vmem:[%s398 + $0x38] sm:$0xff]
        %v520 = vld [vmem:[%s398 + $0x40] sm:$0xff]
        %v521 = vld [vmem:[%s398 + $0x48] sm:$0xff]
        %v522 = vld [vmem:[%s398 + $0x50] sm:$0xff]
        %v523 = vld [vmem:[%s398 + $0x58] sm:$0xff]
        %v524 = vld [vmem:[%s398 + $0x60] sm:$0xff]
        %v525 = vld [vmem:[%s398 + $0x68] sm:$0xff]
        %v526 = vld [vmem:[%s398 + $0x70] sm:$0xff]
        %v527 = vld [vmem:[%s398 + $0x78] sm:$0xff]
        %v528 = vld [vmem:[%s398 + $0x80] sm:$0xff]
        %v529 = vld [vmem:[%s398 + $0x88] sm:$0xff]
        %v530 = vld [vmem:[%s398 + $0x90] sm:$0xff]
        %v531 = vld [vmem:[%s398 + $0x98] sm:$0xff]
        %v532 = vld [vmem:[%s398 + $0xa0] sm:$0xff]
        %v533 = vld [vmem:[%s398 + $0xa8] sm:$0xff]
        %v534 = vld [vmem:[%s398 + $0xb0] sm:$0xff]
        %v535 = vld [vmem:[%s398 + $0xb8] sm:$0xff]
        %v536 = vld [vmem:[%s398 + $0xc0] sm:$0xff]
        %v537 = vld [vmem:[%s398 + $0xc8] sm:$0xff]
        %v538 = vld [vmem:[%s398 + $0xd0] sm:$0xff]
        %v539 = vld [vmem:[%s398 + $0xd8] sm:$0xff]
        %v540 = vld [vmem:[%s398 + $0xe0] sm:$0xff]
        %v541 = vld [vmem:[%s398 + $0xe8] sm:$0xff]
        %v542 = vld [vmem:[%s398 + $0xf0] sm:$0xff]
        %v543 = vld [vmem:[%s398 + $0xf8] sm:$0xff]
        %544 = vst [vmem:[%s479 + $0x8] sm:$0xff] %v512
        %545 = vst [vmem:[%s479 + $0x10] sm:$0xff] %v513
        %546 = vst [vmem:[%s479 + $0x28] sm:$0xff] %v514
        %547 = vst [vmem:[%s479 + $0x30] sm:$0xff] %v515
        %548 = vst [vmem:[%s479 + $0x48] sm:$0xff] %v516
        %549 = vst [vmem:[%s479 + $0x50] sm:$0xff] %v517
        %550 = vst [vmem:[%s479 + $0x68] sm:$0xff] %v518
        %551 = vst [vmem:[%s479 + $0x70] sm:$0xff] %v519
        %552 = vst [vmem:[%s479 + $0x88] sm:$0xff] %v520
        %553 = vst [vmem:[%s479 + $0x90] sm:$0xff] %v521
        %554 = vst [vmem:[%s479 + $0xa8] sm:$0xff] %v522
        %555 = vst [vmem:[%s479 + $0xb0] sm:$0xff] %v523
        %556 = vst [vmem:[%s479 + $0xc8] sm:$0xff] %v524
        %557 = vst [vmem:[%s479 + $0xd0] sm:$0xff] %v525
        %558 = vst [vmem:[%s479 + $0xe8] sm:$0xff] %v526
        %559 = vst [vmem:[%s479 + $0xf0] sm:$0xff] %v527
        %560 = vst [vmem:[%s479 + $0x108] sm:$0xff] %v528
        %561 = vst [vmem:[%s479 + $0x110] sm:$0xff] %v529
        %562 = vst [vmem:[%s479 + $0x128] sm:$0xff] %v530
        %563 = vst [vmem:[%s479 + $0x130] sm:$0xff] %v531
        %564 = vst [vmem:[%s479 + $0x148] sm:$0xff] %v532
        %565 = vst [vmem:[%s479 + $0x150] sm:$0xff] %v533
        %566 = vst [vmem:[%s479 + $0x168] sm:$0xff] %v534
        %567 = vst [vmem:[%s479 + $0x170] sm:$0xff] %v535
        %568 = vst [vmem:[%s479 + $0x188] sm:$0xff] %v536
        %569 = vst [vmem:[%s479 + $0x190] sm:$0xff] %v537
        %570 = vst [vmem:[%s479 + $0x1a8] sm:$0xff] %v538
        %571 = vst [vmem:[%s479 + $0x1b0] sm:$0xff] %v539
        %572 = vst [vmem:[%s479 + $0x1c8] sm:$0xff] %v540
        %573 = vst [vmem:[%s479 + $0x1d0] sm:$0xff] %v541
        %574 = vst [vmem:[%s479 + $0x1e8] sm:$0xff] %v542
        %575 = vst [vmem:[%s479 + $0x1f0] sm:$0xff] %v543
        %v576 = vld [vmem:[%s2] sm:$0x1]
        %v578 = vlaneseq
        %v579 = vshrl.u32 %v578, 7
        %v580 = vsub.s32 0, %v579
        %v581 = vrot.slane %v576, %v580
        %583 = vst [vmem:[#allocation3] sm:$0xff] %v581
        %584 = vst [vmem:[#allocation3 + $0x8] sm:$0xff] %v581
        %585 = vst [vmem:[#allocation3 + $0x10] sm:$0xff] %v581
        %586 = vst [vmem:[#allocation3 + $0x18] sm:$0xff] %v581
        %587 = vst [vmem:[#allocation3 + $0x20] sm:$0xff] %v581
        %588 = vst [vmem:[#allocation3 + $0x28] sm:$0xff] %v581
        %589 = vst [vmem:[#allocation3 + $0x30] sm:$0xff] %v581
        %590 = vst [vmem:[#allocation3 + $0x38] sm:$0xff] %v581
        %591 = vst [vmem:[#allocation3 + $0x40] sm:$0xff] %v581
        %592 = vst [vmem:[#allocation3 + $0x48] sm:$0xff] %v581
        %593 = vst [vmem:[#allocation3 + $0x50] sm:$0xff] %v581
        %594 = vst [vmem:[#allocation3 + $0x58] sm:$0xff] %v581
        %595 = vst [vmem:[#allocation3 + $0x60] sm:$0xff] %v581
        %596 = vst [vmem:[#allocation3 + $0x68] sm:$0xff] %v581
        %597 = vst [vmem:[#allocation3 + $0x70] sm:$0xff] %v581
        %598 = vst [vmem:[#allocation3 + $0x78] sm:$0xff] %v581
        %599 = vst [vmem:[#allocation3 + $0x80] sm:$0xff] %v581
        %600 = vst [vmem:[#allocation3 + $0x88] sm:$0xff] %v581
        %601 = vst [vmem:[#allocation3 + $0x90] sm:$0xff] %v581
        %602 = vst [vmem:[#allocation3 + $0x98] sm:$0xff] %v581
        %603 = vst [vmem:[#allocation3 + $0xa0] sm:$0xff] %v581
        %604 = vst [vmem:[#allocation3 + $0xa8] sm:$0xff] %v581
        %605 = vst [vmem:[#allocation3 + $0xb0] sm:$0xff] %v581
        %606 = vst [vmem:[#allocation3 + $0xb8] sm:$0xff] %v581
        %607 = vst [vmem:[#allocation3 + $0xc0] sm:$0xff] %v581
        %608 = vst [vmem:[#allocation3 + $0xc8] sm:$0xff] %v581
        %609 = vst [vmem:[#allocation3 + $0xd0] sm:$0xff] %v581
        %610 = vst [vmem:[#allocation3 + $0xd8] sm:$0xff] %v581
        %611 = vst [vmem:[#allocation3 + $0xe0] sm:$0xff] %v581
        %612 = vst [vmem:[#allocation3 + $0xe8] sm:$0xff] %v581
        %613 = vst [vmem:[#allocation3 + $0xf0] sm:$0xff] %v581
        %614 = vst [vmem:[#allocation3 + $0xf8] sm:$0xff] %v581
        loop: start=0, step=1, limit=7
        $region81: #{tpu_custom_call.1} parent=63 // loop_pre_header
          _
        $region82: #{tpu_custom_call.1} parent=63 // loop_header
          %s616 = sphi 0, %s620
          %p617 = scmp.ge.s32.totalorder %s616, 7
        $region83: #{tpu_custom_call.1} parent=63 // loop_header_branch
          %619 = sbr.rel (%p617) target = $region87
        $region84: #{tpu_custom_call.1} parent=63 // loop_body
          %s621 = sadd.s32 %s616, 5
          %s622 = scalar_lea.vmem [#allocation2], %s621
          %v623 = vld [vmem:[%s622] sm:$0xff]
          %v624 = vld [vmem:[%s622 + $0x8] sm:$0xff]
          %v625 = vld [vmem:[%s622 + $0x20] sm:$0xff]
          %v626 = vld [vmem:[%s622 + $0x28] sm:$0xff]
          %v627 = vld [vmem:[%s622 + $0x40] sm:$0xff]
          %v628 = vld [vmem:[%s622 + $0x48] sm:$0xff]
          %v629 = vld [vmem:[%s622 + $0x60] sm:$0xff]
          %v630 = vld [vmem:[%s622 + $0x68] sm:$0xff]
          %v631 = vld [vmem:[%s622 + $0x80] sm:$0xff]
          %v632 = vld [vmem:[%s622 + $0x88] sm:$0xff]
          %v633 = vld [vmem:[%s622 + $0xa0] sm:$0xff]
          %v634 = vld [vmem:[%s622 + $0xa8] sm:$0xff]
          %v635 = vld [vmem:[%s622 + $0xc0] sm:$0xff]
          %v636 = vld [vmem:[%s622 + $0xc8] sm:$0xff]
          %v637 = vld [vmem:[%s622 + $0xe0] sm:$0xff]
          %v638 = vld [vmem:[%s622 + $0xe8] sm:$0xff]
          %v639 = vld [vmem:[%s622 + $0x100] sm:$0xff]
          %v640 = vld [vmem:[%s622 + $0x108] sm:$0xff]
          %v641 = vld [vmem:[%s622 + $0x120] sm:$0xff]
          %v642 = vld [vmem:[%s622 + $0x128] sm:$0xff]
          %v643 = vld [vmem:[%s622 + $0x140] sm:$0xff]
          %v644 = vld [vmem:[%s622 + $0x148] sm:$0xff]
          %v645 = vld [vmem:[%s622 + $0x160] sm:$0xff]
          %v646 = vld [vmem:[%s622 + $0x168] sm:$0xff]
          %v647 = vld [vmem:[%s622 + $0x180] sm:$0xff]
          %v648 = vld [vmem:[%s622 + $0x188] sm:$0xff]
          %v649 = vld [vmem:[%s622 + $0x1a0] sm:$0xff]
          %v650 = vld [vmem:[%s622 + $0x1a8] sm:$0xff]
          %v651 = vld [vmem:[%s622 + $0x1c0] sm:$0xff]
          %v652 = vld [vmem:[%s622 + $0x1c8] sm:$0xff]
          %v653 = vld [vmem:[%s622 + $0x1e0] sm:$0xff]
          %v654 = vld [vmem:[%s622 + $0x1e8] sm:$0xff]
          %v655 = vld [vmem:[%s622 + $0x200] sm:$0xff]
          %v656 = vld [vmem:[%s622 + $0x208] sm:$0xff]
          %v657 = vld [vmem:[%s622 + $0x220] sm:$0xff]
          %v658 = vld [vmem:[%s622 + $0x228] sm:$0xff]
          %v659 = vld [vmem:[%s622 + $0x240] sm:$0xff]
          %v660 = vld [vmem:[%s622 + $0x248] sm:$0xff]
          %v661 = vld [vmem:[%s622 + $0x260] sm:$0xff]
          %v662 = vld [vmem:[%s622 + $0x268] sm:$0xff]
          %v663 = vld [vmem:[%s622 + $0x280] sm:$0xff]
          %v664 = vld [vmem:[%s622 + $0x288] sm:$0xff]
          %v665 = vld [vmem:[%s622 + $0x2a0] sm:$0xff]
          %v666 = vld [vmem:[%s622 + $0x2a8] sm:$0xff]
          %s667 = smul.u32 %s616, 8
          %s668 = scalar_lea.vmem [#allocation7], %s667
          %v669 = vld [vmem:[%s668] sm:$0x7f]
          %v670 = vlaneseq
          %v671 = vshrl.u32 %v670, 7
          %v672 = vsub.s32 0, %v671
          %v673 = vrot.slane %v669, %v672
          %v674 = vmul.f32 %v623, %v673
          %v675 = vmul.f32 %v624, %v673
          %v676 = vmul.f32 %v625, %v673
          %v677 = vmul.f32 %v626, %v673
          %v678 = vmul.f32 %v627, %v673
          %v679 = vmul.f32 %v628, %v673
          %v680 = vmul.f32 %v629, %v673
          %v681 = vmul.f32 %v630, %v673
          %v682 = vmul.f32 %v631, %v673
          %v683 = vmul.f32 %v632, %v673
          %v684 = vmul.f32 %v633, %v673
          %v685 = vmul.f32 %v634, %v673
          %v686 = vmul.f32 %v635, %v673
          %v687 = vmul.f32 %v636, %v673
          %v688 = vmul.f32 %v637, %v673
          %v689 = vmul.f32 %v638, %v673
          %v690 = vmul.f32 %v639, %v673
          %v691 = vmul.f32 %v640, %v673
          %v692 = vmul.f32 %v641, %v673
          %v693 = vmul.f32 %v642, %v673
          %v694 = vmul.f32 %v643, %v673
          %v695 = vmul.f32 %v644, %v673
          %v696 = vmul.f32 %v645, %v673
          %v697 = vmul.f32 %v646, %v673
          %v698 = vmul.f32 %v647, %v673
          %v699 = vmul.f32 %v648, %v673
          %v700 = vmul.f32 %v649, %v673
          %v701 = vmul.f32 %v650, %v673
          %v702 = vmul.f32 %v651, %v673
          %v703 = vmul.f32 %v652, %v673
          %v704 = vmul.f32 %v653, %v673
          %v705 = vmul.f32 %v654, %v673
          %v706 = vlaneseq
          %v707 = vshrl.u32 %v706, 7
          %v708 = vsub.s32 1, %v707
          %v709 = vrot.slane %v669, %v708
          %v710 = vmul.f32 %v625, %v709
          %v711 = vmul.f32 %v626, %v709
          %v712 = vmul.f32 %v627, %v709
          %v713 = vmul.f32 %v628, %v709
          %v714 = vmul.f32 %v629, %v709
          %v715 = vmul.f32 %v630, %v709
          %v716 = vmul.f32 %v631, %v709
          %v717 = vmul.f32 %v632, %v709
          %v718 = vmul.f32 %v633, %v709
          %v719 = vmul.f32 %v634, %v709
          %v720 = vmul.f32 %v635, %v709
          %v721 = vmul.f32 %v636, %v709
          %v722 = vmul.f32 %v637, %v709
          %v723 = vmul.f32 %v638, %v709
          %v724 = vmul.f32 %v639, %v709
          %v725 = vmul.f32 %v640, %v709
          %v726 = vmul.f32 %v641, %v709
          %v727 = vmul.f32 %v642, %v709
          %v728 = vmul.f32 %v643, %v709
          %v729 = vmul.f32 %v644, %v709
          %v730 = vmul.f32 %v645, %v709
          %v731 = vmul.f32 %v646, %v709
          %v732 = vmul.f32 %v647, %v709
          %v733 = vmul.f32 %v648, %v709
          %v734 = vmul.f32 %v649, %v709
          %v735 = vmul.f32 %v650, %v709
          %v736 = vmul.f32 %v651, %v709
          %v737 = vmul.f32 %v652, %v709
          %v738 = vmul.f32 %v653, %v709
          %v739 = vmul.f32 %v654, %v709
          %v740 = vmul.f32 %v655, %v709
          %v741 = vmul.f32 %v656, %v709
          %v742 = vadd.f32 %v674, %v710
          %v743 = vadd.f32 %v675, %v711
          %v744 = vadd.f32 %v676, %v712
          %v745 = vadd.f32 %v677, %v713
          %v746 = vadd.f32 %v678, %v714
          %v747 = vadd.f32 %v679, %v715
          %v748 = vadd.f32 %v680, %v716
          %v749 = vadd.f32 %v681, %v717
          %v750 = vadd.f32 %v682, %v718
          %v751 = vadd.f32 %v683, %v719
          %v752 = vadd.f32 %v684, %v720
          %v753 = vadd.f32 %v685, %v721
          %v754 = vadd.f32 %v686, %v722
          %v755 = vadd.f32 %v687, %v723
          %v756 = vadd.f32 %v688, %v724
          %v757 = vadd.f32 %v689, %v725
          %v758 = vadd.f32 %v690, %v726
          %v759 = vadd.f32 %v691, %v727
          %v760 = vadd.f32 %v692, %v728
          %v761 = vadd.f32 %v693, %v729
          %v762 = vadd.f32 %v694, %v730
          %v763 = vadd.f32 %v695, %v731
          %v764 = vadd.f32 %v696, %v732
          %v765 = vadd.f32 %v697, %v733
          %v766 = vadd.f32 %v698, %v734
          %v767 = vadd.f32 %v699, %v735
          %v768 = vadd.f32 %v700, %v736
          %v769 = vadd.f32 %v701, %v737
          %v770 = vadd.f32 %v702, %v738
          %v771 = vadd.f32 %v703, %v739
          %v772 = vadd.f32 %v704, %v740
          %v773 = vadd.f32 %v705, %v741
          %v774 = vlaneseq
          %v775 = vshrl.u32 %v774, 7
          %v776 = vsub.s32 2, %v775
          %v777 = vrot.slane %v669, %v776
          %v778 = vmul.f32 %v627, %v777
          %v779 = vmul.f32 %v628, %v777
          %v780 = vmul.f32 %v629, %v777
          %v781 = vmul.f32 %v630, %v777
          %v782 = vmul.f32 %v631, %v777
          %v783 = vmul.f32 %v632, %v777
          %v784 = vmul.f32 %v633, %v777
          %v785 = vmul.f32 %v634, %v777
          %v786 = vmul.f32 %v635, %v777
          %v787 = vmul.f32 %v636, %v777
          %v788 = vmul.f32 %v637, %v777
          %v789 = vmul.f32 %v638, %v777
          %v790 = vmul.f32 %v639, %v777
          %v791 = vmul.f32 %v640, %v777
          %v792 = vmul.f32 %v641, %v777
          %v793 = vmul.f32 %v642, %v777
          %v794 = vmul.f32 %v643, %v777
          %v795 = vmul.f32 %v644, %v777
          %v796 = vmul.f32 %v645, %v777
          %v797 = vmul.f32 %v646, %v777
          %v798 = vmul.f32 %v647, %v777
          %v799 = vmul.f32 %v648, %v777
          %v800 = vmul.f32 %v649, %v777
          %v801 = vmul.f32 %v650, %v777
          %v802 = vmul.f32 %v651, %v777
          %v803 = vmul.f32 %v652, %v777
          %v804 = vmul.f32 %v653, %v777
          %v805 = vmul.f32 %v654, %v777
          %v806 = vmul.f32 %v655, %v777
          %v807 = vmul.f32 %v656, %v777
          %v808 = vmul.f32 %v657, %v777
          %v809 = vmul.f32 %v658, %v777
          %v810 = vadd.f32 %v742, %v778
          %v811 = vadd.f32 %v743, %v779
          %v812 = vadd.f32 %v744, %v780
          %v813 = vadd.f32 %v745, %v781
          %v814 = vadd.f32 %v746, %v782
          %v815 = vadd.f32 %v747, %v783
          %v816 = vadd.f32 %v748, %v784
          %v817 = vadd.f32 %v749, %v785
          %v818 = vadd.f32 %v750, %v786
          %v819 = vadd.f32 %v751, %v787
          %v820 = vadd.f32 %v752, %v788
          %v821 = vadd.f32 %v753, %v789
          %v822 = vadd.f32 %v754, %v790
          %v823 = vadd.f32 %v755, %v791
          %v824 = vadd.f32 %v756, %v792
          %v825 = vadd.f32 %v757, %v793
          %v826 = vadd.f32 %v758, %v794
          %v827 = vadd.f32 %v759, %v795
          %v828 = vadd.f32 %v760, %v796
          %v829 = vadd.f32 %v761, %v797
          %v830 = vadd.f32 %v762, %v798
          %v831 = vadd.f32 %v763, %v799
          %v832 = vadd.f32 %v764, %v800
          %v833 = vadd.f32 %v765, %v801
          %v834 = vadd.f32 %v766, %v802
          %v835 = vadd.f32 %v767, %v803
          %v836 = vadd.f32 %v768, %v804
          %v837 = vadd.f32 %v769, %v805
          %v838 = vadd.f32 %v770, %v806
          %v839 = vadd.f32 %v771, %v807
          %v840 = vadd.f32 %v772, %v808
          %v841 = vadd.f32 %v773, %v809
          %v842 = vlaneseq
          %v843 = vshrl.u32 %v842, 7
          %v844 = vsub.s32 3, %v843
          %v845 = vrot.slane %v669, %v844
          %v846 = vmul.f32 %v629, %v845
          %v847 = vmul.f32 %v630, %v845
          %v848 = vmul.f32 %v631, %v845
          %v849 = vmul.f32 %v632, %v845
          %v850 = vmul.f32 %v633, %v845
          %v851 = vmul.f32 %v634, %v845
          %v852 = vmul.f32 %v635, %v845
          %v853 = vmul.f32 %v636, %v845
          %v854 = vmul.f32 %v637, %v845
          %v855 = vmul.f32 %v638, %v845
          %v856 = vmul.f32 %v639, %v845
          %v857 = vmul.f32 %v640, %v845
          %v858 = vmul.f32 %v641, %v845
          %v859 = vmul.f32 %v642, %v845
          %v860 = vmul.f32 %v643, %v845
          %v861 = vmul.f32 %v644, %v845
          %v862 = vmul.f32 %v645, %v845
          %v863 = vmul.f32 %v646, %v845
          %v864 = vmul.f32 %v647, %v845
          %v865 = vmul.f32 %v648, %v845
          %v866 = vmul.f32 %v649, %v845
          %v867 = vmul.f32 %v650, %v845
          %v868 = vmul.f32 %v651, %v845
          %v869 = vmul.f32 %v652, %v845
          %v870 = vmul.f32 %v653, %v845
          %v871 = vmul.f32 %v654, %v845
          %v872 = vmul.f32 %v655, %v845
          %v873 = vmul.f32 %v656, %v845
          %v874 = vmul.f32 %v657, %v845
          %v875 = vmul.f32 %v658, %v845
          %v876 = vmul.f32 %v659, %v845
          %v877 = vmul.f32 %v660, %v845
          %v878 = vadd.f32 %v810, %v846
          %v879 = vadd.f32 %v811, %v847
          %v880 = vadd.f32 %v812, %v848
          %v881 = vadd.f32 %v813, %v849
          %v882 = vadd.f32 %v814, %v850
          %v883 = vadd.f32 %v815, %v851
          %v884 = vadd.f32 %v816, %v852
          %v885 = vadd.f32 %v817, %v853
          %v886 = vadd.f32 %v818, %v854
          %v887 = vadd.f32 %v819, %v855
          %v888 = vadd.f32 %v820, %v856
          %v889 = vadd.f32 %v821, %v857
          %v890 = vadd.f32 %v822, %v858
          %v891 = vadd.f32 %v823, %v859
          %v892 = vadd.f32 %v824, %v860
          %v893 = vadd.f32 %v825, %v861
          %v894 = vadd.f32 %v826, %v862
          %v895 = vadd.f32 %v827, %v863
          %v896 = vadd.f32 %v828, %v864
          %v897 = vadd.f32 %v829, %v865
          %v898 = vadd.f32 %v830, %v866
          %v899 = vadd.f32 %v831, %v867
          %v900 = vadd.f32 %v832, %v868
          %v901 = vadd.f32 %v833, %v869
          %v902 = vadd.f32 %v834, %v870
          %v903 = vadd.f32 %v835, %v871
          %v904 = vadd.f32 %v836, %v872
          %v905 = vadd.f32 %v837, %v873
          %v906 = vadd.f32 %v838, %v874
          %v907 = vadd.f32 %v839, %v875
          %v908 = vadd.f32 %v840, %v876
          %v909 = vadd.f32 %v841, %v877
          %v910 = vlaneseq
          %v911 = vshrl.u32 %v910, 7
          %v912 = vsub.s32 4, %v911
          %v913 = vrot.slane %v669, %v912
          %v914 = vmul.f32 %v631, %v913
          %v915 = vmul.f32 %v632, %v913
          %v916 = vmul.f32 %v633, %v913
          %v917 = vmul.f32 %v634, %v913
          %v918 = vmul.f32 %v635, %v913
          %v919 = vmul.f32 %v636, %v913
          %v920 = vmul.f32 %v637, %v913
          %v921 = vmul.f32 %v638, %v913
          %v922 = vmul.f32 %v639, %v913
          %v923 = vmul.f32 %v640, %v913
          %v924 = vmul.f32 %v641, %v913
          %v925 = vmul.f32 %v642, %v913
          %v926 = vmul.f32 %v643, %v913
          %v927 = vmul.f32 %v644, %v913
          %v928 = vmul.f32 %v645, %v913
          %v929 = vmul.f32 %v646, %v913
          %v930 = vmul.f32 %v647, %v913
          %v931 = vmul.f32 %v648, %v913
          %v932 = vmul.f32 %v649, %v913
          %v933 = vmul.f32 %v650, %v913
          %v934 = vmul.f32 %v651, %v913
          %v935 = vmul.f32 %v652, %v913
          %v936 = vmul.f32 %v653, %v913
          %v937 = vmul.f32 %v654, %v913
          %v938 = vmul.f32 %v655, %v913
          %v939 = vmul.f32 %v656, %v913
          %v940 = vmul.f32 %v657, %v913
          %v941 = vmul.f32 %v658, %v913
          %v942 = vmul.f32 %v659, %v913
          %v943 = vmul.f32 %v660, %v913
          %v944 = vmul.f32 %v661, %v913
          %v945 = vmul.f32 %v662, %v913
          %v946 = vadd.f32 %v878, %v914
          %v947 = vadd.f32 %v879, %v915
          %v948 = vadd.f32 %v880, %v916
          %v949 = vadd.f32 %v881, %v917
          %v950 = vadd.f32 %v882, %v918
          %v951 = vadd.f32 %v883, %v919
          %v952 = vadd.f32 %v884, %v920
          %v953 = vadd.f32 %v885, %v921
          %v954 = vadd.f32 %v886, %v922
          %v955 = vadd.f32 %v887, %v923
          %v956 = vadd.f32 %v888, %v924
          %v957 = vadd.f32 %v889, %v925
          %v958 = vadd.f32 %v890, %v926
          %v959 = vadd.f32 %v891, %v927
          %v960 = vadd.f32 %v892, %v928
          %v961 = vadd.f32 %v893, %v929
          %v962 = vadd.f32 %v894, %v930
          %v963 = vadd.f32 %v895, %v931
          %v964 = vadd.f32 %v896, %v932
          %v965 = vadd.f32 %v897, %v933
          %v966 = vadd.f32 %v898, %v934
          %v967 = vadd.f32 %v899, %v935
          %v968 = vadd.f32 %v900, %v936
          %v969 = vadd.f32 %v901, %v937
          %v970 = vadd.f32 %v902, %v938
          %v971 = vadd.f32 %v903, %v939
          %v972 = vadd.f32 %v904, %v940
          %v973 = vadd.f32 %v905, %v941
          %v974 = vadd.f32 %v906, %v942
          %v975 = vadd.f32 %v907, %v943
          %v976 = vadd.f32 %v908, %v944
          %v977 = vadd.f32 %v909, %v945
          %v978 = vlaneseq
          %v979 = vshrl.u32 %v978, 7
          %v980 = vsub.s32 5, %v979
          %v981 = vrot.slane %v669, %v980
          %v982 = vmul.f32 %v633, %v981
          %v983 = vmul.f32 %v634, %v981
          %v984 = vmul.f32 %v635, %v981
          %v985 = vmul.f32 %v636, %v981
          %v986 = vmul.f32 %v637, %v981
          %v987 = vmul.f32 %v638, %v981
          %v988 = vmul.f32 %v639, %v981
          %v989 = vmul.f32 %v640, %v981
          %v990 = vmul.f32 %v641, %v981
          %v991 = vmul.f32 %v642, %v981
          %v992 = vmul.f32 %v643, %v981
          %v993 = vmul.f32 %v644, %v981
          %v994 = vmul.f32 %v645, %v981
          %v995 = vmul.f32 %v646, %v981
          %v996 = vmul.f32 %v647, %v981
          %v997 = vmul.f32 %v648, %v981
          %v998 = vmul.f32 %v649, %v981
          %v999 = vmul.f32 %v650, %v981
          %v1000 = vmul.f32 %v651, %v981
          %v1001 = vmul.f32 %v652, %v981
          %v1002 = vmul.f32 %v653, %v981
          %v1003 = vmul.f32 %v654, %v981
          %v1004 = vmul.f32 %v655, %v981
          %v1005 = vmul.f32 %v656, %v981
          %v1006 = vmul.f32 %v657, %v981
          %v1007 = vmul.f32 %v658, %v981
          %v1008 = vmul.f32 %v659, %v981
          %v1009 = vmul.f32 %v660, %v981
          %v1010 = vmul.f32 %v661, %v981
          %v1011 = vmul.f32 %v662, %v981
          %v1012 = vmul.f32 %v663, %v981
          %v1013 = vmul.f32 %v664, %v981
          %v1014 = vadd.f32 %v946, %v982
          %v1015 = vadd.f32 %v947, %v983
          %v1016 = vadd.f32 %v948, %v984
          %v1017 = vadd.f32 %v949, %v985
          %v1018 = vadd.f32 %v950, %v986
          %v1019 = vadd.f32 %v951, %v987
          %v1020 = vadd.f32 %v952, %v988
          %v1021 = vadd.f32 %v953, %v989
          %v1022 = vadd.f32 %v954, %v990
          %v1023 = vadd.f32 %v955, %v991
          %v1024 = vadd.f32 %v956, %v992
          %v1025 = vadd.f32 %v957, %v993
          %v1026 = vadd.f32 %v958, %v994
          %v1027 = vadd.f32 %v959, %v995
          %v1028 = vadd.f32 %v960, %v996
          %v1029 = vadd.f32 %v961, %v997
          %v1030 = vadd.f32 %v962, %v998
          %v1031 = vadd.f32 %v963, %v999
          %v1032 = vadd.f32 %v964, %v1000
          %v1033 = vadd.f32 %v965, %v1001
          %v1034 = vadd.f32 %v966, %v1002
          %v1035 = vadd.f32 %v967, %v1003
          %v1036 = vadd.f32 %v968, %v1004
          %v1037 = vadd.f32 %v969, %v1005
          %v1038 = vadd.f32 %v970, %v1006
          %v1039 = vadd.f32 %v971, %v1007
          %v1040 = vadd.f32 %v972, %v1008
          %v1041 = vadd.f32 %v973, %v1009
          %v1042 = vadd.f32 %v974, %v1010
          %v1043 = vadd.f32 %v975, %v1011
          %v1044 = vadd.f32 %v976, %v1012
          %v1045 = vadd.f32 %v977, %v1013
          %v1046 = vlaneseq
          %v1047 = vshrl.u32 %v1046, 7
          %v1048 = vsub.s32 6, %v1047
          %v1049 = vrot.slane %v669, %v1048
          %v1050 = vmul.f32 %v635, %v1049
          %v1051 = vmul.f32 %v636, %v1049
          %v1052 = vmul.f32 %v637, %v1049
          %v1053 = vmul.f32 %v638, %v1049
          %v1054 = vmul.f32 %v639, %v1049
          %v1055 = vmul.f32 %v640, %v1049
          %v1056 = vmul.f32 %v641, %v1049
          %v1057 = vmul.f32 %v642, %v1049
          %v1058 = vmul.f32 %v643, %v1049
          %v1059 = vmul.f32 %v644, %v1049
          %v1060 = vmul.f32 %v645, %v1049
          %v1061 = vmul.f32 %v646, %v1049
          %v1062 = vmul.f32 %v647, %v1049
          %v1063 = vmul.f32 %v648, %v1049
          %v1064 = vmul.f32 %v649, %v1049
          %v1065 = vmul.f32 %v650, %v1049
          %v1066 = vmul.f32 %v651, %v1049
          %v1067 = vmul.f32 %v652, %v1049
          %v1068 = vmul.f32 %v653, %v1049
          %v1069 = vmul.f32 %v654, %v1049
          %v1070 = vmul.f32 %v655, %v1049
          %v1071 = vmul.f32 %v656, %v1049
          %v1072 = vmul.f32 %v657, %v1049
          %v1073 = vmul.f32 %v658, %v1049
          %v1074 = vmul.f32 %v659, %v1049
          %v1075 = vmul.f32 %v660, %v1049
          %v1076 = vmul.f32 %v661, %v1049
          %v1077 = vmul.f32 %v662, %v1049
          %v1078 = vmul.f32 %v663, %v1049
          %v1079 = vmul.f32 %v664, %v1049
          %v1080 = vmul.f32 %v665, %v1049
          %v1081 = vmul.f32 %v666, %v1049
          %v1082 = vadd.f32 %v1014, %v1050
          %v1083 = vadd.f32 %v1015, %v1051
          %v1084 = vadd.f32 %v1016, %v1052
          %v1085 = vadd.f32 %v1017, %v1053
          %v1086 = vadd.f32 %v1018, %v1054
          %v1087 = vadd.f32 %v1019, %v1055
          %v1088 = vadd.f32 %v1020, %v1056
          %v1089 = vadd.f32 %v1021, %v1057
          %v1090 = vadd.f32 %v1022, %v1058
          %v1091 = vadd.f32 %v1023, %v1059
          %v1092 = vadd.f32 %v1024, %v1060
          %v1093 = vadd.f32 %v1025, %v1061
          %v1094 = vadd.f32 %v1026, %v1062
          %v1095 = vadd.f32 %v1027, %v1063
          %v1096 = vadd.f32 %v1028, %v1064
          %v1097 = vadd.f32 %v1029, %v1065
          %v1098 = vadd.f32 %v1030, %v1066
          %v1099 = vadd.f32 %v1031, %v1067
          %v1100 = vadd.f32 %v1032, %v1068
          %v1101 = vadd.f32 %v1033, %v1069
          %v1102 = vadd.f32 %v1034, %v1070
          %v1103 = vadd.f32 %v1035, %v1071
          %v1104 = vadd.f32 %v1036, %v1072
          %v1105 = vadd.f32 %v1037, %v1073
          %v1106 = vadd.f32 %v1038, %v1074
          %v1107 = vadd.f32 %v1039, %v1075
          %v1108 = vadd.f32 %v1040, %v1076
          %v1109 = vadd.f32 %v1041, %v1077
          %v1110 = vadd.f32 %v1042, %v1078
          %v1111 = vadd.f32 %v1043, %v1079
          %v1112 = vadd.f32 %v1044, %v1080
          %v1113 = vadd.f32 %v1045, %v1081
          %v1114 = vld [vmem:[#allocation3] sm:$0xff]
          %v1115 = vld [vmem:[#allocation3 + $0x8] sm:$0xff]
          %v1116 = vld [vmem:[#allocation3 + $0x10] sm:$0xff]
          %v1117 = vld [vmem:[#allocation3 + $0x18] sm:$0xff]
          %v1118 = vld [vmem:[#allocation3 + $0x20] sm:$0xff]
          %v1119 = vld [vmem:[#allocation3 + $0x28] sm:$0xff]
          %v1120 = vld [vmem:[#allocation3 + $0x30] sm:$0xff]
          %v1121 = vld [vmem:[#allocation3 + $0x38] sm:$0xff]
          %v1122 = vld [vmem:[#allocation3 + $0x40] sm:$0xff]
          %v1123 = vld [vmem:[#allocation3 + $0x48] sm:$0xff]
          %v1124 = vld [vmem:[#allocation3 + $0x50] sm:$0xff]
          %v1125 = vld [vmem:[#allocation3 + $0x58] sm:$0xff]
          %v1126 = vld [vmem:[#allocation3 + $0x60] sm:$0xff]
          %v1127 = vld [vmem:[#allocation3 + $0x68] sm:$0xff]
          %v1128 = vld [vmem:[#allocation3 + $0x70] sm:$0xff]
          %v1129 = vld [vmem:[#allocation3 + $0x78] sm:$0xff]
          %v1130 = vld [vmem:[#allocation3 + $0x80] sm:$0xff]
          %v1131 = vld [vmem:[#allocation3 + $0x88] sm:$0xff]
          %v1132 = vld [vmem:[#allocation3 + $0x90] sm:$0xff]
          %v1133 = vld [vmem:[#allocation3 + $0x98] sm:$0xff]
          %v1134 = vld [vmem:[#allocation3 + $0xa0] sm:$0xff]
          %v1135 = vld [vmem:[#allocation3 + $0xa8] sm:$0xff]
          %v1136 = vld [vmem:[#allocation3 + $0xb0] sm:$0xff]
          %v1137 = vld [vmem:[#allocation3 + $0xb8] sm:$0xff]
          %v1138 = vld [vmem:[#allocation3 + $0xc0] sm:$0xff]
          %v1139 = vld [vmem:[#allocation3 + $0xc8] sm:$0xff]
          %v1140 = vld [vmem:[#allocation3 + $0xd0] sm:$0xff]
          %v1141 = vld [vmem:[#allocation3 + $0xd8] sm:$0xff]
          %v1142 = vld [vmem:[#allocation3 + $0xe0] sm:$0xff]
          %v1143 = vld [vmem:[#allocation3 + $0xe8] sm:$0xff]
          %v1144 = vld [vmem:[#allocation3 + $0xf0] sm:$0xff]
          %v1145 = vld [vmem:[#allocation3 + $0xf8] sm:$0xff]
          %v1146 = vadd.f32 %v1114, %v1082
          %v1147 = vadd.f32 %v1115, %v1083
          %v1148 = vadd.f32 %v1116, %v1084
          %v1149 = vadd.f32 %v1117, %v1085
          %v1150 = vadd.f32 %v1118, %v1086
          %v1151 = vadd.f32 %v1119, %v1087
          %v1152 = vadd.f32 %v1120, %v1088
          %v1153 = vadd.f32 %v1121, %v1089
          %v1154 = vadd.f32 %v1122, %v1090
          %v1155 = vadd.f32 %v1123, %v1091
          %v1156 = vadd.f32 %v1124, %v1092
          %v1157 = vadd.f32 %v1125, %v1093
          %v1158 = vadd.f32 %v1126, %v1094
          %v1159 = vadd.f32 %v1127, %v1095
          %v1160 = vadd.f32 %v1128, %v1096
          %v1161 = vadd.f32 %v1129, %v1097
          %v1162 = vadd.f32 %v1130, %v1098
          %v1163 = vadd.f32 %v1131, %v1099
          %v1164 = vadd.f32 %v1132, %v1100
          %v1165 = vadd.f32 %v1133, %v1101
          %v1166 = vadd.f32 %v1134, %v1102
          %v1167 = vadd.f32 %v1135, %v1103
          %v1168 = vadd.f32 %v1136, %v1104
          %v1169 = vadd.f32 %v1137, %v1105
          %v1170 = vadd.f32 %v1138, %v1106
          %v1171 = vadd.f32 %v1139, %v1107
          %v1172 = vadd.f32 %v1140, %v1108
          %v1173 = vadd.f32 %v1141, %v1109
          %v1174 = vadd.f32 %v1142, %v1110
          %v1175 = vadd.f32 %v1143, %v1111
          %v1176 = vadd.f32 %v1144, %v1112
          %v1177 = vadd.f32 %v1145, %v1113
          %1178 = vst [vmem:[#allocation3] sm:$0xff] %v1146
          %1179 = vst [vmem:[#allocation3 + $0x8] sm:$0xff] %v1147
          %1180 = vst [vmem:[#allocation3 + $0x10] sm:$0xff] %v1148
          %1181 = vst [vmem:[#allocation3 + $0x18] sm:$0xff] %v1149
          %1182 = vst [vmem:[#allocation3 + $0x20] sm:$0xff] %v1150
          %1183 = vst [vmem:[#allocation3 + $0x28] sm:$0xff] %v1151
          %1184 = vst [vmem:[#allocation3 + $0x30] sm:$0xff] %v1152
          %1185 = vst [vmem:[#allocation3 + $0x38] sm:$0xff] %v1153
          %1186 = vst [vmem:[#allocation3 + $0x40] sm:$0xff] %v1154
          %1187 = vst [vmem:[#allocation3 + $0x48] sm:$0xff] %v1155
          %1188 = vst [vmem:[#allocation3 + $0x50] sm:$0xff] %v1156
          %1189 = vst [vmem:[#allocation3 + $0x58] sm:$0xff] %v1157
          %1190 = vst [vmem:[#allocation3 + $0x60] sm:$0xff] %v1158
          %1191 = vst [vmem:[#allocation3 + $0x68] sm:$0xff] %v1159
          %1192 = vst [vmem:[#allocation3 + $0x70] sm:$0xff] %v1160
          %1193 = vst [vmem:[#allocation3 + $0x78] sm:$0xff] %v1161
          %1194 = vst [vmem:[#allocation3 + $0x80] sm:$0xff] %v1162
          %1195 = vst [vmem:[#allocation3 + $0x88] sm:$0xff] %v1163
          %1196 = vst [vmem:[#allocation3 + $0x90] sm:$0xff] %v1164
          %1197 = vst [vmem:[#allocation3 + $0x98] sm:$0xff] %v1165
          %1198 = vst [vmem:[#allocation3 + $0xa0] sm:$0xff] %v1166
          %1199 = vst [vmem:[#allocation3 + $0xa8] sm:$0xff] %v1167
          %1200 = vst [vmem:[#allocation3 + $0xb0] sm:$0xff] %v1168
          %1201 = vst [vmem:[#allocation3 + $0xb8] sm:$0xff] %v1169
          %1202 = vst [vmem:[#allocation3 + $0xc0] sm:$0xff] %v1170
          %1203 = vst [vmem:[#allocation3 + $0xc8] sm:$0xff] %v1171
          %1204 = vst [vmem:[#allocation3 + $0xd0] sm:$0xff] %v1172
          %1205 = vst [vmem:[#allocation3 + $0xd8] sm:$0xff] %v1173
          %1206 = vst [vmem:[#allocation3 + $0xe0] sm:$0xff] %v1174
          %1207 = vst [vmem:[#allocation3 + $0xe8] sm:$0xff] %v1175
          %1208 = vst [vmem:[#allocation3 + $0xf0] sm:$0xff] %v1176
          %1209 = vst [vmem:[#allocation3 + $0xf8] sm:$0xff] %v1177
        $region85: #{tpu_custom_call.1} parent=63 // loop_footer
          %s620 = sadd.s32 1, %s616
        $region86: #{tpu_custom_call.1} parent=63 // loop_footer_branch
          %615 = sbr.rel target = $region82
        $region87: #{tpu_custom_call.1} parent=63 // loop_exit
          _
        %v1210 = vld [vmem:[#allocation3] sm:$0xff]
        %v1211 = vld [vmem:[#allocation3 + $0x8] sm:$0xff]
        %v1212 = vld [vmem:[#allocation3 + $0x10] sm:$0xff]
        %v1213 = vld [vmem:[#allocation3 + $0x18] sm:$0xff]
        %v1214 = vld [vmem:[#allocation3 + $0x20] sm:$0xff]
        %v1215 = vld [vmem:[#allocation3 + $0x28] sm:$0xff]
        %v1216 = vld [vmem:[#allocation3 + $0x30] sm:$0xff]
        %v1217 = vld [vmem:[#allocation3 + $0x38] sm:$0xff]
        %v1218 = vld [vmem:[#allocation3 + $0x40] sm:$0xff]
        %v1219 = vld [vmem:[#allocation3 + $0x48] sm:$0xff]
        %v1220 = vld [vmem:[#allocation3 + $0x50] sm:$0xff]
        %v1221 = vld [vmem:[#allocation3 + $0x58] sm:$0xff]
        %v1222 = vld [vmem:[#allocation3 + $0x60] sm:$0xff]
        %v1223 = vld [vmem:[#allocation3 + $0x68] sm:$0xff]
        %v1224 = vld [vmem:[#allocation3 + $0x70] sm:$0xff]
        %v1225 = vld [vmem:[#allocation3 + $0x78] sm:$0xff]
        %v1226 = vld [vmem:[#allocation3 + $0x80] sm:$0xff]
        %v1227 = vld [vmem:[#allocation3 + $0x88] sm:$0xff]
        %v1228 = vld [vmem:[#allocation3 + $0x90] sm:$0xff]
        %v1229 = vld [vmem:[#allocation3 + $0x98] sm:$0xff]
        %v1230 = vld [vmem:[#allocation3 + $0xa0] sm:$0xff]
        %v1231 = vld [vmem:[#allocation3 + $0xa8] sm:$0xff]
        %v1232 = vld [vmem:[#allocation3 + $0xb0] sm:$0xff]
        %v1233 = vld [vmem:[#allocation3 + $0xb8] sm:$0xff]
        %v1234 = vld [vmem:[#allocation3 + $0xc0] sm:$0xff]
        %v1235 = vld [vmem:[#allocation3 + $0xc8] sm:$0xff]
        %v1236 = vld [vmem:[#allocation3 + $0xd0] sm:$0xff]
        %v1237 = vld [vmem:[#allocation3 + $0xd8] sm:$0xff]
        %v1238 = vld [vmem:[#allocation3 + $0xe0] sm:$0xff]
        %v1239 = vld [vmem:[#allocation3 + $0xe8] sm:$0xff]
        %v1240 = vld [vmem:[#allocation3 + $0xf0] sm:$0xff]
        %v1241 = vld [vmem:[#allocation3 + $0xf8] sm:$0xff]
        %1242 = vadd.xlane.f32.xlu0 %v1210
        %v1243 = vpop.xlane.xlu0 %1242
        %1244 = vadd.xlane.f32.xlu0 %v1211
        %v1245 = vpop.xlane.xlu0 %1244
        %1246 = vadd.xlane.f32.xlu0 %v1212
        %v1247 = vpop.xlane.xlu0 %1246
        %1248 = vadd.xlane.f32.xlu0 %v1213
        %v1249 = vpop.xlane.xlu0 %1248
        %1250 = vadd.xlane.f32.xlu0 %v1214
        %v1251 = vpop.xlane.xlu0 %1250
        %1252 = vadd.xlane.f32.xlu0 %v1215
        %v1253 = vpop.xlane.xlu0 %1252
        %1254 = vadd.xlane.f32.xlu0 %v1216
        %v1255 = vpop.xlane.xlu0 %1254
        %1256 = vadd.xlane.f32.xlu0 %v1217
        %v1257 = vpop.xlane.xlu0 %1256
        %1258 = vadd.xlane.f32.xlu0 %v1218
        %v1259 = vpop.xlane.xlu0 %1258
        %1260 = vadd.xlane.f32.xlu0 %v1219
        %v1261 = vpop.xlane.xlu0 %1260
        %1262 = vadd.xlane.f32.xlu0 %v1220
        %v1263 = vpop.xlane.xlu0 %1262
        %1264 = vadd.xlane.f32.xlu0 %v1221
        %v1265 = vpop.xlane.xlu0 %1264
        %1266 = vadd.xlane.f32.xlu0 %v1222
        %v1267 = vpop.xlane.xlu0 %1266
        %1268 = vadd.xlane.f32.xlu0 %v1223
        %v1269 = vpop.xlane.xlu0 %1268
        %1270 = vadd.xlane.f32.xlu0 %v1224
        %v1271 = vpop.xlane.xlu0 %1270
        %1272 = vadd.xlane.f32.xlu0 %v1225
        %v1273 = vpop.xlane.xlu0 %1272
        %1274 = vadd.xlane.f32.xlu0 %v1226
        %v1275 = vpop.xlane.xlu0 %1274
        %1276 = vadd.xlane.f32.xlu0 %v1227
        %v1277 = vpop.xlane.xlu0 %1276
        %1278 = vadd.xlane.f32.xlu0 %v1228
        %v1279 = vpop.xlane.xlu0 %1278
        %1280 = vadd.xlane.f32.xlu0 %v1229
        %v1281 = vpop.xlane.xlu0 %1280
        %1282 = vadd.xlane.f32.xlu0 %v1230
        %v1283 = vpop.xlane.xlu0 %1282
        %1284 = vadd.xlane.f32.xlu0 %v1231
        %v1285 = vpop.xlane.xlu0 %1284
        %1286 = vadd.xlane.f32.xlu0 %v1232
        %v1287 = vpop.xlane.xlu0 %1286
        %1288 = vadd.xlane.f32.xlu0 %v1233
        %v1289 = vpop.xlane.xlu0 %1288
        %1290 = vadd.xlane.f32.xlu0 %v1234
        %v1291 = vpop.xlane.xlu0 %1290
        %1292 = vadd.xlane.f32.xlu0 %v1235
        %v1293 = vpop.xlane.xlu0 %1292
        %1294 = vadd.xlane.f32.xlu0 %v1236
        %v1295 = vpop.xlane.xlu0 %1294
        %1296 = vadd.xlane.f32.xlu0 %v1237
        %v1297 = vpop.xlane.xlu0 %1296
        %1298 = vadd.xlane.f32.xlu0 %v1238
        %v1299 = vpop.xlane.xlu0 %1298
        %1300 = vadd.xlane.f32.xlu0 %v1239
        %v1301 = vpop.xlane.xlu0 %1300
        %1302 = vadd.xlane.f32.xlu0 %v1240
        %v1303 = vpop.xlane.xlu0 %1302
        %1304 = vadd.xlane.f32.xlu0 %v1241
        %v1305 = vpop.xlane.xlu0 %1304
        %v1306 = vmul.f32 %v1243, 0.25
        %v1307 = vmul.f32 %v1245, 0.25
        %v1308 = vmul.f32 %v1247, 0.25
        %v1309 = vmul.f32 %v1249, 0.25
        %v1310 = vmul.f32 %v1251, 0.25
        %v1311 = vmul.f32 %v1253, 0.25
        %v1312 = vmul.f32 %v1255, 0.25
        %v1313 = vmul.f32 %v1257, 0.25
        %v1314 = vmul.f32 %v1259, 0.25
        %v1315 = vmul.f32 %v1261, 0.25
        %v1316 = vmul.f32 %v1263, 0.25
        %v1317 = vmul.f32 %v1265, 0.25
        %v1318 = vmul.f32 %v1267, 0.25
        %v1319 = vmul.f32 %v1269, 0.25
        %v1320 = vmul.f32 %v1271, 0.25
        %v1321 = vmul.f32 %v1273, 0.25
        %v1322 = vmul.f32 %v1275, 0.25
        %v1323 = vmul.f32 %v1277, 0.25
        %v1324 = vmul.f32 %v1279, 0.25
        %v1325 = vmul.f32 %v1281, 0.25
        %v1326 = vmul.f32 %v1283, 0.25
        %v1327 = vmul.f32 %v1285, 0.25
        %v1328 = vmul.f32 %v1287, 0.25
        %v1329 = vmul.f32 %v1289, 0.25
        %v1330 = vmul.f32 %v1291, 0.25
        %v1331 = vmul.f32 %v1293, 0.25
        %v1332 = vmul.f32 %v1295, 0.25
        %v1333 = vmul.f32 %v1297, 0.25
        %v1334 = vmul.f32 %v1299, 0.25
        %v1335 = vmul.f32 %v1301, 0.25
        %v1336 = vmul.f32 %v1303, 0.25
        %v1337 = vmul.f32 %v1305, 0.25
        %v1338 = vmul.f32 %v1210, %v1210
        %v1339 = vmul.f32 %v1211, %v1211
        %v1340 = vmul.f32 %v1212, %v1212
        %v1341 = vmul.f32 %v1213, %v1213
        %v1342 = vmul.f32 %v1214, %v1214
        %v1343 = vmul.f32 %v1215, %v1215
        %v1344 = vmul.f32 %v1216, %v1216
        %v1345 = vmul.f32 %v1217, %v1217
        %v1346 = vmul.f32 %v1218, %v1218
        %v1347 = vmul.f32 %v1219, %v1219
        %v1348 = vmul.f32 %v1220, %v1220
        %v1349 = vmul.f32 %v1221, %v1221
        %v1350 = vmul.f32 %v1222, %v1222
        %v1351 = vmul.f32 %v1223, %v1223
        %v1352 = vmul.f32 %v1224, %v1224
        %v1353 = vmul.f32 %v1225, %v1225
        %v1354 = vmul.f32 %v1226, %v1226
        %v1355 = vmul.f32 %v1227, %v1227
        %v1356 = vmul.f32 %v1228, %v1228
        %v1357 = vmul.f32 %v1229, %v1229
        %v1358 = vmul.f32 %v1230, %v1230
        %v1359 = vmul.f32 %v1231, %v1231
        %v1360 = vmul.f32 %v1232, %v1232
        %v1361 = vmul.f32 %v1233, %v1233
        %v1362 = vmul.f32 %v1234, %v1234
        %v1363 = vmul.f32 %v1235, %v1235
        %v1364 = vmul.f32 %v1236, %v1236
        %v1365 = vmul.f32 %v1237, %v1237
        %v1366 = vmul.f32 %v1238, %v1238
        %v1367 = vmul.f32 %v1239, %v1239
        %v1368 = vmul.f32 %v1240, %v1240
        %v1369 = vmul.f32 %v1241, %v1241
        %1370 = vadd.xlane.f32.xlu0 %v1338
        %v1371 = vpop.xlane.xlu0 %1370
        %1372 = vadd.xlane.f32.xlu0 %v1339
        %v1373 = vpop.xlane.xlu0 %1372
        %1374 = vadd.xlane.f32.xlu0 %v1340
        %v1375 = vpop.xlane.xlu0 %1374
        %1376 = vadd.xlane.f32.xlu0 %v1341
        %v1377 = vpop.xlane.xlu0 %1376
        %1378 = vadd.xlane.f32.xlu0 %v1342
        %v1379 = vpop.xlane.xlu0 %1378
        %1380 = vadd.xlane.f32.xlu0 %v1343
        %v1381 = vpop.xlane.xlu0 %1380
        %1382 = vadd.xlane.f32.xlu0 %v1344
        %v1383 = vpop.xlane.xlu0 %1382
        %1384 = vadd.xlane.f32.xlu0 %v1345
        %v1385 = vpop.xlane.xlu0 %1384
        %1386 = vadd.xlane.f32.xlu0 %v1346
        %v1387 = vpop.xlane.xlu0 %1386
        %1388 = vadd.xlane.f32.xlu0 %v1347
        %v1389 = vpop.xlane.xlu0 %1388
        %1390 = vadd.xlane.f32.xlu0 %v1348
        %v1391 = vpop.xlane.xlu0 %1390
        %1392 = vadd.xlane.f32.xlu0 %v1349
        %v1393 = vpop.xlane.xlu0 %1392
        %1394 = vadd.xlane.f32.xlu0 %v1350
        %v1395 = vpop.xlane.xlu0 %1394
        %1396 = vadd.xlane.f32.xlu0 %v1351
        %v1397 = vpop.xlane.xlu0 %1396
        %1398 = vadd.xlane.f32.xlu0 %v1352
        %v1399 = vpop.xlane.xlu0 %1398
        %1400 = vadd.xlane.f32.xlu0 %v1353
        %v1401 = vpop.xlane.xlu0 %1400
        %1402 = vadd.xlane.f32.xlu0 %v1354
        %v1403 = vpop.xlane.xlu0 %1402
        %1404 = vadd.xlane.f32.xlu0 %v1355
        %v1405 = vpop.xlane.xlu0 %1404
        %1406 = vadd.xlane.f32.xlu0 %v1356
        %v1407 = vpop.xlane.xlu0 %1406
        %1408 = vadd.xlane.f32.xlu0 %v1357
        %v1409 = vpop.xlane.xlu0 %1408
        %1410 = vadd.xlane.f32.xlu0 %v1358
        %v1411 = vpop.xlane.xlu0 %1410
        %1412 = vadd.xlane.f32.xlu0 %v1359
        %v1413 = vpop.xlane.xlu0 %1412
        %1414 = vadd.xlane.f32.xlu0 %v1360
        %v1415 = vpop.xlane.xlu0 %1414
        %1416 = vadd.xlane.f32.xlu0 %v1361
        %v1417 = vpop.xlane.xlu0 %1416
        %1418 = vadd.xlane.f32.xlu0 %v1362
        %v1419 = vpop.xlane.xlu0 %1418
        %1420 = vadd.xlane.f32.xlu0 %v1363
        %v1421 = vpop.xlane.xlu0 %1420
        %1422 = vadd.xlane.f32.xlu0 %v1364
        %v1423 = vpop.xlane.xlu0 %1422
        %1424 = vadd.xlane.f32.xlu0 %v1365
        %v1425 = vpop.xlane.xlu0 %1424
        %1426 = vadd.xlane.f32.xlu0 %v1366
        %v1427 = vpop.xlane.xlu0 %1426
        %1428 = vadd.xlane.f32.xlu0 %v1367
        %v1429 = vpop.xlane.xlu0 %1428
        %1430 = vadd.xlane.f32.xlu0 %v1368
        %v1431 = vpop.xlane.xlu0 %1430
        %1432 = vadd.xlane.f32.xlu0 %v1369
        %v1433 = vpop.xlane.xlu0 %1432
        %v1434 = vmul.f32 %v1371, 0.25
        %v1435 = vmul.f32 %v1373, 0.25
        %v1436 = vmul.f32 %v1375, 0.25
        %v1437 = vmul.f32 %v1377, 0.25
        %v1438 = vmul.f32 %v1379, 0.25
        %v1439 = vmul.f32 %v1381, 0.25
        %v1440 = vmul.f32 %v1383, 0.25
        %v1441 = vmul.f32 %v1385, 0.25
        %v1442 = vmul.f32 %v1387, 0.25
        %v1443 = vmul.f32 %v1389, 0.25
        %v1444 = vmul.f32 %v1391, 0.25
        %v1445 = vmul.f32 %v1393, 0.25
        %v1446 = vmul.f32 %v1395, 0.25
        %v1447 = vmul.f32 %v1397, 0.25
        %v1448 = vmul.f32 %v1399, 0.25
        %v1449 = vmul.f32 %v1401, 0.25
        %v1450 = vmul.f32 %v1403, 0.25
        %v1451 = vmul.f32 %v1405, 0.25
        %v1452 = vmul.f32 %v1407, 0.25
        %v1453 = vmul.f32 %v1409, 0.25
        %v1454 = vmul.f32 %v1411, 0.25
        %v1455 = vmul.f32 %v1413, 0.25
        %v1456 = vmul.f32 %v1415, 0.25
        %v1457 = vmul.f32 %v1417, 0.25
        %v1458 = vmul.f32 %v1419, 0.25
        %v1459 = vmul.f32 %v1421, 0.25
        %v1460 = vmul.f32 %v1423, 0.25
        %v1461 = vmul.f32 %v1425, 0.25
        %v1462 = vmul.f32 %v1427, 0.25
        %v1463 = vmul.f32 %v1429, 0.25
        %v1464 = vmul.f32 %v1431, 0.25
        %v1465 = vmul.f32 %v1433, 0.25
        %v1466 = vmul.f32 %v1306, %v1306
        %v1467 = vmul.f32 %v1307, %v1307
        %v1468 = vmul.f32 %v1308, %v1308
        %v1469 = vmul.f32 %v1309, %v1309
        %v1470 = vmul.f32 %v1310, %v1310
        %v1471 = vmul.f32 %v1311, %v1311
        %v1472 = vmul.f32 %v1312, %v1312
        %v1473 = vmul.f32 %v1313, %v1313
        %v1474 = vmul.f32 %v1314, %v1314
        %v1475 = vmul.f32 %v1315, %v1315
        %v1476 = vmul.f32 %v1316, %v1316
        %v1477 = vmul.f32 %v1317, %v1317
        %v1478 = vmul.f32 %v1318, %v1318
        %v1479 = vmul.f32 %v1319, %v1319
        %v1480 = vmul.f32 %v1320, %v1320
        %v1481 = vmul.f32 %v1321, %v1321
        %v1482 = vmul.f32 %v1322, %v1322
        %v1483 = vmul.f32 %v1323, %v1323
        %v1484 = vmul.f32 %v1324, %v1324
        %v1485 = vmul.f32 %v1325, %v1325
        %v1486 = vmul.f32 %v1326, %v1326
        %v1487 = vmul.f32 %v1327, %v1327
        %v1488 = vmul.f32 %v1328, %v1328
        %v1489 = vmul.f32 %v1329, %v1329
        %v1490 = vmul.f32 %v1330, %v1330
        %v1491 = vmul.f32 %v1331, %v1331
        %v1492 = vmul.f32 %v1332, %v1332
        %v1493 = vmul.f32 %v1333, %v1333
        %v1494 = vmul.f32 %v1334, %v1334
        %v1495 = vmul.f32 %v1335, %v1335
        %v1496 = vmul.f32 %v1336, %v1336
        %v1497 = vmul.f32 %v1337, %v1337
        %v1498 = vsub.f32 %v1434, %v1466
        %v1499 = vsub.f32 %v1435, %v1467
        %v1500 = vsub.f32 %v1436, %v1468
        %v1501 = vsub.f32 %v1437, %v1469
        %v1502 = vsub.f32 %v1438, %v1470
        %v1503 = vsub.f32 %v1439, %v1471
        %v1504 = vsub.f32 %v1440, %v1472
        %v1505 = vsub.f32 %v1441, %v1473
        %v1506 = vsub.f32 %v1442, %v1474
        %v1507 = vsub.f32 %v1443, %v1475
        %v1508 = vsub.f32 %v1444, %v1476
        %v1509 = vsub.f32 %v1445, %v1477
        %v1510 = vsub.f32 %v1446, %v1478
        %v1511 = vsub.f32 %v1447, %v1479
        %v1512 = vsub.f32 %v1448, %v1480
        %v1513 = vsub.f32 %v1449, %v1481
        %v1514 = vsub.f32 %v1450, %v1482
        %v1515 = vsub.f32 %v1451, %v1483
        %v1516 = vsub.f32 %v1452, %v1484
        %v1517 = vsub.f32 %v1453, %v1485
        %v1518 = vsub.f32 %v1454, %v1486
        %v1519 = vsub.f32 %v1455, %v1487
        %v1520 = vsub.f32 %v1456, %v1488
        %v1521 = vsub.f32 %v1457, %v1489
        %v1522 = vsub.f32 %v1458, %v1490
        %v1523 = vsub.f32 %v1459, %v1491
        %v1524 = vsub.f32 %v1460, %v1492
        %v1525 = vsub.f32 %v1461, %v1493
        %v1526 = vsub.f32 %v1462, %v1494
        %v1527 = vsub.f32 %v1463, %v1495
        %v1528 = vsub.f32 %v1464, %v1496
        %v1529 = vsub.f32 %v1465, %v1497
        %v1530 = vmax.f32 %v1498, 0.0
        %v1531 = vmax.f32 %v1499, 0.0
        %v1532 = vmax.f32 %v1500, 0.0
        %v1533 = vmax.f32 %v1501, 0.0
        %v1534 = vmax.f32 %v1502, 0.0
        %v1535 = vmax.f32 %v1503, 0.0
        %v1536 = vmax.f32 %v1504, 0.0
        %v1537 = vmax.f32 %v1505, 0.0
        %v1538 = vmax.f32 %v1506, 0.0
        %v1539 = vmax.f32 %v1507, 0.0
        %v1540 = vmax.f32 %v1508, 0.0
        %v1541 = vmax.f32 %v1509, 0.0
        %v1542 = vmax.f32 %v1510, 0.0
        %v1543 = vmax.f32 %v1511, 0.0
        %v1544 = vmax.f32 %v1512, 0.0
        %v1545 = vmax.f32 %v1513, 0.0
        %v1546 = vmax.f32 %v1514, 0.0
        %v1547 = vmax.f32 %v1515, 0.0
        %v1548 = vmax.f32 %v1516, 0.0
        %v1549 = vmax.f32 %v1517, 0.0
        %v1550 = vmax.f32 %v1518, 0.0
        %v1551 = vmax.f32 %v1519, 0.0
        %v1552 = vmax.f32 %v1520, 0.0
        %v1553 = vmax.f32 %v1521, 0.0
        %v1554 = vmax.f32 %v1522, 0.0
        %v1555 = vmax.f32 %v1523, 0.0
        %v1556 = vmax.f32 %v1524, 0.0
        %v1557 = vmax.f32 %v1525, 0.0
        %v1558 = vmax.f32 %v1526, 0.0
        %v1559 = vmax.f32 %v1527, 0.0
        %v1560 = vmax.f32 %v1528, 0.0
        %v1561 = vmax.f32 %v1529, 0.0
        %v1562 = vsub.f32 %v1210, %v1306
        %v1563 = vsub.f32 %v1211, %v1307
        %v1564 = vsub.f32 %v1212, %v1308
        %v1565 = vsub.f32 %v1213, %v1309
        %v1566 = vsub.f32 %v1214, %v1310
        %v1567 = vsub.f32 %v1215, %v1311
        %v1568 = vsub.f32 %v1216, %v1312
        %v1569 = vsub.f32 %v1217, %v1313
        %v1570 = vsub.f32 %v1218, %v1314
        %v1571 = vsub.f32 %v1219, %v1315
        %v1572 = vsub.f32 %v1220, %v1316
        %v1573 = vsub.f32 %v1221, %v1317
        %v1574 = vsub.f32 %v1222, %v1318
        %v1575 = vsub.f32 %v1223, %v1319
        %v1576 = vsub.f32 %v1224, %v1320
        %v1577 = vsub.f32 %v1225, %v1321
        %v1578 = vsub.f32 %v1226, %v1322
        %v1579 = vsub.f32 %v1227, %v1323
        %v1580 = vsub.f32 %v1228, %v1324
        %v1581 = vsub.f32 %v1229, %v1325
        %v1582 = vsub.f32 %v1230, %v1326
        %v1583 = vsub.f32 %v1231, %v1327
        %v1584 = vsub.f32 %v1232, %v1328
        %v1585 = vsub.f32 %v1233, %v1329
        %v1586 = vsub.f32 %v1234, %v1330
        %v1587 = vsub.f32 %v1235, %v1331
        %v1588 = vsub.f32 %v1236, %v1332
        %v1589 = vsub.f32 %v1237, %v1333
        %v1590 = vsub.f32 %v1238, %v1334
        %v1591 = vsub.f32 %v1239, %v1335
        %v1592 = vsub.f32 %v1240, %v1336
        %v1593 = vsub.f32 %v1241, %v1337
        %v1594 = vadd.f32 %v1530, 1e-06
        %v1595 = vadd.f32 %v1531, 1e-06
        %v1596 = vadd.f32 %v1532, 1e-06
        %v1597 = vadd.f32 %v1533, 1e-06
        %v1598 = vadd.f32 %v1534, 1e-06
        %v1599 = vadd.f32 %v1535, 1e-06
        %v1600 = vadd.f32 %v1536, 1e-06
        %v1601 = vadd.f32 %v1537, 1e-06
        %v1602 = vadd.f32 %v1538, 1e-06
        %v1603 = vadd.f32 %v1539, 1e-06
        %v1604 = vadd.f32 %v1540, 1e-06
        %v1605 = vadd.f32 %v1541, 1e-06
        %v1606 = vadd.f32 %v1542, 1e-06
        %v1607 = vadd.f32 %v1543, 1e-06
        %v1608 = vadd.f32 %v1544, 1e-06
        %v1609 = vadd.f32 %v1545, 1e-06
        %v1610 = vadd.f32 %v1546, 1e-06
        %v1611 = vadd.f32 %v1547, 1e-06
        %v1612 = vadd.f32 %v1548, 1e-06
        %v1613 = vadd.f32 %v1549, 1e-06
        %v1614 = vadd.f32 %v1550, 1e-06
        %v1615 = vadd.f32 %v1551, 1e-06
        %v1616 = vadd.f32 %v1552, 1e-06
        %v1617 = vadd.f32 %v1553, 1e-06
        %v1618 = vadd.f32 %v1554, 1e-06
        %v1619 = vadd.f32 %v1555, 1e-06
        %v1620 = vadd.f32 %v1556, 1e-06
        %v1621 = vadd.f32 %v1557, 1e-06
        %v1622 = vadd.f32 %v1558, 1e-06
        %v1623 = vadd.f32 %v1559, 1e-06
        %v1624 = vadd.f32 %v1560, 1e-06
        %v1625 = vadd.f32 %v1561, 1e-06
        %v1626 = vrsqrt.pop %v1594
        %v1627 = vrsqrt.pop %v1595
        %v1628 = vrsqrt.pop %v1596
        %v1629 = vrsqrt.pop %v1597
        %v1630 = vrsqrt.pop %v1598
        %v1631 = vrsqrt.pop %v1599
        %v1632 = vrsqrt.pop %v1600
        %v1633 = vrsqrt.pop %v1601
        %v1634 = vrsqrt.pop %v1602
        %v1635 = vrsqrt.pop %v1603
        %v1636 = vrsqrt.pop %v1604
        %v1637 = vrsqrt.pop %v1605
        %v1638 = vrsqrt.pop %v1606
        %v1639 = vrsqrt.pop %v1607
        %v1640 = vrsqrt.pop %v1608
        %v1641 = vrsqrt.pop %v1609
        %v1642 = vrsqrt.pop %v1610
        %v1643 = vrsqrt.pop %v1611
        %v1644 = vrsqrt.pop %v1612
        %v1645 = vrsqrt.pop %v1613
        %v1646 = vrsqrt.pop %v1614
        %v1647 = vrsqrt.pop %v1615
        %v1648 = vrsqrt.pop %v1616
        %v1649 = vrsqrt.pop %v1617
        %v1650 = vrsqrt.pop %v1618
        %v1651 = vrsqrt.pop %v1619
        %v1652 = vrsqrt.pop %v1620
        %v1653 = vrsqrt.pop %v1621
        %v1654 = vrsqrt.pop %v1622
        %v1655 = vrsqrt.pop %v1623
        %v1656 = vrsqrt.pop %v1624
        %v1657 = vrsqrt.pop %v1625
        %v1658 = vmul.f32 %v1562, %v1626
        %v1659 = vmul.f32 %v1563, %v1627
        %v1660 = vmul.f32 %v1564, %v1628
        %v1661 = vmul.f32 %v1565, %v1629
        %v1662 = vmul.f32 %v1566, %v1630
        %v1663 = vmul.f32 %v1567, %v1631
        %v1664 = vmul.f32 %v1568, %v1632
        %v1665 = vmul.f32 %v1569, %v1633
        %v1666 = vmul.f32 %v1570, %v1634
        %v1667 = vmul.f32 %v1571, %v1635
        %v1668 = vmul.f32 %v1572, %v1636
        %v1669 = vmul.f32 %v1573, %v1637
        %v1670 = vmul.f32 %v1574, %v1638
        %v1671 = vmul.f32 %v1575, %v1639
        %v1672 = vmul.f32 %v1576, %v1640
        %v1673 = vmul.f32 %v1577, %v1641
        %v1674 = vmul.f32 %v1578, %v1642
        %v1675 = vmul.f32 %v1579, %v1643
        %v1676 = vmul.f32 %v1580, %v1644
        %v1677 = vmul.f32 %v1581, %v1645
        %v1678 = vmul.f32 %v1582, %v1646
        %v1679 = vmul.f32 %v1583, %v1647
        %v1680 = vmul.f32 %v1584, %v1648
        %v1681 = vmul.f32 %v1585, %v1649
        %v1682 = vmul.f32 %v1586, %v1650
        %v1683 = vmul.f32 %v1587, %v1651
        %v1684 = vmul.f32 %v1588, %v1652
        %v1685 = vmul.f32 %v1589, %v1653
        %v1686 = vmul.f32 %v1590, %v1654
        %v1687 = vmul.f32 %v1591, %v1655
        %v1688 = vmul.f32 %v1592, %v1656
        %v1689 = vmul.f32 %v1593, %v1657
        %v1690 = vld [vmem:[%s3] sm:$0x1]
        %v1692 = vlaneseq
        %v1693 = vshrl.u32 %v1692, 7
        %v1694 = vsub.s32 0, %v1693
        %v1695 = vrot.slane %v1690, %v1694
        %v1697 = vmul.f32 %v1658, %v1695
        %v1698 = vmul.f32 %v1659, %v1695
        %v1699 = vmul.f32 %v1660, %v1695
        %v1700 = vmul.f32 %v1661, %v1695
        %v1701 = vmul.f32 %v1662, %v1695
        %v1702 = vmul.f32 %v1663, %v1695
        %v1703 = vmul.f32 %v1664, %v1695
        %v1704 = vmul.f32 %v1665, %v1695
        %v1705 = vmul.f32 %v1666, %v1695
        %v1706 = vmul.f32 %v1667, %v1695
        %v1707 = vmul.f32 %v1668, %v1695
        %v1708 = vmul.f32 %v1669, %v1695
        %v1709 = vmul.f32 %v1670, %v1695
        %v1710 = vmul.f32 %v1671, %v1695
        %v1711 = vmul.f32 %v1672, %v1695
        %v1712 = vmul.f32 %v1673, %v1695
        %v1713 = vmul.f32 %v1674, %v1695
        %v1714 = vmul.f32 %v1675, %v1695
        %v1715 = vmul.f32 %v1676, %v1695
        %v1716 = vmul.f32 %v1677, %v1695
        %v1717 = vmul.f32 %v1678, %v1695
        %v1718 = vmul.f32 %v1679, %v1695
        %v1719 = vmul.f32 %v1680, %v1695
        %v1720 = vmul.f32 %v1681, %v1695
        %v1721 = vmul.f32 %v1682, %v1695
        %v1722 = vmul.f32 %v1683, %v1695
        %v1723 = vmul.f32 %v1684, %v1695
        %v1724 = vmul.f32 %v1685, %v1695
        %v1725 = vmul.f32 %v1686, %v1695
        %v1726 = vmul.f32 %v1687, %v1695
        %v1727 = vmul.f32 %v1688, %v1695
        %v1728 = vmul.f32 %v1689, %v1695
        %v1729 = vld [vmem:[%s4] sm:$0x1]
        %v1731 = vlaneseq
        %v1732 = vshrl.u32 %v1731, 7
        %v1733 = vsub.s32 0, %v1732
        %v1734 = vrot.slane %v1729, %v1733
        %v1736 = vadd.f32 %v1697, %v1734
        %v1737 = vadd.f32 %v1698, %v1734
        %v1738 = vadd.f32 %v1699, %v1734
        %v1739 = vadd.f32 %v1700, %v1734
        %v1740 = vadd.f32 %v1701, %v1734
        %v1741 = vadd.f32 %v1702, %v1734
        %v1742 = vadd.f32 %v1703, %v1734
        %v1743 = vadd.f32 %v1704, %v1734
        %v1744 = vadd.f32 %v1705, %v1734
        %v1745 = vadd.f32 %v1706, %v1734
        %v1746 = vadd.f32 %v1707, %v1734
        %v1747 = vadd.f32 %v1708, %v1734
        %v1748 = vadd.f32 %v1709, %v1734
        %v1749 = vadd.f32 %v1710, %v1734
        %v1750 = vadd.f32 %v1711, %v1734
        %v1751 = vadd.f32 %v1712, %v1734
        %v1752 = vadd.f32 %v1713, %v1734
        %v1753 = vadd.f32 %v1714, %v1734
        %v1754 = vadd.f32 %v1715, %v1734
        %v1755 = vadd.f32 %v1716, %v1734
        %v1756 = vadd.f32 %v1717, %v1734
        %v1757 = vadd.f32 %v1718, %v1734
        %v1758 = vadd.f32 %v1719, %v1734
        %v1759 = vadd.f32 %v1720, %v1734
        %v1760 = vadd.f32 %v1721, %v1734
        %v1761 = vadd.f32 %v1722, %v1734
        %v1762 = vadd.f32 %v1723, %v1734
        %v1763 = vadd.f32 %v1724, %v1734
        %v1764 = vadd.f32 %v1725, %v1734
        %v1765 = vadd.f32 %v1726, %v1734
        %v1766 = vadd.f32 %v1727, %v1734
        %v1767 = vadd.f32 %v1728, %v1734
        %v1768 = vpack.c.bf16 %v1737, %v1736
        %v1769 = vpack.c.bf16 %v1739, %v1738
        %v1770 = vpack.c.bf16 %v1741, %v1740
        %v1771 = vpack.c.bf16 %v1743, %v1742
        %v1772 = vpack.c.bf16 %v1745, %v1744
        %v1773 = vpack.c.bf16 %v1747, %v1746
        %v1774 = vpack.c.bf16 %v1749, %v1748
        %v1775 = vpack.c.bf16 %v1751, %v1750
        %v1776 = vpack.c.bf16 %v1753, %v1752
        %v1777 = vpack.c.bf16 %v1755, %v1754
        %v1778 = vpack.c.bf16 %v1757, %v1756
        %v1779 = vpack.c.bf16 %v1759, %v1758
        %v1780 = vpack.c.bf16 %v1761, %v1760
        %v1781 = vpack.c.bf16 %v1763, %v1762
        %v1782 = vpack.c.bf16 %v1765, %v1764
        %v1783 = vpack.c.bf16 %v1767, %v1766
        %v1784 = vld [vmem:[#allocation9] sm:$0xf]
        %v1785 = vld [vmem:[#allocation9 + $0x4] sm:$0xf]
        %v1786 = vld [vmem:[#allocation9 + $0x8] sm:$0xf]
        %v1787 = vld [vmem:[#allocation9 + $0xc] sm:$0xf]
        %v1788 = vld [vmem:[#allocation9 + $0x10] sm:$0xf]
        %v1789 = vld [vmem:[#allocation9 + $0x14] sm:$0xf]
        %v1790 = vld [vmem:[#allocation9 + $0x18] sm:$0xf]
        %v1791 = vld [vmem:[#allocation9 + $0x1c] sm:$0xf]
        %v1792 = vld [vmem:[#allocation9 + $0x20] sm:$0xf]
        %v1793 = vld [vmem:[#allocation9 + $0x24] sm:$0xf]
        %v1794 = vld [vmem:[#allocation9 + $0x28] sm:$0xf]
        %v1795 = vld [vmem:[#allocation9 + $0x2c] sm:$0xf]
        %v1796 = vld [vmem:[#allocation9 + $0x30] sm:$0xf]
        %v1797 = vld [vmem:[#allocation9 + $0x34] sm:$0xf]
        %v1798 = vld [vmem:[#allocation9 + $0x38] sm:$0xf]
        %v1799 = vld [vmem:[#allocation9 + $0x3c] sm:$0xf]
        %v1800 = vld [vmem:[%s6] sm:$0x1]
        %v1802 = vlaneseq
        %v1803 = vshrl.u32 %v1802, 7
        %v1804 = vsub.s32 0, %v1803
        %v1805 = vrot.slane %v1800, %v1804
        %v1823 = vunpack.c.l.b16 %v1784
        %v1824 = vunpack.c.l.b16 %v1785
        %v1825 = vunpack.c.l.b16 %v1786
        %v1826 = vunpack.c.l.b16 %v1787
        %v1827 = vunpack.c.l.b16 %v1788
        %v1828 = vunpack.c.l.b16 %v1789
        %v1829 = vunpack.c.l.b16 %v1790
        %v1830 = vunpack.c.l.b16 %v1791
        %v1831 = vunpack.c.l.b16 %v1792
        %v1832 = vunpack.c.l.b16 %v1793
        %v1833 = vunpack.c.l.b16 %v1794
        %v1834 = vunpack.c.l.b16 %v1795
        %v1835 = vunpack.c.l.b16 %v1796
        %v1836 = vunpack.c.l.b16 %v1797
        %v1837 = vunpack.c.l.b16 %v1798
        %v1838 = vunpack.c.l.b16 %v1799
        %v1839 = vpack.c.b16 %v1824, %v1823
        %v1840 = vpack.c.b16 %v1826, %v1825
        %v1841 = vpack.c.b16 %v1828, %v1827
        %v1842 = vpack.c.b16 %v1830, %v1829
        %v1843 = vpack.c.b16 %v1832, %v1831
        %v1844 = vpack.c.b16 %v1834, %v1833
        %v1845 = vpack.c.b16 %v1836, %v1835
        %v1846 = vpack.c.b16 %v1838, %v1837
        %1855 = vmatprep.subr.bf16.mxu0 0
        %1856 = vmatpush1.bf16.msra.mxu0 %v1839
        %1857 = vmatprep.subr.bf16.mxu0 0
        %1858 = vmatpush1.bf16.msra.mxu0 %v1840
        %1859 = vmatprep.subr.bf16.mxu0 0
        %1860 = vmatpush1.bf16.msra.mxu0 %v1841
        %1861 = vmatprep.subr.bf16.mxu0 0
        %1862 = vmatpush1.bf16.msra.mxu0 %v1842
        %1863 = vmatprep.subr.bf16.mxu0 0
        %1864 = vmatpush1.bf16.msra.mxu0 %v1843
        %1865 = vmatprep.subr.bf16.mxu0 0
        %1866 = vmatpush1.bf16.msra.mxu0 %v1844
        %1867 = vmatprep.subr.bf16.mxu0 0
        %1868 = vmatpush1.bf16.msra.mxu0 %v1845
        %1869 = vmatprep.subr.bf16.mxu0 0
        %1870 = vmatpush1.bf16.msra.mxu0 %v1846
        %1871 = vmatprep.subr.bf16.mxu0 0
        %1872 = vmatpush1.bf16.msra.mxu0 0
        %1873 = vmatprep.subr.bf16.mxu0 0
        %1874 = vmatpush1.bf16.msra.mxu0 0
        %1875 = vmatprep.subr.bf16.mxu0 0
        %1876 = vmatpush1.bf16.msra.mxu0 0
        %1877 = vmatprep.subr.bf16.mxu0 0
        %1878 = vmatpush1.bf16.msra.mxu0 0
        %1879 = vmatprep.subr.bf16.mxu0 0
        %1880 = vmatpush1.bf16.msra.mxu0 0
        %1881 = vmatprep.subr.bf16.mxu0 0
        %1882 = vmatpush1.bf16.msra.mxu0 0
        %1883 = vmatprep.subr.bf16.mxu0 0
        %1884 = vmatpush1.bf16.msra.mxu0 0
        %1885 = vmatprep.subr.bf16.mxu0 0
        %1886 = vmatpush1.bf16.msra.mxu0 0
        %1887 = vmatprep.mubr.bf16.mxu0 0
        %1888 = vmatmul.mubr.bf16.gmra.mrb[0].mxu0 %v1768
        %v1889 = vpop.f32.mrb[0].mxu0
        %v1890 = vadd.f32 %v1805, %v1889
        %v1891 = vpop.f32.mrb[0].mxu0
        %v1892 = vpop.f32.mrb[0].mxu0
        %v1893 = vadd.f32 %v1805, %v1892
        %v1894 = vpop.f32.mrb[0].mxu0
        %1895 = vmatprep.mubr.bf16.mxu0 0
        %1896 = vmatmul.mubr.bf16.gmra.mrb[0].mxu0 %v1769
        %v1897 = vpop.f32.mrb[0].mxu0
        %v1898 = vadd.f32 %v1805, %v1897
        %v1899 = vpop.f32.mrb[0].mxu0
        %v1900 = vpop.f32.mrb[0].mxu0
        %v1901 = vadd.f32 %v1805, %v1900
        %v1902 = vpop.f32.mrb[0].mxu0
        %1903 = vmatprep.mubr.bf16.mxu0 0
        %1904 = vmatmul.mubr.bf16.gmra.mrb[0].mxu0 %v1770
        %v1905 = vpop.f32.mrb[0].mxu0
        %v1906 = vadd.f32 %v1805, %v1905
        %v1907 = vpop.f32.mrb[0].mxu0
        %v1908 = vpop.f32.mrb[0].mxu0
        %v1909 = vadd.f32 %v1805, %v1908
        %v1910 = vpop.f32.mrb[0].mxu0
        %1911 = vmatprep.mubr.bf16.mxu0 0
        %1912 = vmatmul.mubr.bf16.gmra.mrb[0].mxu0 %v1771
        %v1913 = vpop.f32.mrb[0].mxu0
        %v1914 = vadd.f32 %v1805, %v1913
        %v1915 = vpop.f32.mrb[0].mxu0
        %v1916 = vpop.f32.mrb[0].mxu0
        %v1917 = vadd.f32 %v1805, %v1916
        %v1918 = vpop.f32.mrb[0].mxu0
        %1919 = vmatprep.mubr.bf16.mxu0 0
        %1920 = vmatmul.mubr.bf16.gmra.mrb[0].mxu0 %v1772
        %v1921 = vpop.f32.mrb[0].mxu0
        %v1922 = vadd.f32 %v1805, %v1921
        %v1923 = vpop.f32.mrb[0].mxu0
        %v1924 = vpop.f32.mrb[0].mxu0
        %v1925 = vadd.f32 %v1805, %v1924
        %v1926 = vpop.f32.mrb[0].mxu0
        %1927 = vmatprep.mubr.bf16.mxu0 0
        %1928 = vmatmul.mubr.bf16.gmra.mrb[0].mxu0 %v1773
        %v1929 = vpop.f32.mrb[0].mxu0
        %v1930 = vadd.f32 %v1805, %v1929
        %v1931 = vpop.f32.mrb[0].mxu0
        %v1932 = vpop.f32.mrb[0].mxu0
        %v1933 = vadd.f32 %v1805, %v1932
        %v1934 = vpop.f32.mrb[0].mxu0
        %1935 = vmatprep.mubr.bf16.mxu0 0
        %1936 = vmatmul.mubr.bf16.gmra.mrb[0].mxu0 %v1774
        %v1937 = vpop.f32.mrb[0].mxu0
        %v1938 = vadd.f32 %v1805, %v1937
        %v1939 = vpop.f32.mrb[0].mxu0
        %v1940 = vpop.f32.mrb[0].mxu0
        %v1941 = vadd.f32 %v1805, %v1940
        %v1942 = vpop.f32.mrb[0].mxu0
        %1943 = vmatprep.mubr.bf16.mxu0 0
        %1944 = vmatmul.mubr.bf16.gmra.mrb[0].mxu0 %v1775
        %v1945 = vpop.f32.mrb[0].mxu0
        %v1946 = vadd.f32 %v1805, %v1945
        %v1947 = vpop.f32.mrb[0].mxu0
        %v1948 = vpop.f32.mrb[0].mxu0
        %v1949 = vadd.f32 %v1805, %v1948
        %v1950 = vpop.f32.mrb[0].mxu0
        %1951 = vmatprep.mubr.bf16.mxu0 0
        %1952 = vmatmul.mubr.bf16.gmra.mrb[0].mxu0 %v1776
        %v1953 = vpop.f32.mrb[0].mxu0
        %v1954 = vadd.f32 %v1805, %v1953
        %v1955 = vpop.f32.mrb[0].mxu0
        %v1956 = vpop.f32.mrb[0].mxu0
        %v1957 = vadd.f32 %v1805, %v1956
        %v1958 = vpop.f32.mrb[0].mxu0
        %1959 = vmatprep.mubr.bf16.mxu0 0
        %1960 = vmatmul.mubr.bf16.gmra.mrb[0].mxu0 %v1777
        %v1961 = vpop.f32.mrb[0].mxu0
        %v1962 = vadd.f32 %v1805, %v1961
        %v1963 = vpop.f32.mrb[0].mxu0
        %v1964 = vpop.f32.mrb[0].mxu0
        %v1965 = vadd.f32 %v1805, %v1964
        %v1966 = vpop.f32.mrb[0].mxu0
        %1967 = vmatprep.mubr.bf16.mxu0 0
        %1968 = vmatmul.mubr.bf16.gmra.mrb[0].mxu0 %v1778
        %v1969 = vpop.f32.mrb[0].mxu0
        %v1970 = vadd.f32 %v1805, %v1969
        %v1971 = vpop.f32.mrb[0].mxu0
        %v1972 = vpop.f32.mrb[0].mxu0
        %v1973 = vadd.f32 %v1805, %v1972
        %v1974 = vpop.f32.mrb[0].mxu0
        %1975 = vmatprep.mubr.bf16.mxu0 0
        %1976 = vmatmul.mubr.bf16.gmra.mrb[0].mxu0 %v1779
        %v1977 = vpop.f32.mrb[0].mxu0
        %v1978 = vadd.f32 %v1805, %v1977
        %v1979 = vpop.f32.mrb[0].mxu0
        %v1980 = vpop.f32.mrb[0].mxu0
        %v1981 = vadd.f32 %v1805, %v1980
        %v1982 = vpop.f32.mrb[0].mxu0
        %1983 = vmatprep.mubr.bf16.mxu0 0
        %1984 = vmatmul.mubr.bf16.gmra.mrb[0].mxu0 %v1780
        %v1985 = vpop.f32.mrb[0].mxu0
        %v1986 = vadd.f32 %v1805, %v1985
        %v1987 = vpop.f32.mrb[0].mxu0
        %v1988 = vpop.f32.mrb[0].mxu0
        %v1989 = vadd.f32 %v1805, %v1988
        %v1990 = vpop.f32.mrb[0].mxu0
        %1991 = vmatprep.mubr.bf16.mxu0 0
        %1992 = vmatmul.mubr.bf16.gmra.mrb[0].mxu0 %v1781
        %v1993 = vpop.f32.mrb[0].mxu0
        %v1994 = vadd.f32 %v1805, %v1993
        %v1995 = vpop.f32.mrb[0].mxu0
        %v1996 = vpop.f32.mrb[0].mxu0
        %v1997 = vadd.f32 %v1805, %v1996
        %v1998 = vpop.f32.mrb[0].mxu0
        %1999 = vmatprep.mubr.bf16.mxu0 0
        %2000 = vmatmul.mubr.bf16.gmra.mrb[0].mxu0 %v1782
        %v2001 = vpop.f32.mrb[0].mxu0
        %v2002 = vadd.f32 %v1805, %v2001
        %v2003 = vpop.f32.mrb[0].mxu0
        %v2004 = vpop.f32.mrb[0].mxu0
        %v2005 = vadd.f32 %v1805, %v2004
        %v2006 = vpop.f32.mrb[0].mxu0
        %2007 = vmatprep.mubr.bf16.mxu0 0
        %2008 = vmatmul.mubr.bf16.gmra.mrb[0].mxu0 %v1783
        %v2009 = vpop.f32.mrb[0].mxu0
        %v2010 = vadd.f32 %v1805, %v2009
        %v2011 = vpop.f32.mrb[0].mxu0
        %v2012 = vpop.f32.mrb[0].mxu0
        %v2013 = vadd.f32 %v1805, %v2012
        %v2014 = vpop.f32.mrb[0].mxu0
        %2015 = vdwg.mxu0
        %v2016 = vpack.c.bf16 %v1893, %v1890
        %v2017 = vpack.c.bf16 %v1901, %v1898
        %v2018 = vpack.c.bf16 %v1909, %v1906
        %v2019 = vpack.c.bf16 %v1917, %v1914
        %v2020 = vpack.c.bf16 %v1925, %v1922
        %v2021 = vpack.c.bf16 %v1933, %v1930
        %v2022 = vpack.c.bf16 %v1941, %v1938
        %v2023 = vpack.c.bf16 %v1949, %v1946
        %v2024 = vpack.c.bf16 %v1957, %v1954
        %v2025 = vpack.c.bf16 %v1965, %v1962
        %v2026 = vpack.c.bf16 %v1973, %v1970
        %v2027 = vpack.c.bf16 %v1981, %v1978
        %v2028 = vpack.c.bf16 %v1989, %v1986
        %v2029 = vpack.c.bf16 %v1997, %v1994
        %v2030 = vpack.c.bf16 %v2005, %v2002
        %v2031 = vpack.c.bf16 %v2013, %v2010
        %v2032 = vmul.bf16 %v2016, %v2016
        %v2033 = vmul.bf16 %v2017, %v2017
        %v2034 = vmul.bf16 %v2018, %v2018
        %v2035 = vmul.bf16 %v2019, %v2019
        %v2036 = vmul.bf16 %v2020, %v2020
        %v2037 = vmul.bf16 %v2021, %v2021
        %v2038 = vmul.bf16 %v2022, %v2022
        %v2039 = vmul.bf16 %v2023, %v2023
        %v2040 = vmul.bf16 %v2024, %v2024
        %v2041 = vmul.bf16 %v2025, %v2025
        %v2042 = vmul.bf16 %v2026, %v2026
        %v2043 = vmul.bf16 %v2027, %v2027
        %v2044 = vmul.bf16 %v2028, %v2028
        %v2045 = vmul.bf16 %v2029, %v2029
        %v2046 = vmul.bf16 %v2030, %v2030
        %v2047 = vmul.bf16 %v2031, %v2031
        %v2048 = vmul.bf16 %v2016, %v2032
        %v2049 = vmul.bf16 %v2017, %v2033
        %v2050 = vmul.bf16 %v2018, %v2034
        %v2051 = vmul.bf16 %v2019, %v2035
        %v2052 = vmul.bf16 %v2020, %v2036
        %v2053 = vmul.bf16 %v2021, %v2037
        %v2054 = vmul.bf16 %v2022, %v2038
        %v2055 = vmul.bf16 %v2023, %v2039
        %v2056 = vmul.bf16 %v2024, %v2040
        %v2057 = vmul.bf16 %v2025, %v2041
        %v2058 = vmul.bf16 %v2026, %v2042
        %v2059 = vmul.bf16 %v2027, %v2043
        %v2060 = vmul.bf16 %v2028, %v2044
        %v2061 = vmul.bf16 %v2029, %v2045
        %v2062 = vmul.bf16 %v2030, %v2046
        %v2063 = vmul.bf16 %v2031, %v2047
        %v2064 = vmul.bf16 %v2048, 1027030327
        %v2065 = vmul.bf16 %v2049, 1027030327
        %v2066 = vmul.bf16 %v2050, 1027030327
        %v2067 = vmul.bf16 %v2051, 1027030327
        %v2068 = vmul.bf16 %v2052, 1027030327
        %v2069 = vmul.bf16 %v2053, 1027030327
        %v2070 = vmul.bf16 %v2054, 1027030327
        %v2071 = vmul.bf16 %v2055, 1027030327
        %v2072 = vmul.bf16 %v2056, 1027030327
        %v2073 = vmul.bf16 %v2057, 1027030327
        %v2074 = vmul.bf16 %v2058, 1027030327
        %v2075 = vmul.bf16 %v2059, 1027030327
        %v2076 = vmul.bf16 %v2060, 1027030327
        %v2077 = vmul.bf16 %v2061, 1027030327
        %v2078 = vmul.bf16 %v2062, 1027030327
        %v2079 = vmul.bf16 %v2063, 1027030327
        %v2080 = vadd.bf16 %v2016, %v2064
        %v2081 = vadd.bf16 %v2017, %v2065
        %v2082 = vadd.bf16 %v2018, %v2066
        %v2083 = vadd.bf16 %v2019, %v2067
        %v2084 = vadd.bf16 %v2020, %v2068
        %v2085 = vadd.bf16 %v2021, %v2069
        %v2086 = vadd.bf16 %v2022, %v2070
        %v2087 = vadd.bf16 %v2023, %v2071
        %v2088 = vadd.bf16 %v2024, %v2072
        %v2089 = vadd.bf16 %v2025, %v2073
        %v2090 = vadd.bf16 %v2026, %v2074
        %v2091 = vadd.bf16 %v2027, %v2075
        %v2092 = vadd.bf16 %v2028, %v2076
        %v2093 = vadd.bf16 %v2029, %v2077
        %v2094 = vadd.bf16 %v2030, %v2078
        %v2095 = vadd.bf16 %v2031, %v2079
        %v2096 = vmul.bf16 %v2080, 1061961548
        %v2097 = vmul.bf16 %v2081, 1061961548
        %v2098 = vmul.bf16 %v2082, 1061961548
        %v2099 = vmul.bf16 %v2083, 1061961548
        %v2100 = vmul.bf16 %v2084, 1061961548
        %v2101 = vmul.bf16 %v2085, 1061961548
        %v2102 = vmul.bf16 %v2086, 1061961548
        %v2103 = vmul.bf16 %v2087, 1061961548
        %v2104 = vmul.bf16 %v2088, 1061961548
        %v2105 = vmul.bf16 %v2089, 1061961548
        %v2106 = vmul.bf16 %v2090, 1061961548
        %v2107 = vmul.bf16 %v2091, 1061961548
        %v2108 = vmul.bf16 %v2092, 1061961548
        %v2109 = vmul.bf16 %v2093, 1061961548
        %v2110 = vmul.bf16 %v2094, 1061961548
        %v2111 = vmul.bf16 %v2095, 1061961548
        %v2112 = vtanh.bf16.pop %v2096
        %v2113 = vtanh.bf16.pop %v2097
        %v2114 = vtanh.bf16.pop %v2098
        %v2115 = vtanh.bf16.pop %v2099
        %v2116 = vtanh.bf16.pop %v2100
        %v2117 = vtanh.bf16.pop %v2101
        %v2118 = vtanh.bf16.pop %v2102
        %v2119 = vtanh.bf16.pop %v2103
        %v2120 = vtanh.bf16.pop %v2104
        %v2121 = vtanh.bf16.pop %v2105
        %v2122 = vtanh.bf16.pop %v2106
        %v2123 = vtanh.bf16.pop %v2107
        %v2124 = vtanh.bf16.pop %v2108
        %v2125 = vtanh.bf16.pop %v2109
        %v2126 = vtanh.bf16.pop %v2110
        %v2127 = vtanh.bf16.pop %v2111
        %v2128 = vadd.bf16 %v2112, 1065369472
        %v2129 = vadd.bf16 %v2113, 1065369472
        %v2130 = vadd.bf16 %v2114, 1065369472
        %v2131 = vadd.bf16 %v2115, 1065369472
        %v2132 = vadd.bf16 %v2116, 1065369472
        %v2133 = vadd.bf16 %v2117, 1065369472
        %v2134 = vadd.bf16 %v2118, 1065369472
        %v2135 = vadd.bf16 %v2119, 1065369472
        %v2136 = vadd.bf16 %v2120, 1065369472
        %v2137 = vadd.bf16 %v2121, 1065369472
        %v2138 = vadd.bf16 %v2122, 1065369472
        %v2139 = vadd.bf16 %v2123, 1065369472
        %v2140 = vadd.bf16 %v2124, 1065369472
        %v2141 = vadd.bf16 %v2125, 1065369472
        %v2142 = vadd.bf16 %v2126, 1065369472
        %v2143 = vadd.bf16 %v2127, 1065369472
        %v2144 = vmul.bf16 %v2128, 1056980736
        %v2145 = vmul.bf16 %v2129, 1056980736
        %v2146 = vmul.bf16 %v2130, 1056980736
        %v2147 = vmul.bf16 %v2131, 1056980736
        %v2148 = vmul.bf16 %v2132, 1056980736
        %v2149 = vmul.bf16 %v2133, 1056980736
        %v2150 = vmul.bf16 %v2134, 1056980736
        %v2151 = vmul.bf16 %v2135, 1056980736
        %v2152 = vmul.bf16 %v2136, 1056980736
        %v2153 = vmul.bf16 %v2137, 1056980736
        %v2154 = vmul.bf16 %v2138, 1056980736
        %v2155 = vmul.bf16 %v2139, 1056980736
        %v2156 = vmul.bf16 %v2140, 1056980736
        %v2157 = vmul.bf16 %v2141, 1056980736
        %v2158 = vmul.bf16 %v2142, 1056980736
        %v2159 = vmul.bf16 %v2143, 1056980736
        %v2160 = vmul.bf16 %v2016, %v2144
        %v2161 = vmul.bf16 %v2017, %v2145
        %v2162 = vmul.bf16 %v2018, %v2146
        %v2163 = vmul.bf16 %v2019, %v2147
        %v2164 = vmul.bf16 %v2020, %v2148
        %v2165 = vmul.bf16 %v2021, %v2149
        %v2166 = vmul.bf16 %v2022, %v2150
        %v2167 = vmul.bf16 %v2023, %v2151
        %v2168 = vmul.bf16 %v2024, %v2152
        %v2169 = vmul.bf16 %v2025, %v2153
        %v2170 = vmul.bf16 %v2026, %v2154
        %v2171 = vmul.bf16 %v2027, %v2155
        %v2172 = vmul.bf16 %v2028, %v2156
        %v2173 = vmul.bf16 %v2029, %v2157
        %v2174 = vmul.bf16 %v2030, %v2158
        %v2175 = vmul.bf16 %v2031, %v2159
        %v2176 = vunpack.c.l.bf16 %v2160
        %v2177 = vunpack.c.h.bf16 %v2160
        %v2178 = vunpack.c.l.bf16 %v2161
        %v2179 = vunpack.c.h.bf16 %v2161
        %v2180 = vunpack.c.l.bf16 %v2162
        %v2181 = vunpack.c.h.bf16 %v2162
        %v2182 = vunpack.c.l.bf16 %v2163
        %v2183 = vunpack.c.h.bf16 %v2163
        %v2184 = vunpack.c.l.bf16 %v2164
        %v2185 = vunpack.c.h.bf16 %v2164
        %v2186 = vunpack.c.l.bf16 %v2165
        %v2187 = vunpack.c.h.bf16 %v2165
        %v2188 = vunpack.c.l.bf16 %v2166
        %v2189 = vunpack.c.h.bf16 %v2166
        %v2190 = vunpack.c.l.bf16 %v2167
        %v2191 = vunpack.c.h.bf16 %v2167
        %v2192 = vunpack.c.l.bf16 %v2168
        %v2193 = vunpack.c.h.bf16 %v2168
        %v2194 = vunpack.c.l.bf16 %v2169
        %v2195 = vunpack.c.h.bf16 %v2169
        %v2196 = vunpack.c.l.bf16 %v2170
        %v2197 = vunpack.c.h.bf16 %v2170
        %v2198 = vunpack.c.l.bf16 %v2171
        %v2199 = vunpack.c.h.bf16 %v2171
        %v2200 = vunpack.c.l.bf16 %v2172
        %v2201 = vunpack.c.h.bf16 %v2172
        %v2202 = vunpack.c.l.bf16 %v2173
        %v2203 = vunpack.c.h.bf16 %v2173
        %v2204 = vunpack.c.l.bf16 %v2174
        %v2205 = vunpack.c.h.bf16 %v2174
        %v2206 = vunpack.c.l.bf16 %v2175
        %v2207 = vunpack.c.h.bf16 %v2175
        %v2208 = vmul.f32 %v2176, %v2176
        %v2209 = vmul.f32 %v2177, %v2177
        %v2210 = vmul.f32 %v2178, %v2178
        %v2211 = vmul.f32 %v2179, %v2179
        %v2212 = vmul.f32 %v2180, %v2180
        %v2213 = vmul.f32 %v2181, %v2181
        %v2214 = vmul.f32 %v2182, %v2182
        %v2215 = vmul.f32 %v2183, %v2183
        %v2216 = vmul.f32 %v2184, %v2184
        %v2217 = vmul.f32 %v2185, %v2185
        %v2218 = vmul.f32 %v2186, %v2186
        %v2219 = vmul.f32 %v2187, %v2187
        %v2220 = vmul.f32 %v2188, %v2188
        %v2221 = vmul.f32 %v2189, %v2189
        %v2222 = vmul.f32 %v2190, %v2190
        %v2223 = vmul.f32 %v2191, %v2191
        %v2224 = vmul.f32 %v2192, %v2192
        %v2225 = vmul.f32 %v2193, %v2193
        %v2226 = vmul.f32 %v2194, %v2194
        %v2227 = vmul.f32 %v2195, %v2195
        %v2228 = vmul.f32 %v2196, %v2196
        %v2229 = vmul.f32 %v2197, %v2197
        %v2230 = vmul.f32 %v2198, %v2198
        %v2231 = vmul.f32 %v2199, %v2199
        %v2232 = vmul.f32 %v2200, %v2200
        %v2233 = vmul.f32 %v2201, %v2201
        %v2234 = vmul.f32 %v2202, %v2202
        %v2235 = vmul.f32 %v2203, %v2203
        %v2236 = vmul.f32 %v2204, %v2204
        %v2237 = vmul.f32 %v2205, %v2205
        %v2238 = vmul.f32 %v2206, %v2206
        %v2239 = vmul.f32 %v2207, %v2207
        %v2240 = vadd.f32 %v2208, %v2209
        %v2241 = vadd.f32 %v2240, %v2210
        %v2242 = vadd.f32 %v2241, %v2211
        %v2243 = vadd.f32 %v2242, %v2212
        %v2244 = vadd.f32 %v2243, %v2213
        %v2245 = vadd.f32 %v2244, %v2214
        %v2246 = vadd.f32 %v2245, %v2215
        %v2247 = vadd.f32 %v2246, %v2216
        %v2248 = vadd.f32 %v2247, %v2217
        %v2249 = vadd.f32 %v2248, %v2218
        %v2250 = vadd.f32 %v2249, %v2219
        %v2251 = vadd.f32 %v2250, %v2220
        %v2252 = vadd.f32 %v2251, %v2221
        %v2253 = vadd.f32 %v2252, %v2222
        %v2254 = vadd.f32 %v2253, %v2223
        %v2255 = vadd.f32 %v2254, %v2224
        %v2256 = vadd.f32 %v2255, %v2225
        %v2257 = vadd.f32 %v2256, %v2226
        %v2258 = vadd.f32 %v2257, %v2227
        %v2259 = vadd.f32 %v2258, %v2228
        %v2260 = vadd.f32 %v2259, %v2229
        %v2261 = vadd.f32 %v2260, %v2230
        %v2262 = vadd.f32 %v2261, %v2231
        %v2263 = vadd.f32 %v2262, %v2232
        %v2264 = vadd.f32 %v2263, %v2233
        %v2265 = vadd.f32 %v2264, %v2234
        %v2266 = vadd.f32 %v2265, %v2235
        %v2267 = vadd.f32 %v2266, %v2236
        %v2268 = vadd.f32 %v2267, %v2237
        %v2269 = vadd.f32 %v2268, %v2238
        %v2270 = vadd.f32 %v2269, %v2239
        %v2271 = vrot.slane %v2270, 4
        %v2272 = vadd.f32 %v2270, %v2271
        %v2273 = vrot.slane %v2272, 2
        %v2274 = vadd.f32 %v2272, %v2273
        %v2275 = vrot.slane %v2274, 1
        %v2276 = vadd.f32 %v2274, %v2275
        %v2277 = vrsqrt.pop %v2276
        %v2278 = vmul.f32 %v2276, %v2277
        %vm2279 = vcmp.eq.f32.partialorder %v2276, inf
        %v2280 = vsel %vm2279, %v2276, %v2278
        %vm2281 = vcmp.eq.f32.partialorder %v2276, 0.0
        %v2282 = vand.u32 %v2276, 2147483648
        %v2283 = vsel %vm2281, %v2282, %v2280
        %2284 = vadd.xlane.f32.xlu0 %v2283
        %v2285 = vpop.xlane.xlu0 %2284
        %v2286 = vmul.f32 %v2285, 0.0625
        %v2287 = vadd.f32 %v2286, 1e-06
        %v2288 = vrcp.pop %v2287
        %v2289 = vmul.f32 %v2283, %v2288
        %v2290 = vld [vmem:[%s7] sm:$0x1]
        %v2291 = vmul.f32 %v2290, %v2289
        %v2292 = vadd.f32 %v2291, 1.0
        %v2293 = vpack.c.bf16 %v2292, %v2292
        %v2295 = vpack.i.b16 %v2293, %v2293
        %v2297 = vlaneseq
        %v2298 = vshrl.u32 %v2297, 7
        %v2299 = vsub.s32 0, %v2298
        %v2300 = vrot.slane %v2295, %v2299
        %v2301 = vmul.bf16 %v2160, %v2300
        %v2302 = vmul.bf16 %v2161, %v2300
        %v2303 = vmul.bf16 %v2162, %v2300
        %v2304 = vmul.bf16 %v2163, %v2300
        %v2305 = vmul.bf16 %v2164, %v2300
        %v2306 = vmul.bf16 %v2165, %v2300
        %v2307 = vmul.bf16 %v2166, %v2300
        %v2308 = vmul.bf16 %v2167, %v2300
        %v2309 = vmul.bf16 %v2168, %v2300
        %v2310 = vmul.bf16 %v2169, %v2300
        %v2311 = vmul.bf16 %v2170, %v2300
        %v2312 = vmul.bf16 %v2171, %v2300
        %v2313 = vmul.bf16 %v2172, %v2300
        %v2314 = vmul.bf16 %v2173, %v2300
        %v2315 = vmul.bf16 %v2174, %v2300
        %v2316 = vmul.bf16 %v2175, %v2300
        %v2317 = vld [vmem:[%s8] sm:$0x1]
        %v2318 = vpack.c.bf16 %v2317, %v2317
        %v2320 = vpack.i.b16 %v2318, %v2318
        %v2322 = vlaneseq
        %v2323 = vshrl.u32 %v2322, 7
        %v2324 = vsub.s32 0, %v2323
        %v2325 = vrot.slane %v2320, %v2324
        %v2326 = vadd.bf16 %v2301, %v2325
        %v2327 = vadd.bf16 %v2302, %v2325
        %v2328 = vadd.bf16 %v2303, %v2325
        %v2329 = vadd.bf16 %v2304, %v2325
        %v2330 = vadd.bf16 %v2305, %v2325
        %v2331 = vadd.bf16 %v2306, %v2325
        %v2332 = vadd.bf16 %v2307, %v2325
        %v2333 = vadd.bf16 %v2308, %v2325
        %v2334 = vadd.bf16 %v2309, %v2325
        %v2335 = vadd.bf16 %v2310, %v2325
        %v2336 = vadd.bf16 %v2311, %v2325
        %v2337 = vadd.bf16 %v2312, %v2325
        %v2338 = vadd.bf16 %v2313, %v2325
        %v2339 = vadd.bf16 %v2314, %v2325
        %v2340 = vadd.bf16 %v2315, %v2325
        %v2341 = vadd.bf16 %v2316, %v2325
        %v2342 = vld [vmem:[#allocation10] sm:$0xf]
        %v2343 = vld [vmem:[#allocation10 + $0x4] sm:$0xf]
        %v2344 = vld [vmem:[#allocation10 + $0x8] sm:$0xf]
        %v2345 = vld [vmem:[#allocation10 + $0xc] sm:$0xf]
        %v2346 = vld [vmem:[#allocation10 + $0x10] sm:$0xf]
        %v2347 = vld [vmem:[#allocation10 + $0x14] sm:$0xf]
        %v2348 = vld [vmem:[#allocation10 + $0x18] sm:$0xf]
        %v2349 = vld [vmem:[#allocation10 + $0x1c] sm:$0xf]
        %v2350 = vld [vmem:[#allocation10 + $0x20] sm:$0xf]
        %v2351 = vld [vmem:[#allocation10 + $0x24] sm:$0xf]
        %v2352 = vld [vmem:[#allocation10 + $0x28] sm:$0xf]
        %v2353 = vld [vmem:[#allocation10 + $0x2c] sm:$0xf]
        %v2354 = vld [vmem:[#allocation10 + $0x30] sm:$0xf]
        %v2355 = vld [vmem:[#allocation10 + $0x34] sm:$0xf]
        %v2356 = vld [vmem:[#allocation10 + $0x38] sm:$0xf]
        %v2357 = vld [vmem:[#allocation10 + $0x3c] sm:$0xf]
        %v2358 = vld [vmem:[%s10] sm:$0x1]
        %v2360 = vlaneseq
        %v2361 = vshrl.u32 %v2360, 7
        %v2362 = vsub.s32 0, %v2361
        %v2363 = vrot.slane %v2358, %v2362
        %v2381 = vunpack.c.l.b16 %v2342
        %v2382 = vunpack.c.l.b16 %v2343
        %v2383 = vunpack.c.l.b16 %v2344
        %v2384 = vunpack.c.l.b16 %v2345
        %v2385 = vunpack.c.l.b16 %v2346
        %v2386 = vunpack.c.l.b16 %v2347
        %v2387 = vunpack.c.l.b16 %v2348
        %v2388 = vunpack.c.l.b16 %v2349
        %v2389 = vunpack.c.l.b16 %v2350
        %v2390 = vunpack.c.l.b16 %v2351
        %v2391 = vunpack.c.l.b16 %v2352
        %v2392 = vunpack.c.l.b16 %v2353
        %v2393 = vunpack.c.l.b16 %v2354
        %v2394 = vunpack.c.l.b16 %v2355
        %v2395 = vunpack.c.l.b16 %v2356
        %v2396 = vunpack.c.l.b16 %v2357
        %v2397 = vpack.c.b16 %v2382, %v2381
        %v2398 = vpack.c.b16 %v2384, %v2383
        %v2399 = vpack.c.b16 %v2386, %v2385
        %v2400 = vpack.c.b16 %v2388, %v2387
        %v2401 = vpack.c.b16 %v2390, %v2389
        %v2402 = vpack.c.b16 %v2392, %v2391
        %v2403 = vpack.c.b16 %v2394, %v2393
        %v2404 = vpack.c.b16 %v2396, %v2395
        %2413 = vmatprep.subr.bf16.mxu0 0
        %2414 = vmatpush1.bf16.msra.mxu0 %v2397
        %2415 = vmatprep.subr.bf16.mxu0 0
        %2416 = vmatpush1.bf16.msra.mxu0 %v2398
        %2417 = vmatprep.subr.bf16.mxu0 0
        %2418 = vmatpush1.bf16.msra.mxu0 %v2399
        %2419 = vmatprep.subr.bf16.mxu0 0
        %2420 = vmatpush1.bf16.msra.mxu0 %v2400
        %2421 = vmatprep.subr.bf16.mxu0 0
        %2422 = vmatpush1.bf16.msra.mxu0 %v2401
        %2423 = vmatprep.subr.bf16.mxu0 0
        %2424 = vmatpush1.bf16.msra.mxu0 %v2402
        %2425 = vmatprep.subr.bf16.mxu0 0
        %2426 = vmatpush1.bf16.msra.mxu0 %v2403
        %2427 = vmatprep.subr.bf16.mxu0 0
        %2428 = vmatpush1.bf16.msra.mxu0 %v2404
        %2429 = vmatprep.subr.bf16.mxu0 0
        %2430 = vmatpush1.bf16.msra.mxu0 0
        %2431 = vmatprep.subr.bf16.mxu0 0
        %2432 = vmatpush1.bf16.msra.mxu0 0
        %2433 = vmatprep.subr.bf16.mxu0 0
        %2434 = vmatpush1.bf16.msra.mxu0 0
        %2435 = vmatprep.subr.bf16.mxu0 0
        %2436 = vmatpush1.bf16.msra.mxu0 0
        %2437 = vmatprep.subr.bf16.mxu0 0
        %2438 = vmatpush1.bf16.msra.mxu0 0
        %2439 = vmatprep.subr.bf16.mxu0 0
        %2440 = vmatpush1.bf16.msra.mxu0 0
        %2441 = vmatprep.subr.bf16.mxu0 0
        %2442 = vmatpush1.bf16.msra.mxu0 0
        %2443 = vmatprep.subr.bf16.mxu0 0
        %2444 = vmatpush1.bf16.msra.mxu0 0
        %2445 = vmatprep.mubr.bf16.mxu0 0
        %2446 = vmatmul.mubr.bf16.gmra.mrb[0].mxu0 %v2326
        %v2447 = vpop.f32.mrb[0].mxu0
        %v2448 = vadd.f32 %v2363, %v2447
        %v2449 = vpop.f32.mrb[0].mxu0
        %v2450 = vpop.f32.mrb[0].mxu0
        %v2451 = vadd.f32 %v2363, %v2450
        %v2452 = vpop.f32.mrb[0].mxu0
        %2453 = vmatprep.mubr.bf16.mxu0 0
        %2454 = vmatmul.mubr.bf16.gmra.mrb[0].mxu0 %v2327
        %v2455 = vpop.f32.mrb[0].mxu0
        %v2456 = vadd.f32 %v2363, %v2455
        %v2457 = vpop.f32.mrb[0].mxu0
        %v2458 = vpop.f32.mrb[0].mxu0
        %v2459 = vadd.f32 %v2363, %v2458
        %v2460 = vpop.f32.mrb[0].mxu0
        %2461 = vmatprep.mubr.bf16.mxu0 0
        %2462 = vmatmul.mubr.bf16.gmra.mrb[0].mxu0 %v2328
        %v2463 = vpop.f32.mrb[0].mxu0
        %v2464 = vadd.f32 %v2363, %v2463
        %v2465 = vpop.f32.mrb[0].mxu0
        %v2466 = vpop.f32.mrb[0].mxu0
        %v2467 = vadd.f32 %v2363, %v2466
        %v2468 = vpop.f32.mrb[0].mxu0
        %2469 = vmatprep.mubr.bf16.mxu0 0
        %2470 = vmatmul.mubr.bf16.gmra.mrb[0].mxu0 %v2329
        %v2471 = vpop.f32.mrb[0].mxu0
        %v2472 = vadd.f32 %v2363, %v2471
        %v2473 = vpop.f32.mrb[0].mxu0
        %v2474 = vpop.f32.mrb[0].mxu0
        %v2475 = vadd.f32 %v2363, %v2474
        %v2476 = vpop.f32.mrb[0].mxu0
        %2477 = vmatprep.mubr.bf16.mxu0 0
        %2478 = vmatmul.mubr.bf16.gmra.mrb[0].mxu0 %v2330
        %v2479 = vpop.f32.mrb[0].mxu0
        %v2480 = vadd.f32 %v2363, %v2479
        %v2481 = vpop.f32.mrb[0].mxu0
        %v2482 = vpop.f32.mrb[0].mxu0
        %v2483 = vadd.f32 %v2363, %v2482
        %v2484 = vpop.f32.mrb[0].mxu0
        %2485 = vmatprep.mubr.bf16.mxu0 0
        %2486 = vmatmul.mubr.bf16.gmra.mrb[0].mxu0 %v2331
        %v2487 = vpop.f32.mrb[0].mxu0
        %v2488 = vadd.f32 %v2363, %v2487
        %v2489 = vpop.f32.mrb[0].mxu0
        %v2490 = vpop.f32.mrb[0].mxu0
        %v2491 = vadd.f32 %v2363, %v2490
        %v2492 = vpop.f32.mrb[0].mxu0
        %2493 = vmatprep.mubr.bf16.mxu0 0
        %2494 = vmatmul.mubr.bf16.gmra.mrb[0].mxu0 %v2332
        %v2495 = vpop.f32.mrb[0].mxu0
        %v2496 = vadd.f32 %v2363, %v2495
        %v2497 = vpop.f32.mrb[0].mxu0
        %v2498 = vpop.f32.mrb[0].mxu0
        %v2499 = vadd.f32 %v2363, %v2498
        %v2500 = vpop.f32.mrb[0].mxu0
        %2501 = vmatprep.mubr.bf16.mxu0 0
        %2502 = vmatmul.mubr.bf16.gmra.mrb[0].mxu0 %v2333
        %v2503 = vpop.f32.mrb[0].mxu0
        %v2504 = vadd.f32 %v2363, %v2503
        %v2505 = vpop.f32.mrb[0].mxu0
        %v2506 = vpop.f32.mrb[0].mxu0
        %v2507 = vadd.f32 %v2363, %v2506
        %v2508 = vpop.f32.mrb[0].mxu0
        %2509 = vmatprep.mubr.bf16.mxu0 0
        %2510 = vmatmul.mubr.bf16.gmra.mrb[0].mxu0 %v2334
        %v2511 = vpop.f32.mrb[0].mxu0
        %v2512 = vadd.f32 %v2363, %v2511
        %v2513 = vpop.f32.mrb[0].mxu0
        %v2514 = vpop.f32.mrb[0].mxu0
        %v2515 = vadd.f32 %v2363, %v2514
        %v2516 = vpop.f32.mrb[0].mxu0
        %2517 = vmatprep.mubr.bf16.mxu0 0
        %2518 = vmatmul.mubr.bf16.gmra.mrb[0].mxu0 %v2335
        %v2519 = vpop.f32.mrb[0].mxu0
        %v2520 = vadd.f32 %v2363, %v2519
        %v2521 = vpop.f32.mrb[0].mxu0
        %v2522 = vpop.f32.mrb[0].mxu0
        %v2523 = vadd.f32 %v2363, %v2522
        %v2524 = vpop.f32.mrb[0].mxu0
        %2525 = vmatprep.mubr.bf16.mxu0 0
        %2526 = vmatmul.mubr.bf16.gmra.mrb[0].mxu0 %v2336
        %v2527 = vpop.f32.mrb[0].mxu0
        %v2528 = vadd.f32 %v2363, %v2527
        %v2529 = vpop.f32.mrb[0].mxu0
        %v2530 = vpop.f32.mrb[0].mxu0
        %v2531 = vadd.f32 %v2363, %v2530
        %v2532 = vpop.f32.mrb[0].mxu0
        %2533 = vmatprep.mubr.bf16.mxu0 0
        %2534 = vmatmul.mubr.bf16.gmra.mrb[0].mxu0 %v2337
        %v2535 = vpop.f32.mrb[0].mxu0
        %v2536 = vadd.f32 %v2363, %v2535
        %v2537 = vpop.f32.mrb[0].mxu0
        %v2538 = vpop.f32.mrb[0].mxu0
        %v2539 = vadd.f32 %v2363, %v2538
        %v2540 = vpop.f32.mrb[0].mxu0
        %2541 = vmatprep.mubr.bf16.mxu0 0
        %2542 = vmatmul.mubr.bf16.gmra.mrb[0].mxu0 %v2338
        %v2543 = vpop.f32.mrb[0].mxu0
        %v2544 = vadd.f32 %v2363, %v2543
        %v2545 = vpop.f32.mrb[0].mxu0
        %v2546 = vpop.f32.mrb[0].mxu0
        %v2547 = vadd.f32 %v2363, %v2546
        %v2548 = vpop.f32.mrb[0].mxu0
        %2549 = vmatprep.mubr.bf16.mxu0 0
        %2550 = vmatmul.mubr.bf16.gmra.mrb[0].mxu0 %v2339
        %v2551 = vpop.f32.mrb[0].mxu0
        %v2552 = vadd.f32 %v2363, %v2551
        %v2553 = vpop.f32.mrb[0].mxu0
        %v2554 = vpop.f32.mrb[0].mxu0
        %v2555 = vadd.f32 %v2363, %v2554
        %v2556 = vpop.f32.mrb[0].mxu0
        %2557 = vmatprep.mubr.bf16.mxu0 0
        %2558 = vmatmul.mubr.bf16.gmra.mrb[0].mxu0 %v2340
        %v2559 = vpop.f32.mrb[0].mxu0
        %v2560 = vadd.f32 %v2363, %v2559
        %v2561 = vpop.f32.mrb[0].mxu0
        %v2562 = vpop.f32.mrb[0].mxu0
        %v2563 = vadd.f32 %v2363, %v2562
        %v2564 = vpop.f32.mrb[0].mxu0
        %2565 = vmatprep.mubr.bf16.mxu0 0
        %2566 = vmatmul.mubr.bf16.gmra.mrb[0].mxu0 %v2341
        %v2567 = vpop.f32.mrb[0].mxu0
        %v2568 = vadd.f32 %v2363, %v2567
        %v2569 = vpop.f32.mrb[0].mxu0
        %v2570 = vpop.f32.mrb[0].mxu0
        %v2571 = vadd.f32 %v2363, %v2570
        %v2572 = vpop.f32.mrb[0].mxu0
        %2573 = vdwg.mxu0
        %v2574 = vld [vmem:[%s398] sm:$0xff]
        %v2575 = vld [vmem:[%s398 + $0x8] sm:$0xff]
        %v2576 = vld [vmem:[%s398 + $0x10] sm:$0xff]
        %v2577 = vld [vmem:[%s398 + $0x18] sm:$0xff]
        %v2578 = vld [vmem:[%s398 + $0x20] sm:$0xff]
        %v2579 = vld [vmem:[%s398 + $0x28] sm:$0xff]
        %v2580 = vld [vmem:[%s398 + $0x30] sm:$0xff]
        %v2581 = vld [vmem:[%s398 + $0x38] sm:$0xff]
        %v2582 = vld [vmem:[%s398 + $0x40] sm:$0xff]
        %v2583 = vld [vmem:[%s398 + $0x48] sm:$0xff]
        %v2584 = vld [vmem:[%s398 + $0x50] sm:$0xff]
        %v2585 = vld [vmem:[%s398 + $0x58] sm:$0xff]
        %v2586 = vld [vmem:[%s398 + $0x60] sm:$0xff]
        %v2587 = vld [vmem:[%s398 + $0x68] sm:$0xff]
        %v2588 = vld [vmem:[%s398 + $0x70] sm:$0xff]
        %v2589 = vld [vmem:[%s398 + $0x78] sm:$0xff]
        %v2590 = vld [vmem:[%s398 + $0x80] sm:$0xff]
        %v2591 = vld [vmem:[%s398 + $0x88] sm:$0xff]
        %v2592 = vld [vmem:[%s398 + $0x90] sm:$0xff]
        %v2593 = vld [vmem:[%s398 + $0x98] sm:$0xff]
        %v2594 = vld [vmem:[%s398 + $0xa0] sm:$0xff]
        %v2595 = vld [vmem:[%s398 + $0xa8] sm:$0xff]
        %v2596 = vld [vmem:[%s398 + $0xb0] sm:$0xff]
        %v2597 = vld [vmem:[%s398 + $0xb8] sm:$0xff]
        %v2598 = vld [vmem:[%s398 + $0xc0] sm:$0xff]
        %v2599 = vld [vmem:[%s398 + $0xc8] sm:$0xff]
        %v2600 = vld [vmem:[%s398 + $0xd0] sm:$0xff]
        %v2601 = vld [vmem:[%s398 + $0xd8] sm:$0xff]
        %v2602 = vld [vmem:[%s398 + $0xe0] sm:$0xff]
        %v2603 = vld [vmem:[%s398 + $0xe8] sm:$0xff]
        %v2604 = vld [vmem:[%s398 + $0xf0] sm:$0xff]
        %v2605 = vld [vmem:[%s398 + $0xf8] sm:$0xff]
        %v2606 = vadd.f32 %v2448, %v2574
        %v2607 = vadd.f32 %v2451, %v2575
        %v2608 = vadd.f32 %v2456, %v2576
        %v2609 = vadd.f32 %v2459, %v2577
        %v2610 = vadd.f32 %v2464, %v2578
        %v2611 = vadd.f32 %v2467, %v2579
        %v2612 = vadd.f32 %v2472, %v2580
        %v2613 = vadd.f32 %v2475, %v2581
        %v2614 = vadd.f32 %v2480, %v2582
        %v2615 = vadd.f32 %v2483, %v2583
        %v2616 = vadd.f32 %v2488, %v2584
        %v2617 = vadd.f32 %v2491, %v2585
        %v2618 = vadd.f32 %v2496, %v2586
        %v2619 = vadd.f32 %v2499, %v2587
        %v2620 = vadd.f32 %v2504, %v2588
        %v2621 = vadd.f32 %v2507, %v2589
        %v2622 = vadd.f32 %v2512, %v2590
        %v2623 = vadd.f32 %v2515, %v2591
        %v2624 = vadd.f32 %v2520, %v2592
        %v2625 = vadd.f32 %v2523, %v2593
        %v2626 = vadd.f32 %v2528, %v2594
        %v2627 = vadd.f32 %v2531, %v2595
        %v2628 = vadd.f32 %v2536, %v2596
        %v2629 = vadd.f32 %v2539, %v2597
        %v2630 = vadd.f32 %v2544, %v2598
        %v2631 = vadd.f32 %v2547, %v2599
        %v2632 = vadd.f32 %v2552, %v2600
        %v2633 = vadd.f32 %v2555, %v2601
        %v2634 = vadd.f32 %v2560, %v2602
        %v2635 = vadd.f32 %v2563, %v2603
        %v2636 = vadd.f32 %v2568, %v2604
        %v2637 = vadd.f32 %v2571, %v2605
        %2638 = vst [vmem:[%s448] sm:$0xff] %v2606
        %2639 = vst [vmem:[%s448 + $0x8] sm:$0xff] %v2607
        %2640 = vst [vmem:[%s448 + $0x10] sm:$0xff] %v2608
        %2641 = vst [vmem:[%s448 + $0x18] sm:$0xff] %v2609
        %2642 = vst [vmem:[%s448 + $0x20] sm:$0xff] %v2610
        %2643 = vst [vmem:[%s448 + $0x28] sm:$0xff] %v2611
        %2644 = vst [vmem:[%s448 + $0x30] sm:$0xff] %v2612
        %2645 = vst [vmem:[%s448 + $0x38] sm:$0xff] %v2613
        %2646 = vst [vmem:[%s448 + $0x40] sm:$0xff] %v2614
        %2647 = vst [vmem:[%s448 + $0x48] sm:$0xff] %v2615
        %2648 = vst [vmem:[%s448 + $0x50] sm:$0xff] %v2616
        %2649 = vst [vmem:[%s448 + $0x58] sm:$0xff] %v2617
        %2650 = vst [vmem:[%s448 + $0x60] sm:$0xff] %v2618
        %2651 = vst [vmem:[%s448 + $0x68] sm:$0xff] %v2619
        %2652 = vst [vmem:[%s448 + $0x70] sm:$0xff] %v2620
        %2653 = vst [vmem:[%s448 + $0x78] sm:$0xff] %v2621
        %2654 = vst [vmem:[%s448 + $0x80] sm:$0xff] %v2622
        %2655 = vst [vmem:[%s448 + $0x88] sm:$0xff] %v2623
        %2656 = vst [vmem:[%s448 + $0x90] sm:$0xff] %v2624
        %2657 = vst [vmem:[%s448 + $0x98] sm:$0xff] %v2625
        %2658 = vst [vmem:[%s448 + $0xa0] sm:$0xff] %v2626
        %2659 = vst [vmem:[%s448 + $0xa8] sm:$0xff] %v2627
        %2660 = vst [vmem:[%s448 + $0xb0] sm:$0xff] %v2628
        %2661 = vst [vmem:[%s448 + $0xb8] sm:$0xff] %v2629
        %2662 = vst [vmem:[%s448 + $0xc0] sm:$0xff] %v2630
        %2663 = vst [vmem:[%s448 + $0xc8] sm:$0xff] %v2631
        %2664 = vst [vmem:[%s448 + $0xd0] sm:$0xff] %v2632
        %2665 = vst [vmem:[%s448 + $0xd8] sm:$0xff] %v2633
        %2666 = vst [vmem:[%s448 + $0xe0] sm:$0xff] %v2634
        %2667 = vst [vmem:[%s448 + $0xe8] sm:$0xff] %v2635
        %2668 = vst [vmem:[%s448 + $0xf0] sm:$0xff] %v2636
        %2669 = vst [vmem:[%s448 + $0xf8] sm:$0xff] %v2637
        %s2670 = sand.u32 %s274, 1
        %s2671 = scalar_lea.sflag [#allocation6], %s2670
        %s2672 = sand.u32 %s274, 1
        %s2673 = smul.addr %s2672, 256
        %s2674 = scalar_lea.vmem [#allocation12], %s2673
        // Predicated region
        $region88: #{tpu_custom_call.1} parent=63 // pred_check
          %p2675 = pneg %p284
        $region89: #{tpu_custom_call.1} parent=63 // pred_check_branch
          %2677 = sbr.rel (%p2675) target = $region91
        $region90: #{tpu_custom_call.1} parent=63 // pred_region
          %s2679 = ssub.s32 4096, 4096
          %2680 = vsyncadd %s2671, %s2679
          %s2681 = smul.addr %s30, 32
          %s2682 = smul.addr %s2681, 128
          %s2683 = scalar_lea.hbm %s11, %s2682
          %s2684 = sshll.u32 %s2674, 4
          %s2685 = int_to_ptr.vmem [resolvable:$true] %s2684
          %2690 = dma.vmem_to_hbm [thread:$0]  %s2685, 4096, %s2683, %s2671, 128, 128, 8
        $region91: #{tpu_custom_call.1} parent=63 // pred_fallthru
          _
      $region64: #{tpu_custom_call.1} parent=5 // pred_fallthru
        _
      %p2691 = scmp.le.s32.totalorder 2, %s25
      // Predicated region
      $region92: #{tpu_custom_call.1} parent=5 // pred_check
        %p2692 = pneg %p2691
      $region93: #{tpu_custom_call.1} parent=5 // pred_check_branch
        %2694 = sbr.rel (%p2692) target = $region95
      $region94: #{tpu_custom_call.1} parent=5 // pred_region
        %s2695 = ssub.s32 %s25, 2
        // Predicated region
        $region96: #{tpu_custom_call.1} parent=94 // pred_check
          %p2696 = pneg %p290
        $region97: #{tpu_custom_call.1} parent=94 // pred_check_branch
          %2698 = sbr.rel (%p2696) target = $region99
        $region98: #{tpu_custom_call.1} parent=94 // pred_region
          %s2699 = sand.u32 %s275, 1
          %s2700 = scalar_lea.sflag [#allocation6], %s2699
          %s2701 = sand.u32 %s275, 1
          %s2702 = smul.addr %s2701, 256
          %s2703 = scalar_lea.vmem [#allocation12], %s2702
          %2704 = dma.done %s2700, 4096
        $region99: #{tpu_custom_call.1} parent=94 // pred_fallthru
          _
      $region95: #{tpu_custom_call.1} parent=5 // pred_fallthru
        _
    $region6: #{tpu_custom_call.1} parent=1 // loop_footer
      %s29 = sadd.s32 1, %s25
    $region7: #{tpu_custom_call.1} parent=1 // loop_footer_branch
      %24 = sbr.rel target = $region3
    $region8: #{tpu_custom_call.1} parent=1 // loop_exit
      _
    %2705 = vsyncpa [#allocation5], 1
    %s2706 = scalar_lea.sflag [#allocation5], 1
    %2707 = vsyncpa %s2706, 1
    %2708 = vsyncpa [#allocation8], 1
    %2709 = vsyncpa [#allocation11], 1
    %2710 = vsyncpa [#allocation6], 1
    %s2711 = scalar_lea.sflag [#allocation6], 1
    %2712 = vsyncpa %s2711, 1

</llo_original>
